<compile_context>
chip_gen: v7x
topology: tpu7x:2x2x1
jax: 0.10.0
libtpu: 0.0.40
codegen_flags: <defaults>
</compile_context>

<pallas_src>
import jax
import jax.numpy as jnp
from jax import lax
from jax.experimental import pallas as pl
from jax.experimental.pallas import tpu as pltpu


def _ceil_to(x, m):
    return (x + m - 1) // m * m


# --------------------------------------------------------------------------
# Pallas kernels
# --------------------------------------------------------------------------
def conv_relu_pool_kernel(x_ref, w_ref, b_ref, o_ref):
    """Fused conv-as-matmul + 2x2 max-pool + bias + ReLU for one row tile.

    x_ref : (1, 4*TM, K)  4 pool-corner im2col row blocks, stacked along rows
    w_ref : (K, Cout)     conv weight as a matrix (tap-major rows)
    b_ref : (1, Cout)
    o_ref : (TM, Cout)
    """
    tm = o_ref.shape[0]
    # Single MXU matmul covering all four pooling corners; W is pushed once.
    y = jnp.dot(x_ref[0], w_ref[...], preferred_element_type=jnp.float32)
    # Max over the 4 corner chunks first (TM is a multiple of 8 -> aligned
    # sublane slices), then bias + ReLU once (exact rewrite of the original
    # per-corner relu(x@w+b) followed by max).
    m = jnp.maximum(jnp.maximum(y[0 * tm:1 * tm, :], y[1 * tm:2 * tm, :]),
                    jnp.maximum(y[2 * tm:3 * tm, :], y[3 * tm:4 * tm, :]))
    o_ref[...] = jnp.maximum(m + b_ref[...], 0.0)


def mlp_head_kernel(x_ref, w1_ref, b1_ref, w2_ref, b2_ref, w3_ref, b3_ref, o_ref):
    """relu(x@w1+b1) -> relu(.@w2+b2) -> .@w3+b3 -> log_softmax(axis=1)."""
    h1 = jnp.maximum(
        jnp.dot(x_ref[...], w1_ref[...], preferred_element_type=jnp.float32)
        + b1_ref[...], 0.0)
    h2 = jnp.maximum(
        jnp.dot(h1, w2_ref[...], preferred_element_type=jnp.float32)
        + b2_ref[...], 0.0)
    logits = (jnp.dot(h2, w3_ref[...], preferred_element_type=jnp.float32)
              + b3_ref[...])
    m = jnp.max(logits, axis=1, keepdims=True)
    lse = m + jnp.log(jnp.sum(jnp.exp(logits - m), axis=1, keepdims=True))
    o_ref[...] = logits - lse


# --------------------------------------------------------------------------
# Wrappers
# --------------------------------------------------------------------------
def conv_relu_pool(x_nhwc, w_mat, b_mat, *, tile_m=512):
    """Conv2d(k=3, s=1, p=2) + ReLU + MaxPool2d(2,2) for one layer.

    x_nhwc : (B, H, W, Cin) float32
    w_mat  : (9*Cin, Cout)  weight matrix, rows ordered (ky, kx, cin)
    b_mat  : (1, Cout)
    returns: (B, Hp, Wp, Cout), Hp = (H+2)//2, Wp = (W+2)//2
    """
    B, H, W, Cin = x_nhwc.shape
    K, Cout = w_mat.shape
    assert K == 9 * Cin

    xp = jnp.pad(x_nhwc, ((0, 0), (2, 2), (2, 2), (0, 0)))
    Hc, Wc = H + 2, W + 2              # conv output size (pad=2, k=3, s=1)
    Hp, Wp = Hc // 2, Wc // 2          # pooled size (floor, matches MaxPool2d)
    M = B * Hp * Wp

    def corner(ry, rx):
        cols = []
        for dy in range(3):
            for dx in range(3):
                sl = xp[:, ry + dy::2, rx + dx::2, :][:, :Hp, :Wp, :]
                cols.append(sl)
        return jnp.concatenate(cols, axis=-1).reshape(M, K)  # (M, 9*Cin)

    corners = jnp.stack(
        [corner(0, 0), corner(0, 1), corner(1, 0), corner(1, 1)], axis=0)  # (4,M,K)

    TM = min(tile_m, _ceil_to(M, 8))
    M_pad = _ceil_to(M, TM)
    G = M_pad // TM
    if M_pad != M:
        corners = jnp.pad(corners, ((0, 0), (0, M_pad - M), (0, 0)))
    # (4, G, TM, K) -> (G, 4*TM, K): every grid tile sees its four corner row
    # blocks as one contiguous slab so the kernel can do a single matmul.
    x_tiles = (corners.reshape(4, G, TM, K)
                      .transpose(1, 0, 2, 3)
                      .reshape(G, 4 * TM, K))

    out = pl.pallas_call(
        conv_relu_pool_kernel,
        out_shape=jax.ShapeDtypeStruct((M_pad, Cout), jnp.float32),
        grid=(G,),
        in_specs=[
            pl.BlockSpec((1, 4 * TM, K), lambda i: (i, 0, 0)),
            pl.BlockSpec((K, Cout), lambda i: (0, 0)),   # weight: resident
            pl.BlockSpec((1, Cout), lambda i: (0, 0)),   # bias:   resident
        ],
        out_specs=pl.BlockSpec((TM, Cout), lambda i: (i, 0)),
        compiler_params=pltpu.CompilerParams(
            dimension_semantics=("parallel",)),
    )(x_tiles, w_mat, b_mat)
    return out[:M].reshape(B, Hp, Wp, Cout)


def mlp_head(x, w1, b1, w2, b2, w3, b3, *, tile_b=128):
    """x: (B, 800); weights pre-transposed to (in, out); biases (1, out)."""
    B, D = x.shape
    H1 = w1.shape[1]
    H2 = w2.shape[1]
    O = w3.shape[1]

    TB = min(tile_b, _ceil_to(B, 8))
    B_pad = _ceil_to(B, TB)
    if B_pad != B:
        x = jnp.pad(x, ((0, B_pad - B), (0, 0)))
    G = B_pad // TB

    # Note: on v6e/v7x, casting x/w1/w2 to bf16 (keeping f32 accumulation)
    # roughly doubles MXU throughput at large batch; kept f32 here to preserve
    # the strict f32 reference tolerance.
    out = pl.pallas_call(
        mlp_head_kernel,
        out_shape=jax.ShapeDtypeStruct((B_pad, O), jnp.float32),
        grid=(G,),
        in_specs=[
            pl.BlockSpec((TB, D), lambda i: (i, 0)),
            pl.BlockSpec((D, H1), lambda i: (0, 0)),
            pl.BlockSpec((1, H1), lambda i: (0, 0)),
            pl.BlockSpec((H1, H2), lambda i: (0, 0)),
            pl.BlockSpec((1, H2), lambda i: (0, 0)),
            pl.BlockSpec((H2, O), lambda i: (0, 0)),
            pl.BlockSpec((1, O), lambda i: (0, 0)),
        ],
        out_specs=pl.BlockSpec((TB, O), lambda i: (i, 0)),
        compiler_params=pltpu.CompilerParams(
            dimension_semantics=("parallel",)),
    )(x, w1, b1, w2, b2, w3, b3)
    return out[:B]


def prepare_params(p):
    """One-time weight layout prep (run OUTSIDE the jitted forward)."""
    def conv_w(w_pt):
        cout, cin = w_pt.shape[0], w_pt.shape[1]
        # row ordering (ky, kx, cin) matches the im2col column ordering
        return jnp.transpose(w_pt, (2, 3, 1, 0)).reshape(9 * cin, cout)

    return {
        "w_c1": conv_w(p["w_c1"]), "b_c1": p["b_c1"].reshape(1, -1),
        "w_c2": conv_w(p["w_c2"]), "b_c2": p["b_c2"].reshape(1, -1),
        "w_c3": conv_w(p["w_c3"]), "b_c3": p["b_c3"].reshape(1, -1),
        "w_fc1": p["w_fc1"].T, "b_fc1": p["b_fc1"].reshape(1, -1),
        "w_fc2": p["w_fc2"].T, "b_fc2": p["b_fc2"].reshape(1, -1),
        "w_fc3": p["w_fc3"].T, "b_fc3": p["b_fc3"].reshape(1, -1),
    }


def color_net_cnn(x_nchw, pp):
    """Full forward pass. x_nchw: (B, 3, 28, 28) -> (B, output) log-probs."""
    x = jnp.transpose(x_nchw, (0, 2, 3, 1))                     # NCHW -> NHWC
    x = conv_relu_pool(x, pp["w_c1"], pp["b_c1"])               # (B, 15, 15, 8)
    x = conv_relu_pool(x, pp["w_c2"], pp["b_c2"])               # (B, 8, 8, 16)
    x = conv_relu_pool(x, pp["w_c3"], pp["b_c3"])               # (B, 5, 5, 32)
    # PyTorch flattens NCHW => transpose back before reshape so the fc1 weight
    # layout (out=1000, in=C*H*W=800) is honored exactly.
    x = jnp.transpose(x, (0, 3, 1, 2)).reshape(x.shape[0], -1)  # (B, 800)
    return mlp_head(x, pp["w_fc1"], pp["b_fc1"], pp["w_fc2"], pp["b_fc2"],
                    pp["w_fc3"], pp["b_fc3"])


# --------------------------------------------------------------------------
# Deterministic parameter init (PyTorch-format shapes) + pure-JAX reference
# --------------------------------------------------------------------------
def init_params(key, output=10):
    ks = jax.random.split(key, 12)

    def w(k, shape, fan_in):
        return jax.random.normal(k, shape, jnp.float32) / jnp.sqrt(
            jnp.float32(fan_in))

    p = {}
    p["w_c1"] = w(ks[0], (8, 3, 3, 3), 3 * 9)
    p["b_c1"] = w(ks[1], (8,), 3 * 9)
    p["w_c2"] = w(ks[2], (16, 8, 3, 3), 8 * 9)
    p["b_c2"] = w(ks[3], (16,), 8 * 9)
    p["w_c3"] = w(ks[4], (32, 16, 3, 3), 16 * 9)
    p["b_c3"] = w(ks[5], (32,), 16 * 9)
    p["w_fc1"] = w(ks[6], (1000, 800), 800)
    p["b_fc1"] = w(ks[7], (1000,), 800)
    p["w_fc2"] = w(ks[8], (64, 1000), 1000)
    p["b_fc2"] = w(ks[9], (64,), 1000)
    p["w_fc3"] = w(ks[10], (output, 64), 64)
    p["b_fc3"] = w(ks[11], (output,), 64)
    return p


def reference_forward(x_nchw, p):
    def conv_block(x, w, b):
        y = lax.conv_general_dilated(
            x, w, window_strides=(1, 1), padding=((2, 2), (2, 2)),
            dimension_numbers=("NCHW", "OIHW", "NCHW"))
        y = jnp.maximum(y + b[None, :, None, None], 0.0)
        return lax.reduce_window(y, -jnp.inf, lax.max,
                                 (1, 1, 2, 2), (1, 1, 2, 2), "VALID")

    y = conv_block(x_nchw, p["w_c1"], p["b_c1"])
    y = conv_block(y, p["w_c2"], p["b_c2"])
    y = conv_block(y, p["w_c3"], p["b_c3"])
    y = y.reshape(y.shape[0], -1)
    y = jnp.maximum(y @ p["w_fc1"].T + p["b_fc1"], 0.0)
    y = jnp.maximum(y @ p["w_fc2"].T + p["b_fc2"], 0.0)
    y = y @ p["w_fc3"].T + p["b_fc3"]
    return jax.nn.log_softmax(y, axis=1)


# --------------------------------------------------------------------------
if __name__ == "__main__":
    key = jax.random.PRNGKey(0)
    kx, kp = jax.random.split(key)
    x = jax.random.normal(kx, (2, 3, 28, 28), jnp.float32)   # NCHW, like PyTorch
    params = init_params(kp, output=10)
    prepared = prepare_params(params)       # one-time layout prep, outside jit

    fwd = jax.jit(color_net_cnn)
    out = jax.block_until_ready(fwd(x, prepared))
    assert out.shape == (2, 10), out.shape

    ref = reference_forward(x, params)
    max_err = float(jnp.max(jnp.abs(out - ref)))
    assert jnp.allclose(out, ref, atol=2e-4, rtol=2e-4), max_err

    print("KERNEL_OK")
</pallas_src>

<mosaic_0001>
module attributes {stable_mosaic.version = 11 : i64} {
  func.func @conv_relu_pool_kernel(%arg0: i32, %arg1: memref<1x1824x27xf32, #tpu.memory_space<vmem>>, %arg2: memref<27x8xf32, #tpu.memory_space<vmem>>, %arg3: memref<1x8xf32, #tpu.memory_space<vmem>>, %arg4: memref<456x8xf32, #tpu.memory_space<vmem>>) attributes {dimension_semantics = [#tpu.dimension_semantics<parallel>], iteration_bounds = array<i64: 1>, scalar_prefetch = 0 : i64, scratch_operands = 0 : i64, tpu.core_type = #tpu.core_type<tc>, window_params = [{transform_indices = @transform_0, window_bounds = array<i64: 1, 1824, 27>}, {pipeline_mode = #tpu.pipeline_mode<synchronous>, transform_indices = @transform_1, window_bounds = array<i64: 27, 8>}, {pipeline_mode = #tpu.pipeline_mode<synchronous>, transform_indices = @transform_2, window_bounds = array<i64: 1, 8>}, {transform_indices = @transform_3, window_bounds = array<i64: 456, 8>}]} {
    %c0 = arith.constant 0 : index
    %c0_0 = arith.constant 0 : index
    %c0_1 = arith.constant 0 : index
    %0 = vector.load %arg1[%c0, %c0_0, %c0_1] : memref<1x1824x27xf32, #tpu.memory_space<vmem>>, vector<1x1824x27xf32>
    %1 = vector.shape_cast %0 : vector<1x1824x27xf32> to vector<1824x27xf32>
    %c0_2 = arith.constant 0 : index
    %c0_3 = arith.constant 0 : index
    %2 = vector.load %arg2[%c0_2, %c0_3] : memref<27x8xf32, #tpu.memory_space<vmem>>, vector<27x8xf32>
    %cst = arith.constant dense<0.000000e+00> : vector<1824x8xf32>
    %3 = tpu.matmul %1, %2, %cst {dimension_numbers = #tpu.dot_dimension_numbers<[1], [0], [0], [1], [0, 0, 1, 1], [], []>} : vector<1824x27xf32>, vector<27x8xf32>, vector<1824x8xf32> -> vector<1824x8xf32>
    %4 = vector.extract_strided_slice %3 {offsets = [0, 0], sizes = [456, 8], strides = [1, 1]} : vector<1824x8xf32> to vector<456x8xf32>
    %5 = vector.extract_strided_slice %3 {offsets = [456, 0], sizes = [456, 8], strides = [1, 1]} : vector<1824x8xf32> to vector<456x8xf32>
    %6 = arith.maximumf %4, %5 : vector<456x8xf32>
    %7 = vector.extract_strided_slice %3 {offsets = [912, 0], sizes = [456, 8], strides = [1, 1]} : vector<1824x8xf32> to vector<456x8xf32>
    %8 = vector.extract_strided_slice %3 {offsets = [1368, 0], sizes = [456, 8], strides = [1, 1]} : vector<1824x8xf32> to vector<456x8xf32>
    %9 = arith.maximumf %7, %8 : vector<456x8xf32>
    %10 = arith.maximumf %6, %9 : vector<456x8xf32>
    %c0_4 = arith.constant 0 : index
    %c0_5 = arith.constant 0 : index
    %11 = vector.load %arg3[%c0_4, %c0_5] : memref<1x8xf32, #tpu.memory_space<vmem>>, vector<1x8xf32>
    %12 = vector.broadcast %11 : vector<1x8xf32> to vector<456x8xf32>
    %13 = arith.addf %10, %12 : vector<456x8xf32>
    %cst_6 = arith.constant 0.000000e+00 : f32
    %14 = vector.broadcast %cst_6 : f32 to vector<456x8xf32>
    %15 = arith.maximumf %13, %14 : vector<456x8xf32>
    %c0_7 = arith.constant 0 : index
    %c0_8 = arith.constant 0 : index
    %16 = vector.load %arg4[%c0_7, %c0_8] : memref<456x8xf32, #tpu.memory_space<vmem>>, vector<456x8xf32>
    tpu.vector_store %arg4[%c0_7, %c0_8], %15 {strides = array<i32>} : memref<456x8xf32, #tpu.memory_space<vmem>>, vector<456x8xf32>,
    return
  }
  func.func @transform_0(%arg0: i32) -> (i32, i32, i32) {
    %c0_i32 = arith.constant 0 : i32
    %c0_i32_0 = arith.constant 0 : i32
    %c0_i32_1 = arith.constant 0 : i32
    return %arg0, %c0_i32, %c0_i32_0 : i32, i32, i32
  }
  func.func @transform_1(%arg0: i32) -> (i32, i32) {
    %c0_i32 = arith.constant 0 : i32
    %c0_i32_0 = arith.constant 0 : i32
    %c0_i32_1 = arith.constant 0 : i32
    return %c0_i32, %c0_i32_0 : i32, i32
  }
  func.func @transform_2(%arg0: i32) -> (i32, i32) {
    %c0_i32 = arith.constant 0 : i32
    %c0_i32_0 = arith.constant 0 : i32
    %c0_i32_1 = arith.constant 0 : i32
    return %c0_i32, %c0_i32_0 : i32, i32
  }
  func.func @transform_3(%arg0: i32) -> (i32, i32) {
    %c0_i32 = arith.constant 0 : i32
    %c0_i32_0 = arith.constant 0 : i32
    return %arg0, %c0_i32 : i32, i32
  }
}

module attributes {stable_mosaic.version = 11 : i64} {
  func.func @conv_relu_pool_kernel(%arg0: i32, %arg1: memref<1x512x72xf32, #tpu.memory_space<vmem>>, %arg2: memref<72x16xf32, #tpu.memory_space<vmem>>, %arg3: memref<1x16xf32, #tpu.memory_space<vmem>>, %arg4: memref<128x16xf32, #tpu.memory_space<vmem>>) attributes {dimension_semantics = [#tpu.dimension_semantics<parallel>], iteration_bounds = array<i64: 1>, scalar_prefetch = 0 : i64, scratch_operands = 0 : i64, tpu.core_type = #tpu.core_type<tc>, window_params = [{transform_indices = @transform_0, window_bounds = array<i64: 1, 512, 72>}, {pipeline_mode = #tpu.pipeline_mode<synchronous>, transform_indices = @transform_1, window_bounds = array<i64: 72, 16>}, {pipeline_mode = #tpu.pipeline_mode<synchronous>, transform_indices = @transform_2, window_bounds = array<i64: 1, 16>}, {transform_indices = @transform_3, window_bounds = array<i64: 128, 16>}]} {
    %c0 = arith.constant 0 : index
    %c0_0 = arith.constant 0 : index
    %c0_1 = arith.constant 0 : index
    %0 = vector.load %arg1[%c0, %c0_0, %c0_1] : memref<1x512x72xf32, #tpu.memory_space<vmem>>, vector<1x512x72xf32>
    %1 = vector.shape_cast %0 : vector<1x512x72xf32> to vector<512x72xf32>
    %c0_2 = arith.constant 0 : index
    %c0_3 = arith.constant 0 : index
    %2 = vector.load %arg2[%c0_2, %c0_3] : memref<72x16xf32, #tpu.memory_space<vmem>>, vector<72x16xf32>
    %cst = arith.constant dense<0.000000e+00> : vector<512x16xf32>
    %3 = tpu.matmul %1, %2, %cst {dimension_numbers = #tpu.dot_dimension_numbers<[1], [0], [0], [1], [0, 0, 1, 1], [], []>} : vector<512x72xf32>, vector<72x16xf32>, vector<512x16xf32> -> vector<512x16xf32>
    %4 = vector.extract_strided_slice %3 {offsets = [0, 0], sizes = [128, 16], strides = [1, 1]} : vector<512x16xf32> to vector<128x16xf32>
    %5 = vector.extract_strided_slice %3 {offsets = [128, 0], sizes = [128, 16], strides = [1, 1]} : vector<512x16xf32> to vector<128x16xf32>
    %6 = arith.maximumf %4, %5 : vector<128x16xf32>
    %7 = vector.extract_strided_slice %3 {offsets = [256, 0], sizes = [128, 16], strides = [1, 1]} : vector<512x16xf32> to vector<128x16xf32>
    %8 = vector.extract_strided_slice %3 {offsets = [384, 0], sizes = [128, 16], strides = [1, 1]} : vector<512x16xf32> to vector<128x16xf32>
    %9 = arith.maximumf %7, %8 : vector<128x16xf32>
    %10 = arith.maximumf %6, %9 : vector<128x16xf32>
    %c0_4 = arith.constant 0 : index
    %c0_5 = arith.constant 0 : index
    %11 = vector.load %arg3[%c0_4, %c0_5] : memref<1x16xf32, #tpu.memory_space<vmem>>, vector<1x16xf32>
    %12 = vector.broadcast %11 : vector<1x16xf32> to vector<128x16xf32>
    %13 = arith.addf %10, %12 : vector<128x16xf32>
    %cst_6 = arith.constant 0.000000e+00 : f32
    %14 = vector.broadcast %cst_6 : f32 to vector<128x16xf32>
    %15 = arith.maximumf %13, %14 : vector<128x16xf32>
    %c0_7 = arith.constant 0 : index
    %c0_8 = arith.constant 0 : index
    %16 = vector.load %arg4[%c0_7, %c0_8] : memref<128x16xf32, #tpu.memory_space<vmem>>, vector<128x16xf32>
    tpu.vector_store %arg4[%c0_7, %c0_8], %15 {strides = array<i32>} : memref<128x16xf32, #tpu.memory_space<vmem>>, vector<128x16xf32>,
    return
  }
  func.func @transform_0(%arg0: i32) -> (i32, i32, i32) {
    %c0_i32 = arith.constant 0 : i32
    %c0_i32_0 = arith.constant 0 : i32
    %c0_i32_1 = arith.constant 0 : i32
    return %arg0, %c0_i32, %c0_i32_0 : i32, i32, i32
  }
  func.func @transform_1(%arg0: i32) -> (i32, i32) {
    %c0_i32 = arith.constant 0 : i32
    %c0_i32_0 = arith.constant 0 : i32
    %c0_i32_1 = arith.constant 0 : i32
    return %c0_i32, %c0_i32_0 : i32, i32
  }
  func.func @transform_2(%arg0: i32) -> (i32, i32) {
    %c0_i32 = arith.constant 0 : i32
    %c0_i32_0 = arith.constant 0 : i32
    %c0_i32_1 = arith.constant 0 : i32
    return %c0_i32, %c0_i32_0 : i32, i32
  }
  func.func @transform_3(%arg0: i32) -> (i32, i32) {
    %c0_i32 = arith.constant 0 : i32
    %c0_i32_0 = arith.constant 0 : i32
    return %arg0, %c0_i32 : i32, i32
  }
}

module attributes {stable_mosaic.version = 11 : i64} {
  func.func @conv_relu_pool_kernel(%arg0: i32, %arg1: memref<1x224x144xf32, #tpu.memory_space<vmem>>, %arg2: memref<144x32xf32, #tpu.memory_space<vmem>>, %arg3: memref<1x32xf32, #tpu.memory_space<vmem>>, %arg4: memref<56x32xf32, #tpu.memory_space<vmem>>) attributes {dimension_semantics = [#tpu.dimension_semantics<parallel>], iteration_bounds = array<i64: 1>, scalar_prefetch = 0 : i64, scratch_operands = 0 : i64, tpu.core_type = #tpu.core_type<tc>, window_params = [{transform_indices = @transform_0, window_bounds = array<i64: 1, 224, 144>}, {pipeline_mode = #tpu.pipeline_mode<synchronous>, transform_indices = @transform_1, window_bounds = array<i64: 144, 32>}, {pipeline_mode = #tpu.pipeline_mode<synchronous>, transform_indices = @transform_2, window_bounds = array<i64: 1, 32>}, {transform_indices = @transform_3, window_bounds = array<i64: 56, 32>}]} {
    %c0 = arith.constant 0 : index
    %c0_0 = arith.constant 0 : index
    %c0_1 = arith.constant 0 : index
    %0 = vector.load %arg1[%c0, %c0_0, %c0_1] : memref<1x224x144xf32, #tpu.memory_space<vmem>>, vector<1x224x144xf32>
    %1 = vector.shape_cast %0 : vector<1x224x144xf32> to vector<224x144xf32>
    %c0_2 = arith.constant 0 : index
    %c0_3 = arith.constant 0 : index
    %2 = vector.load %arg2[%c0_2, %c0_3] : memref<144x32xf32, #tpu.memory_space<vmem>>, vector<144x32xf32>
    %cst = arith.constant dense<0.000000e+00> : vector<224x32xf32>
    %3 = tpu.matmul %1, %2, %cst {dimension_numbers = #tpu.dot_dimension_numbers<[1], [0], [0], [1], [0, 0, 1, 1], [], []>} : vector<224x144xf32>, vector<144x32xf32>, vector<224x32xf32> -> vector<224x32xf32>
    %4 = vector.extract_strided_slice %3 {offsets = [0, 0], sizes = [56, 32], strides = [1, 1]} : vector<224x32xf32> to vector<56x32xf32>
    %5 = vector.extract_strided_slice %3 {offsets = [56, 0], sizes = [56, 32], strides = [1, 1]} : vector<224x32xf32> to vector<56x32xf32>
    %6 = arith.maximumf %4, %5 : vector<56x32xf32>
    %7 = vector.extract_strided_slice %3 {offsets = [112, 0], sizes = [56, 32], strides = [1, 1]} : vector<224x32xf32> to vector<56x32xf32>
    %8 = vector.extract_strided_slice %3 {offsets = [168, 0], sizes = [56, 32], strides = [1, 1]} : vector<224x32xf32> to vector<56x32xf32>
    %9 = arith.maximumf %7, %8 : vector<56x32xf32>
    %10 = arith.maximumf %6, %9 : vector<56x32xf32>
    %c0_4 = arith.constant 0 : index
    %c0_5 = arith.constant 0 : index
    %11 = vector.load %arg3[%c0_4, %c0_5] : memref<1x32xf32, #tpu.memory_space<vmem>>, vector<1x32xf32>
    %12 = vector.broadcast %11 : vector<1x32xf32> to vector<56x32xf32>
    %13 = arith.addf %10, %12 : vector<56x32xf32>
    %cst_6 = arith.constant 0.000000e+00 : f32
    %14 = vector.broadcast %cst_6 : f32 to vector<56x32xf32>
    %15 = arith.maximumf %13, %14 : vector<56x32xf32>
    %c0_7 = arith.constant 0 : index
    %c0_8 = arith.constant 0 : index
    %16 = vector.load %arg4[%c0_7, %c0_8] : memref<56x32xf32, #tpu.memory_space<vmem>>, vector<56x32xf32>
    tpu.vector_store %arg4[%c0_7, %c0_8], %15 {strides = array<i32>} : memref<56x32xf32, #tpu.memory_space<vmem>>, vector<56x32xf32>,
    return
  }
  func.func @transform_0(%arg0: i32) -> (i32, i32, i32) {
    %c0_i32 = arith.constant 0 : i32
    %c0_i32_0 = arith.constant 0 : i32
    %c0_i32_1 = arith.constant 0 : i32
    return %arg0, %c0_i32, %c0_i32_0 : i32, i32, i32
  }
  func.func @transform_1(%arg0: i32) -> (i32, i32) {
    %c0_i32 = arith.constant 0 : i32
    %c0_i32_0 = arith.constant 0 : i32
    %c0_i32_1 = arith.constant 0 : i32
    return %c0_i32, %c0_i32_0 : i32, i32
  }
  func.func @transform_2(%arg0: i32) -> (i32, i32) {
    %c0_i32 = arith.constant 0 : i32
    %c0_i32_0 = arith.constant 0 : i32
    %c0_i32_1 = arith.constant 0 : i32
    return %c0_i32, %c0_i32_0 : i32, i32
  }
  func.func @transform_3(%arg0: i32) -> (i32, i32) {
    %c0_i32 = arith.constant 0 : i32
    %c0_i32_0 = arith.constant 0 : i32
    return %arg0, %c0_i32 : i32, i32
  }
}

module attributes {stable_mosaic.version = 11 : i64} {
  func.func @mlp_head_kernel(%arg0: i32, %arg1: memref<8x800xf32, #tpu.memory_space<vmem>>, %arg2: memref<800x1000xf32, #tpu.memory_space<vmem>>, %arg3: memref<1x1000xf32, #tpu.memory_space<vmem>>, %arg4: memref<1000x64xf32, #tpu.memory_space<vmem>>, %arg5: memref<1x64xf32, #tpu.memory_space<vmem>>, %arg6: memref<64x10xf32, #tpu.memory_space<vmem>>, %arg7: memref<1x10xf32, #tpu.memory_space<vmem>>, %arg8: memref<8x10xf32, #tpu.memory_space<vmem>>) attributes {dimension_semantics = [#tpu.dimension_semantics<parallel>], iteration_bounds = array<i64: 1>, scalar_prefetch = 0 : i64, scratch_operands = 0 : i64, tpu.core_type = #tpu.core_type<tc>, window_params = [{transform_indices = @transform_0, window_bounds = array<i64: 8, 800>}, {pipeline_mode = #tpu.pipeline_mode<synchronous>, transform_indices = @transform_1, window_bounds = array<i64: 800, 1000>}, {pipeline_mode = #tpu.pipeline_mode<synchronous>, transform_indices = @transform_2, window_bounds = array<i64: 1, 1000>}, {pipeline_mode = #tpu.pipeline_mode<synchronous>, transform_indices = @transform_3, window_bounds = array<i64: 1000, 64>}, {pipeline_mode = #tpu.pipeline_mode<synchronous>, transform_indices = @transform_4, window_bounds = array<i64: 1, 64>}, {pipeline_mode = #tpu.pipeline_mode<synchronous>, transform_indices = @transform_5, window_bounds = array<i64: 64, 10>}, {pipeline_mode = #tpu.pipeline_mode<synchronous>, transform_indices = @transform_6, window_bounds = array<i64: 1, 10>}, {transform_indices = @transform_7, window_bounds = array<i64: 8, 10>}]} {
    %c0 = arith.constant 0 : index
    %c0_0 = arith.constant 0 : index
    %0 = vector.load %arg1[%c0, %c0_0] : memref<8x800xf32, #tpu.memory_space<vmem>>, vector<8x800xf32>
    %c0_1 = arith.constant 0 : index
    %c0_2 = arith.constant 0 : index
    %1 = vector.load %arg2[%c0_1, %c0_2] : memref<800x1000xf32, #tpu.memory_space<vmem>>, vector<800x1000xf32>
    %cst = arith.constant dense<0.000000e+00> : vector<8x1000xf32>
    %2 = tpu.matmul %0, %1, %cst {dimension_numbers = #tpu.dot_dimension_numbers<[1], [0], [0], [1], [0, 0, 1, 1], [], []>} : vector<8x800xf32>, vector<800x1000xf32>, vector<8x1000xf32> -> vector<8x1000xf32>
    %c0_3 = arith.constant 0 : index
    %c0_4 = arith.constant 0 : index
    %3 = vector.load %arg3[%c0_3, %c0_4] : memref<1x1000xf32, #tpu.memory_space<vmem>>, vector<1x1000xf32>
    %4 = vector.broadcast %3 : vector<1x1000xf32> to vector<8x1000xf32>
    %5 = arith.addf %2, %4 : vector<8x1000xf32>
    %cst_5 = arith.constant 0.000000e+00 : f32
    %6 = vector.broadcast %cst_5 : f32 to vector<8x1000xf32>
    %7 = arith.maximumf %5, %6 : vector<8x1000xf32>
    %c0_6 = arith.constant 0 : index
    %c0_7 = arith.constant 0 : index
    %8 = vector.load %arg4[%c0_6, %c0_7] : memref<1000x64xf32, #tpu.memory_space<vmem>>, vector<1000x64xf32>
    %cst_8 = arith.constant dense<0.000000e+00> : vector<8x64xf32>
    %9 = tpu.matmul %7, %8, %cst_8 {dimension_numbers = #tpu.dot_dimension_numbers<[1], [0], [0], [1], [0, 0, 1, 1], [], []>} : vector<8x1000xf32>, vector<1000x64xf32>, vector<8x64xf32> -> vector<8x64xf32>
    %c0_9 = arith.constant 0 : index
    %c0_10 = arith.constant 0 : index
    %10 = vector.load %arg5[%c0_9, %c0_10] : memref<1x64xf32, #tpu.memory_space<vmem>>, vector<1x64xf32>
    %11 = vector.broadcast %10 : vector<1x64xf32> to vector<8x64xf32>
    %12 = arith.addf %9, %11 : vector<8x64xf32>
    %cst_11 = arith.constant 0.000000e+00 : f32
    %13 = vector.broadcast %cst_11 : f32 to vector<8x64xf32>
    %14 = arith.maximumf %12, %13 : vector<8x64xf32>
    %c0_12 = arith.constant 0 : index
    %c0_13 = arith.constant 0 : index
    %15 = vector.load %arg6[%c0_12, %c0_13] : memref<64x10xf32, #tpu.memory_space<vmem>>, vector<64x10xf32>
    %cst_14 = arith.constant dense<0.000000e+00> : vector<8x10xf32>
    %16 = tpu.matmul %14, %15, %cst_14 {dimension_numbers = #tpu.dot_dimension_numbers<[1], [0], [0], [1], [0, 0, 1, 1], [], []>} : vector<8x64xf32>, vector<64x10xf32>, vector<8x10xf32> -> vector<8x10xf32>
    %c0_15 = arith.constant 0 : index
    %c0_16 = arith.constant 0 : index
    %17 = vector.load %arg7[%c0_15, %c0_16] : memref<1x10xf32, #tpu.memory_space<vmem>>, vector<1x10xf32>
    %18 = vector.broadcast %17 : vector<1x10xf32> to vector<8x10xf32>
    %19 = arith.addf %16, %18 : vector<8x10xf32>
    %cst_17 = arith.constant dense<0xFF800000> : vector<8xf32>
    %20 = vector.multi_reduction <maximumf>, %19, %cst_17 [1] : vector<8x10xf32> to vector<8xf32>
    %21 = vector.shape_cast %20 : vector<8xf32> to vector<8x1xf32>
    %22 = vector.broadcast %21 : vector<8x1xf32> to vector<8x10xf32>
    %23 = arith.subf %19, %22 : vector<8x10xf32>
    %24 = math.exp %23 : vector<8x10xf32>
    %cst_18 = arith.constant dense<0.000000e+00> : vector<8xf32>
    %25 = vector.multi_reduction <add>, %24, %cst_18 [1] : vector<8x10xf32> to vector<8xf32>
    %26 = vector.shape_cast %25 : vector<8xf32> to vector<8x1xf32>
    %27 = math.log %26 : vector<8x1xf32>
    %28 = arith.addf %21, %27 : vector<8x1xf32>
    %29 = vector.broadcast %28 : vector<8x1xf32> to vector<8x10xf32>
    %30 = arith.subf %19, %29 : vector<8x10xf32>
    %c0_19 = arith.constant 0 : index
    %c0_20 = arith.constant 0 : index
    %31 = vector.load %arg8[%c0_19, %c0_20] : memref<8x10xf32, #tpu.memory_space<vmem>>, vector<8x10xf32>
    tpu.vector_store %arg8[%c0_19, %c0_20], %30 {strides = array<i32>} : memref<8x10xf32, #tpu.memory_space<vmem>>, vector<8x10xf32>,
    return
  }
  func.func @transform_0(%arg0: i32) -> (i32, i32) {
    %c0_i32 = arith.constant 0 : i32
    %c0_i32_0 = arith.constant 0 : i32
    return %arg0, %c0_i32 : i32, i32
  }
  func.func @transform_1(%arg0: i32) -> (i32, i32) {
    %c0_i32 = arith.constant 0 : i32
    %c0_i32_0 = arith.constant 0 : i32
    %c0_i32_1 = arith.constant 0 : i32
    return %c0_i32, %c0_i32_0 : i32, i32
  }
  func.func @transform_2(%arg0: i32) -> (i32, i32) {
    %c0_i32 = arith.constant 0 : i32
    %c0_i32_0 = arith.constant 0 : i32
    %c0_i32_1 = arith.constant 0 : i32
    return %c0_i32, %c0_i32_0 : i32, i32
  }
  func.func @transform_3(%arg0: i32) -> (i32, i32) {
    %c0_i32 = arith.constant 0 : i32
    %c0_i32_0 = arith.constant 0 : i32
    %c0_i32_1 = arith.constant 0 : i32
    return %c0_i32, %c0_i32_0 : i32, i32
  }
  func.func @transform_4(%arg0: i32) -> (i32, i32) {
    %c0_i32 = arith.constant 0 : i32
    %c0_i32_0 = arith.constant 0 : i32
    %c0_i32_1 = arith.constant 0 : i32
    return %c0_i32, %c0_i32_0 : i32, i32
  }
  func.func @transform_5(%arg0: i32) -> (i32, i32) {
    %c0_i32 = arith.constant 0 : i32
    %c0_i32_0 = arith.constant 0 : i32
    %c0_i32_1 = arith.constant 0 : i32
    return %c0_i32, %c0_i32_0 : i32, i32
  }
  func.func @transform_6(%arg0: i32) -> (i32, i32) {
    %c0_i32 = arith.constant 0 : i32
    %c0_i32_0 = arith.constant 0 : i32
    %c0_i32_1 = arith.constant 0 : i32
    return %c0_i32, %c0_i32_0 : i32, i32
  }
  func.func @transform_7(%arg0: i32) -> (i32, i32) {
    %c0_i32 = arith.constant 0 : i32
    %c0_i32_0 = arith.constant 0 : i32
    return %arg0, %c0_i32 : i32, i32
  }
}

</mosaic_0001>

<llo_original>
// kernel: color_net_cnn.4
$region0: #{color_net_cnn.4}
  #allocation0 [shape = 'u32[]', space=smem, size = 0x4, offset = 0x4, fixed_abs, tag = 'smem constant byte address 0x4 - core index']
  #allocation1 [shape = 'u32[144,128]{1,0:T(1,128)}', space=vmem, size = 0x12000, scoped, tag = 'internal scratch']
  %s0 = inlined_call_operand.vmem [shape: f32[1,1824,27], index: 0, kind: input, shape index: {}]
  %s1 = inlined_call_operand.vmem [shape: f32[27,8], index: 1, kind: input, shape index: {}]
  %s2 = inlined_call_operand.vmem [shape: f32[1,8], index: 2, kind: input, shape index: {}]
  %s3 = inlined_call_operand.vmem [shape: f32[456,8], index: 3, kind: output, shape index: {}]
  %s4 = sld [smem:[#allocation0]]
  $region22: #{color_net_cnn.4} parent=0
    _
  %s6 = ssub.s32 1, %s4
  %s7 = scalar_select 0, %s6, %s4
  // Predicated region
  $region2: #{color_net_cnn.4} parent=0 // pred_check
    _
  $region3: #{color_net_cnn.4} parent=0 // pred_check_branch
    %9 = sbr.rel (0) target = $region5
  $region4: #{color_net_cnn.4} parent=0 // pred_region
    _
  $region5: #{color_net_cnn.4} parent=0 // pred_fallthru
    _
  // Predicated region
  $region6: #{color_net_cnn.4} parent=0 // pred_check
    _
  $region7: #{color_net_cnn.4} parent=0 // pred_check_branch
    %11 = sbr.rel (0) target = $region9
  $region8: #{color_net_cnn.4} parent=0 // pred_region
    _
  $region9: #{color_net_cnn.4} parent=0 // pred_fallthru
    _
  // Predicated region
  $region10: #{color_net_cnn.4} parent=0 // pred_check
    _
  $region11: #{color_net_cnn.4} parent=0 // pred_check_branch
    %13 = sbr.rel (0) target = $region13
  $region12: #{color_net_cnn.4} parent=0 // pred_region
    _
  $region13: #{color_net_cnn.4} parent=0 // pred_fallthru
    _
  %v14 = vld [vmem:[%s0] sm:$0xff]
  %v15 = vld [vmem:[%s0 + $0x8] sm:$0xff]
  %v16 = vld [vmem:[%s0 + $0x10] sm:$0xff]
  %v17 = vld [vmem:[%s0 + $0x18] sm:$0xff]
  %v18 = vld [vmem:[%s0 + $0x20] sm:$0xff]
  %v19 = vld [vmem:[%s0 + $0x28] sm:$0xff]
  %v20 = vld [vmem:[%s0 + $0x30] sm:$0xff]
  %v21 = vld [vmem:[%s0 + $0x38] sm:$0xff]
  %v22 = vld [vmem:[%s0 + $0x40] sm:$0xff]
  %v23 = vld [vmem:[%s0 + $0x48] sm:$0xff]
  %v24 = vld [vmem:[%s0 + $0x50] sm:$0xff]
  %v25 = vld [vmem:[%s0 + $0x58] sm:$0xff]
  %v26 = vld [vmem:[%s0 + $0x60] sm:$0xff]
  %v27 = vld [vmem:[%s0 + $0x68] sm:$0xff]
  %v28 = vld [vmem:[%s0 + $0x70] sm:$0xff]
  %v29 = vld [vmem:[%s0 + $0x78] sm:$0xff]
  %v30 = vld [vmem:[%s0 + $0x80] sm:$0xff]
  %v31 = vld [vmem:[%s0 + $0x88] sm:$0xff]
  %v32 = vld [vmem:[%s0 + $0x90] sm:$0xff]
  %v33 = vld [vmem:[%s0 + $0x98] sm:$0xff]
  %v34 = vld [vmem:[%s0 + $0xa0] sm:$0xff]
  %v35 = vld [vmem:[%s0 + $0xa8] sm:$0xff]
  %v36 = vld [vmem:[%s0 + $0xb0] sm:$0xff]
  %v37 = vld [vmem:[%s0 + $0xb8] sm:$0xff]
  %v38 = vld [vmem:[%s0 + $0xc0] sm:$0xff]
  %v39 = vld [vmem:[%s0 + $0xc8] sm:$0xff]
  %v40 = vld [vmem:[%s0 + $0xd0] sm:$0xff]
  %v41 = vld [vmem:[%s0 + $0xd8] sm:$0xff]
  %v42 = vld [vmem:[%s0 + $0xe0] sm:$0xff]
  %v43 = vld [vmem:[%s0 + $0xe8] sm:$0xff]
  %v44 = vld [vmem:[%s0 + $0xf0] sm:$0xff]
  %v45 = vld [vmem:[%s0 + $0xf8] sm:$0xff]
  %v46 = vld [vmem:[%s0 + $0x100] sm:$0xff]
  %v47 = vld [vmem:[%s0 + $0x108] sm:$0xff]
  %v48 = vld [vmem:[%s0 + $0x110] sm:$0xff]
  %v49 = vld [vmem:[%s0 + $0x118] sm:$0xff]
  %v50 = vld [vmem:[%s0 + $0x120] sm:$0xff]
  %v51 = vld [vmem:[%s0 + $0x128] sm:$0xff]
  %v52 = vld [vmem:[%s0 + $0x130] sm:$0xff]
  %v53 = vld [vmem:[%s0 + $0x138] sm:$0xff]
  %v54 = vld [vmem:[%s0 + $0x140] sm:$0xff]
  %v55 = vld [vmem:[%s0 + $0x148] sm:$0xff]
  %v56 = vld [vmem:[%s0 + $0x150] sm:$0xff]
  %v57 = vld [vmem:[%s0 + $0x158] sm:$0xff]
  %v58 = vld [vmem:[%s0 + $0x160] sm:$0xff]
  %v59 = vld [vmem:[%s0 + $0x168] sm:$0xff]
  %v60 = vld [vmem:[%s0 + $0x170] sm:$0xff]
  %v61 = vld [vmem:[%s0 + $0x178] sm:$0xff]
  %v62 = vld [vmem:[%s0 + $0x180] sm:$0xff]
  %v63 = vld [vmem:[%s0 + $0x188] sm:$0xff]
  %v64 = vld [vmem:[%s0 + $0x190] sm:$0xff]
  %v65 = vld [vmem:[%s0 + $0x198] sm:$0xff]
  %v66 = vld [vmem:[%s0 + $0x1a0] sm:$0xff]
  %v67 = vld [vmem:[%s0 + $0x1a8] sm:$0xff]
  %v68 = vld [vmem:[%s0 + $0x1b0] sm:$0xff]
  %v69 = vld [vmem:[%s0 + $0x1b8] sm:$0xff]
  %v70 = vld [vmem:[%s0 + $0x1c0] sm:$0xff]
  %v71 = vld [vmem:[%s0 + $0x1c8] sm:$0xff]
  %v72 = vld [vmem:[%s0 + $0x1d0] sm:$0xff]
  %v73 = vld [vmem:[%s0 + $0x1d8] sm:$0xff]
  %v74 = vld [vmem:[%s0 + $0x1e0] sm:$0xff]
  %v75 = vld [vmem:[%s0 + $0x1e8] sm:$0xff]
  %v76 = vld [vmem:[%s0 + $0x1f0] sm:$0xff]
  %v77 = vld [vmem:[%s0 + $0x1f8] sm:$0xff]
  %v78 = vld [vmem:[%s0 + $0x200] sm:$0xff]
  %v79 = vld [vmem:[%s0 + $0x208] sm:$0xff]
  %v80 = vld [vmem:[%s0 + $0x210] sm:$0xff]
  %v81 = vld [vmem:[%s0 + $0x218] sm:$0xff]
  %v82 = vld [vmem:[%s0 + $0x220] sm:$0xff]
  %v83 = vld [vmem:[%s0 + $0x228] sm:$0xff]
  %v84 = vld [vmem:[%s0 + $0x230] sm:$0xff]
  %v85 = vld [vmem:[%s0 + $0x238] sm:$0xff]
  %v86 = vld [vmem:[%s0 + $0x240] sm:$0xff]
  %v87 = vld [vmem:[%s0 + $0x248] sm:$0xff]
  %v88 = vld [vmem:[%s0 + $0x250] sm:$0xff]
  %v89 = vld [vmem:[%s0 + $0x258] sm:$0xff]
  %v90 = vld [vmem:[%s0 + $0x260] sm:$0xff]
  %v91 = vld [vmem:[%s0 + $0x268] sm:$0xff]
  %v92 = vld [vmem:[%s0 + $0x270] sm:$0xff]
  %v93 = vld [vmem:[%s0 + $0x278] sm:$0xff]
  %v94 = vld [vmem:[%s0 + $0x280] sm:$0xff]
  %v95 = vld [vmem:[%s0 + $0x288] sm:$0xff]
  %v96 = vld [vmem:[%s0 + $0x290] sm:$0xff]
  %v97 = vld [vmem:[%s0 + $0x298] sm:$0xff]
  %v98 = vld [vmem:[%s0 + $0x2a0] sm:$0xff]
  %v99 = vld [vmem:[%s0 + $0x2a8] sm:$0xff]
  %v100 = vld [vmem:[%s0 + $0x2b0] sm:$0xff]
  %v101 = vld [vmem:[%s0 + $0x2b8] sm:$0xff]
  %v102 = vld [vmem:[%s0 + $0x2c0] sm:$0xff]
  %v103 = vld [vmem:[%s0 + $0x2c8] sm:$0xff]
  %v104 = vld [vmem:[%s0 + $0x2d0] sm:$0xff]
  %v105 = vld [vmem:[%s0 + $0x2d8] sm:$0xff]
  %v106 = vld [vmem:[%s0 + $0x2e0] sm:$0xff]
  %v107 = vld [vmem:[%s0 + $0x2e8] sm:$0xff]
  %v108 = vld [vmem:[%s0 + $0x2f0] sm:$0xff]
  %v109 = vld [vmem:[%s0 + $0x2f8] sm:$0xff]
  %v110 = vld [vmem:[%s0 + $0x300] sm:$0xff]
  %v111 = vld [vmem:[%s0 + $0x308] sm:$0xff]
  %v112 = vld [vmem:[%s0 + $0x310] sm:$0xff]
  %v113 = vld [vmem:[%s0 + $0x318] sm:$0xff]
  %v114 = vld [vmem:[%s0 + $0x320] sm:$0xff]
  %v115 = vld [vmem:[%s0 + $0x328] sm:$0xff]
  %v116 = vld [vmem:[%s0 + $0x330] sm:$0xff]
  %v117 = vld [vmem:[%s0 + $0x338] sm:$0xff]
  %v118 = vld [vmem:[%s0 + $0x340] sm:$0xff]
  %v119 = vld [vmem:[%s0 + $0x348] sm:$0xff]
  %v120 = vld [vmem:[%s0 + $0x350] sm:$0xff]
  %v121 = vld [vmem:[%s0 + $0x358] sm:$0xff]
  %v122 = vld [vmem:[%s0 + $0x360] sm:$0xff]
  %v123 = vld [vmem:[%s0 + $0x368] sm:$0xff]
  %v124 = vld [vmem:[%s0 + $0x370] sm:$0xff]
  %v125 = vld [vmem:[%s0 + $0x378] sm:$0xff]
  %v126 = vld [vmem:[%s0 + $0x380] sm:$0xff]
  %v127 = vld [vmem:[%s0 + $0x388] sm:$0xff]
  %v128 = vld [vmem:[%s0 + $0x390] sm:$0xff]
  %v129 = vld [vmem:[%s0 + $0x398] sm:$0xff]
  %v130 = vld [vmem:[%s0 + $0x3a0] sm:$0xff]
  %v131 = vld [vmem:[%s0 + $0x3a8] sm:$0xff]
  %v132 = vld [vmem:[%s0 + $0x3b0] sm:$0xff]
  %v133 = vld [vmem:[%s0 + $0x3b8] sm:$0xff]
  %v134 = vld [vmem:[%s0 + $0x3c0] sm:$0xff]
  %v135 = vld [vmem:[%s0 + $0x3c8] sm:$0xff]
  %v136 = vld [vmem:[%s0 + $0x3d0] sm:$0xff]
  %v137 = vld [vmem:[%s0 + $0x3d8] sm:$0xff]
  %v138 = vld [vmem:[%s0 + $0x3e0] sm:$0xff]
  %v139 = vld [vmem:[%s0 + $0x3e8] sm:$0xff]
  %v140 = vld [vmem:[%s0 + $0x3f0] sm:$0xff]
  %v141 = vld [vmem:[%s0 + $0x3f8] sm:$0xff]
  %v142 = vld [vmem:[%s0 + $0x400] sm:$0xff]
  %v143 = vld [vmem:[%s0 + $0x408] sm:$0xff]
  %v144 = vld [vmem:[%s0 + $0x410] sm:$0xff]
  %v145 = vld [vmem:[%s0 + $0x418] sm:$0xff]
  %v146 = vld [vmem:[%s0 + $0x420] sm:$0xff]
  %v147 = vld [vmem:[%s0 + $0x428] sm:$0xff]
  %v148 = vld [vmem:[%s0 + $0x430] sm:$0xff]
  %v149 = vld [vmem:[%s0 + $0x438] sm:$0xff]
  %v150 = vld [vmem:[%s0 + $0x440] sm:$0xff]
  %v151 = vld [vmem:[%s0 + $0x448] sm:$0xff]
  %v152 = vld [vmem:[%s0 + $0x450] sm:$0xff]
  %v153 = vld [vmem:[%s0 + $0x458] sm:$0xff]
  %v154 = vld [vmem:[%s0 + $0x460] sm:$0xff]
  %v155 = vld [vmem:[%s0 + $0x468] sm:$0xff]
  %v156 = vld [vmem:[%s0 + $0x470] sm:$0xff]
  %v157 = vld [vmem:[%s0 + $0x478] sm:$0xff]
  %v158 = vld [vmem:[%s0 + $0x480] sm:$0xff]
  %v159 = vld [vmem:[%s0 + $0x488] sm:$0xff]
  %v160 = vld [vmem:[%s0 + $0x490] sm:$0xff]
  %v161 = vld [vmem:[%s0 + $0x498] sm:$0xff]
  %v162 = vld [vmem:[%s0 + $0x4a0] sm:$0xff]
  %v163 = vld [vmem:[%s0 + $0x4a8] sm:$0xff]
  %v164 = vld [vmem:[%s0 + $0x4b0] sm:$0xff]
  %v165 = vld [vmem:[%s0 + $0x4b8] sm:$0xff]
  %v166 = vld [vmem:[%s0 + $0x4c0] sm:$0xff]
  %v167 = vld [vmem:[%s0 + $0x4c8] sm:$0xff]
  %v168 = vld [vmem:[%s0 + $0x4d0] sm:$0xff]
  %v169 = vld [vmem:[%s0 + $0x4d8] sm:$0xff]
  %v170 = vld [vmem:[%s0 + $0x4e0] sm:$0xff]
  %v171 = vld [vmem:[%s0 + $0x4e8] sm:$0xff]
  %v172 = vld [vmem:[%s0 + $0x4f0] sm:$0xff]
  %v173 = vld [vmem:[%s0 + $0x4f8] sm:$0xff]
  %v174 = vld [vmem:[%s0 + $0x500] sm:$0xff]
  %v175 = vld [vmem:[%s0 + $0x508] sm:$0xff]
  %v176 = vld [vmem:[%s0 + $0x510] sm:$0xff]
  %v177 = vld [vmem:[%s0 + $0x518] sm:$0xff]
  %v178 = vld [vmem:[%s0 + $0x520] sm:$0xff]
  %v179 = vld [vmem:[%s0 + $0x528] sm:$0xff]
  %v180 = vld [vmem:[%s0 + $0x530] sm:$0xff]
  %v181 = vld [vmem:[%s0 + $0x538] sm:$0xff]
  %v182 = vld [vmem:[%s0 + $0x540] sm:$0xff]
  %v183 = vld [vmem:[%s0 + $0x548] sm:$0xff]
  %v184 = vld [vmem:[%s0 + $0x550] sm:$0xff]
  %v185 = vld [vmem:[%s0 + $0x558] sm:$0xff]
  %v186 = vld [vmem:[%s0 + $0x560] sm:$0xff]
  %v187 = vld [vmem:[%s0 + $0x568] sm:$0xff]
  %v188 = vld [vmem:[%s0 + $0x570] sm:$0xff]
  %v189 = vld [vmem:[%s0 + $0x578] sm:$0xff]
  %v190 = vld [vmem:[%s0 + $0x580] sm:$0xff]
  %v191 = vld [vmem:[%s0 + $0x588] sm:$0xff]
  %v192 = vld [vmem:[%s0 + $0x590] sm:$0xff]
  %v193 = vld [vmem:[%s0 + $0x598] sm:$0xff]
  %v194 = vld [vmem:[%s0 + $0x5a0] sm:$0xff]
  %v195 = vld [vmem:[%s0 + $0x5a8] sm:$0xff]
  %v196 = vld [vmem:[%s0 + $0x5b0] sm:$0xff]
  %v197 = vld [vmem:[%s0 + $0x5b8] sm:$0xff]
  %v198 = vld [vmem:[%s0 + $0x5c0] sm:$0xff]
  %v199 = vld [vmem:[%s0 + $0x5c8] sm:$0xff]
  %v200 = vld [vmem:[%s0 + $0x5d0] sm:$0xff]
  %v201 = vld [vmem:[%s0 + $0x5d8] sm:$0xff]
  %v202 = vld [vmem:[%s0 + $0x5e0] sm:$0xff]
  %v203 = vld [vmem:[%s0 + $0x5e8] sm:$0xff]
  %v204 = vld [vmem:[%s0 + $0x5f0] sm:$0xff]
  %v205 = vld [vmem:[%s0 + $0x5f8] sm:$0xff]
  %v206 = vld [vmem:[%s0 + $0x600] sm:$0xff]
  %v207 = vld [vmem:[%s0 + $0x608] sm:$0xff]
  %v208 = vld [vmem:[%s0 + $0x610] sm:$0xff]
  %v209 = vld [vmem:[%s0 + $0x618] sm:$0xff]
  %v210 = vld [vmem:[%s0 + $0x620] sm:$0xff]
  %v211 = vld [vmem:[%s0 + $0x628] sm:$0xff]
  %v212 = vld [vmem:[%s0 + $0x630] sm:$0xff]
  %v213 = vld [vmem:[%s0 + $0x638] sm:$0xff]
  %v214 = vld [vmem:[%s0 + $0x640] sm:$0xff]
  %v215 = vld [vmem:[%s0 + $0x648] sm:$0xff]
  %v216 = vld [vmem:[%s0 + $0x650] sm:$0xff]
  %v217 = vld [vmem:[%s0 + $0x658] sm:$0xff]
  %v218 = vld [vmem:[%s0 + $0x660] sm:$0xff]
  %v219 = vld [vmem:[%s0 + $0x668] sm:$0xff]
  %v220 = vld [vmem:[%s0 + $0x670] sm:$0xff]
  %v221 = vld [vmem:[%s0 + $0x678] sm:$0xff]
  %v222 = vld [vmem:[%s0 + $0x680] sm:$0xff]
  %v223 = vld [vmem:[%s0 + $0x688] sm:$0xff]
  %v224 = vld [vmem:[%s0 + $0x690] sm:$0xff]
  %v225 = vld [vmem:[%s0 + $0x698] sm:$0xff]
  %v226 = vld [vmem:[%s0 + $0x6a0] sm:$0xff]
  %v227 = vld [vmem:[%s0 + $0x6a8] sm:$0xff]
  %v228 = vld [vmem:[%s0 + $0x6b0] sm:$0xff]
  %v229 = vld [vmem:[%s0 + $0x6b8] sm:$0xff]
  %v230 = vld [vmem:[%s0 + $0x6c0] sm:$0xff]
  %v231 = vld [vmem:[%s0 + $0x6c8] sm:$0xff]
  %v232 = vld [vmem:[%s0 + $0x6d0] sm:$0xff]
  %v233 = vld [vmem:[%s0 + $0x6d8] sm:$0xff]
  %v234 = vld [vmem:[%s0 + $0x6e0] sm:$0xff]
  %v235 = vld [vmem:[%s0 + $0x6e8] sm:$0xff]
  %v236 = vld [vmem:[%s0 + $0x6f0] sm:$0xff]
  %v237 = vld [vmem:[%s0 + $0x6f8] sm:$0xff]
  %v238 = vld [vmem:[%s0 + $0x700] sm:$0xff]
  %v239 = vld [vmem:[%s0 + $0x708] sm:$0xff]
  %v240 = vld [vmem:[%s0 + $0x710] sm:$0xff]
  %v241 = vld [vmem:[%s0 + $0x718] sm:$0xff]
  %v242 = vld [vmem:[%s1] sm:$0xff]
  %v243 = vld [vmem:[%s1 + $0x8] sm:$0xff]
  %v244 = vld [vmem:[%s1 + $0x10] sm:$0xff]
  %v245 = vld [vmem:[%s1 + $0x18] sm:$0x7]
  %vm246 = vcmask 220160
  %v248 = vsel %vm246, %v14, 0
  %v251 = vsel %vm246, %v15, 0
  %v254 = vsel %vm246, %v16, 0
  %v257 = vsel %vm246, %v17, 0
  %v260 = vsel %vm246, %v18, 0
  %v263 = vsel %vm246, %v19, 0
  %v266 = vsel %vm246, %v20, 0
  %v269 = vsel %vm246, %v21, 0
  %v272 = vsel %vm246, %v22, 0
  %v275 = vsel %vm246, %v23, 0
  %v278 = vsel %vm246, %v24, 0
  %v281 = vsel %vm246, %v25, 0
  %v284 = vsel %vm246, %v26, 0
  %v287 = vsel %vm246, %v27, 0
  %v290 = vsel %vm246, %v28, 0
  %v293 = vsel %vm246, %v29, 0
  %v296 = vsel %vm246, %v30, 0
  %v299 = vsel %vm246, %v31, 0
  %v302 = vsel %vm246, %v32, 0
  %v305 = vsel %vm246, %v33, 0
  %v308 = vsel %vm246, %v34, 0
  %v311 = vsel %vm246, %v35, 0
  %v314 = vsel %vm246, %v36, 0
  %v317 = vsel %vm246, %v37, 0
  %v320 = vsel %vm246, %v38, 0
  %v323 = vsel %vm246, %v39, 0
  %v326 = vsel %vm246, %v40, 0
  %v329 = vsel %vm246, %v41, 0
  %v332 = vsel %vm246, %v42, 0
  %v335 = vsel %vm246, %v43, 0
  %v338 = vsel %vm246, %v44, 0
  %v341 = vsel %vm246, %v45, 0
  %v344 = vsel %vm246, %v46, 0
  %v347 = vsel %vm246, %v47, 0
  %v350 = vsel %vm246, %v48, 0
  %v353 = vsel %vm246, %v49, 0
  %v356 = vsel %vm246, %v50, 0
  %v359 = vsel %vm246, %v51, 0
  %v362 = vsel %vm246, %v52, 0
  %v365 = vsel %vm246, %v53, 0
  %v368 = vsel %vm246, %v54, 0
  %v371 = vsel %vm246, %v55, 0
  %v374 = vsel %vm246, %v56, 0
  %v377 = vsel %vm246, %v57, 0
  %v380 = vsel %vm246, %v58, 0
  %v383 = vsel %vm246, %v59, 0
  %v386 = vsel %vm246, %v60, 0
  %v389 = vsel %vm246, %v61, 0
  %v392 = vsel %vm246, %v62, 0
  %v395 = vsel %vm246, %v63, 0
  %v398 = vsel %vm246, %v64, 0
  %v401 = vsel %vm246, %v65, 0
  %v404 = vsel %vm246, %v66, 0
  %v407 = vsel %vm246, %v67, 0
  %v410 = vsel %vm246, %v68, 0
  %v413 = vsel %vm246, %v69, 0
  %v416 = vsel %vm246, %v70, 0
  %v419 = vsel %vm246, %v71, 0
  %v422 = vsel %vm246, %v72, 0
  %v425 = vsel %vm246, %v73, 0
  %v428 = vsel %vm246, %v74, 0
  %v431 = vsel %vm246, %v75, 0
  %v434 = vsel %vm246, %v76, 0
  %v437 = vsel %vm246, %v77, 0
  %v440 = vsel %vm246, %v78, 0
  %v443 = vsel %vm246, %v79, 0
  %v446 = vsel %vm246, %v80, 0
  %v449 = vsel %vm246, %v81, 0
  %v452 = vsel %vm246, %v82, 0
  %v455 = vsel %vm246, %v83, 0
  %v458 = vsel %vm246, %v84, 0
  %v461 = vsel %vm246, %v85, 0
  %v464 = vsel %vm246, %v86, 0
  %v467 = vsel %vm246, %v87, 0
  %v470 = vsel %vm246, %v88, 0
  %v473 = vsel %vm246, %v89, 0
  %v476 = vsel %vm246, %v90, 0
  %v479 = vsel %vm246, %v91, 0
  %v482 = vsel %vm246, %v92, 0
  %v485 = vsel %vm246, %v93, 0
  %v488 = vsel %vm246, %v94, 0
  %v491 = vsel %vm246, %v95, 0
  %v494 = vsel %vm246, %v96, 0
  %v497 = vsel %vm246, %v97, 0
  %v500 = vsel %vm246, %v98, 0
  %v503 = vsel %vm246, %v99, 0
  %v506 = vsel %vm246, %v100, 0
  %v509 = vsel %vm246, %v101, 0
  %v512 = vsel %vm246, %v102, 0
  %v515 = vsel %vm246, %v103, 0
  %v518 = vsel %vm246, %v104, 0
  %v521 = vsel %vm246, %v105, 0
  %v524 = vsel %vm246, %v106, 0
  %v527 = vsel %vm246, %v107, 0
  %v530 = vsel %vm246, %v108, 0
  %v533 = vsel %vm246, %v109, 0
  %v536 = vsel %vm246, %v110, 0
  %v539 = vsel %vm246, %v111, 0
  %v542 = vsel %vm246, %v112, 0
  %v545 = vsel %vm246, %v113, 0
  %v548 = vsel %vm246, %v114, 0
  %v551 = vsel %vm246, %v115, 0
  %v554 = vsel %vm246, %v116, 0
  %v557 = vsel %vm246, %v117, 0
  %v560 = vsel %vm246, %v118, 0
  %v563 = vsel %vm246, %v119, 0
  %v566 = vsel %vm246, %v120, 0
  %v569 = vsel %vm246, %v121, 0
  %v572 = vsel %vm246, %v122, 0
  %v575 = vsel %vm246, %v123, 0
  %v578 = vsel %vm246, %v124, 0
  %v581 = vsel %vm246, %v125, 0
  %v584 = vsel %vm246, %v126, 0
  %v587 = vsel %vm246, %v127, 0
  %v590 = vsel %vm246, %v128, 0
  %v593 = vsel %vm246, %v129, 0
  %v596 = vsel %vm246, %v130, 0
  %v599 = vsel %vm246, %v131, 0
  %v602 = vsel %vm246, %v132, 0
  %v605 = vsel %vm246, %v133, 0
  %v608 = vsel %vm246, %v134, 0
  %v611 = vsel %vm246, %v135, 0
  %v614 = vsel %vm246, %v136, 0
  %v617 = vsel %vm246, %v137, 0
  %v620 = vsel %vm246, %v138, 0
  %v623 = vsel %vm246, %v139, 0
  %v626 = vsel %vm246, %v140, 0
  %v629 = vsel %vm246, %v141, 0
  %v632 = vsel %vm246, %v142, 0
  %v635 = vsel %vm246, %v143, 0
  %v638 = vsel %vm246, %v144, 0
  %v641 = vsel %vm246, %v145, 0
  %v644 = vsel %vm246, %v146, 0
  %v647 = vsel %vm246, %v147, 0
  %v650 = vsel %vm246, %v148, 0
  %v653 = vsel %vm246, %v149, 0
  %v656 = vsel %vm246, %v150, 0
  %v659 = vsel %vm246, %v151, 0
  %v662 = vsel %vm246, %v152, 0
  %v665 = vsel %vm246, %v153, 0
  %v668 = vsel %vm246, %v154, 0
  %v671 = vsel %vm246, %v155, 0
  %v674 = vsel %vm246, %v156, 0
  %v677 = vsel %vm246, %v157, 0
  %v680 = vsel %vm246, %v158, 0
  %v683 = vsel %vm246, %v159, 0
  %v686 = vsel %vm246, %v160, 0
  %v689 = vsel %vm246, %v161, 0
  %v692 = vsel %vm246, %v162, 0
  %v695 = vsel %vm246, %v163, 0
  %v698 = vsel %vm246, %v164, 0
  %v701 = vsel %vm246, %v165, 0
  %v704 = vsel %vm246, %v166, 0
  %v707 = vsel %vm246, %v167, 0
  %v710 = vsel %vm246, %v168, 0
  %v713 = vsel %vm246, %v169, 0
  %v716 = vsel %vm246, %v170, 0
  %v719 = vsel %vm246, %v171, 0
  %v722 = vsel %vm246, %v172, 0
  %v725 = vsel %vm246, %v173, 0
  %v728 = vsel %vm246, %v174, 0
  %v731 = vsel %vm246, %v175, 0
  %v734 = vsel %vm246, %v176, 0
  %v737 = vsel %vm246, %v177, 0
  %v740 = vsel %vm246, %v178, 0
  %v743 = vsel %vm246, %v179, 0
  %v746 = vsel %vm246, %v180, 0
  %v749 = vsel %vm246, %v181, 0
  %v752 = vsel %vm246, %v182, 0
  %v755 = vsel %vm246, %v183, 0
  %v758 = vsel %vm246, %v184, 0
  %v761 = vsel %vm246, %v185, 0
  %v764 = vsel %vm246, %v186, 0
  %v767 = vsel %vm246, %v187, 0
  %v770 = vsel %vm246, %v188, 0
  %v773 = vsel %vm246, %v189, 0
  %v776 = vsel %vm246, %v190, 0
  %v779 = vsel %vm246, %v191, 0
  %v782 = vsel %vm246, %v192, 0
  %v785 = vsel %vm246, %v193, 0
  %v788 = vsel %vm246, %v194, 0
  %v791 = vsel %vm246, %v195, 0
  %v794 = vsel %vm246, %v196, 0
  %v797 = vsel %vm246, %v197, 0
  %v800 = vsel %vm246, %v198, 0
  %v803 = vsel %vm246, %v199, 0
  %v806 = vsel %vm246, %v200, 0
  %v809 = vsel %vm246, %v201, 0
  %v812 = vsel %vm246, %v202, 0
  %v815 = vsel %vm246, %v203, 0
  %v818 = vsel %vm246, %v204, 0
  %v821 = vsel %vm246, %v205, 0
  %v824 = vsel %vm246, %v206, 0
  %v827 = vsel %vm246, %v207, 0
  %v830 = vsel %vm246, %v208, 0
  %v833 = vsel %vm246, %v209, 0
  %v836 = vsel %vm246, %v210, 0
  %v839 = vsel %vm246, %v211, 0
  %v842 = vsel %vm246, %v212, 0
  %v845 = vsel %vm246, %v213, 0
  %v848 = vsel %vm246, %v214, 0
  %v851 = vsel %vm246, %v215, 0
  %v854 = vsel %vm246, %v216, 0
  %v857 = vsel %vm246, %v217, 0
  %v860 = vsel %vm246, %v218, 0
  %v863 = vsel %vm246, %v219, 0
  %v866 = vsel %vm246, %v220, 0
  %v869 = vsel %vm246, %v221, 0
  %v872 = vsel %vm246, %v222, 0
  %v875 = vsel %vm246, %v223, 0
  %v878 = vsel %vm246, %v224, 0
  %v881 = vsel %vm246, %v225, 0
  %v884 = vsel %vm246, %v226, 0
  %v887 = vsel %vm246, %v227, 0
  %v890 = vsel %vm246, %v228, 0
  %v893 = vsel %vm246, %v229, 0
  %v896 = vsel %vm246, %v230, 0
  %v899 = vsel %vm246, %v231, 0
  %v902 = vsel %vm246, %v232, 0
  %v905 = vsel %vm246, %v233, 0
  %v908 = vsel %vm246, %v234, 0
  %v911 = vsel %vm246, %v235, 0
  %v914 = vsel %vm246, %v236, 0
  %v917 = vsel %vm246, %v237, 0
  %v920 = vsel %vm246, %v238, 0
  %v923 = vsel %vm246, %v239, 0
  %v926 = vsel %vm246, %v240, 0
  %v929 = vsel %vm246, %v241, 0
  %vm931 = vcmask 1042432
  %v933 = vsel %vm931, %v245, 0
  %935 = vmatprep.subr.mxu0 0.0
  %936 = vmatpush1.msra.mxu0 %v242
  %937 = vmatprep.subr.mxu0 0.0
  %938 = vmatpush1.msra.mxu0 %v243
  %939 = vmatprep.subr.mxu0 0.0
  %940 = vmatpush1.msra.mxu0 %v244
  %941 = vmatprep.subr.mxu0 0.0
  %942 = vmatpush1.msra.mxu0 %v933
  %943 = vmatprep.subr.mxu0 0.0
  %944 = vmatpush1.msra.mxu0 0.0
  %945 = vmatprep.subr.mxu0 0.0
  %946 = vmatpush1.msra.mxu0 0.0
  %947 = vmatprep.subr.mxu0 0.0
  %948 = vmatpush1.msra.mxu0 0.0
  %949 = vmatprep.subr.mxu0 0.0
  %950 = vmatpush1.msra.mxu0 0.0
  %951 = vmatprep.subr.mxu0 0.0
  %952 = vmatpush1.msra.mxu0 0.0
  %953 = vmatprep.subr.mxu0 0.0
  %954 = vmatpush1.msra.mxu0 0.0
  %955 = vmatprep.subr.mxu0 0.0
  %956 = vmatpush1.msra.mxu0 0.0
  %957 = vmatprep.subr.mxu0 0.0
  %958 = vmatpush1.msra.mxu0 0.0
  %959 = vmatprep.subr.mxu0 0.0
  %960 = vmatpush1.msra.mxu0 0.0
  %961 = vmatprep.subr.mxu0 0.0
  %962 = vmatpush1.msra.mxu0 0.0
  %963 = vmatprep.subr.mxu0 0.0
  %964 = vmatpush1.msra.mxu0 0.0
  %965 = vmatprep.subr.mxu0 0.0
  %966 = vmatpush1.msra.mxu0 0.0
  %967 = vmatprep.subr.mxu0 0.0
  %968 = vmatpush1.msra.mxu0 0.0
  %969 = vmatprep.subr.mxu0 0.0
  %970 = vmatpush1.msra.mxu0 0.0
  %971 = vmatprep.subr.mxu0 0.0
  %972 = vmatpush1.msra.mxu0 0.0
  %973 = vmatprep.subr.mxu0 0.0
  %974 = vmatpush1.msra.mxu0 0.0
  %975 = vmatprep.subr.mxu0 0.0
  %976 = vmatpush1.msra.mxu0 0.0
  %977 = vmatprep.subr.mxu0 0.0
  %978 = vmatpush1.msra.mxu0 0.0
  %979 = vmatprep.subr.mxu0 0.0
  %980 = vmatpush1.msra.mxu0 0.0
  %981 = vmatprep.subr.mxu0 0.0
  %982 = vmatpush1.msra.mxu0 0.0
  %983 = vmatprep.subr.mxu0 0.0
  %984 = vmatpush1.msra.mxu0 0.0
  %985 = vmatprep.subr.mxu0 0.0
  %986 = vmatpush1.msra.mxu0 0.0
  %987 = vmatprep.subr.mxu0 0.0
  %988 = vmatpush1.msra.mxu0 0.0
  %989 = vmatprep.subr.mxu0 0.0
  %990 = vmatpush1.msra.mxu0 0.0
  %991 = vmatprep.subr.mxu0 0.0
  %992 = vmatpush1.msra.mxu0 0.0
  %993 = vmatprep.subr.mxu0 0.0
  %994 = vmatpush1.msra.mxu0 0.0
  %995 = vmatprep.subr.mxu0 0.0
  %996 = vmatpush1.msra.mxu0 0.0
  %997 = vmatprep.subr.mxu0 0.0
  %998 = vmatpush1.msra.mxu0 0.0
  %999 = vmatprep.mubr.f32.mxu0 0.0
  %1000 = vmatmul.mubr.f32.gmra.mrb[0].mxu0 %v248
  %v1001 = vpop.f32.mrb[0].mxu0
  %v1002 = vadd.f32 0.0, %v1001
  %v1003 = vpop.f32.mrb[0].mxu0
  %1004 = vmatprep.mubr.f32.mxu0 0.0
  %1005 = vmatmul.mubr.f32.gmra.mrb[0].mxu0 %v251
  %v1006 = vpop.f32.mrb[0].mxu0
  %v1007 = vadd.f32 0.0, %v1006
  %v1008 = vpop.f32.mrb[0].mxu0
  %1009 = vmatprep.mubr.f32.mxu0 0.0
  %1010 = vmatmul.mubr.f32.gmra.mrb[0].mxu0 %v254
  %v1011 = vpop.f32.mrb[0].mxu0
  %v1012 = vadd.f32 0.0, %v1011
  %v1013 = vpop.f32.mrb[0].mxu0
  %1014 = vmatprep.mubr.f32.mxu0 0.0
  %1015 = vmatmul.mubr.f32.gmra.mrb[0].mxu0 %v257
  %v1016 = vpop.f32.mrb[0].mxu0
  %v1017 = vadd.f32 0.0, %v1016
  %v1018 = vpop.f32.mrb[0].mxu0
  %1019 = vmatprep.mubr.f32.mxu0 0.0
  %1020 = vmatmul.mubr.f32.gmra.mrb[0].mxu0 %v260
  %v1021 = vpop.f32.mrb[0].mxu0
  %v1022 = vadd.f32 0.0, %v1021
  %v1023 = vpop.f32.mrb[0].mxu0
  %1024 = vmatprep.mubr.f32.mxu0 0.0
  %1025 = vmatmul.mubr.f32.gmra.mrb[0].mxu0 %v263
  %v1026 = vpop.f32.mrb[0].mxu0
  %v1027 = vadd.f32 0.0, %v1026
  %v1028 = vpop.f32.mrb[0].mxu0
  %1029 = vmatprep.mubr.f32.mxu0 0.0
  %1030 = vmatmul.mubr.f32.gmra.mrb[0].mxu0 %v266
  %v1031 = vpop.f32.mrb[0].mxu0
  %v1032 = vadd.f32 0.0, %v1031
  %v1033 = vpop.f32.mrb[0].mxu0
  %1034 = vmatprep.mubr.f32.mxu0 0.0
  %1035 = vmatmul.mubr.f32.gmra.mrb[0].mxu0 %v269
  %v1036 = vpop.f32.mrb[0].mxu0
  %v1037 = vadd.f32 0.0, %v1036
  %v1038 = vpop.f32.mrb[0].mxu0
  %1039 = vmatprep.mubr.f32.mxu0 0.0
  %1040 = vmatmul.mubr.f32.gmra.mrb[0].mxu0 %v272
  %v1041 = vpop.f32.mrb[0].mxu0
  %v1042 = vadd.f32 0.0, %v1041
  %v1043 = vpop.f32.mrb[0].mxu0
  %1044 = vmatprep.mubr.f32.mxu0 0.0
  %1045 = vmatmul.mubr.f32.gmra.mrb[0].mxu0 %v275
  %v1046 = vpop.f32.mrb[0].mxu0
  %v1047 = vadd.f32 0.0, %v1046
  %v1048 = vpop.f32.mrb[0].mxu0
  %1049 = vmatprep.mubr.f32.mxu0 0.0
  %1050 = vmatmul.mubr.f32.gmra.mrb[0].mxu0 %v278
  %v1051 = vpop.f32.mrb[0].mxu0
  %v1052 = vadd.f32 0.0, %v1051
  %v1053 = vpop.f32.mrb[0].mxu0
  %1054 = vmatprep.mubr.f32.mxu0 0.0
  %1055 = vmatmul.mubr.f32.gmra.mrb[0].mxu0 %v281
  %v1056 = vpop.f32.mrb[0].mxu0
  %v1057 = vadd.f32 0.0, %v1056
  %v1058 = vpop.f32.mrb[0].mxu0
  %1059 = vmatprep.mubr.f32.mxu0 0.0
  %1060 = vmatmul.mubr.f32.gmra.mrb[0].mxu0 %v284
  %v1061 = vpop.f32.mrb[0].mxu0
  %v1062 = vadd.f32 0.0, %v1061
  %v1063 = vpop.f32.mrb[0].mxu0
  %1064 = vmatprep.mubr.f32.mxu0 0.0
  %1065 = vmatmul.mubr.f32.gmra.mrb[0].mxu0 %v287
  %v1066 = vpop.f32.mrb[0].mxu0
  %v1067 = vadd.f32 0.0, %v1066
  %v1068 = vpop.f32.mrb[0].mxu0
  %1069 = vmatprep.mubr.f32.mxu0 0.0
  %1070 = vmatmul.mubr.f32.gmra.mrb[0].mxu0 %v290
  %v1071 = vpop.f32.mrb[0].mxu0
  %v1072 = vadd.f32 0.0, %v1071
  %v1073 = vpop.f32.mrb[0].mxu0
  %1074 = vmatprep.mubr.f32.mxu0 0.0
  %1075 = vmatmul.mubr.f32.gmra.mrb[0].mxu0 %v293
  %v1076 = vpop.f32.mrb[0].mxu0
  %v1077 = vadd.f32 0.0, %v1076
  %v1078 = vpop.f32.mrb[0].mxu0
  %1079 = vmatprep.mubr.f32.mxu0 0.0
  %1080 = vmatmul.mubr.f32.gmra.mrb[0].mxu0 %v296
  %v1081 = vpop.f32.mrb[0].mxu0
  %v1082 = vadd.f32 0.0, %v1081
  %v1083 = vpop.f32.mrb[0].mxu0
  %1084 = vmatprep.mubr.f32.mxu0 0.0
  %1085 = vmatmul.mubr.f32.gmra.mrb[0].mxu0 %v299
  %v1086 = vpop.f32.mrb[0].mxu0
  %v1087 = vadd.f32 0.0, %v1086
  %v1088 = vpop.f32.mrb[0].mxu0
  %1089 = vmatprep.mubr.f32.mxu0 0.0
  %1090 = vmatmul.mubr.f32.gmra.mrb[0].mxu0 %v302
  %v1091 = vpop.f32.mrb[0].mxu0
  %v1092 = vadd.f32 0.0, %v1091
  %v1093 = vpop.f32.mrb[0].mxu0
  %1094 = vmatprep.mubr.f32.mxu0 0.0
  %1095 = vmatmul.mubr.f32.gmra.mrb[0].mxu0 %v305
  %v1096 = vpop.f32.mrb[0].mxu0
  %v1097 = vadd.f32 0.0, %v1096
  %v1098 = vpop.f32.mrb[0].mxu0
  %1099 = vmatprep.mubr.f32.mxu0 0.0
  %1100 = vmatmul.mubr.f32.gmra.mrb[0].mxu0 %v308
  %v1101 = vpop.f32.mrb[0].mxu0
  %v1102 = vadd.f32 0.0, %v1101
  %v1103 = vpop.f32.mrb[0].mxu0
  %1104 = vmatprep.mubr.f32.mxu0 0.0
  %1105 = vmatmul.mubr.f32.gmra.mrb[0].mxu0 %v311
  %v1106 = vpop.f32.mrb[0].mxu0
  %v1107 = vadd.f32 0.0, %v1106
  %v1108 = vpop.f32.mrb[0].mxu0
  %1109 = vmatprep.mubr.f32.mxu0 0.0
  %1110 = vmatmul.mubr.f32.gmra.mrb[0].mxu0 %v314
  %v1111 = vpop.f32.mrb[0].mxu0
  %v1112 = vadd.f32 0.0, %v1111
  %v1113 = vpop.f32.mrb[0].mxu0
  %1114 = vmatprep.mubr.f32.mxu0 0.0
  %1115 = vmatmul.mubr.f32.gmra.mrb[0].mxu0 %v317
  %v1116 = vpop.f32.mrb[0].mxu0
  %v1117 = vadd.f32 0.0, %v1116
  %v1118 = vpop.f32.mrb[0].mxu0
  %1119 = vmatprep.mubr.f32.mxu0 0.0
  %1120 = vmatmul.mubr.f32.gmra.mrb[0].mxu0 %v320
  %v1121 = vpop.f32.mrb[0].mxu0
  %v1122 = vadd.f32 0.0, %v1121
  %v1123 = vpop.f32.mrb[0].mxu0
  %1124 = vmatprep.mubr.f32.mxu0 0.0
  %1125 = vmatmul.mubr.f32.gmra.mrb[0].mxu0 %v323
  %v1126 = vpop.f32.mrb[0].mxu0
  %v1127 = vadd.f32 0.0, %v1126
  %v1128 = vpop.f32.mrb[0].mxu0
  %1129 = vmatprep.mubr.f32.mxu0 0.0
  %1130 = vmatmul.mubr.f32.gmra.mrb[0].mxu0 %v326
  %v1131 = vpop.f32.mrb[0].mxu0
  %v1132 = vadd.f32 0.0, %v1131
  %v1133 = vpop.f32.mrb[0].mxu0
  %1134 = vmatprep.mubr.f32.mxu0 0.0
  %1135 = vmatmul.mubr.f32.gmra.mrb[0].mxu0 %v329
  %v1136 = vpop.f32.mrb[0].mxu0
  %v1137 = vadd.f32 0.0, %v1136
  %v1138 = vpop.f32.mrb[0].mxu0
  %1139 = vmatprep.mubr.f32.mxu0 0.0
  %1140 = vmatmul.mubr.f32.gmra.mrb[0].mxu0 %v332
  %v1141 = vpop.f32.mrb[0].mxu0
  %v1142 = vadd.f32 0.0, %v1141
  %v1143 = vpop.f32.mrb[0].mxu0
  %1144 = vmatprep.mubr.f32.mxu0 0.0
  %1145 = vmatmul.mubr.f32.gmra.mrb[0].mxu0 %v335
  %v1146 = vpop.f32.mrb[0].mxu0
  %v1147 = vadd.f32 0.0, %v1146
  %v1148 = vpop.f32.mrb[0].mxu0
  %1149 = vmatprep.mubr.f32.mxu0 0.0
  %1150 = vmatmul.mubr.f32.gmra.mrb[0].mxu0 %v338
  %v1151 = vpop.f32.mrb[0].mxu0
  %v1152 = vadd.f32 0.0, %v1151
  %v1153 = vpop.f32.mrb[0].mxu0
  %1154 = vmatprep.mubr.f32.mxu0 0.0
  %1155 = vmatmul.mubr.f32.gmra.mrb[0].mxu0 %v341
  %v1156 = vpop.f32.mrb[0].mxu0
  %v1157 = vadd.f32 0.0, %v1156
  %v1158 = vpop.f32.mrb[0].mxu0
  %1159 = vmatprep.mubr.f32.mxu0 0.0
  %1160 = vmatmul.mubr.f32.gmra.mrb[0].mxu0 %v344
  %v1161 = vpop.f32.mrb[0].mxu0
  %v1162 = vadd.f32 0.0, %v1161
  %v1163 = vpop.f32.mrb[0].mxu0
  %1164 = vmatprep.mubr.f32.mxu0 0.0
  %1165 = vmatmul.mubr.f32.gmra.mrb[0].mxu0 %v347
  %v1166 = vpop.f32.mrb[0].mxu0
  %v1167 = vadd.f32 0.0, %v1166
  %v1168 = vpop.f32.mrb[0].mxu0
  %1169 = vmatprep.mubr.f32.mxu0 0.0
  %1170 = vmatmul.mubr.f32.gmra.mrb[0].mxu0 %v350
  %v1171 = vpop.f32.mrb[0].mxu0
  %v1172 = vadd.f32 0.0, %v1171
  %v1173 = vpop.f32.mrb[0].mxu0
  %1174 = vmatprep.mubr.f32.mxu0 0.0
  %1175 = vmatmul.mubr.f32.gmra.mrb[0].mxu0 %v353
  %v1176 = vpop.f32.mrb[0].mxu0
  %v1177 = vadd.f32 0.0, %v1176
  %v1178 = vpop.f32.mrb[0].mxu0
  %1179 = vmatprep.mubr.f32.mxu0 0.0
  %1180 = vmatmul.mubr.f32.gmra.mrb[0].mxu0 %v356
  %v1181 = vpop.f32.mrb[0].mxu0
  %v1182 = vadd.f32 0.0, %v1181
  %v1183 = vpop.f32.mrb[0].mxu0
  %1184 = vmatprep.mubr.f32.mxu0 0.0
  %1185 = vmatmul.mubr.f32.gmra.mrb[0].mxu0 %v359
  %v1186 = vpop.f32.mrb[0].mxu0
  %v1187 = vadd.f32 0.0, %v1186
  %v1188 = vpop.f32.mrb[0].mxu0
  %1189 = vmatprep.mubr.f32.mxu0 0.0
  %1190 = vmatmul.mubr.f32.gmra.mrb[0].mxu0 %v362
  %v1191 = vpop.f32.mrb[0].mxu0
  %v1192 = vadd.f32 0.0, %v1191
  %v1193 = vpop.f32.mrb[0].mxu0
  %1194 = vmatprep.mubr.f32.mxu0 0.0
  %1195 = vmatmul.mubr.f32.gmra.mrb[0].mxu0 %v365
  %v1196 = vpop.f32.mrb[0].mxu0
  %v1197 = vadd.f32 0.0, %v1196
  %v1198 = vpop.f32.mrb[0].mxu0
  %1199 = vmatprep.mubr.f32.mxu0 0.0
  %1200 = vmatmul.mubr.f32.gmra.mrb[0].mxu0 %v368
  %v1201 = vpop.f32.mrb[0].mxu0
  %v1202 = vadd.f32 0.0, %v1201
  %v1203 = vpop.f32.mrb[0].mxu0
  %1204 = vmatprep.mubr.f32.mxu0 0.0
  %1205 = vmatmul.mubr.f32.gmra.mrb[0].mxu0 %v371
  %v1206 = vpop.f32.mrb[0].mxu0
  %v1207 = vadd.f32 0.0, %v1206
  %v1208 = vpop.f32.mrb[0].mxu0
  %1209 = vmatprep.mubr.f32.mxu0 0.0
  %1210 = vmatmul.mubr.f32.gmra.mrb[0].mxu0 %v374
  %v1211 = vpop.f32.mrb[0].mxu0
  %v1212 = vadd.f32 0.0, %v1211
  %v1213 = vpop.f32.mrb[0].mxu0
  %1214 = vmatprep.mubr.f32.mxu0 0.0
  %1215 = vmatmul.mubr.f32.gmra.mrb[0].mxu0 %v377
  %v1216 = vpop.f32.mrb[0].mxu0
  %v1217 = vadd.f32 0.0, %v1216
  %v1218 = vpop.f32.mrb[0].mxu0
  %1219 = vmatprep.mubr.f32.mxu0 0.0
  %1220 = vmatmul.mubr.f32.gmra.mrb[0].mxu0 %v380
  %v1221 = vpop.f32.mrb[0].mxu0
  %v1222 = vadd.f32 0.0, %v1221
  %v1223 = vpop.f32.mrb[0].mxu0
  %1224 = vmatprep.mubr.f32.mxu0 0.0
  %1225 = vmatmul.mubr.f32.gmra.mrb[0].mxu0 %v383
  %v1226 = vpop.f32.mrb[0].mxu0
  %v1227 = vadd.f32 0.0, %v1226
  %v1228 = vpop.f32.mrb[0].mxu0
  %1229 = vmatprep.mubr.f32.mxu0 0.0
  %1230 = vmatmul.mubr.f32.gmra.mrb[0].mxu0 %v386
  %v1231 = vpop.f32.mrb[0].mxu0
  %v1232 = vadd.f32 0.0, %v1231
  %v1233 = vpop.f32.mrb[0].mxu0
  %1234 = vmatprep.mubr.f32.mxu0 0.0
  %1235 = vmatmul.mubr.f32.gmra.mrb[0].mxu0 %v389
  %v1236 = vpop.f32.mrb[0].mxu0
  %v1237 = vadd.f32 0.0, %v1236
  %v1238 = vpop.f32.mrb[0].mxu0
  %1239 = vmatprep.mubr.f32.mxu0 0.0
  %1240 = vmatmul.mubr.f32.gmra.mrb[0].mxu0 %v392
  %v1241 = vpop.f32.mrb[0].mxu0
  %v1242 = vadd.f32 0.0, %v1241
  %v1243 = vpop.f32.mrb[0].mxu0
  %1244 = vmatprep.mubr.f32.mxu0 0.0
  %1245 = vmatmul.mubr.f32.gmra.mrb[0].mxu0 %v395
  %v1246 = vpop.f32.mrb[0].mxu0
  %v1247 = vadd.f32 0.0, %v1246
  %v1248 = vpop.f32.mrb[0].mxu0
  %1249 = vmatprep.mubr.f32.mxu0 0.0
  %1250 = vmatmul.mubr.f32.gmra.mrb[0].mxu0 %v398
  %v1251 = vpop.f32.mrb[0].mxu0
  %v1252 = vadd.f32 0.0, %v1251
  %v1253 = vpop.f32.mrb[0].mxu0
  %1254 = vmatprep.mubr.f32.mxu0 0.0
  %1255 = vmatmul.mubr.f32.gmra.mrb[0].mxu0 %v401
  %v1256 = vpop.f32.mrb[0].mxu0
  %v1257 = vadd.f32 0.0, %v1256
  %v1258 = vpop.f32.mrb[0].mxu0
  %1259 = vmatprep.mubr.f32.mxu0 0.0
  %1260 = vmatmul.mubr.f32.gmra.mrb[0].mxu0 %v404
  %v1261 = vpop.f32.mrb[0].mxu0
  %v1262 = vadd.f32 0.0, %v1261
  %v1263 = vpop.f32.mrb[0].mxu0
  %1264 = vmatprep.mubr.f32.mxu0 0.0
  %1265 = vmatmul.mubr.f32.gmra.mrb[0].mxu0 %v407
  %v1266 = vpop.f32.mrb[0].mxu0
  %v1267 = vadd.f32 0.0, %v1266
  %v1268 = vpop.f32.mrb[0].mxu0
  %1269 = vmatprep.mubr.f32.mxu0 0.0
  %1270 = vmatmul.mubr.f32.gmra.mrb[0].mxu0 %v410
  %v1271 = vpop.f32.mrb[0].mxu0
  %v1272 = vadd.f32 0.0, %v1271
  %v1273 = vpop.f32.mrb[0].mxu0
  %1274 = vmatprep.mubr.f32.mxu0 0.0
  %1275 = vmatmul.mubr.f32.gmra.mrb[0].mxu0 %v413
  %v1276 = vpop.f32.mrb[0].mxu0
  %v1277 = vadd.f32 0.0, %v1276
  %v1278 = vpop.f32.mrb[0].mxu0
  %1279 = vmatprep.mubr.f32.mxu0 0.0
  %1280 = vmatmul.mubr.f32.gmra.mrb[0].mxu0 %v416
  %v1281 = vpop.f32.mrb[0].mxu0
  %v1282 = vadd.f32 0.0, %v1281
  %v1283 = vpop.f32.mrb[0].mxu0
  %1284 = vmatprep.mubr.f32.mxu0 0.0
  %1285 = vmatmul.mubr.f32.gmra.mrb[0].mxu0 %v419
  %v1286 = vpop.f32.mrb[0].mxu0
  %v1287 = vadd.f32 0.0, %v1286
  %v1288 = vpop.f32.mrb[0].mxu0
  %1289 = vmatprep.mubr.f32.mxu0 0.0
  %1290 = vmatmul.mubr.f32.gmra.mrb[0].mxu0 %v422
  %v1291 = vpop.f32.mrb[0].mxu0
  %v1292 = vadd.f32 0.0, %v1291
  %v1293 = vpop.f32.mrb[0].mxu0
  %1294 = vmatprep.mubr.f32.mxu0 0.0
  %1295 = vmatmul.mubr.f32.gmra.mrb[0].mxu0 %v425
  %v1296 = vpop.f32.mrb[0].mxu0
  %v1297 = vadd.f32 0.0, %v1296
  %v1298 = vpop.f32.mrb[0].mxu0
  %1299 = vmatprep.mubr.f32.mxu0 0.0
  %1300 = vmatmul.mubr.f32.gmra.mrb[0].mxu0 %v428
  %v1301 = vpop.f32.mrb[0].mxu0
  %v1302 = vadd.f32 0.0, %v1301
  %v1303 = vpop.f32.mrb[0].mxu0
  %1304 = vmatprep.mubr.f32.mxu0 0.0
  %1305 = vmatmul.mubr.f32.gmra.mrb[0].mxu0 %v431
  %v1306 = vpop.f32.mrb[0].mxu0
  %v1307 = vadd.f32 0.0, %v1306
  %v1308 = vpop.f32.mrb[0].mxu0
  %1309 = vmatprep.mubr.f32.mxu0 0.0
  %1310 = vmatmul.mubr.f32.gmra.mrb[0].mxu0 %v434
  %v1311 = vpop.f32.mrb[0].mxu0
  %v1312 = vadd.f32 0.0, %v1311
  %v1313 = vpop.f32.mrb[0].mxu0
  %1314 = vmatprep.mubr.f32.mxu0 0.0
  %1315 = vmatmul.mubr.f32.gmra.mrb[0].mxu0 %v437
  %v1316 = vpop.f32.mrb[0].mxu0
  %v1317 = vadd.f32 0.0, %v1316
  %v1318 = vpop.f32.mrb[0].mxu0
  %1319 = vmatprep.mubr.f32.mxu0 0.0
  %1320 = vmatmul.mubr.f32.gmra.mrb[0].mxu0 %v440
  %v1321 = vpop.f32.mrb[0].mxu0
  %v1322 = vadd.f32 0.0, %v1321
  %v1323 = vpop.f32.mrb[0].mxu0
  %1324 = vmatprep.mubr.f32.mxu0 0.0
  %1325 = vmatmul.mubr.f32.gmra.mrb[0].mxu0 %v443
  %v1326 = vpop.f32.mrb[0].mxu0
  %v1327 = vadd.f32 0.0, %v1326
  %v1328 = vpop.f32.mrb[0].mxu0
  %1329 = vmatprep.mubr.f32.mxu0 0.0
  %1330 = vmatmul.mubr.f32.gmra.mrb[0].mxu0 %v446
  %v1331 = vpop.f32.mrb[0].mxu0
  %v1332 = vadd.f32 0.0, %v1331
  %v1333 = vpop.f32.mrb[0].mxu0
  %1334 = vmatprep.mubr.f32.mxu0 0.0
  %1335 = vmatmul.mubr.f32.gmra.mrb[0].mxu0 %v449
  %v1336 = vpop.f32.mrb[0].mxu0
  %v1337 = vadd.f32 0.0, %v1336
  %v1338 = vpop.f32.mrb[0].mxu0
  %1339 = vmatprep.mubr.f32.mxu0 0.0
  %1340 = vmatmul.mubr.f32.gmra.mrb[0].mxu0 %v452
  %v1341 = vpop.f32.mrb[0].mxu0
  %v1342 = vadd.f32 0.0, %v1341
  %v1343 = vpop.f32.mrb[0].mxu0
  %1344 = vmatprep.mubr.f32.mxu0 0.0
  %1345 = vmatmul.mubr.f32.gmra.mrb[0].mxu0 %v455
  %v1346 = vpop.f32.mrb[0].mxu0
  %v1347 = vadd.f32 0.0, %v1346
  %v1348 = vpop.f32.mrb[0].mxu0
  %1349 = vmatprep.mubr.f32.mxu0 0.0
  %1350 = vmatmul.mubr.f32.gmra.mrb[0].mxu0 %v458
  %v1351 = vpop.f32.mrb[0].mxu0
  %v1352 = vadd.f32 0.0, %v1351
  %v1353 = vpop.f32.mrb[0].mxu0
  %1354 = vmatprep.mubr.f32.mxu0 0.0
  %1355 = vmatmul.mubr.f32.gmra.mrb[0].mxu0 %v461
  %v1356 = vpop.f32.mrb[0].mxu0
  %v1357 = vadd.f32 0.0, %v1356
  %v1358 = vpop.f32.mrb[0].mxu0
  %1359 = vmatprep.mubr.f32.mxu0 0.0
  %1360 = vmatmul.mubr.f32.gmra.mrb[0].mxu0 %v464
  %v1361 = vpop.f32.mrb[0].mxu0
  %v1362 = vadd.f32 0.0, %v1361
  %v1363 = vpop.f32.mrb[0].mxu0
  %1364 = vmatprep.mubr.f32.mxu0 0.0
  %1365 = vmatmul.mubr.f32.gmra.mrb[0].mxu0 %v467
  %v1366 = vpop.f32.mrb[0].mxu0
  %v1367 = vadd.f32 0.0, %v1366
  %v1368 = vpop.f32.mrb[0].mxu0
  %1369 = vmatprep.mubr.f32.mxu0 0.0
  %1370 = vmatmul.mubr.f32.gmra.mrb[0].mxu0 %v470
  %v1371 = vpop.f32.mrb[0].mxu0
  %v1372 = vadd.f32 0.0, %v1371
  %v1373 = vpop.f32.mrb[0].mxu0
  %1374 = vmatprep.mubr.f32.mxu0 0.0
  %1375 = vmatmul.mubr.f32.gmra.mrb[0].mxu0 %v473
  %v1376 = vpop.f32.mrb[0].mxu0
  %v1377 = vadd.f32 0.0, %v1376
  %v1378 = vpop.f32.mrb[0].mxu0
  %1379 = vmatprep.mubr.f32.mxu0 0.0
  %1380 = vmatmul.mubr.f32.gmra.mrb[0].mxu0 %v476
  %v1381 = vpop.f32.mrb[0].mxu0
  %v1382 = vadd.f32 0.0, %v1381
  %v1383 = vpop.f32.mrb[0].mxu0
  %1384 = vmatprep.mubr.f32.mxu0 0.0
  %1385 = vmatmul.mubr.f32.gmra.mrb[0].mxu0 %v479
  %v1386 = vpop.f32.mrb[0].mxu0
  %v1387 = vadd.f32 0.0, %v1386
  %v1388 = vpop.f32.mrb[0].mxu0
  %1389 = vmatprep.mubr.f32.mxu0 0.0
  %1390 = vmatmul.mubr.f32.gmra.mrb[0].mxu0 %v482
  %v1391 = vpop.f32.mrb[0].mxu0
  %v1392 = vadd.f32 0.0, %v1391
  %v1393 = vpop.f32.mrb[0].mxu0
  %1394 = vmatprep.mubr.f32.mxu0 0.0
  %1395 = vmatmul.mubr.f32.gmra.mrb[0].mxu0 %v485
  %v1396 = vpop.f32.mrb[0].mxu0
  %v1397 = vadd.f32 0.0, %v1396
  %v1398 = vpop.f32.mrb[0].mxu0
  %1399 = vmatprep.mubr.f32.mxu0 0.0
  %1400 = vmatmul.mubr.f32.gmra.mrb[0].mxu0 %v488
  %v1401 = vpop.f32.mrb[0].mxu0
  %v1402 = vadd.f32 0.0, %v1401
  %v1403 = vpop.f32.mrb[0].mxu0
  %1404 = vmatprep.mubr.f32.mxu0 0.0
  %1405 = vmatmul.mubr.f32.gmra.mrb[0].mxu0 %v491
  %v1406 = vpop.f32.mrb[0].mxu0
  %v1407 = vadd.f32 0.0, %v1406
  %v1408 = vpop.f32.mrb[0].mxu0
  %1409 = vmatprep.mubr.f32.mxu0 0.0
  %1410 = vmatmul.mubr.f32.gmra.mrb[0].mxu0 %v494
  %v1411 = vpop.f32.mrb[0].mxu0
  %v1412 = vadd.f32 0.0, %v1411
  %v1413 = vpop.f32.mrb[0].mxu0
  %1414 = vmatprep.mubr.f32.mxu0 0.0
  %1415 = vmatmul.mubr.f32.gmra.mrb[0].mxu0 %v497
  %v1416 = vpop.f32.mrb[0].mxu0
  %v1417 = vadd.f32 0.0, %v1416
  %v1418 = vpop.f32.mrb[0].mxu0
  %1419 = vmatprep.mubr.f32.mxu0 0.0
  %1420 = vmatmul.mubr.f32.gmra.mrb[0].mxu0 %v500
  %v1421 = vpop.f32.mrb[0].mxu0
  %v1422 = vadd.f32 0.0, %v1421
  %v1423 = vpop.f32.mrb[0].mxu0
  %1424 = vmatprep.mubr.f32.mxu0 0.0
  %1425 = vmatmul.mubr.f32.gmra.mrb[0].mxu0 %v503
  %v1426 = vpop.f32.mrb[0].mxu0
  %v1427 = vadd.f32 0.0, %v1426
  %v1428 = vpop.f32.mrb[0].mxu0
  %1429 = vmatprep.mubr.f32.mxu0 0.0
  %1430 = vmatmul.mubr.f32.gmra.mrb[0].mxu0 %v506
  %v1431 = vpop.f32.mrb[0].mxu0
  %v1432 = vadd.f32 0.0, %v1431
  %v1433 = vpop.f32.mrb[0].mxu0
  %1434 = vmatprep.mubr.f32.mxu0 0.0
  %1435 = vmatmul.mubr.f32.gmra.mrb[0].mxu0 %v509
  %v1436 = vpop.f32.mrb[0].mxu0
  %v1437 = vadd.f32 0.0, %v1436
  %v1438 = vpop.f32.mrb[0].mxu0
  %1439 = vmatprep.mubr.f32.mxu0 0.0
  %1440 = vmatmul.mubr.f32.gmra.mrb[0].mxu0 %v512
  %v1441 = vpop.f32.mrb[0].mxu0
  %v1442 = vadd.f32 0.0, %v1441
  %v1443 = vpop.f32.mrb[0].mxu0
  %1444 = vmatprep.mubr.f32.mxu0 0.0
  %1445 = vmatmul.mubr.f32.gmra.mrb[0].mxu0 %v515
  %v1446 = vpop.f32.mrb[0].mxu0
  %v1447 = vadd.f32 0.0, %v1446
  %v1448 = vpop.f32.mrb[0].mxu0
  %1449 = vmatprep.mubr.f32.mxu0 0.0
  %1450 = vmatmul.mubr.f32.gmra.mrb[0].mxu0 %v518
  %v1451 = vpop.f32.mrb[0].mxu0
  %v1452 = vadd.f32 0.0, %v1451
  %v1453 = vpop.f32.mrb[0].mxu0
  %1454 = vmatprep.mubr.f32.mxu0 0.0
  %1455 = vmatmul.mubr.f32.gmra.mrb[0].mxu0 %v521
  %v1456 = vpop.f32.mrb[0].mxu0
  %v1457 = vadd.f32 0.0, %v1456
  %v1458 = vpop.f32.mrb[0].mxu0
  %1459 = vmatprep.mubr.f32.mxu0 0.0
  %1460 = vmatmul.mubr.f32.gmra.mrb[0].mxu0 %v524
  %v1461 = vpop.f32.mrb[0].mxu0
  %v1462 = vadd.f32 0.0, %v1461
  %v1463 = vpop.f32.mrb[0].mxu0
  %1464 = vmatprep.mubr.f32.mxu0 0.0
  %1465 = vmatmul.mubr.f32.gmra.mrb[0].mxu0 %v527
  %v1466 = vpop.f32.mrb[0].mxu0
  %v1467 = vadd.f32 0.0, %v1466
  %v1468 = vpop.f32.mrb[0].mxu0
  %1469 = vmatprep.mubr.f32.mxu0 0.0
  %1470 = vmatmul.mubr.f32.gmra.mrb[0].mxu0 %v530
  %v1471 = vpop.f32.mrb[0].mxu0
  %v1472 = vadd.f32 0.0, %v1471
  %v1473 = vpop.f32.mrb[0].mxu0
  %1474 = vmatprep.mubr.f32.mxu0 0.0
  %1475 = vmatmul.mubr.f32.gmra.mrb[0].mxu0 %v533
  %v1476 = vpop.f32.mrb[0].mxu0
  %v1477 = vadd.f32 0.0, %v1476
  %v1478 = vpop.f32.mrb[0].mxu0
  %1479 = vmatprep.mubr.f32.mxu0 0.0
  %1480 = vmatmul.mubr.f32.gmra.mrb[0].mxu0 %v536
  %v1481 = vpop.f32.mrb[0].mxu0
  %v1482 = vadd.f32 0.0, %v1481
  %v1483 = vpop.f32.mrb[0].mxu0
  %1484 = vmatprep.mubr.f32.mxu0 0.0
  %1485 = vmatmul.mubr.f32.gmra.mrb[0].mxu0 %v539
  %v1486 = vpop.f32.mrb[0].mxu0
  %v1487 = vadd.f32 0.0, %v1486
  %v1488 = vpop.f32.mrb[0].mxu0
  %1489 = vmatprep.mubr.f32.mxu0 0.0
  %1490 = vmatmul.mubr.f32.gmra.mrb[0].mxu0 %v542
  %v1491 = vpop.f32.mrb[0].mxu0
  %v1492 = vadd.f32 0.0, %v1491
  %v1493 = vpop.f32.mrb[0].mxu0
  %1494 = vmatprep.mubr.f32.mxu0 0.0
  %1495 = vmatmul.mubr.f32.gmra.mrb[0].mxu0 %v545
  %v1496 = vpop.f32.mrb[0].mxu0
  %v1497 = vadd.f32 0.0, %v1496
  %v1498 = vpop.f32.mrb[0].mxu0
  %1499 = vmatprep.mubr.f32.mxu0 0.0
  %1500 = vmatmul.mubr.f32.gmra.mrb[0].mxu0 %v548
  %v1501 = vpop.f32.mrb[0].mxu0
  %v1502 = vadd.f32 0.0, %v1501
  %v1503 = vpop.f32.mrb[0].mxu0
  %1504 = vmatprep.mubr.f32.mxu0 0.0
  %1505 = vmatmul.mubr.f32.gmra.mrb[0].mxu0 %v551
  %v1506 = vpop.f32.mrb[0].mxu0
  %v1507 = vadd.f32 0.0, %v1506
  %v1508 = vpop.f32.mrb[0].mxu0
  %1509 = vmatprep.mubr.f32.mxu0 0.0
  %1510 = vmatmul.mubr.f32.gmra.mrb[0].mxu0 %v554
  %v1511 = vpop.f32.mrb[0].mxu0
  %v1512 = vadd.f32 0.0, %v1511
  %v1513 = vpop.f32.mrb[0].mxu0
  %1514 = vmatprep.mubr.f32.mxu0 0.0
  %1515 = vmatmul.mubr.f32.gmra.mrb[0].mxu0 %v557
  %v1516 = vpop.f32.mrb[0].mxu0
  %v1517 = vadd.f32 0.0, %v1516
  %v1518 = vpop.f32.mrb[0].mxu0
  %1519 = vmatprep.mubr.f32.mxu0 0.0
  %1520 = vmatmul.mubr.f32.gmra.mrb[0].mxu0 %v560
  %v1521 = vpop.f32.mrb[0].mxu0
  %v1522 = vadd.f32 0.0, %v1521
  %v1523 = vpop.f32.mrb[0].mxu0
  %1524 = vmatprep.mubr.f32.mxu0 0.0
  %1525 = vmatmul.mubr.f32.gmra.mrb[0].mxu0 %v563
  %v1526 = vpop.f32.mrb[0].mxu0
  %v1527 = vadd.f32 0.0, %v1526
  %v1528 = vpop.f32.mrb[0].mxu0
  %1529 = vmatprep.mubr.f32.mxu0 0.0
  %1530 = vmatmul.mubr.f32.gmra.mrb[0].mxu0 %v566
  %v1531 = vpop.f32.mrb[0].mxu0
  %v1532 = vadd.f32 0.0, %v1531
  %v1533 = vpop.f32.mrb[0].mxu0
  %1534 = vmatprep.mubr.f32.mxu0 0.0
  %1535 = vmatmul.mubr.f32.gmra.mrb[0].mxu0 %v569
  %v1536 = vpop.f32.mrb[0].mxu0
  %v1537 = vadd.f32 0.0, %v1536
  %v1538 = vpop.f32.mrb[0].mxu0
  %1539 = vmatprep.mubr.f32.mxu0 0.0
  %1540 = vmatmul.mubr.f32.gmra.mrb[0].mxu0 %v572
  %v1541 = vpop.f32.mrb[0].mxu0
  %v1542 = vadd.f32 0.0, %v1541
  %v1543 = vpop.f32.mrb[0].mxu0
  %1544 = vmatprep.mubr.f32.mxu0 0.0
  %1545 = vmatmul.mubr.f32.gmra.mrb[0].mxu0 %v575
  %v1546 = vpop.f32.mrb[0].mxu0
  %v1547 = vadd.f32 0.0, %v1546
  %v1548 = vpop.f32.mrb[0].mxu0
  %1549 = vmatprep.mubr.f32.mxu0 0.0
  %1550 = vmatmul.mubr.f32.gmra.mrb[0].mxu0 %v578
  %v1551 = vpop.f32.mrb[0].mxu0
  %v1552 = vadd.f32 0.0, %v1551
  %v1553 = vpop.f32.mrb[0].mxu0
  %1554 = vmatprep.mubr.f32.mxu0 0.0
  %1555 = vmatmul.mubr.f32.gmra.mrb[0].mxu0 %v581
  %v1556 = vpop.f32.mrb[0].mxu0
  %v1557 = vadd.f32 0.0, %v1556
  %v1558 = vpop.f32.mrb[0].mxu0
  %1559 = vmatprep.mubr.f32.mxu0 0.0
  %1560 = vmatmul.mubr.f32.gmra.mrb[0].mxu0 %v584
  %v1561 = vpop.f32.mrb[0].mxu0
  %v1562 = vadd.f32 0.0, %v1561
  %v1563 = vpop.f32.mrb[0].mxu0
  %1564 = vmatprep.mubr.f32.mxu0 0.0
  %1565 = vmatmul.mubr.f32.gmra.mrb[0].mxu0 %v587
  %v1566 = vpop.f32.mrb[0].mxu0
  %v1567 = vadd.f32 0.0, %v1566
  %v1568 = vpop.f32.mrb[0].mxu0
  %1569 = vmatprep.mubr.f32.mxu0 0.0
  %1570 = vmatmul.mubr.f32.gmra.mrb[0].mxu0 %v590
  %v1571 = vpop.f32.mrb[0].mxu0
  %v1572 = vadd.f32 0.0, %v1571
  %v1573 = vpop.f32.mrb[0].mxu0
  %1574 = vmatprep.mubr.f32.mxu0 0.0
  %1575 = vmatmul.mubr.f32.gmra.mrb[0].mxu0 %v593
  %v1576 = vpop.f32.mrb[0].mxu0
  %v1577 = vadd.f32 0.0, %v1576
  %v1578 = vpop.f32.mrb[0].mxu0
  %1579 = vmatprep.mubr.f32.mxu0 0.0
  %1580 = vmatmul.mubr.f32.gmra.mrb[0].mxu0 %v596
  %v1581 = vpop.f32.mrb[0].mxu0
  %v1582 = vadd.f32 0.0, %v1581
  %v1583 = vpop.f32.mrb[0].mxu0
  %1584 = vmatprep.mubr.f32.mxu0 0.0
  %1585 = vmatmul.mubr.f32.gmra.mrb[0].mxu0 %v599
  %v1586 = vpop.f32.mrb[0].mxu0
  %v1587 = vadd.f32 0.0, %v1586
  %v1588 = vpop.f32.mrb[0].mxu0
  %1589 = vmatprep.mubr.f32.mxu0 0.0
  %1590 = vmatmul.mubr.f32.gmra.mrb[0].mxu0 %v602
  %v1591 = vpop.f32.mrb[0].mxu0
  %v1592 = vadd.f32 0.0, %v1591
  %v1593 = vpop.f32.mrb[0].mxu0
  %1594 = vmatprep.mubr.f32.mxu0 0.0
  %1595 = vmatmul.mubr.f32.gmra.mrb[0].mxu0 %v605
  %v1596 = vpop.f32.mrb[0].mxu0
  %v1597 = vadd.f32 0.0, %v1596
  %v1598 = vpop.f32.mrb[0].mxu0
  %1599 = vmatprep.mubr.f32.mxu0 0.0
  %1600 = vmatmul.mubr.f32.gmra.mrb[0].mxu0 %v608
  %v1601 = vpop.f32.mrb[0].mxu0
  %v1602 = vadd.f32 0.0, %v1601
  %v1603 = vpop.f32.mrb[0].mxu0
  %1604 = vmatprep.mubr.f32.mxu0 0.0
  %1605 = vmatmul.mubr.f32.gmra.mrb[0].mxu0 %v611
  %v1606 = vpop.f32.mrb[0].mxu0
  %v1607 = vadd.f32 0.0, %v1606
  %v1608 = vpop.f32.mrb[0].mxu0
  %1609 = vmatprep.mubr.f32.mxu0 0.0
  %1610 = vmatmul.mubr.f32.gmra.mrb[0].mxu0 %v614
  %v1611 = vpop.f32.mrb[0].mxu0
  %v1612 = vadd.f32 0.0, %v1611
  %v1613 = vpop.f32.mrb[0].mxu0
  %1614 = vmatprep.mubr.f32.mxu0 0.0
  %1615 = vmatmul.mubr.f32.gmra.mrb[0].mxu0 %v617
  %v1616 = vpop.f32.mrb[0].mxu0
  %v1617 = vadd.f32 0.0, %v1616
  %v1618 = vpop.f32.mrb[0].mxu0
  %1619 = vmatprep.mubr.f32.mxu0 0.0
  %1620 = vmatmul.mubr.f32.gmra.mrb[0].mxu0 %v620
  %v1621 = vpop.f32.mrb[0].mxu0
  %v1622 = vadd.f32 0.0, %v1621
  %v1623 = vpop.f32.mrb[0].mxu0
  %1624 = vmatprep.mubr.f32.mxu0 0.0
  %1625 = vmatmul.mubr.f32.gmra.mrb[0].mxu0 %v623
  %v1626 = vpop.f32.mrb[0].mxu0
  %v1627 = vadd.f32 0.0, %v1626
  %v1628 = vpop.f32.mrb[0].mxu0
  %1629 = vmatprep.mubr.f32.mxu0 0.0
  %1630 = vmatmul.mubr.f32.gmra.mrb[0].mxu0 %v626
  %v1631 = vpop.f32.mrb[0].mxu0
  %v1632 = vadd.f32 0.0, %v1631
  %v1633 = vpop.f32.mrb[0].mxu0
  %1634 = vmatprep.mubr.f32.mxu0 0.0
  %1635 = vmatmul.mubr.f32.gmra.mrb[0].mxu0 %v629
  %v1636 = vpop.f32.mrb[0].mxu0
  %v1637 = vadd.f32 0.0, %v1636
  %v1638 = vpop.f32.mrb[0].mxu0
  %1639 = vmatprep.mubr.f32.mxu0 0.0
  %1640 = vmatmul.mubr.f32.gmra.mrb[0].mxu0 %v632
  %v1641 = vpop.f32.mrb[0].mxu0
  %v1642 = vadd.f32 0.0, %v1641
  %v1643 = vpop.f32.mrb[0].mxu0
  %1644 = vmatprep.mubr.f32.mxu0 0.0
  %1645 = vmatmul.mubr.f32.gmra.mrb[0].mxu0 %v635
  %v1646 = vpop.f32.mrb[0].mxu0
  %v1647 = vadd.f32 0.0, %v1646
  %v1648 = vpop.f32.mrb[0].mxu0
  %1649 = vmatprep.mubr.f32.mxu0 0.0
  %1650 = vmatmul.mubr.f32.gmra.mrb[0].mxu0 %v638
  %v1651 = vpop.f32.mrb[0].mxu0
  %v1652 = vadd.f32 0.0, %v1651
  %v1653 = vpop.f32.mrb[0].mxu0
  %1654 = vmatprep.mubr.f32.mxu0 0.0
  %1655 = vmatmul.mubr.f32.gmra.mrb[0].mxu0 %v641
  %v1656 = vpop.f32.mrb[0].mxu0
  %v1657 = vadd.f32 0.0, %v1656
  %v1658 = vpop.f32.mrb[0].mxu0
  %1659 = vmatprep.mubr.f32.mxu0 0.0
  %1660 = vmatmul.mubr.f32.gmra.mrb[0].mxu0 %v644
  %v1661 = vpop.f32.mrb[0].mxu0
  %v1662 = vadd.f32 0.0, %v1661
  %v1663 = vpop.f32.mrb[0].mxu0
  %1664 = vmatprep.mubr.f32.mxu0 0.0
  %1665 = vmatmul.mubr.f32.gmra.mrb[0].mxu0 %v647
  %v1666 = vpop.f32.mrb[0].mxu0
  %v1667 = vadd.f32 0.0, %v1666
  %v1668 = vpop.f32.mrb[0].mxu0
  %1669 = vmatprep.mubr.f32.mxu0 0.0
  %1670 = vmatmul.mubr.f32.gmra.mrb[0].mxu0 %v650
  %v1671 = vpop.f32.mrb[0].mxu0
  %v1672 = vadd.f32 0.0, %v1671
  %v1673 = vpop.f32.mrb[0].mxu0
  %1674 = vmatprep.mubr.f32.mxu0 0.0
  %1675 = vmatmul.mubr.f32.gmra.mrb[0].mxu0 %v653
  %v1676 = vpop.f32.mrb[0].mxu0
  %v1677 = vadd.f32 0.0, %v1676
  %v1678 = vpop.f32.mrb[0].mxu0
  %1679 = vmatprep.mubr.f32.mxu0 0.0
  %1680 = vmatmul.mubr.f32.gmra.mrb[0].mxu0 %v656
  %v1681 = vpop.f32.mrb[0].mxu0
  %v1682 = vadd.f32 0.0, %v1681
  %v1683 = vpop.f32.mrb[0].mxu0
  %1684 = vmatprep.mubr.f32.mxu0 0.0
  %1685 = vmatmul.mubr.f32.gmra.mrb[0].mxu0 %v659
  %v1686 = vpop.f32.mrb[0].mxu0
  %v1687 = vadd.f32 0.0, %v1686
  %v1688 = vpop.f32.mrb[0].mxu0
  %1689 = vmatprep.mubr.f32.mxu0 0.0
  %1690 = vmatmul.mubr.f32.gmra.mrb[0].mxu0 %v662
  %v1691 = vpop.f32.mrb[0].mxu0
  %v1692 = vadd.f32 0.0, %v1691
  %v1693 = vpop.f32.mrb[0].mxu0
  %1694 = vmatprep.mubr.f32.mxu0 0.0
  %1695 = vmatmul.mubr.f32.gmra.mrb[0].mxu0 %v665
  %v1696 = vpop.f32.mrb[0].mxu0
  %v1697 = vadd.f32 0.0, %v1696
  %v1698 = vpop.f32.mrb[0].mxu0
  %1699 = vmatprep.mubr.f32.mxu0 0.0
  %1700 = vmatmul.mubr.f32.gmra.mrb[0].mxu0 %v668
  %v1701 = vpop.f32.mrb[0].mxu0
  %v1702 = vadd.f32 0.0, %v1701
  %v1703 = vpop.f32.mrb[0].mxu0
  %1704 = vmatprep.mubr.f32.mxu0 0.0
  %1705 = vmatmul.mubr.f32.gmra.mrb[0].mxu0 %v671
  %v1706 = vpop.f32.mrb[0].mxu0
  %v1707 = vadd.f32 0.0, %v1706
  %v1708 = vpop.f32.mrb[0].mxu0
  %1709 = vmatprep.mubr.f32.mxu0 0.0
  %1710 = vmatmul.mubr.f32.gmra.mrb[0].mxu0 %v674
  %v1711 = vpop.f32.mrb[0].mxu0
  %v1712 = vadd.f32 0.0, %v1711
  %v1713 = vpop.f32.mrb[0].mxu0
  %1714 = vmatprep.mubr.f32.mxu0 0.0
  %1715 = vmatmul.mubr.f32.gmra.mrb[0].mxu0 %v677
  %v1716 = vpop.f32.mrb[0].mxu0
  %v1717 = vadd.f32 0.0, %v1716
  %v1718 = vpop.f32.mrb[0].mxu0
  %1719 = vmatprep.mubr.f32.mxu0 0.0
  %1720 = vmatmul.mubr.f32.gmra.mrb[0].mxu0 %v680
  %v1721 = vpop.f32.mrb[0].mxu0
  %v1722 = vadd.f32 0.0, %v1721
  %v1723 = vpop.f32.mrb[0].mxu0
  %1724 = vmatprep.mubr.f32.mxu0 0.0
  %1725 = vmatmul.mubr.f32.gmra.mrb[0].mxu0 %v683
  %v1726 = vpop.f32.mrb[0].mxu0
  %v1727 = vadd.f32 0.0, %v1726
  %v1728 = vpop.f32.mrb[0].mxu0
  %1729 = vmatprep.mubr.f32.mxu0 0.0
  %1730 = vmatmul.mubr.f32.gmra.mrb[0].mxu0 %v686
  %v1731 = vpop.f32.mrb[0].mxu0
  %v1732 = vadd.f32 0.0, %v1731
  %v1733 = vpop.f32.mrb[0].mxu0
  %1734 = vmatprep.mubr.f32.mxu0 0.0
  %1735 = vmatmul.mubr.f32.gmra.mrb[0].mxu0 %v689
  %v1736 = vpop.f32.mrb[0].mxu0
  %v1737 = vadd.f32 0.0, %v1736
  %v1738 = vpop.f32.mrb[0].mxu0
  %1739 = vmatprep.mubr.f32.mxu0 0.0
  %1740 = vmatmul.mubr.f32.gmra.mrb[0].mxu0 %v692
  %v1741 = vpop.f32.mrb[0].mxu0
  %v1742 = vadd.f32 0.0, %v1741
  %v1743 = vpop.f32.mrb[0].mxu0
  %1744 = vmatprep.mubr.f32.mxu0 0.0
  %1745 = vmatmul.mubr.f32.gmra.mrb[0].mxu0 %v695
  %v1746 = vpop.f32.mrb[0].mxu0
  %v1747 = vadd.f32 0.0, %v1746
  %v1748 = vpop.f32.mrb[0].mxu0
  %1749 = vmatprep.mubr.f32.mxu0 0.0
  %1750 = vmatmul.mubr.f32.gmra.mrb[0].mxu0 %v698
  %v1751 = vpop.f32.mrb[0].mxu0
  %v1752 = vadd.f32 0.0, %v1751
  %v1753 = vpop.f32.mrb[0].mxu0
  %1754 = vmatprep.mubr.f32.mxu0 0.0
  %1755 = vmatmul.mubr.f32.gmra.mrb[0].mxu0 %v701
  %v1756 = vpop.f32.mrb[0].mxu0
  %v1757 = vadd.f32 0.0, %v1756
  %v1758 = vpop.f32.mrb[0].mxu0
  %1759 = vmatprep.mubr.f32.mxu0 0.0
  %1760 = vmatmul.mubr.f32.gmra.mrb[0].mxu0 %v704
  %v1761 = vpop.f32.mrb[0].mxu0
  %v1762 = vadd.f32 0.0, %v1761
  %v1763 = vpop.f32.mrb[0].mxu0
  %1764 = vmatprep.mubr.f32.mxu0 0.0
  %1765 = vmatmul.mubr.f32.gmra.mrb[0].mxu0 %v707
  %v1766 = vpop.f32.mrb[0].mxu0
  %v1767 = vadd.f32 0.0, %v1766
  %v1768 = vpop.f32.mrb[0].mxu0
  %1769 = vmatprep.mubr.f32.mxu0 0.0
  %1770 = vmatmul.mubr.f32.gmra.mrb[0].mxu0 %v710
  %v1771 = vpop.f32.mrb[0].mxu0
  %v1772 = vadd.f32 0.0, %v1771
  %v1773 = vpop.f32.mrb[0].mxu0
  %1774 = vmatprep.mubr.f32.mxu0 0.0
  %1775 = vmatmul.mubr.f32.gmra.mrb[0].mxu0 %v713
  %v1776 = vpop.f32.mrb[0].mxu0
  %v1777 = vadd.f32 0.0, %v1776
  %v1778 = vpop.f32.mrb[0].mxu0
  %1779 = vmatprep.mubr.f32.mxu0 0.0
  %1780 = vmatmul.mubr.f32.gmra.mrb[0].mxu0 %v716
  %v1781 = vpop.f32.mrb[0].mxu0
  %v1782 = vadd.f32 0.0, %v1781
  %v1783 = vpop.f32.mrb[0].mxu0
  %1784 = vmatprep.mubr.f32.mxu0 0.0
  %1785 = vmatmul.mubr.f32.gmra.mrb[0].mxu0 %v719
  %v1786 = vpop.f32.mrb[0].mxu0
  %v1787 = vadd.f32 0.0, %v1786
  %v1788 = vpop.f32.mrb[0].mxu0
  %1789 = vmatprep.mubr.f32.mxu0 0.0
  %1790 = vmatmul.mubr.f32.gmra.mrb[0].mxu0 %v722
  %v1791 = vpop.f32.mrb[0].mxu0
  %v1792 = vadd.f32 0.0, %v1791
  %v1793 = vpop.f32.mrb[0].mxu0
  %1794 = vmatprep.mubr.f32.mxu0 0.0
  %1795 = vmatmul.mubr.f32.gmra.mrb[0].mxu0 %v725
  %v1796 = vpop.f32.mrb[0].mxu0
  %v1797 = vadd.f32 0.0, %v1796
  %v1798 = vpop.f32.mrb[0].mxu0
  %1799 = vmatprep.mubr.f32.mxu0 0.0
  %1800 = vmatmul.mubr.f32.gmra.mrb[0].mxu0 %v728
  %v1801 = vpop.f32.mrb[0].mxu0
  %v1802 = vadd.f32 0.0, %v1801
  %v1803 = vpop.f32.mrb[0].mxu0
  %1804 = vmatprep.mubr.f32.mxu0 0.0
  %1805 = vmatmul.mubr.f32.gmra.mrb[0].mxu0 %v731
  %v1806 = vpop.f32.mrb[0].mxu0
  %v1807 = vadd.f32 0.0, %v1806
  %v1808 = vpop.f32.mrb[0].mxu0
  %1809 = vmatprep.mubr.f32.mxu0 0.0
  %1810 = vmatmul.mubr.f32.gmra.mrb[0].mxu0 %v734
  %v1811 = vpop.f32.mrb[0].mxu0
  %v1812 = vadd.f32 0.0, %v1811
  %v1813 = vpop.f32.mrb[0].mxu0
  %1814 = vmatprep.mubr.f32.mxu0 0.0
  %1815 = vmatmul.mubr.f32.gmra.mrb[0].mxu0 %v737
  %v1816 = vpop.f32.mrb[0].mxu0
  %v1817 = vadd.f32 0.0, %v1816
  %v1818 = vpop.f32.mrb[0].mxu0
  %1819 = vmatprep.mubr.f32.mxu0 0.0
  %1820 = vmatmul.mubr.f32.gmra.mrb[0].mxu0 %v740
  %v1821 = vpop.f32.mrb[0].mxu0
  %v1822 = vadd.f32 0.0, %v1821
  %v1823 = vpop.f32.mrb[0].mxu0
  %1824 = vmatprep.mubr.f32.mxu0 0.0
  %1825 = vmatmul.mubr.f32.gmra.mrb[0].mxu0 %v743
  %v1826 = vpop.f32.mrb[0].mxu0
  %v1827 = vadd.f32 0.0, %v1826
  %v1828 = vpop.f32.mrb[0].mxu0
  %1829 = vmatprep.mubr.f32.mxu0 0.0
  %1830 = vmatmul.mubr.f32.gmra.mrb[0].mxu0 %v746
  %v1831 = vpop.f32.mrb[0].mxu0
  %v1832 = vadd.f32 0.0, %v1831
  %v1833 = vpop.f32.mrb[0].mxu0
  %1834 = vmatprep.mubr.f32.mxu0 0.0
  %1835 = vmatmul.mubr.f32.gmra.mrb[0].mxu0 %v749
  %v1836 = vpop.f32.mrb[0].mxu0
  %v1837 = vadd.f32 0.0, %v1836
  %v1838 = vpop.f32.mrb[0].mxu0
  %1839 = vmatprep.mubr.f32.mxu0 0.0
  %1840 = vmatmul.mubr.f32.gmra.mrb[0].mxu0 %v752
  %v1841 = vpop.f32.mrb[0].mxu0
  %v1842 = vadd.f32 0.0, %v1841
  %v1843 = vpop.f32.mrb[0].mxu0
  %1844 = vmatprep.mubr.f32.mxu0 0.0
  %1845 = vmatmul.mubr.f32.gmra.mrb[0].mxu0 %v755
  %v1846 = vpop.f32.mrb[0].mxu0
  %v1847 = vadd.f32 0.0, %v1846
  %v1848 = vpop.f32.mrb[0].mxu0
  %1849 = vmatprep.mubr.f32.mxu0 0.0
  %1850 = vmatmul.mubr.f32.gmra.mrb[0].mxu0 %v758
  %v1851 = vpop.f32.mrb[0].mxu0
  %v1852 = vadd.f32 0.0, %v1851
  %v1853 = vpop.f32.mrb[0].mxu0
  %1854 = vmatprep.mubr.f32.mxu0 0.0
  %1855 = vmatmul.mubr.f32.gmra.mrb[0].mxu0 %v761
  %v1856 = vpop.f32.mrb[0].mxu0
  %v1857 = vadd.f32 0.0, %v1856
  %v1858 = vpop.f32.mrb[0].mxu0
  %1859 = vmatprep.mubr.f32.mxu0 0.0
  %1860 = vmatmul.mubr.f32.gmra.mrb[0].mxu0 %v764
  %v1861 = vpop.f32.mrb[0].mxu0
  %v1862 = vadd.f32 0.0, %v1861
  %v1863 = vpop.f32.mrb[0].mxu0
  %1864 = vmatprep.mubr.f32.mxu0 0.0
  %1865 = vmatmul.mubr.f32.gmra.mrb[0].mxu0 %v767
  %v1866 = vpop.f32.mrb[0].mxu0
  %v1867 = vadd.f32 0.0, %v1866
  %v1868 = vpop.f32.mrb[0].mxu0
  %1869 = vmatprep.mubr.f32.mxu0 0.0
  %1870 = vmatmul.mubr.f32.gmra.mrb[0].mxu0 %v770
  %v1871 = vpop.f32.mrb[0].mxu0
  %v1872 = vadd.f32 0.0, %v1871
  %v1873 = vpop.f32.mrb[0].mxu0
  %1874 = vmatprep.mubr.f32.mxu0 0.0
  %1875 = vmatmul.mubr.f32.gmra.mrb[0].mxu0 %v773
  %v1876 = vpop.f32.mrb[0].mxu0
  %v1877 = vadd.f32 0.0, %v1876
  %v1878 = vpop.f32.mrb[0].mxu0
  %1879 = vmatprep.mubr.f32.mxu0 0.0
  %1880 = vmatmul.mubr.f32.gmra.mrb[0].mxu0 %v776
  %v1881 = vpop.f32.mrb[0].mxu0
  %v1882 = vadd.f32 0.0, %v1881
  %v1883 = vpop.f32.mrb[0].mxu0
  %1884 = vmatprep.mubr.f32.mxu0 0.0
  %1885 = vmatmul.mubr.f32.gmra.mrb[0].mxu0 %v779
  %v1886 = vpop.f32.mrb[0].mxu0
  %v1887 = vadd.f32 0.0, %v1886
  %v1888 = vpop.f32.mrb[0].mxu0
  %1889 = vmatprep.mubr.f32.mxu0 0.0
  %1890 = vmatmul.mubr.f32.gmra.mrb[0].mxu0 %v782
  %v1891 = vpop.f32.mrb[0].mxu0
  %v1892 = vadd.f32 0.0, %v1891
  %v1893 = vpop.f32.mrb[0].mxu0
  %1894 = vmatprep.mubr.f32.mxu0 0.0
  %1895 = vmatmul.mubr.f32.gmra.mrb[0].mxu0 %v785
  %v1896 = vpop.f32.mrb[0].mxu0
  %v1897 = vadd.f32 0.0, %v1896
  %v1898 = vpop.f32.mrb[0].mxu0
  %1899 = vmatprep.mubr.f32.mxu0 0.0
  %1900 = vmatmul.mubr.f32.gmra.mrb[0].mxu0 %v788
  %v1901 = vpop.f32.mrb[0].mxu0
  %v1902 = vadd.f32 0.0, %v1901
  %v1903 = vpop.f32.mrb[0].mxu0
  %1904 = vmatprep.mubr.f32.mxu0 0.0
  %1905 = vmatmul.mubr.f32.gmra.mrb[0].mxu0 %v791
  %v1906 = vpop.f32.mrb[0].mxu0
  %v1907 = vadd.f32 0.0, %v1906
  %v1908 = vpop.f32.mrb[0].mxu0
  %1909 = vmatprep.mubr.f32.mxu0 0.0
  %1910 = vmatmul.mubr.f32.gmra.mrb[0].mxu0 %v794
  %v1911 = vpop.f32.mrb[0].mxu0
  %v1912 = vadd.f32 0.0, %v1911
  %v1913 = vpop.f32.mrb[0].mxu0
  %1914 = vmatprep.mubr.f32.mxu0 0.0
  %1915 = vmatmul.mubr.f32.gmra.mrb[0].mxu0 %v797
  %v1916 = vpop.f32.mrb[0].mxu0
  %v1917 = vadd.f32 0.0, %v1916
  %v1918 = vpop.f32.mrb[0].mxu0
  %1919 = vmatprep.mubr.f32.mxu0 0.0
  %1920 = vmatmul.mubr.f32.gmra.mrb[0].mxu0 %v800
  %v1921 = vpop.f32.mrb[0].mxu0
  %v1922 = vadd.f32 0.0, %v1921
  %v1923 = vpop.f32.mrb[0].mxu0
  %1924 = vmatprep.mubr.f32.mxu0 0.0
  %1925 = vmatmul.mubr.f32.gmra.mrb[0].mxu0 %v803
  %v1926 = vpop.f32.mrb[0].mxu0
  %v1927 = vadd.f32 0.0, %v1926
  %v1928 = vpop.f32.mrb[0].mxu0
  %1929 = vmatprep.mubr.f32.mxu0 0.0
  %1930 = vmatmul.mubr.f32.gmra.mrb[0].mxu0 %v806
  %v1931 = vpop.f32.mrb[0].mxu0
  %v1932 = vadd.f32 0.0, %v1931
  %v1933 = vpop.f32.mrb[0].mxu0
  %1934 = vmatprep.mubr.f32.mxu0 0.0
  %1935 = vmatmul.mubr.f32.gmra.mrb[0].mxu0 %v809
  %v1936 = vpop.f32.mrb[0].mxu0
  %v1937 = vadd.f32 0.0, %v1936
  %v1938 = vpop.f32.mrb[0].mxu0
  %1939 = vmatprep.mubr.f32.mxu0 0.0
  %1940 = vmatmul.mubr.f32.gmra.mrb[0].mxu0 %v812
  %v1941 = vpop.f32.mrb[0].mxu0
  %v1942 = vadd.f32 0.0, %v1941
  %v1943 = vpop.f32.mrb[0].mxu0
  %1944 = vmatprep.mubr.f32.mxu0 0.0
  %1945 = vmatmul.mubr.f32.gmra.mrb[0].mxu0 %v815
  %v1946 = vpop.f32.mrb[0].mxu0
  %v1947 = vadd.f32 0.0, %v1946
  %v1948 = vpop.f32.mrb[0].mxu0
  %1949 = vmatprep.mubr.f32.mxu0 0.0
  %1950 = vmatmul.mubr.f32.gmra.mrb[0].mxu0 %v818
  %v1951 = vpop.f32.mrb[0].mxu0
  %v1952 = vadd.f32 0.0, %v1951
  %v1953 = vpop.f32.mrb[0].mxu0
  %1954 = vmatprep.mubr.f32.mxu0 0.0
  %1955 = vmatmul.mubr.f32.gmra.mrb[0].mxu0 %v821
  %v1956 = vpop.f32.mrb[0].mxu0
  %v1957 = vadd.f32 0.0, %v1956
  %v1958 = vpop.f32.mrb[0].mxu0
  %1959 = vmatprep.mubr.f32.mxu0 0.0
  %1960 = vmatmul.mubr.f32.gmra.mrb[0].mxu0 %v824
  %v1961 = vpop.f32.mrb[0].mxu0
  %v1962 = vadd.f32 0.0, %v1961
  %v1963 = vpop.f32.mrb[0].mxu0
  %1964 = vmatprep.mubr.f32.mxu0 0.0
  %1965 = vmatmul.mubr.f32.gmra.mrb[0].mxu0 %v827
  %v1966 = vpop.f32.mrb[0].mxu0
  %v1967 = vadd.f32 0.0, %v1966
  %v1968 = vpop.f32.mrb[0].mxu0
  %1969 = vmatprep.mubr.f32.mxu0 0.0
  %1970 = vmatmul.mubr.f32.gmra.mrb[0].mxu0 %v830
  %v1971 = vpop.f32.mrb[0].mxu0
  %v1972 = vadd.f32 0.0, %v1971
  %v1973 = vpop.f32.mrb[0].mxu0
  %1974 = vmatprep.mubr.f32.mxu0 0.0
  %1975 = vmatmul.mubr.f32.gmra.mrb[0].mxu0 %v833
  %v1976 = vpop.f32.mrb[0].mxu0
  %v1977 = vadd.f32 0.0, %v1976
  %v1978 = vpop.f32.mrb[0].mxu0
  %1979 = vmatprep.mubr.f32.mxu0 0.0
  %1980 = vmatmul.mubr.f32.gmra.mrb[0].mxu0 %v836
  %v1981 = vpop.f32.mrb[0].mxu0
  %v1982 = vadd.f32 0.0, %v1981
  %v1983 = vpop.f32.mrb[0].mxu0
  %1984 = vmatprep.mubr.f32.mxu0 0.0
  %1985 = vmatmul.mubr.f32.gmra.mrb[0].mxu0 %v839
  %v1986 = vpop.f32.mrb[0].mxu0
  %v1987 = vadd.f32 0.0, %v1986
  %v1988 = vpop.f32.mrb[0].mxu0
  %1989 = vmatprep.mubr.f32.mxu0 0.0
  %1990 = vmatmul.mubr.f32.gmra.mrb[0].mxu0 %v842
  %v1991 = vpop.f32.mrb[0].mxu0
  %v1992 = vadd.f32 0.0, %v1991
  %v1993 = vpop.f32.mrb[0].mxu0
  %1994 = vmatprep.mubr.f32.mxu0 0.0
  %1995 = vmatmul.mubr.f32.gmra.mrb[0].mxu0 %v845
  %v1996 = vpop.f32.mrb[0].mxu0
  %v1997 = vadd.f32 0.0, %v1996
  %v1998 = vpop.f32.mrb[0].mxu0
  %1999 = vmatprep.mubr.f32.mxu0 0.0
  %2000 = vmatmul.mubr.f32.gmra.mrb[0].mxu0 %v848
  %v2001 = vpop.f32.mrb[0].mxu0
  %v2002 = vadd.f32 0.0, %v2001
  %v2003 = vpop.f32.mrb[0].mxu0
  %2004 = vmatprep.mubr.f32.mxu0 0.0
  %2005 = vmatmul.mubr.f32.gmra.mrb[0].mxu0 %v851
  %v2006 = vpop.f32.mrb[0].mxu0
  %v2007 = vadd.f32 0.0, %v2006
  %v2008 = vpop.f32.mrb[0].mxu0
  %2009 = vmatprep.mubr.f32.mxu0 0.0
  %2010 = vmatmul.mubr.f32.gmra.mrb[0].mxu0 %v854
  %v2011 = vpop.f32.mrb[0].mxu0
  %v2012 = vadd.f32 0.0, %v2011
  %v2013 = vpop.f32.mrb[0].mxu0
  %2014 = vmatprep.mubr.f32.mxu0 0.0
  %2015 = vmatmul.mubr.f32.gmra.mrb[0].mxu0 %v857
  %v2016 = vpop.f32.mrb[0].mxu0
  %v2017 = vadd.f32 0.0, %v2016
  %v2018 = vpop.f32.mrb[0].mxu0
  %2019 = vmatprep.mubr.f32.mxu0 0.0
  %2020 = vmatmul.mubr.f32.gmra.mrb[0].mxu0 %v860
  %v2021 = vpop.f32.mrb[0].mxu0
  %v2022 = vadd.f32 0.0, %v2021
  %v2023 = vpop.f32.mrb[0].mxu0
  %2024 = vmatprep.mubr.f32.mxu0 0.0
  %2025 = vmatmul.mubr.f32.gmra.mrb[0].mxu0 %v863
  %v2026 = vpop.f32.mrb[0].mxu0
  %v2027 = vadd.f32 0.0, %v2026
  %v2028 = vpop.f32.mrb[0].mxu0
  %2029 = vmatprep.mubr.f32.mxu0 0.0
  %2030 = vmatmul.mubr.f32.gmra.mrb[0].mxu0 %v866
  %v2031 = vpop.f32.mrb[0].mxu0
  %v2032 = vadd.f32 0.0, %v2031
  %v2033 = vpop.f32.mrb[0].mxu0
  %2034 = vmatprep.mubr.f32.mxu0 0.0
  %2035 = vmatmul.mubr.f32.gmra.mrb[0].mxu0 %v869
  %v2036 = vpop.f32.mrb[0].mxu0
  %v2037 = vadd.f32 0.0, %v2036
  %v2038 = vpop.f32.mrb[0].mxu0
  %2039 = vmatprep.mubr.f32.mxu0 0.0
  %2040 = vmatmul.mubr.f32.gmra.mrb[0].mxu0 %v872
  %v2041 = vpop.f32.mrb[0].mxu0
  %v2042 = vadd.f32 0.0, %v2041
  %v2043 = vpop.f32.mrb[0].mxu0
  %2044 = vmatprep.mubr.f32.mxu0 0.0
  %2045 = vmatmul.mubr.f32.gmra.mrb[0].mxu0 %v875
  %v2046 = vpop.f32.mrb[0].mxu0
  %v2047 = vadd.f32 0.0, %v2046
  %v2048 = vpop.f32.mrb[0].mxu0
  %2049 = vmatprep.mubr.f32.mxu0 0.0
  %2050 = vmatmul.mubr.f32.gmra.mrb[0].mxu0 %v878
  %v2051 = vpop.f32.mrb[0].mxu0
  %v2052 = vadd.f32 0.0, %v2051
  %v2053 = vpop.f32.mrb[0].mxu0
  %2054 = vmatprep.mubr.f32.mxu0 0.0
  %2055 = vmatmul.mubr.f32.gmra.mrb[0].mxu0 %v881
  %v2056 = vpop.f32.mrb[0].mxu0
  %v2057 = vadd.f32 0.0, %v2056
  %v2058 = vpop.f32.mrb[0].mxu0
  %2059 = vmatprep.mubr.f32.mxu0 0.0
  %2060 = vmatmul.mubr.f32.gmra.mrb[0].mxu0 %v884
  %v2061 = vpop.f32.mrb[0].mxu0
  %v2062 = vadd.f32 0.0, %v2061
  %v2063 = vpop.f32.mrb[0].mxu0
  %2064 = vmatprep.mubr.f32.mxu0 0.0
  %2065 = vmatmul.mubr.f32.gmra.mrb[0].mxu0 %v887
  %v2066 = vpop.f32.mrb[0].mxu0
  %v2067 = vadd.f32 0.0, %v2066
  %v2068 = vpop.f32.mrb[0].mxu0
  %2069 = vmatprep.mubr.f32.mxu0 0.0
  %2070 = vmatmul.mubr.f32.gmra.mrb[0].mxu0 %v890
  %v2071 = vpop.f32.mrb[0].mxu0
  %v2072 = vadd.f32 0.0, %v2071
  %v2073 = vpop.f32.mrb[0].mxu0
  %2074 = vmatprep.mubr.f32.mxu0 0.0
  %2075 = vmatmul.mubr.f32.gmra.mrb[0].mxu0 %v893
  %v2076 = vpop.f32.mrb[0].mxu0
  %v2077 = vadd.f32 0.0, %v2076
  %v2078 = vpop.f32.mrb[0].mxu0
  %2079 = vmatprep.mubr.f32.mxu0 0.0
  %2080 = vmatmul.mubr.f32.gmra.mrb[0].mxu0 %v896
  %v2081 = vpop.f32.mrb[0].mxu0
  %v2082 = vadd.f32 0.0, %v2081
  %v2083 = vpop.f32.mrb[0].mxu0
  %2084 = vmatprep.mubr.f32.mxu0 0.0
  %2085 = vmatmul.mubr.f32.gmra.mrb[0].mxu0 %v899
  %v2086 = vpop.f32.mrb[0].mxu0
  %v2087 = vadd.f32 0.0, %v2086
  %v2088 = vpop.f32.mrb[0].mxu0
  %2089 = vmatprep.mubr.f32.mxu0 0.0
  %2090 = vmatmul.mubr.f32.gmra.mrb[0].mxu0 %v902
  %v2091 = vpop.f32.mrb[0].mxu0
  %v2092 = vadd.f32 0.0, %v2091
  %v2093 = vpop.f32.mrb[0].mxu0
  %2094 = vmatprep.mubr.f32.mxu0 0.0
  %2095 = vmatmul.mubr.f32.gmra.mrb[0].mxu0 %v905
  %v2096 = vpop.f32.mrb[0].mxu0
  %v2097 = vadd.f32 0.0, %v2096
  %v2098 = vpop.f32.mrb[0].mxu0
  %2099 = vmatprep.mubr.f32.mxu0 0.0
  %2100 = vmatmul.mubr.f32.gmra.mrb[0].mxu0 %v908
  %v2101 = vpop.f32.mrb[0].mxu0
  %v2102 = vadd.f32 0.0, %v2101
  %v2103 = vpop.f32.mrb[0].mxu0
  %2104 = vmatprep.mubr.f32.mxu0 0.0
  %2105 = vmatmul.mubr.f32.gmra.mrb[0].mxu0 %v911
  %v2106 = vpop.f32.mrb[0].mxu0
  %v2107 = vadd.f32 0.0, %v2106
  %v2108 = vpop.f32.mrb[0].mxu0
  %2109 = vmatprep.mubr.f32.mxu0 0.0
  %2110 = vmatmul.mubr.f32.gmra.mrb[0].mxu0 %v914
  %v2111 = vpop.f32.mrb[0].mxu0
  %v2112 = vadd.f32 0.0, %v2111
  %v2113 = vpop.f32.mrb[0].mxu0
  %2114 = vmatprep.mubr.f32.mxu0 0.0
  %2115 = vmatmul.mubr.f32.gmra.mrb[0].mxu0 %v917
  %v2116 = vpop.f32.mrb[0].mxu0
  %v2117 = vadd.f32 0.0, %v2116
  %v2118 = vpop.f32.mrb[0].mxu0
  %2119 = vmatprep.mubr.f32.mxu0 0.0
  %2120 = vmatmul.mubr.f32.gmra.mrb[0].mxu0 %v920
  %v2121 = vpop.f32.mrb[0].mxu0
  %v2122 = vadd.f32 0.0, %v2121
  %v2123 = vpop.f32.mrb[0].mxu0
  %2124 = vmatprep.mubr.f32.mxu0 0.0
  %2125 = vmatmul.mubr.f32.gmra.mrb[0].mxu0 %v923
  %v2126 = vpop.f32.mrb[0].mxu0
  %v2127 = vadd.f32 0.0, %v2126
  %v2128 = vpop.f32.mrb[0].mxu0
  %2129 = vmatprep.mubr.f32.mxu0 0.0
  %2130 = vmatmul.mubr.f32.gmra.mrb[0].mxu0 %v926
  %v2131 = vpop.f32.mrb[0].mxu0
  %v2132 = vadd.f32 0.0, %v2131
  %v2133 = vpop.f32.mrb[0].mxu0
  %2134 = vmatprep.mubr.f32.mxu0 0.0
  %2135 = vmatmul.mubr.f32.gmra.mrb[0].mxu0 %v929
  %v2136 = vpop.f32.mrb[0].mxu0
  %v2137 = vadd.f32 0.0, %v2136
  %v2138 = vpop.f32.mrb[0].mxu0
  %2139 = vdwg.mxu0
  %v2140 = vmax.f32 %v1002, %v1287
  %v2141 = vmax.f32 %v1007, %v1292
  %v2142 = vmax.f32 %v1012, %v1297
  %v2143 = vmax.f32 %v1017, %v1302
  %v2144 = vmax.f32 %v1022, %v1307
  %v2145 = vmax.f32 %v1027, %v1312
  %v2146 = vmax.f32 %v1032, %v1317
  %v2147 = vmax.f32 %v1037, %v1322
  %v2148 = vmax.f32 %v1042, %v1327
  %v2149 = vmax.f32 %v1047, %v1332
  %v2150 = vmax.f32 %v1052, %v1337
  %v2151 = vmax.f32 %v1057, %v1342
  %v2152 = vmax.f32 %v1062, %v1347
  %v2153 = vmax.f32 %v1067, %v1352
  %v2154 = vmax.f32 %v1072, %v1357
  %v2155 = vmax.f32 %v1077, %v1362
  %v2156 = vmax.f32 %v1082, %v1367
  %v2157 = vmax.f32 %v1087, %v1372
  %v2158 = vmax.f32 %v1092, %v1377
  %v2159 = vmax.f32 %v1097, %v1382
  %v2160 = vmax.f32 %v1102, %v1387
  %v2161 = vmax.f32 %v1107, %v1392
  %v2162 = vmax.f32 %v1112, %v1397
  %v2163 = vmax.f32 %v1117, %v1402
  %v2164 = vmax.f32 %v1122, %v1407
  %v2165 = vmax.f32 %v1127, %v1412
  %v2166 = vmax.f32 %v1132, %v1417
  %v2167 = vmax.f32 %v1137, %v1422
  %v2168 = vmax.f32 %v1142, %v1427
  %v2169 = vmax.f32 %v1147, %v1432
  %v2170 = vmax.f32 %v1152, %v1437
  %v2171 = vmax.f32 %v1157, %v1442
  %v2172 = vmax.f32 %v1162, %v1447
  %v2173 = vmax.f32 %v1167, %v1452
  %v2174 = vmax.f32 %v1172, %v1457
  %v2175 = vmax.f32 %v1177, %v1462
  %v2176 = vmax.f32 %v1182, %v1467
  %v2177 = vmax.f32 %v1187, %v1472
  %v2178 = vmax.f32 %v1192, %v1477
  %v2179 = vmax.f32 %v1197, %v1482
  %v2180 = vmax.f32 %v1202, %v1487
  %v2181 = vmax.f32 %v1207, %v1492
  %v2182 = vmax.f32 %v1212, %v1497
  %v2183 = vmax.f32 %v1217, %v1502
  %v2184 = vmax.f32 %v1222, %v1507
  %v2185 = vmax.f32 %v1227, %v1512
  %v2186 = vmax.f32 %v1232, %v1517
  %v2187 = vmax.f32 %v1237, %v1522
  %v2188 = vmax.f32 %v1242, %v1527
  %v2189 = vmax.f32 %v1247, %v1532
  %v2190 = vmax.f32 %v1252, %v1537
  %v2191 = vmax.f32 %v1257, %v1542
  %v2192 = vmax.f32 %v1262, %v1547
  %v2193 = vmax.f32 %v1267, %v1552
  %v2194 = vmax.f32 %v1272, %v1557
  %v2195 = vmax.f32 %v1277, %v1562
  %v2196 = vmax.f32 %v1282, %v1567
  %v2197 = vmax.f32 %v1572, %v1857
  %v2198 = vmax.f32 %v1577, %v1862
  %v2199 = vmax.f32 %v1582, %v1867
  %v2200 = vmax.f32 %v1587, %v1872
  %v2201 = vmax.f32 %v1592, %v1877
  %v2202 = vmax.f32 %v1597, %v1882
  %v2203 = vmax.f32 %v1602, %v1887
  %v2204 = vmax.f32 %v1607, %v1892
  %v2205 = vmax.f32 %v1612, %v1897
  %v2206 = vmax.f32 %v1617, %v1902
  %v2207 = vmax.f32 %v1622, %v1907
  %v2208 = vmax.f32 %v1627, %v1912
  %v2209 = vmax.f32 %v1632, %v1917
  %v2210 = vmax.f32 %v1637, %v1922
  %v2211 = vmax.f32 %v1642, %v1927
  %v2212 = vmax.f32 %v1647, %v1932
  %v2213 = vmax.f32 %v1652, %v1937
  %v2214 = vmax.f32 %v1657, %v1942
  %v2215 = vmax.f32 %v1662, %v1947
  %v2216 = vmax.f32 %v1667, %v1952
  %v2217 = vmax.f32 %v1672, %v1957
  %v2218 = vmax.f32 %v1677, %v1962
  %v2219 = vmax.f32 %v1682, %v1967
  %v2220 = vmax.f32 %v1687, %v1972
  %v2221 = vmax.f32 %v1692, %v1977
  %v2222 = vmax.f32 %v1697, %v1982
  %v2223 = vmax.f32 %v1702, %v1987
  %v2224 = vmax.f32 %v1707, %v1992
  %v2225 = vmax.f32 %v1712, %v1997
  %v2226 = vmax.f32 %v1717, %v2002
  %v2227 = vmax.f32 %v1722, %v2007
  %v2228 = vmax.f32 %v1727, %v2012
  %v2229 = vmax.f32 %v1732, %v2017
  %v2230 = vmax.f32 %v1737, %v2022
  %v2231 = vmax.f32 %v1742, %v2027
  %v2232 = vmax.f32 %v1747, %v2032
  %v2233 = vmax.f32 %v1752, %v2037
  %v2234 = vmax.f32 %v1757, %v2042
  %v2235 = vmax.f32 %v1762, %v2047
  %v2236 = vmax.f32 %v1767, %v2052
  %v2237 = vmax.f32 %v1772, %v2057
  %v2238 = vmax.f32 %v1777, %v2062
  %v2239 = vmax.f32 %v1782, %v2067
  %v2240 = vmax.f32 %v1787, %v2072
  %v2241 = vmax.f32 %v1792, %v2077
  %v2242 = vmax.f32 %v1797, %v2082
  %v2243 = vmax.f32 %v1802, %v2087
  %v2244 = vmax.f32 %v1807, %v2092
  %v2245 = vmax.f32 %v1812, %v2097
  %v2246 = vmax.f32 %v1817, %v2102
  %v2247 = vmax.f32 %v1822, %v2107
  %v2248 = vmax.f32 %v1827, %v2112
  %v2249 = vmax.f32 %v1832, %v2117
  %v2250 = vmax.f32 %v1837, %v2122
  %v2251 = vmax.f32 %v1842, %v2127
  %v2252 = vmax.f32 %v1847, %v2132
  %v2253 = vmax.f32 %v1852, %v2137
  %v2254 = vmax.f32 %v2140, %v2197
  %v2255 = vmax.f32 %v2141, %v2198
  %v2256 = vmax.f32 %v2142, %v2199
  %v2257 = vmax.f32 %v2143, %v2200
  %v2258 = vmax.f32 %v2144, %v2201
  %v2259 = vmax.f32 %v2145, %v2202
  %v2260 = vmax.f32 %v2146, %v2203
  %v2261 = vmax.f32 %v2147, %v2204
  %v2262 = vmax.f32 %v2148, %v2205
  %v2263 = vmax.f32 %v2149, %v2206
  %v2264 = vmax.f32 %v2150, %v2207
  %v2265 = vmax.f32 %v2151, %v2208
  %v2266 = vmax.f32 %v2152, %v2209
  %v2267 = vmax.f32 %v2153, %v2210
  %v2268 = vmax.f32 %v2154, %v2211
  %v2269 = vmax.f32 %v2155, %v2212
  %v2270 = vmax.f32 %v2156, %v2213
  %v2271 = vmax.f32 %v2157, %v2214
  %v2272 = vmax.f32 %v2158, %v2215
  %v2273 = vmax.f32 %v2159, %v2216
  %v2274 = vmax.f32 %v2160, %v2217
  %v2275 = vmax.f32 %v2161, %v2218
  %v2276 = vmax.f32 %v2162, %v2219
  %v2277 = vmax.f32 %v2163, %v2220
  %v2278 = vmax.f32 %v2164, %v2221
  %v2279 = vmax.f32 %v2165, %v2222
  %v2280 = vmax.f32 %v2166, %v2223
  %v2281 = vmax.f32 %v2167, %v2224
  %v2282 = vmax.f32 %v2168, %v2225
  %v2283 = vmax.f32 %v2169, %v2226
  %v2284 = vmax.f32 %v2170, %v2227
  %v2285 = vmax.f32 %v2171, %v2228
  %v2286 = vmax.f32 %v2172, %v2229
  %v2287 = vmax.f32 %v2173, %v2230
  %v2288 = vmax.f32 %v2174, %v2231
  %v2289 = vmax.f32 %v2175, %v2232
  %v2290 = vmax.f32 %v2176, %v2233
  %v2291 = vmax.f32 %v2177, %v2234
  %v2292 = vmax.f32 %v2178, %v2235
  %v2293 = vmax.f32 %v2179, %v2236
  %v2294 = vmax.f32 %v2180, %v2237
  %v2295 = vmax.f32 %v2181, %v2238
  %v2296 = vmax.f32 %v2182, %v2239
  %v2297 = vmax.f32 %v2183, %v2240
  %v2298 = vmax.f32 %v2184, %v2241
  %v2299 = vmax.f32 %v2185, %v2242
  %v2300 = vmax.f32 %v2186, %v2243
  %v2301 = vmax.f32 %v2187, %v2244
  %v2302 = vmax.f32 %v2188, %v2245
  %v2303 = vmax.f32 %v2189, %v2246
  %v2304 = vmax.f32 %v2190, %v2247
  %v2305 = vmax.f32 %v2191, %v2248
  %v2306 = vmax.f32 %v2192, %v2249
  %v2307 = vmax.f32 %v2193, %v2250
  %v2308 = vmax.f32 %v2194, %v2251
  %v2309 = vmax.f32 %v2195, %v2252
  %v2310 = vmax.f32 %v2196, %v2253
  %v2311 = vld [vmem:[%s2] sm:$0x1]
  %v2313 = vlaneseq
  %v2314 = vshrl.u32 %v2313, 7
  %v2315 = vsub.s32 0, %v2314
  %v2316 = vrot.slane %v2311, %v2315
  %v2318 = vadd.f32 %v2254, %v2316
  %v2319 = vadd.f32 %v2255, %v2316
  %v2320 = vadd.f32 %v2256, %v2316
  %v2321 = vadd.f32 %v2257, %v2316
  %v2322 = vadd.f32 %v2258, %v2316
  %v2323 = vadd.f32 %v2259, %v2316
  %v2324 = vadd.f32 %v2260, %v2316
  %v2325 = vadd.f32 %v2261, %v2316
  %v2326 = vadd.f32 %v2262, %v2316
  %v2327 = vadd.f32 %v2263, %v2316
  %v2328 = vadd.f32 %v2264, %v2316
  %v2329 = vadd.f32 %v2265, %v2316
  %v2330 = vadd.f32 %v2266, %v2316
  %v2331 = vadd.f32 %v2267, %v2316
  %v2332 = vadd.f32 %v2268, %v2316
  %v2333 = vadd.f32 %v2269, %v2316
  %v2334 = vadd.f32 %v2270, %v2316
  %v2335 = vadd.f32 %v2271, %v2316
  %v2336 = vadd.f32 %v2272, %v2316
  %v2337 = vadd.f32 %v2273, %v2316
  %v2338 = vadd.f32 %v2274, %v2316
  %v2339 = vadd.f32 %v2275, %v2316
  %v2340 = vadd.f32 %v2276, %v2316
  %v2341 = vadd.f32 %v2277, %v2316
  %v2342 = vadd.f32 %v2278, %v2316
  %v2343 = vadd.f32 %v2279, %v2316
  %v2344 = vadd.f32 %v2280, %v2316
  %v2345 = vadd.f32 %v2281, %v2316
  %v2346 = vadd.f32 %v2282, %v2316
  %v2347 = vadd.f32 %v2283, %v2316
  %v2348 = vadd.f32 %v2284, %v2316
  %v2349 = vadd.f32 %v2285, %v2316
  %v2350 = vadd.f32 %v2286, %v2316
  %v2351 = vadd.f32 %v2287, %v2316
  %v2352 = vadd.f32 %v2288, %v2316
  %v2353 = vadd.f32 %v2289, %v2316
  %v2354 = vadd.f32 %v2290, %v2316
  %v2355 = vadd.f32 %v2291, %v2316
  %v2356 = vadd.f32 %v2292, %v2316
  %v2357 = vadd.f32 %v2293, %v2316
  %v2358 = vadd.f32 %v2294, %v2316
  %v2359 = vadd.f32 %v2295, %v2316
  %v2360 = vadd.f32 %v2296, %v2316
  %v2361 = vadd.f32 %v2297, %v2316
  %v2362 = vadd.f32 %v2298, %v2316
  %v2363 = vadd.f32 %v2299, %v2316
  %v2364 = vadd.f32 %v2300, %v2316
  %v2365 = vadd.f32 %v2301, %v2316
  %v2366 = vadd.f32 %v2302, %v2316
  %v2367 = vadd.f32 %v2303, %v2316
  %v2368 = vadd.f32 %v2304, %v2316
  %v2369 = vadd.f32 %v2305, %v2316
  %v2370 = vadd.f32 %v2306, %v2316
  %v2371 = vadd.f32 %v2307, %v2316
  %v2372 = vadd.f32 %v2308, %v2316
  %v2373 = vadd.f32 %v2309, %v2316
  %v2374 = vadd.f32 %v2310, %v2316
  %v2375 = vmax.f32 %v2318, 0.0
  %v2376 = vmax.f32 %v2319, 0.0
  %v2377 = vmax.f32 %v2320, 0.0
  %v2378 = vmax.f32 %v2321, 0.0
  %v2379 = vmax.f32 %v2322, 0.0
  %v2380 = vmax.f32 %v2323, 0.0
  %v2381 = vmax.f32 %v2324, 0.0
  %v2382 = vmax.f32 %v2325, 0.0
  %v2383 = vmax.f32 %v2326, 0.0
  %v2384 = vmax.f32 %v2327, 0.0
  %v2385 = vmax.f32 %v2328, 0.0
  %v2386 = vmax.f32 %v2329, 0.0
  %v2387 = vmax.f32 %v2330, 0.0
  %v2388 = vmax.f32 %v2331, 0.0
  %v2389 = vmax.f32 %v2332, 0.0
  %v2390 = vmax.f32 %v2333, 0.0
  %v2391 = vmax.f32 %v2334, 0.0
  %v2392 = vmax.f32 %v2335, 0.0
  %v2393 = vmax.f32 %v2336, 0.0
  %v2394 = vmax.f32 %v2337, 0.0
  %v2395 = vmax.f32 %v2338, 0.0
  %v2396 = vmax.f32 %v2339, 0.0
  %v2397 = vmax.f32 %v2340, 0.0
  %v2398 = vmax.f32 %v2341, 0.0
  %v2399 = vmax.f32 %v2342, 0.0
  %v2400 = vmax.f32 %v2343, 0.0
  %v2401 = vmax.f32 %v2344, 0.0
  %v2402 = vmax.f32 %v2345, 0.0
  %v2403 = vmax.f32 %v2346, 0.0
  %v2404 = vmax.f32 %v2347, 0.0
  %v2405 = vmax.f32 %v2348, 0.0
  %v2406 = vmax.f32 %v2349, 0.0
  %v2407 = vmax.f32 %v2350, 0.0
  %v2408 = vmax.f32 %v2351, 0.0
  %v2409 = vmax.f32 %v2352, 0.0
  %v2410 = vmax.f32 %v2353, 0.0
  %v2411 = vmax.f32 %v2354, 0.0
  %v2412 = vmax.f32 %v2355, 0.0
  %v2413 = vmax.f32 %v2356, 0.0
  %v2414 = vmax.f32 %v2357, 0.0
  %v2415 = vmax.f32 %v2358, 0.0
  %v2416 = vmax.f32 %v2359, 0.0
  %v2417 = vmax.f32 %v2360, 0.0
  %v2418 = vmax.f32 %v2361, 0.0
  %v2419 = vmax.f32 %v2362, 0.0
  %v2420 = vmax.f32 %v2363, 0.0
  %v2421 = vmax.f32 %v2364, 0.0
  %v2422 = vmax.f32 %v2365, 0.0
  %v2423 = vmax.f32 %v2366, 0.0
  %v2424 = vmax.f32 %v2367, 0.0
  %v2425 = vmax.f32 %v2368, 0.0
  %v2426 = vmax.f32 %v2369, 0.0
  %v2427 = vmax.f32 %v2370, 0.0
  %v2428 = vmax.f32 %v2371, 0.0
  %v2429 = vmax.f32 %v2372, 0.0
  %v2430 = vmax.f32 %v2373, 0.0
  %v2431 = vmax.f32 %v2374, 0.0
  %vm2432 = vcmask 64512
  %2433 = vst.msk [vmem:[%s3] sm:$0xff] %vm2432, %v2375
  %2434 = vst.msk [vmem:[%s3 + $0x8] sm:$0xff] %vm2432, %v2376
  %2435 = vst.msk [vmem:[%s3 + $0x10] sm:$0xff] %vm2432, %v2377
  %2436 = vst.msk [vmem:[%s3 + $0x18] sm:$0xff] %vm2432, %v2378
  %2437 = vst.msk [vmem:[%s3 + $0x20] sm:$0xff] %vm2432, %v2379
  %2438 = vst.msk [vmem:[%s3 + $0x28] sm:$0xff] %vm2432, %v2380
  %2439 = vst.msk [vmem:[%s3 + $0x30] sm:$0xff] %vm2432, %v2381
  %2440 = vst.msk [vmem:[%s3 + $0x38] sm:$0xff] %vm2432, %v2382
  %2441 = vst.msk [vmem:[%s3 + $0x40] sm:$0xff] %vm2432, %v2383
  %2442 = vst.msk [vmem:[%s3 + $0x48] sm:$0xff] %vm2432, %v2384
  %2443 = vst.msk [vmem:[%s3 + $0x50] sm:$0xff] %vm2432, %v2385
  %2444 = vst.msk [vmem:[%s3 + $0x58] sm:$0xff] %vm2432, %v2386
  %2445 = vst.msk [vmem:[%s3 + $0x60] sm:$0xff] %vm2432, %v2387
  %2446 = vst.msk [vmem:[%s3 + $0x68] sm:$0xff] %vm2432, %v2388
  %2447 = vst.msk [vmem:[%s3 + $0x70] sm:$0xff] %vm2432, %v2389
  %2448 = vst.msk [vmem:[%s3 + $0x78] sm:$0xff] %vm2432, %v2390
  %2449 = vst.msk [vmem:[%s3 + $0x80] sm:$0xff] %vm2432, %v2391
  %2450 = vst.msk [vmem:[%s3 + $0x88] sm:$0xff] %vm2432, %v2392
  %2451 = vst.msk [vmem:[%s3 + $0x90] sm:$0xff] %vm2432, %v2393
  %2452 = vst.msk [vmem:[%s3 + $0x98] sm:$0xff] %vm2432, %v2394
  %2453 = vst.msk [vmem:[%s3 + $0xa0] sm:$0xff] %vm2432, %v2395
  %2454 = vst.msk [vmem:[%s3 + $0xa8] sm:$0xff] %vm2432, %v2396
  %2455 = vst.msk [vmem:[%s3 + $0xb0] sm:$0xff] %vm2432, %v2397
  %2456 = vst.msk [vmem:[%s3 + $0xb8] sm:$0xff] %vm2432, %v2398
  %2457 = vst.msk [vmem:[%s3 + $0xc0] sm:$0xff] %vm2432, %v2399
  %2458 = vst.msk [vmem:[%s3 + $0xc8] sm:$0xff] %vm2432, %v2400
  %2459 = vst.msk [vmem:[%s3 + $0xd0] sm:$0xff] %vm2432, %v2401
  %2460 = vst.msk [vmem:[%s3 + $0xd8] sm:$0xff] %vm2432, %v2402
  %2461 = vst.msk [vmem:[%s3 + $0xe0] sm:$0xff] %vm2432, %v2403
  %2462 = vst.msk [vmem:[%s3 + $0xe8] sm:$0xff] %vm2432, %v2404
  %2463 = vst.msk [vmem:[%s3 + $0xf0] sm:$0xff] %vm2432, %v2405
  %2464 = vst.msk [vmem:[%s3 + $0xf8] sm:$0xff] %vm2432, %v2406
  %2465 = vst.msk [vmem:[%s3 + $0x100] sm:$0xff] %vm2432, %v2407
  %2466 = vst.msk [vmem:[%s3 + $0x108] sm:$0xff] %vm2432, %v2408
  %2467 = vst.msk [vmem:[%s3 + $0x110] sm:$0xff] %vm2432, %v2409
  %2468 = vst.msk [vmem:[%s3 + $0x118] sm:$0xff] %vm2432, %v2410
  %2469 = vst.msk [vmem:[%s3 + $0x120] sm:$0xff] %vm2432, %v2411
  %2470 = vst.msk [vmem:[%s3 + $0x128] sm:$0xff] %vm2432, %v2412
  %2471 = vst.msk [vmem:[%s3 + $0x130] sm:$0xff] %vm2432, %v2413
  %2472 = vst.msk [vmem:[%s3 + $0x138] sm:$0xff] %vm2432, %v2414
  %2473 = vst.msk [vmem:[%s3 + $0x140] sm:$0xff] %vm2432, %v2415
  %2474 = vst.msk [vmem:[%s3 + $0x148] sm:$0xff] %vm2432, %v2416
  %2475 = vst.msk [vmem:[%s3 + $0x150] sm:$0xff] %vm2432, %v2417
  %2476 = vst.msk [vmem:[%s3 + $0x158] sm:$0xff] %vm2432, %v2418
  %2477 = vst.msk [vmem:[%s3 + $0x160] sm:$0xff] %vm2432, %v2419
  %2478 = vst.msk [vmem:[%s3 + $0x168] sm:$0xff] %vm2432, %v2420
  %2479 = vst.msk [vmem:[%s3 + $0x170] sm:$0xff] %vm2432, %v2421
  %2480 = vst.msk [vmem:[%s3 + $0x178] sm:$0xff] %vm2432, %v2422
  %2481 = vst.msk [vmem:[%s3 + $0x180] sm:$0xff] %vm2432, %v2423
  %2482 = vst.msk [vmem:[%s3 + $0x188] sm:$0xff] %vm2432, %v2424
  %2483 = vst.msk [vmem:[%s3 + $0x190] sm:$0xff] %vm2432, %v2425
  %2484 = vst.msk [vmem:[%s3 + $0x198] sm:$0xff] %vm2432, %v2426
  %2485 = vst.msk [vmem:[%s3 + $0x1a0] sm:$0xff] %vm2432, %v2427
  %2486 = vst.msk [vmem:[%s3 + $0x1a8] sm:$0xff] %vm2432, %v2428
  %2487 = vst.msk [vmem:[%s3 + $0x1b0] sm:$0xff] %vm2432, %v2429
  %2488 = vst.msk [vmem:[%s3 + $0x1b8] sm:$0xff] %vm2432, %v2430
  %2489 = vst.msk [vmem:[%s3 + $0x1c0] sm:$0xff] %vm2432, %v2431
  // Predicated region
  $region14: #{color_net_cnn.4} parent=0 // pred_check
    _
  $region15: #{color_net_cnn.4} parent=0 // pred_check_branch
    %2491 = sbr.rel (0) target = $region17
  $region16: #{color_net_cnn.4} parent=0 // pred_region
    _
  $region17: #{color_net_cnn.4} parent=0 // pred_fallthru
    _
  // Predicated region
  $region18: #{color_net_cnn.4} parent=0 // pred_check
    _
  $region19: #{color_net_cnn.4} parent=0 // pred_check_branch
    %2493 = sbr.rel (0) target = $region21
  $region20: #{color_net_cnn.4} parent=0 // pred_region
    _
  $region21: #{color_net_cnn.4} parent=0 // pred_fallthru
    _

// kernel: color_net_cnn.5
$region0: #{color_net_cnn.5}
  #allocation0 [shape = 'u32[]', space=smem, size = 0x4, offset = 0x4, fixed_abs, tag = 'smem constant byte address 0x4 - core index']
  #allocation1 [shape = 'u32[144,128]{1,0:T(1,128)}', space=vmem, size = 0x12000, scoped, tag = 'internal scratch']
  %s0 = inlined_call_operand.vmem [shape: f32[1,512,72], index: 0, kind: input, shape index: {}]
  %s1 = inlined_call_operand.vmem [shape: f32[72,16], index: 1, kind: input, shape index: {}]
  %s2 = inlined_call_operand.vmem [shape: f32[1,16], index: 2, kind: input, shape index: {}]
  %s3 = inlined_call_operand.vmem [shape: f32[128,16], index: 3, kind: output, shape index: {}]
  %s4 = sld [smem:[#allocation0]]
  $region22: #{color_net_cnn.5} parent=0
    _
  %s6 = ssub.s32 1, %s4
  %s7 = scalar_select 0, %s6, %s4
  // Predicated region
  $region2: #{color_net_cnn.5} parent=0 // pred_check
    _
  $region3: #{color_net_cnn.5} parent=0 // pred_check_branch
    %9 = sbr.rel (0) target = $region5
  $region4: #{color_net_cnn.5} parent=0 // pred_region
    _
  $region5: #{color_net_cnn.5} parent=0 // pred_fallthru
    _
  // Predicated region
  $region6: #{color_net_cnn.5} parent=0 // pred_check
    _
  $region7: #{color_net_cnn.5} parent=0 // pred_check_branch
    %11 = sbr.rel (0) target = $region9
  $region8: #{color_net_cnn.5} parent=0 // pred_region
    _
  $region9: #{color_net_cnn.5} parent=0 // pred_fallthru
    _
  // Predicated region
  $region10: #{color_net_cnn.5} parent=0 // pred_check
    _
  $region11: #{color_net_cnn.5} parent=0 // pred_check_branch
    %13 = sbr.rel (0) target = $region13
  $region12: #{color_net_cnn.5} parent=0 // pred_region
    _
  $region13: #{color_net_cnn.5} parent=0 // pred_fallthru
    _
  %v14 = vld [vmem:[%s0] sm:$0xff]
  %v15 = vld [vmem:[%s0 + $0x8] sm:$0xff]
  %v16 = vld [vmem:[%s0 + $0x10] sm:$0xff]
  %v17 = vld [vmem:[%s0 + $0x18] sm:$0xff]
  %v18 = vld [vmem:[%s0 + $0x20] sm:$0xff]
  %v19 = vld [vmem:[%s0 + $0x28] sm:$0xff]
  %v20 = vld [vmem:[%s0 + $0x30] sm:$0xff]
  %v21 = vld [vmem:[%s0 + $0x38] sm:$0xff]
  %v22 = vld [vmem:[%s0 + $0x40] sm:$0xff]
  %v23 = vld [vmem:[%s0 + $0x48] sm:$0xff]
  %v24 = vld [vmem:[%s0 + $0x50] sm:$0xff]
  %v25 = vld [vmem:[%s0 + $0x58] sm:$0xff]
  %v26 = vld [vmem:[%s0 + $0x60] sm:$0xff]
  %v27 = vld [vmem:[%s0 + $0x68] sm:$0xff]
  %v28 = vld [vmem:[%s0 + $0x70] sm:$0xff]
  %v29 = vld [vmem:[%s0 + $0x78] sm:$0xff]
  %v30 = vld [vmem:[%s0 + $0x80] sm:$0xff]
  %v31 = vld [vmem:[%s0 + $0x88] sm:$0xff]
  %v32 = vld [vmem:[%s0 + $0x90] sm:$0xff]
  %v33 = vld [vmem:[%s0 + $0x98] sm:$0xff]
  %v34 = vld [vmem:[%s0 + $0xa0] sm:$0xff]
  %v35 = vld [vmem:[%s0 + $0xa8] sm:$0xff]
  %v36 = vld [vmem:[%s0 + $0xb0] sm:$0xff]
  %v37 = vld [vmem:[%s0 + $0xb8] sm:$0xff]
  %v38 = vld [vmem:[%s0 + $0xc0] sm:$0xff]
  %v39 = vld [vmem:[%s0 + $0xc8] sm:$0xff]
  %v40 = vld [vmem:[%s0 + $0xd0] sm:$0xff]
  %v41 = vld [vmem:[%s0 + $0xd8] sm:$0xff]
  %v42 = vld [vmem:[%s0 + $0xe0] sm:$0xff]
  %v43 = vld [vmem:[%s0 + $0xe8] sm:$0xff]
  %v44 = vld [vmem:[%s0 + $0xf0] sm:$0xff]
  %v45 = vld [vmem:[%s0 + $0xf8] sm:$0xff]
  %v46 = vld [vmem:[%s0 + $0x100] sm:$0xff]
  %v47 = vld [vmem:[%s0 + $0x108] sm:$0xff]
  %v48 = vld [vmem:[%s0 + $0x110] sm:$0xff]
  %v49 = vld [vmem:[%s0 + $0x118] sm:$0xff]
  %v50 = vld [vmem:[%s0 + $0x120] sm:$0xff]
  %v51 = vld [vmem:[%s0 + $0x128] sm:$0xff]
  %v52 = vld [vmem:[%s0 + $0x130] sm:$0xff]
  %v53 = vld [vmem:[%s0 + $0x138] sm:$0xff]
  %v54 = vld [vmem:[%s0 + $0x140] sm:$0xff]
  %v55 = vld [vmem:[%s0 + $0x148] sm:$0xff]
  %v56 = vld [vmem:[%s0 + $0x150] sm:$0xff]
  %v57 = vld [vmem:[%s0 + $0x158] sm:$0xff]
  %v58 = vld [vmem:[%s0 + $0x160] sm:$0xff]
  %v59 = vld [vmem:[%s0 + $0x168] sm:$0xff]
  %v60 = vld [vmem:[%s0 + $0x170] sm:$0xff]
  %v61 = vld [vmem:[%s0 + $0x178] sm:$0xff]
  %v62 = vld [vmem:[%s0 + $0x180] sm:$0xff]
  %v63 = vld [vmem:[%s0 + $0x188] sm:$0xff]
  %v64 = vld [vmem:[%s0 + $0x190] sm:$0xff]
  %v65 = vld [vmem:[%s0 + $0x198] sm:$0xff]
  %v66 = vld [vmem:[%s0 + $0x1a0] sm:$0xff]
  %v67 = vld [vmem:[%s0 + $0x1a8] sm:$0xff]
  %v68 = vld [vmem:[%s0 + $0x1b0] sm:$0xff]
  %v69 = vld [vmem:[%s0 + $0x1b8] sm:$0xff]
  %v70 = vld [vmem:[%s0 + $0x1c0] sm:$0xff]
  %v71 = vld [vmem:[%s0 + $0x1c8] sm:$0xff]
  %v72 = vld [vmem:[%s0 + $0x1d0] sm:$0xff]
  %v73 = vld [vmem:[%s0 + $0x1d8] sm:$0xff]
  %v74 = vld [vmem:[%s0 + $0x1e0] sm:$0xff]
  %v75 = vld [vmem:[%s0 + $0x1e8] sm:$0xff]
  %v76 = vld [vmem:[%s0 + $0x1f0] sm:$0xff]
  %v77 = vld [vmem:[%s0 + $0x1f8] sm:$0xff]
  %v78 = vld [vmem:[%s1] sm:$0xff]
  %v79 = vld [vmem:[%s1 + $0x8] sm:$0xff]
  %v80 = vld [vmem:[%s1 + $0x10] sm:$0xff]
  %v81 = vld [vmem:[%s1 + $0x18] sm:$0xff]
  %v82 = vld [vmem:[%s1 + $0x20] sm:$0xff]
  %v83 = vld [vmem:[%s1 + $0x28] sm:$0xff]
  %v84 = vld [vmem:[%s1 + $0x30] sm:$0xff]
  %v85 = vld [vmem:[%s1 + $0x38] sm:$0xff]
  %v86 = vld [vmem:[%s1 + $0x40] sm:$0xff]
  %vm87 = vcmask 588800
  %v89 = vsel %vm87, %v14, 0
  %v92 = vsel %vm87, %v15, 0
  %v95 = vsel %vm87, %v16, 0
  %v98 = vsel %vm87, %v17, 0
  %v101 = vsel %vm87, %v18, 0
  %v104 = vsel %vm87, %v19, 0
  %v107 = vsel %vm87, %v20, 0
  %v110 = vsel %vm87, %v21, 0
  %v113 = vsel %vm87, %v22, 0
  %v116 = vsel %vm87, %v23, 0
  %v119 = vsel %vm87, %v24, 0
  %v122 = vsel %vm87, %v25, 0
  %v125 = vsel %vm87, %v26, 0
  %v128 = vsel %vm87, %v27, 0
  %v131 = vsel %vm87, %v28, 0
  %v134 = vsel %vm87, %v29, 0
  %v137 = vsel %vm87, %v30, 0
  %v140 = vsel %vm87, %v31, 0
  %v143 = vsel %vm87, %v32, 0
  %v146 = vsel %vm87, %v33, 0
  %v149 = vsel %vm87, %v34, 0
  %v152 = vsel %vm87, %v35, 0
  %v155 = vsel %vm87, %v36, 0
  %v158 = vsel %vm87, %v37, 0
  %v161 = vsel %vm87, %v38, 0
  %v164 = vsel %vm87, %v39, 0
  %v167 = vsel %vm87, %v40, 0
  %v170 = vsel %vm87, %v41, 0
  %v173 = vsel %vm87, %v42, 0
  %v176 = vsel %vm87, %v43, 0
  %v179 = vsel %vm87, %v44, 0
  %v182 = vsel %vm87, %v45, 0
  %v185 = vsel %vm87, %v46, 0
  %v188 = vsel %vm87, %v47, 0
  %v191 = vsel %vm87, %v48, 0
  %v194 = vsel %vm87, %v49, 0
  %v197 = vsel %vm87, %v50, 0
  %v200 = vsel %vm87, %v51, 0
  %v203 = vsel %vm87, %v52, 0
  %v206 = vsel %vm87, %v53, 0
  %v209 = vsel %vm87, %v54, 0
  %v212 = vsel %vm87, %v55, 0
  %v215 = vsel %vm87, %v56, 0
  %v218 = vsel %vm87, %v57, 0
  %v221 = vsel %vm87, %v58, 0
  %v224 = vsel %vm87, %v59, 0
  %v227 = vsel %vm87, %v60, 0
  %v230 = vsel %vm87, %v61, 0
  %v233 = vsel %vm87, %v62, 0
  %v236 = vsel %vm87, %v63, 0
  %v239 = vsel %vm87, %v64, 0
  %v242 = vsel %vm87, %v65, 0
  %v245 = vsel %vm87, %v66, 0
  %v248 = vsel %vm87, %v67, 0
  %v251 = vsel %vm87, %v68, 0
  %v254 = vsel %vm87, %v69, 0
  %v257 = vsel %vm87, %v70, 0
  %v260 = vsel %vm87, %v71, 0
  %v263 = vsel %vm87, %v72, 0
  %v266 = vsel %vm87, %v73, 0
  %v269 = vsel %vm87, %v74, 0
  %v272 = vsel %vm87, %v75, 0
  %v275 = vsel %vm87, %v76, 0
  %v278 = vsel %vm87, %v77, 0
  %280 = vmatprep.subr.mxu0 0.0
  %281 = vmatpush1.msra.mxu0 %v78
  %282 = vmatprep.subr.mxu0 0.0
  %283 = vmatpush1.msra.mxu0 %v79
  %284 = vmatprep.subr.mxu0 0.0
  %285 = vmatpush1.msra.mxu0 %v80
  %286 = vmatprep.subr.mxu0 0.0
  %287 = vmatpush1.msra.mxu0 %v81
  %288 = vmatprep.subr.mxu0 0.0
  %289 = vmatpush1.msra.mxu0 %v82
  %290 = vmatprep.subr.mxu0 0.0
  %291 = vmatpush1.msra.mxu0 %v83
  %292 = vmatprep.subr.mxu0 0.0
  %293 = vmatpush1.msra.mxu0 %v84
  %294 = vmatprep.subr.mxu0 0.0
  %295 = vmatpush1.msra.mxu0 %v85
  %296 = vmatprep.subr.mxu0 0.0
  %297 = vmatpush1.msra.mxu0 %v86
  %298 = vmatprep.subr.mxu0 0.0
  %299 = vmatpush1.msra.mxu0 0.0
  %300 = vmatprep.subr.mxu0 0.0
  %301 = vmatpush1.msra.mxu0 0.0
  %302 = vmatprep.subr.mxu0 0.0
  %303 = vmatpush1.msra.mxu0 0.0
  %304 = vmatprep.subr.mxu0 0.0
  %305 = vmatpush1.msra.mxu0 0.0
  %306 = vmatprep.subr.mxu0 0.0
  %307 = vmatpush1.msra.mxu0 0.0
  %308 = vmatprep.subr.mxu0 0.0
  %309 = vmatpush1.msra.mxu0 0.0
  %310 = vmatprep.subr.mxu0 0.0
  %311 = vmatpush1.msra.mxu0 0.0
  %312 = vmatprep.subr.mxu0 0.0
  %313 = vmatpush1.msra.mxu0 0.0
  %314 = vmatprep.subr.mxu0 0.0
  %315 = vmatpush1.msra.mxu0 0.0
  %316 = vmatprep.subr.mxu0 0.0
  %317 = vmatpush1.msra.mxu0 0.0
  %318 = vmatprep.subr.mxu0 0.0
  %319 = vmatpush1.msra.mxu0 0.0
  %320 = vmatprep.subr.mxu0 0.0
  %321 = vmatpush1.msra.mxu0 0.0
  %322 = vmatprep.subr.mxu0 0.0
  %323 = vmatpush1.msra.mxu0 0.0
  %324 = vmatprep.subr.mxu0 0.0
  %325 = vmatpush1.msra.mxu0 0.0
  %326 = vmatprep.subr.mxu0 0.0
  %327 = vmatpush1.msra.mxu0 0.0
  %328 = vmatprep.subr.mxu0 0.0
  %329 = vmatpush1.msra.mxu0 0.0
  %330 = vmatprep.subr.mxu0 0.0
  %331 = vmatpush1.msra.mxu0 0.0
  %332 = vmatprep.subr.mxu0 0.0
  %333 = vmatpush1.msra.mxu0 0.0
  %334 = vmatprep.subr.mxu0 0.0
  %335 = vmatpush1.msra.mxu0 0.0
  %336 = vmatprep.subr.mxu0 0.0
  %337 = vmatpush1.msra.mxu0 0.0
  %338 = vmatprep.subr.mxu0 0.0
  %339 = vmatpush1.msra.mxu0 0.0
  %340 = vmatprep.subr.mxu0 0.0
  %341 = vmatpush1.msra.mxu0 0.0
  %342 = vmatprep.subr.mxu0 0.0
  %343 = vmatpush1.msra.mxu0 0.0
  %344 = vmatprep.mubr.f32.mxu0 0.0
  %345 = vmatmul.mubr.f32.gmra.mrb[0].mxu0 %v89
  %v346 = vpop.f32.mrb[0].mxu0
  %v347 = vadd.f32 0.0, %v346
  %v348 = vpop.f32.mrb[0].mxu0
  %349 = vmatprep.mubr.f32.mxu0 0.0
  %350 = vmatmul.mubr.f32.gmra.mrb[0].mxu0 %v92
  %v351 = vpop.f32.mrb[0].mxu0
  %v352 = vadd.f32 0.0, %v351
  %v353 = vpop.f32.mrb[0].mxu0
  %354 = vmatprep.mubr.f32.mxu0 0.0
  %355 = vmatmul.mubr.f32.gmra.mrb[0].mxu0 %v95
  %v356 = vpop.f32.mrb[0].mxu0
  %v357 = vadd.f32 0.0, %v356
  %v358 = vpop.f32.mrb[0].mxu0
  %359 = vmatprep.mubr.f32.mxu0 0.0
  %360 = vmatmul.mubr.f32.gmra.mrb[0].mxu0 %v98
  %v361 = vpop.f32.mrb[0].mxu0
  %v362 = vadd.f32 0.0, %v361
  %v363 = vpop.f32.mrb[0].mxu0
  %364 = vmatprep.mubr.f32.mxu0 0.0
  %365 = vmatmul.mubr.f32.gmra.mrb[0].mxu0 %v101
  %v366 = vpop.f32.mrb[0].mxu0
  %v367 = vadd.f32 0.0, %v366
  %v368 = vpop.f32.mrb[0].mxu0
  %369 = vmatprep.mubr.f32.mxu0 0.0
  %370 = vmatmul.mubr.f32.gmra.mrb[0].mxu0 %v104
  %v371 = vpop.f32.mrb[0].mxu0
  %v372 = vadd.f32 0.0, %v371
  %v373 = vpop.f32.mrb[0].mxu0
  %374 = vmatprep.mubr.f32.mxu0 0.0
  %375 = vmatmul.mubr.f32.gmra.mrb[0].mxu0 %v107
  %v376 = vpop.f32.mrb[0].mxu0
  %v377 = vadd.f32 0.0, %v376
  %v378 = vpop.f32.mrb[0].mxu0
  %379 = vmatprep.mubr.f32.mxu0 0.0
  %380 = vmatmul.mubr.f32.gmra.mrb[0].mxu0 %v110
  %v381 = vpop.f32.mrb[0].mxu0
  %v382 = vadd.f32 0.0, %v381
  %v383 = vpop.f32.mrb[0].mxu0
  %384 = vmatprep.mubr.f32.mxu0 0.0
  %385 = vmatmul.mubr.f32.gmra.mrb[0].mxu0 %v113
  %v386 = vpop.f32.mrb[0].mxu0
  %v387 = vadd.f32 0.0, %v386
  %v388 = vpop.f32.mrb[0].mxu0
  %389 = vmatprep.mubr.f32.mxu0 0.0
  %390 = vmatmul.mubr.f32.gmra.mrb[0].mxu0 %v116
  %v391 = vpop.f32.mrb[0].mxu0
  %v392 = vadd.f32 0.0, %v391
  %v393 = vpop.f32.mrb[0].mxu0
  %394 = vmatprep.mubr.f32.mxu0 0.0
  %395 = vmatmul.mubr.f32.gmra.mrb[0].mxu0 %v119
  %v396 = vpop.f32.mrb[0].mxu0
  %v397 = vadd.f32 0.0, %v396
  %v398 = vpop.f32.mrb[0].mxu0
  %399 = vmatprep.mubr.f32.mxu0 0.0
  %400 = vmatmul.mubr.f32.gmra.mrb[0].mxu0 %v122
  %v401 = vpop.f32.mrb[0].mxu0
  %v402 = vadd.f32 0.0, %v401
  %v403 = vpop.f32.mrb[0].mxu0
  %404 = vmatprep.mubr.f32.mxu0 0.0
  %405 = vmatmul.mubr.f32.gmra.mrb[0].mxu0 %v125
  %v406 = vpop.f32.mrb[0].mxu0
  %v407 = vadd.f32 0.0, %v406
  %v408 = vpop.f32.mrb[0].mxu0
  %409 = vmatprep.mubr.f32.mxu0 0.0
  %410 = vmatmul.mubr.f32.gmra.mrb[0].mxu0 %v128
  %v411 = vpop.f32.mrb[0].mxu0
  %v412 = vadd.f32 0.0, %v411
  %v413 = vpop.f32.mrb[0].mxu0
  %414 = vmatprep.mubr.f32.mxu0 0.0
  %415 = vmatmul.mubr.f32.gmra.mrb[0].mxu0 %v131
  %v416 = vpop.f32.mrb[0].mxu0
  %v417 = vadd.f32 0.0, %v416
  %v418 = vpop.f32.mrb[0].mxu0
  %419 = vmatprep.mubr.f32.mxu0 0.0
  %420 = vmatmul.mubr.f32.gmra.mrb[0].mxu0 %v134
  %v421 = vpop.f32.mrb[0].mxu0
  %v422 = vadd.f32 0.0, %v421
  %v423 = vpop.f32.mrb[0].mxu0
  %424 = vmatprep.mubr.f32.mxu0 0.0
  %425 = vmatmul.mubr.f32.gmra.mrb[0].mxu0 %v137
  %v426 = vpop.f32.mrb[0].mxu0
  %v427 = vadd.f32 0.0, %v426
  %v428 = vpop.f32.mrb[0].mxu0
  %429 = vmatprep.mubr.f32.mxu0 0.0
  %430 = vmatmul.mubr.f32.gmra.mrb[0].mxu0 %v140
  %v431 = vpop.f32.mrb[0].mxu0
  %v432 = vadd.f32 0.0, %v431
  %v433 = vpop.f32.mrb[0].mxu0
  %434 = vmatprep.mubr.f32.mxu0 0.0
  %435 = vmatmul.mubr.f32.gmra.mrb[0].mxu0 %v143
  %v436 = vpop.f32.mrb[0].mxu0
  %v437 = vadd.f32 0.0, %v436
  %v438 = vpop.f32.mrb[0].mxu0
  %439 = vmatprep.mubr.f32.mxu0 0.0
  %440 = vmatmul.mubr.f32.gmra.mrb[0].mxu0 %v146
  %v441 = vpop.f32.mrb[0].mxu0
  %v442 = vadd.f32 0.0, %v441
  %v443 = vpop.f32.mrb[0].mxu0
  %444 = vmatprep.mubr.f32.mxu0 0.0
  %445 = vmatmul.mubr.f32.gmra.mrb[0].mxu0 %v149
  %v446 = vpop.f32.mrb[0].mxu0
  %v447 = vadd.f32 0.0, %v446
  %v448 = vpop.f32.mrb[0].mxu0
  %449 = vmatprep.mubr.f32.mxu0 0.0
  %450 = vmatmul.mubr.f32.gmra.mrb[0].mxu0 %v152
  %v451 = vpop.f32.mrb[0].mxu0
  %v452 = vadd.f32 0.0, %v451
  %v453 = vpop.f32.mrb[0].mxu0
  %454 = vmatprep.mubr.f32.mxu0 0.0
  %455 = vmatmul.mubr.f32.gmra.mrb[0].mxu0 %v155
  %v456 = vpop.f32.mrb[0].mxu0
  %v457 = vadd.f32 0.0, %v456
  %v458 = vpop.f32.mrb[0].mxu0
  %459 = vmatprep.mubr.f32.mxu0 0.0
  %460 = vmatmul.mubr.f32.gmra.mrb[0].mxu0 %v158
  %v461 = vpop.f32.mrb[0].mxu0
  %v462 = vadd.f32 0.0, %v461
  %v463 = vpop.f32.mrb[0].mxu0
  %464 = vmatprep.mubr.f32.mxu0 0.0
  %465 = vmatmul.mubr.f32.gmra.mrb[0].mxu0 %v161
  %v466 = vpop.f32.mrb[0].mxu0
  %v467 = vadd.f32 0.0, %v466
  %v468 = vpop.f32.mrb[0].mxu0
  %469 = vmatprep.mubr.f32.mxu0 0.0
  %470 = vmatmul.mubr.f32.gmra.mrb[0].mxu0 %v164
  %v471 = vpop.f32.mrb[0].mxu0
  %v472 = vadd.f32 0.0, %v471
  %v473 = vpop.f32.mrb[0].mxu0
  %474 = vmatprep.mubr.f32.mxu0 0.0
  %475 = vmatmul.mubr.f32.gmra.mrb[0].mxu0 %v167
  %v476 = vpop.f32.mrb[0].mxu0
  %v477 = vadd.f32 0.0, %v476
  %v478 = vpop.f32.mrb[0].mxu0
  %479 = vmatprep.mubr.f32.mxu0 0.0
  %480 = vmatmul.mubr.f32.gmra.mrb[0].mxu0 %v170
  %v481 = vpop.f32.mrb[0].mxu0
  %v482 = vadd.f32 0.0, %v481
  %v483 = vpop.f32.mrb[0].mxu0
  %484 = vmatprep.mubr.f32.mxu0 0.0
  %485 = vmatmul.mubr.f32.gmra.mrb[0].mxu0 %v173
  %v486 = vpop.f32.mrb[0].mxu0
  %v487 = vadd.f32 0.0, %v486
  %v488 = vpop.f32.mrb[0].mxu0
  %489 = vmatprep.mubr.f32.mxu0 0.0
  %490 = vmatmul.mubr.f32.gmra.mrb[0].mxu0 %v176
  %v491 = vpop.f32.mrb[0].mxu0
  %v492 = vadd.f32 0.0, %v491
  %v493 = vpop.f32.mrb[0].mxu0
  %494 = vmatprep.mubr.f32.mxu0 0.0
  %495 = vmatmul.mubr.f32.gmra.mrb[0].mxu0 %v179
  %v496 = vpop.f32.mrb[0].mxu0
  %v497 = vadd.f32 0.0, %v496
  %v498 = vpop.f32.mrb[0].mxu0
  %499 = vmatprep.mubr.f32.mxu0 0.0
  %500 = vmatmul.mubr.f32.gmra.mrb[0].mxu0 %v182
  %v501 = vpop.f32.mrb[0].mxu0
  %v502 = vadd.f32 0.0, %v501
  %v503 = vpop.f32.mrb[0].mxu0
  %504 = vmatprep.mubr.f32.mxu0 0.0
  %505 = vmatmul.mubr.f32.gmra.mrb[0].mxu0 %v185
  %v506 = vpop.f32.mrb[0].mxu0
  %v507 = vadd.f32 0.0, %v506
  %v508 = vpop.f32.mrb[0].mxu0
  %509 = vmatprep.mubr.f32.mxu0 0.0
  %510 = vmatmul.mubr.f32.gmra.mrb[0].mxu0 %v188
  %v511 = vpop.f32.mrb[0].mxu0
  %v512 = vadd.f32 0.0, %v511
  %v513 = vpop.f32.mrb[0].mxu0
  %514 = vmatprep.mubr.f32.mxu0 0.0
  %515 = vmatmul.mubr.f32.gmra.mrb[0].mxu0 %v191
  %v516 = vpop.f32.mrb[0].mxu0
  %v517 = vadd.f32 0.0, %v516
  %v518 = vpop.f32.mrb[0].mxu0
  %519 = vmatprep.mubr.f32.mxu0 0.0
  %520 = vmatmul.mubr.f32.gmra.mrb[0].mxu0 %v194
  %v521 = vpop.f32.mrb[0].mxu0
  %v522 = vadd.f32 0.0, %v521
  %v523 = vpop.f32.mrb[0].mxu0
  %524 = vmatprep.mubr.f32.mxu0 0.0
  %525 = vmatmul.mubr.f32.gmra.mrb[0].mxu0 %v197
  %v526 = vpop.f32.mrb[0].mxu0
  %v527 = vadd.f32 0.0, %v526
  %v528 = vpop.f32.mrb[0].mxu0
  %529 = vmatprep.mubr.f32.mxu0 0.0
  %530 = vmatmul.mubr.f32.gmra.mrb[0].mxu0 %v200
  %v531 = vpop.f32.mrb[0].mxu0
  %v532 = vadd.f32 0.0, %v531
  %v533 = vpop.f32.mrb[0].mxu0
  %534 = vmatprep.mubr.f32.mxu0 0.0
  %535 = vmatmul.mubr.f32.gmra.mrb[0].mxu0 %v203
  %v536 = vpop.f32.mrb[0].mxu0
  %v537 = vadd.f32 0.0, %v536
  %v538 = vpop.f32.mrb[0].mxu0
  %539 = vmatprep.mubr.f32.mxu0 0.0
  %540 = vmatmul.mubr.f32.gmra.mrb[0].mxu0 %v206
  %v541 = vpop.f32.mrb[0].mxu0
  %v542 = vadd.f32 0.0, %v541
  %v543 = vpop.f32.mrb[0].mxu0
  %544 = vmatprep.mubr.f32.mxu0 0.0
  %545 = vmatmul.mubr.f32.gmra.mrb[0].mxu0 %v209
  %v546 = vpop.f32.mrb[0].mxu0
  %v547 = vadd.f32 0.0, %v546
  %v548 = vpop.f32.mrb[0].mxu0
  %549 = vmatprep.mubr.f32.mxu0 0.0
  %550 = vmatmul.mubr.f32.gmra.mrb[0].mxu0 %v212
  %v551 = vpop.f32.mrb[0].mxu0
  %v552 = vadd.f32 0.0, %v551
  %v553 = vpop.f32.mrb[0].mxu0
  %554 = vmatprep.mubr.f32.mxu0 0.0
  %555 = vmatmul.mubr.f32.gmra.mrb[0].mxu0 %v215
  %v556 = vpop.f32.mrb[0].mxu0
  %v557 = vadd.f32 0.0, %v556
  %v558 = vpop.f32.mrb[0].mxu0
  %559 = vmatprep.mubr.f32.mxu0 0.0
  %560 = vmatmul.mubr.f32.gmra.mrb[0].mxu0 %v218
  %v561 = vpop.f32.mrb[0].mxu0
  %v562 = vadd.f32 0.0, %v561
  %v563 = vpop.f32.mrb[0].mxu0
  %564 = vmatprep.mubr.f32.mxu0 0.0
  %565 = vmatmul.mubr.f32.gmra.mrb[0].mxu0 %v221
  %v566 = vpop.f32.mrb[0].mxu0
  %v567 = vadd.f32 0.0, %v566
  %v568 = vpop.f32.mrb[0].mxu0
  %569 = vmatprep.mubr.f32.mxu0 0.0
  %570 = vmatmul.mubr.f32.gmra.mrb[0].mxu0 %v224
  %v571 = vpop.f32.mrb[0].mxu0
  %v572 = vadd.f32 0.0, %v571
  %v573 = vpop.f32.mrb[0].mxu0
  %574 = vmatprep.mubr.f32.mxu0 0.0
  %575 = vmatmul.mubr.f32.gmra.mrb[0].mxu0 %v227
  %v576 = vpop.f32.mrb[0].mxu0
  %v577 = vadd.f32 0.0, %v576
  %v578 = vpop.f32.mrb[0].mxu0
  %579 = vmatprep.mubr.f32.mxu0 0.0
  %580 = vmatmul.mubr.f32.gmra.mrb[0].mxu0 %v230
  %v581 = vpop.f32.mrb[0].mxu0
  %v582 = vadd.f32 0.0, %v581
  %v583 = vpop.f32.mrb[0].mxu0
  %584 = vmatprep.mubr.f32.mxu0 0.0
  %585 = vmatmul.mubr.f32.gmra.mrb[0].mxu0 %v233
  %v586 = vpop.f32.mrb[0].mxu0
  %v587 = vadd.f32 0.0, %v586
  %v588 = vpop.f32.mrb[0].mxu0
  %589 = vmatprep.mubr.f32.mxu0 0.0
  %590 = vmatmul.mubr.f32.gmra.mrb[0].mxu0 %v236
  %v591 = vpop.f32.mrb[0].mxu0
  %v592 = vadd.f32 0.0, %v591
  %v593 = vpop.f32.mrb[0].mxu0
  %594 = vmatprep.mubr.f32.mxu0 0.0
  %595 = vmatmul.mubr.f32.gmra.mrb[0].mxu0 %v239
  %v596 = vpop.f32.mrb[0].mxu0
  %v597 = vadd.f32 0.0, %v596
  %v598 = vpop.f32.mrb[0].mxu0
  %599 = vmatprep.mubr.f32.mxu0 0.0
  %600 = vmatmul.mubr.f32.gmra.mrb[0].mxu0 %v242
  %v601 = vpop.f32.mrb[0].mxu0
  %v602 = vadd.f32 0.0, %v601
  %v603 = vpop.f32.mrb[0].mxu0
  %604 = vmatprep.mubr.f32.mxu0 0.0
  %605 = vmatmul.mubr.f32.gmra.mrb[0].mxu0 %v245
  %v606 = vpop.f32.mrb[0].mxu0
  %v607 = vadd.f32 0.0, %v606
  %v608 = vpop.f32.mrb[0].mxu0
  %609 = vmatprep.mubr.f32.mxu0 0.0
  %610 = vmatmul.mubr.f32.gmra.mrb[0].mxu0 %v248
  %v611 = vpop.f32.mrb[0].mxu0
  %v612 = vadd.f32 0.0, %v611
  %v613 = vpop.f32.mrb[0].mxu0
  %614 = vmatprep.mubr.f32.mxu0 0.0
  %615 = vmatmul.mubr.f32.gmra.mrb[0].mxu0 %v251
  %v616 = vpop.f32.mrb[0].mxu0
  %v617 = vadd.f32 0.0, %v616
  %v618 = vpop.f32.mrb[0].mxu0
  %619 = vmatprep.mubr.f32.mxu0 0.0
  %620 = vmatmul.mubr.f32.gmra.mrb[0].mxu0 %v254
  %v621 = vpop.f32.mrb[0].mxu0
  %v622 = vadd.f32 0.0, %v621
  %v623 = vpop.f32.mrb[0].mxu0
  %624 = vmatprep.mubr.f32.mxu0 0.0
  %625 = vmatmul.mubr.f32.gmra.mrb[0].mxu0 %v257
  %v626 = vpop.f32.mrb[0].mxu0
  %v627 = vadd.f32 0.0, %v626
  %v628 = vpop.f32.mrb[0].mxu0
  %629 = vmatprep.mubr.f32.mxu0 0.0
  %630 = vmatmul.mubr.f32.gmra.mrb[0].mxu0 %v260
  %v631 = vpop.f32.mrb[0].mxu0
  %v632 = vadd.f32 0.0, %v631
  %v633 = vpop.f32.mrb[0].mxu0
  %634 = vmatprep.mubr.f32.mxu0 0.0
  %635 = vmatmul.mubr.f32.gmra.mrb[0].mxu0 %v263
  %v636 = vpop.f32.mrb[0].mxu0
  %v637 = vadd.f32 0.0, %v636
  %v638 = vpop.f32.mrb[0].mxu0
  %639 = vmatprep.mubr.f32.mxu0 0.0
  %640 = vmatmul.mubr.f32.gmra.mrb[0].mxu0 %v266
  %v641 = vpop.f32.mrb[0].mxu0
  %v642 = vadd.f32 0.0, %v641
  %v643 = vpop.f32.mrb[0].mxu0
  %644 = vmatprep.mubr.f32.mxu0 0.0
  %645 = vmatmul.mubr.f32.gmra.mrb[0].mxu0 %v269
  %v646 = vpop.f32.mrb[0].mxu0
  %v647 = vadd.f32 0.0, %v646
  %v648 = vpop.f32.mrb[0].mxu0
  %649 = vmatprep.mubr.f32.mxu0 0.0
  %650 = vmatmul.mubr.f32.gmra.mrb[0].mxu0 %v272
  %v651 = vpop.f32.mrb[0].mxu0
  %v652 = vadd.f32 0.0, %v651
  %v653 = vpop.f32.mrb[0].mxu0
  %654 = vmatprep.mubr.f32.mxu0 0.0
  %655 = vmatmul.mubr.f32.gmra.mrb[0].mxu0 %v275
  %v656 = vpop.f32.mrb[0].mxu0
  %v657 = vadd.f32 0.0, %v656
  %v658 = vpop.f32.mrb[0].mxu0
  %659 = vmatprep.mubr.f32.mxu0 0.0
  %660 = vmatmul.mubr.f32.gmra.mrb[0].mxu0 %v278
  %v661 = vpop.f32.mrb[0].mxu0
  %v662 = vadd.f32 0.0, %v661
  %v663 = vpop.f32.mrb[0].mxu0
  %664 = vdwg.mxu0
  %v665 = vmax.f32 %v347, %v427
  %v666 = vmax.f32 %v352, %v432
  %v667 = vmax.f32 %v357, %v437
  %v668 = vmax.f32 %v362, %v442
  %v669 = vmax.f32 %v367, %v447
  %v670 = vmax.f32 %v372, %v452
  %v671 = vmax.f32 %v377, %v457
  %v672 = vmax.f32 %v382, %v462
  %v673 = vmax.f32 %v387, %v467
  %v674 = vmax.f32 %v392, %v472
  %v675 = vmax.f32 %v397, %v477
  %v676 = vmax.f32 %v402, %v482
  %v677 = vmax.f32 %v407, %v487
  %v678 = vmax.f32 %v412, %v492
  %v679 = vmax.f32 %v417, %v497
  %v680 = vmax.f32 %v422, %v502
  %v681 = vmax.f32 %v507, %v587
  %v682 = vmax.f32 %v512, %v592
  %v683 = vmax.f32 %v517, %v597
  %v684 = vmax.f32 %v522, %v602
  %v685 = vmax.f32 %v527, %v607
  %v686 = vmax.f32 %v532, %v612
  %v687 = vmax.f32 %v537, %v617
  %v688 = vmax.f32 %v542, %v622
  %v689 = vmax.f32 %v547, %v627
  %v690 = vmax.f32 %v552, %v632
  %v691 = vmax.f32 %v557, %v637
  %v692 = vmax.f32 %v562, %v642
  %v693 = vmax.f32 %v567, %v647
  %v694 = vmax.f32 %v572, %v652
  %v695 = vmax.f32 %v577, %v657
  %v696 = vmax.f32 %v582, %v662
  %v697 = vmax.f32 %v665, %v681
  %v698 = vmax.f32 %v666, %v682
  %v699 = vmax.f32 %v667, %v683
  %v700 = vmax.f32 %v668, %v684
  %v701 = vmax.f32 %v669, %v685
  %v702 = vmax.f32 %v670, %v686
  %v703 = vmax.f32 %v671, %v687
  %v704 = vmax.f32 %v672, %v688
  %v705 = vmax.f32 %v673, %v689
  %v706 = vmax.f32 %v674, %v690
  %v707 = vmax.f32 %v675, %v691
  %v708 = vmax.f32 %v676, %v692
  %v709 = vmax.f32 %v677, %v693
  %v710 = vmax.f32 %v678, %v694
  %v711 = vmax.f32 %v679, %v695
  %v712 = vmax.f32 %v680, %v696
  %v713 = vld [vmem:[%s2] sm:$0x1]
  %v715 = vlaneseq
  %v716 = vshrl.u32 %v715, 7
  %v717 = vsub.s32 0, %v716
  %v718 = vrot.slane %v713, %v717
  %v720 = vadd.f32 %v697, %v718
  %v721 = vadd.f32 %v698, %v718
  %v722 = vadd.f32 %v699, %v718
  %v723 = vadd.f32 %v700, %v718
  %v724 = vadd.f32 %v701, %v718
  %v725 = vadd.f32 %v702, %v718
  %v726 = vadd.f32 %v703, %v718
  %v727 = vadd.f32 %v704, %v718
  %v728 = vadd.f32 %v705, %v718
  %v729 = vadd.f32 %v706, %v718
  %v730 = vadd.f32 %v707, %v718
  %v731 = vadd.f32 %v708, %v718
  %v732 = vadd.f32 %v709, %v718
  %v733 = vadd.f32 %v710, %v718
  %v734 = vadd.f32 %v711, %v718
  %v735 = vadd.f32 %v712, %v718
  %v736 = vmax.f32 %v720, 0.0
  %v737 = vmax.f32 %v721, 0.0
  %v738 = vmax.f32 %v722, 0.0
  %v739 = vmax.f32 %v723, 0.0
  %v740 = vmax.f32 %v724, 0.0
  %v741 = vmax.f32 %v725, 0.0
  %v742 = vmax.f32 %v726, 0.0
  %v743 = vmax.f32 %v727, 0.0
  %v744 = vmax.f32 %v728, 0.0
  %v745 = vmax.f32 %v729, 0.0
  %v746 = vmax.f32 %v730, 0.0
  %v747 = vmax.f32 %v731, 0.0
  %v748 = vmax.f32 %v732, 0.0
  %v749 = vmax.f32 %v733, 0.0
  %v750 = vmax.f32 %v734, 0.0
  %v751 = vmax.f32 %v735, 0.0
  %vm752 = vcmask 130048
  %753 = vst.msk [vmem:[%s3] sm:$0xff] %vm752, %v736
  %754 = vst.msk [vmem:[%s3 + $0x8] sm:$0xff] %vm752, %v737
  %755 = vst.msk [vmem:[%s3 + $0x10] sm:$0xff] %vm752, %v738
  %756 = vst.msk [vmem:[%s3 + $0x18] sm:$0xff] %vm752, %v739
  %757 = vst.msk [vmem:[%s3 + $0x20] sm:$0xff] %vm752, %v740
  %758 = vst.msk [vmem:[%s3 + $0x28] sm:$0xff] %vm752, %v741
  %759 = vst.msk [vmem:[%s3 + $0x30] sm:$0xff] %vm752, %v742
  %760 = vst.msk [vmem:[%s3 + $0x38] sm:$0xff] %vm752, %v743
  %761 = vst.msk [vmem:[%s3 + $0x40] sm:$0xff] %vm752, %v744
  %762 = vst.msk [vmem:[%s3 + $0x48] sm:$0xff] %vm752, %v745
  %763 = vst.msk [vmem:[%s3 + $0x50] sm:$0xff] %vm752, %v746
  %764 = vst.msk [vmem:[%s3 + $0x58] sm:$0xff] %vm752, %v747
  %765 = vst.msk [vmem:[%s3 + $0x60] sm:$0xff] %vm752, %v748
  %766 = vst.msk [vmem:[%s3 + $0x68] sm:$0xff] %vm752, %v749
  %767 = vst.msk [vmem:[%s3 + $0x70] sm:$0xff] %vm752, %v750
  %768 = vst.msk [vmem:[%s3 + $0x78] sm:$0xff] %vm752, %v751
  // Predicated region
  $region14: #{color_net_cnn.5} parent=0 // pred_check
    _
  $region15: #{color_net_cnn.5} parent=0 // pred_check_branch
    %770 = sbr.rel (0) target = $region17
  $region16: #{color_net_cnn.5} parent=0 // pred_region
    _
  $region17: #{color_net_cnn.5} parent=0 // pred_fallthru
    _
  // Predicated region
  $region18: #{color_net_cnn.5} parent=0 // pred_check
    _
  $region19: #{color_net_cnn.5} parent=0 // pred_check_branch
    %772 = sbr.rel (0) target = $region21
  $region20: #{color_net_cnn.5} parent=0 // pred_region
    _
  $region21: #{color_net_cnn.5} parent=0 // pred_fallthru
    _

// kernel: color_net_cnn.6
$region0: #{color_net_cnn.6}
  #allocation0 [shape = 'u32[]', space=smem, size = 0x4, offset = 0x4, fixed_abs, tag = 'smem constant byte address 0x4 - core index']
  #allocation1 [shape = 'u32[144,128]{1,0:T(1,128)}', space=vmem, size = 0x12000, scoped, tag = 'internal scratch']
  %s0 = inlined_call_operand.vmem [shape: f32[1,224,144], index: 0, kind: input, shape index: {}]
  %s1 = inlined_call_operand.vmem [shape: f32[144,32], index: 1, kind: input, shape index: {}]
  %s2 = inlined_call_operand.vmem [shape: f32[1,32], index: 2, kind: input, shape index: {}]
  %s3 = inlined_call_operand.vmem [shape: f32[56,32], index: 3, kind: output, shape index: {}]
  %s4 = sld [smem:[#allocation0]]
  $region22: #{color_net_cnn.6} parent=0
    _
  %s6 = ssub.s32 1, %s4
  %s7 = scalar_select 0, %s6, %s4
  // Predicated region
  $region2: #{color_net_cnn.6} parent=0 // pred_check
    _
  $region3: #{color_net_cnn.6} parent=0 // pred_check_branch
    %9 = sbr.rel (0) target = $region5
  $region4: #{color_net_cnn.6} parent=0 // pred_region
    _
  $region5: #{color_net_cnn.6} parent=0 // pred_fallthru
    _
  // Predicated region
  $region6: #{color_net_cnn.6} parent=0 // pred_check
    _
  $region7: #{color_net_cnn.6} parent=0 // pred_check_branch
    %11 = sbr.rel (0) target = $region9
  $region8: #{color_net_cnn.6} parent=0 // pred_region
    _
  $region9: #{color_net_cnn.6} parent=0 // pred_fallthru
    _
  // Predicated region
  $region10: #{color_net_cnn.6} parent=0 // pred_check
    _
  $region11: #{color_net_cnn.6} parent=0 // pred_check_branch
    %13 = sbr.rel (0) target = $region13
  $region12: #{color_net_cnn.6} parent=0 // pred_region
    _
  $region13: #{color_net_cnn.6} parent=0 // pred_fallthru
    _
  %v14 = vld [vmem:[%s0] sm:$0xff]
  %v15 = vld [vmem:[%s0 + $0x8] sm:$0xff]
  %v16 = vld [vmem:[%s0 + $0x10] sm:$0xff]
  %v17 = vld [vmem:[%s0 + $0x18] sm:$0xff]
  %v18 = vld [vmem:[%s0 + $0x20] sm:$0xff]
  %v19 = vld [vmem:[%s0 + $0x28] sm:$0xff]
  %v20 = vld [vmem:[%s0 + $0x30] sm:$0xff]
  %v21 = vld [vmem:[%s0 + $0x38] sm:$0xff]
  %v22 = vld [vmem:[%s0 + $0x40] sm:$0xff]
  %v23 = vld [vmem:[%s0 + $0x48] sm:$0xff]
  %v24 = vld [vmem:[%s0 + $0x50] sm:$0xff]
  %v25 = vld [vmem:[%s0 + $0x58] sm:$0xff]
  %v26 = vld [vmem:[%s0 + $0x60] sm:$0xff]
  %v27 = vld [vmem:[%s0 + $0x68] sm:$0xff]
  %v28 = vld [vmem:[%s0 + $0x70] sm:$0xff]
  %v29 = vld [vmem:[%s0 + $0x78] sm:$0xff]
  %v30 = vld [vmem:[%s0 + $0x80] sm:$0xff]
  %v31 = vld [vmem:[%s0 + $0x88] sm:$0xff]
  %v32 = vld [vmem:[%s0 + $0x90] sm:$0xff]
  %v33 = vld [vmem:[%s0 + $0x98] sm:$0xff]
  %v34 = vld [vmem:[%s0 + $0xa0] sm:$0xff]
  %v35 = vld [vmem:[%s0 + $0xa8] sm:$0xff]
  %v36 = vld [vmem:[%s0 + $0xb0] sm:$0xff]
  %v37 = vld [vmem:[%s0 + $0xb8] sm:$0xff]
  %v38 = vld [vmem:[%s0 + $0xc0] sm:$0xff]
  %v39 = vld [vmem:[%s0 + $0xc8] sm:$0xff]
  %v40 = vld [vmem:[%s0 + $0xd0] sm:$0xff]
  %v41 = vld [vmem:[%s0 + $0xd8] sm:$0xff]
  %v42 = vld [vmem:[%s0 + $0xe0] sm:$0xff]
  %v43 = vld [vmem:[%s0 + $0xe8] sm:$0xff]
  %v44 = vld [vmem:[%s0 + $0xf0] sm:$0xff]
  %v45 = vld [vmem:[%s0 + $0xf8] sm:$0xff]
  %v46 = vld [vmem:[%s0 + $0x100] sm:$0xff]
  %v47 = vld [vmem:[%s0 + $0x108] sm:$0xff]
  %v48 = vld [vmem:[%s0 + $0x110] sm:$0xff]
  %v49 = vld [vmem:[%s0 + $0x118] sm:$0xff]
  %v50 = vld [vmem:[%s0 + $0x120] sm:$0xff]
  %v51 = vld [vmem:[%s0 + $0x128] sm:$0xff]
  %v52 = vld [vmem:[%s0 + $0x130] sm:$0xff]
  %v53 = vld [vmem:[%s0 + $0x138] sm:$0xff]
  %v54 = vld [vmem:[%s0 + $0x140] sm:$0xff]
  %v55 = vld [vmem:[%s0 + $0x148] sm:$0xff]
  %v56 = vld [vmem:[%s0 + $0x150] sm:$0xff]
  %v57 = vld [vmem:[%s0 + $0x158] sm:$0xff]
  %v58 = vld [vmem:[%s0 + $0x160] sm:$0xff]
  %v59 = vld [vmem:[%s0 + $0x168] sm:$0xff]
  %v60 = vld [vmem:[%s0 + $0x170] sm:$0xff]
  %v61 = vld [vmem:[%s0 + $0x178] sm:$0xff]
  %v62 = vld [vmem:[%s0 + $0x180] sm:$0xff]
  %v63 = vld [vmem:[%s0 + $0x188] sm:$0xff]
  %v64 = vld [vmem:[%s0 + $0x190] sm:$0xff]
  %v65 = vld [vmem:[%s0 + $0x198] sm:$0xff]
  %v66 = vld [vmem:[%s0 + $0x1a0] sm:$0xff]
  %v67 = vld [vmem:[%s0 + $0x1a8] sm:$0xff]
  %v68 = vld [vmem:[%s0 + $0x1b0] sm:$0xff]
  %v69 = vld [vmem:[%s0 + $0x1b8] sm:$0xff]
  %v70 = vld [vmem:[%s1] sm:$0xff]
  %v71 = vld [vmem:[%s1 + $0x8] sm:$0xff]
  %v72 = vld [vmem:[%s1 + $0x10] sm:$0xff]
  %v73 = vld [vmem:[%s1 + $0x18] sm:$0xff]
  %v74 = vld [vmem:[%s1 + $0x20] sm:$0xff]
  %v75 = vld [vmem:[%s1 + $0x28] sm:$0xff]
  %v76 = vld [vmem:[%s1 + $0x30] sm:$0xff]
  %v77 = vld [vmem:[%s1 + $0x38] sm:$0xff]
  %v78 = vld [vmem:[%s1 + $0x40] sm:$0xff]
  %v79 = vld [vmem:[%s1 + $0x48] sm:$0xff]
  %v80 = vld [vmem:[%s1 + $0x50] sm:$0xff]
  %v81 = vld [vmem:[%s1 + $0x58] sm:$0xff]
  %v82 = vld [vmem:[%s1 + $0x60] sm:$0xff]
  %v83 = vld [vmem:[%s1 + $0x68] sm:$0xff]
  %v84 = vld [vmem:[%s1 + $0x70] sm:$0xff]
  %v85 = vld [vmem:[%s1 + $0x78] sm:$0xff]
  %v86 = vld [vmem:[%s1 + $0x80] sm:$0xff]
  %v87 = vld [vmem:[%s1 + $0x88] sm:$0xff]
  %vm88 = vcmask 130048
  %v90 = vsel %vm88, %v15, 0
  %v93 = vsel %vm88, %v17, 0
  %v96 = vsel %vm88, %v19, 0
  %v99 = vsel %vm88, %v21, 0
  %v102 = vsel %vm88, %v23, 0
  %v105 = vsel %vm88, %v25, 0
  %v108 = vsel %vm88, %v27, 0
  %v111 = vsel %vm88, %v29, 0
  %v114 = vsel %vm88, %v31, 0
  %v117 = vsel %vm88, %v33, 0
  %v120 = vsel %vm88, %v35, 0
  %v123 = vsel %vm88, %v37, 0
  %v126 = vsel %vm88, %v39, 0
  %v129 = vsel %vm88, %v41, 0
  %v132 = vsel %vm88, %v43, 0
  %v135 = vsel %vm88, %v45, 0
  %v138 = vsel %vm88, %v47, 0
  %v141 = vsel %vm88, %v49, 0
  %v144 = vsel %vm88, %v51, 0
  %v147 = vsel %vm88, %v53, 0
  %v150 = vsel %vm88, %v55, 0
  %v153 = vsel %vm88, %v57, 0
  %v156 = vsel %vm88, %v59, 0
  %v159 = vsel %vm88, %v61, 0
  %v162 = vsel %vm88, %v63, 0
  %v165 = vsel %vm88, %v65, 0
  %v168 = vsel %vm88, %v67, 0
  %v171 = vsel %vm88, %v69, 0
  %173 = vmatprep.subr.mxu0 0.0
  %174 = vmatpush1.msra.mxu0 %v70
  %175 = vmatprep.subr.mxu0 0.0
  %176 = vmatpush1.msra.mxu0 %v71
  %177 = vmatprep.subr.mxu0 0.0
  %178 = vmatpush1.msra.mxu0 %v72
  %179 = vmatprep.subr.mxu0 0.0
  %180 = vmatpush1.msra.mxu0 %v73
  %181 = vmatprep.subr.mxu0 0.0
  %182 = vmatpush1.msra.mxu0 %v74
  %183 = vmatprep.subr.mxu0 0.0
  %184 = vmatpush1.msra.mxu0 %v75
  %185 = vmatprep.subr.mxu0 0.0
  %186 = vmatpush1.msra.mxu0 %v76
  %187 = vmatprep.subr.mxu0 0.0
  %188 = vmatpush1.msra.mxu0 %v77
  %189 = vmatprep.subr.mxu0 0.0
  %190 = vmatpush1.msra.mxu0 %v78
  %191 = vmatprep.subr.mxu0 0.0
  %192 = vmatpush1.msra.mxu0 %v79
  %193 = vmatprep.subr.mxu0 0.0
  %194 = vmatpush1.msra.mxu0 %v80
  %195 = vmatprep.subr.mxu0 0.0
  %196 = vmatpush1.msra.mxu0 %v81
  %197 = vmatprep.subr.mxu0 0.0
  %198 = vmatpush1.msra.mxu0 %v82
  %199 = vmatprep.subr.mxu0 0.0
  %200 = vmatpush1.msra.mxu0 %v83
  %201 = vmatprep.subr.mxu0 0.0
  %202 = vmatpush1.msra.mxu0 %v84
  %203 = vmatprep.subr.mxu0 0.0
  %204 = vmatpush1.msra.mxu0 %v85
  %205 = vmatprep.subr.mxu0 0.0
  %206 = vmatpush1.msra.mxu0 %v86
  %207 = vmatprep.subr.mxu0 0.0
  %208 = vmatpush1.msra.mxu0 %v87
  %209 = vmatprep.subr.mxu0 0.0
  %210 = vmatpush1.msra.mxu0 0.0
  %211 = vmatprep.subr.mxu0 0.0
  %212 = vmatpush1.msra.mxu0 0.0
  %213 = vmatprep.subr.mxu0 0.0
  %214 = vmatpush1.msra.mxu0 0.0
  %215 = vmatprep.subr.mxu0 0.0
  %216 = vmatpush1.msra.mxu0 0.0
  %217 = vmatprep.subr.mxu0 0.0
  %218 = vmatpush1.msra.mxu0 0.0
  %219 = vmatprep.subr.mxu0 0.0
  %220 = vmatpush1.msra.mxu0 0.0
  %221 = vmatprep.subr.mxu0 0.0
  %222 = vmatpush1.msra.mxu0 0.0
  %223 = vmatprep.subr.mxu0 0.0
  %224 = vmatpush1.msra.mxu0 0.0
  %225 = vmatprep.subr.mxu0 0.0
  %226 = vmatpush1.msra.mxu0 0.0
  %227 = vmatprep.subr.mxu0 0.0
  %228 = vmatpush1.msra.mxu0 0.0
  %229 = vmatprep.subr.mxu0 0.0
  %230 = vmatpush1.msra.mxu0 0.0
  %231 = vmatprep.subr.mxu0 0.0
  %232 = vmatpush1.msra.mxu0 0.0
  %233 = vmatprep.subr.mxu0 0.0
  %234 = vmatpush1.msra.mxu0 0.0
  %235 = vmatprep.subr.mxu0 0.0
  %236 = vmatpush1.msra.mxu0 0.0
  %237 = vmatprep.mubr.f32.mxu0 %v90
  %238 = vmatmul.mubr.f32.gmra.mrb[0].mxu0 %v14
  %v239 = vpop.f32.mrb[0].mxu0
  %v240 = vadd.f32 0.0, %v239
  %v241 = vpop.f32.mrb[0].mxu0
  %242 = vmatprep.mubr.f32.mxu0 %v93
  %243 = vmatmul.mubr.f32.gmra.mrb[0].mxu0 %v16
  %v244 = vpop.f32.mrb[0].mxu0
  %v245 = vadd.f32 0.0, %v244
  %v246 = vpop.f32.mrb[0].mxu0
  %247 = vmatprep.mubr.f32.mxu0 %v96
  %248 = vmatmul.mubr.f32.gmra.mrb[0].mxu0 %v18
  %v249 = vpop.f32.mrb[0].mxu0
  %v250 = vadd.f32 0.0, %v249
  %v251 = vpop.f32.mrb[0].mxu0
  %252 = vmatprep.mubr.f32.mxu0 %v99
  %253 = vmatmul.mubr.f32.gmra.mrb[0].mxu0 %v20
  %v254 = vpop.f32.mrb[0].mxu0
  %v255 = vadd.f32 0.0, %v254
  %v256 = vpop.f32.mrb[0].mxu0
  %257 = vmatprep.mubr.f32.mxu0 %v102
  %258 = vmatmul.mubr.f32.gmra.mrb[0].mxu0 %v22
  %v259 = vpop.f32.mrb[0].mxu0
  %v260 = vadd.f32 0.0, %v259
  %v261 = vpop.f32.mrb[0].mxu0
  %262 = vmatprep.mubr.f32.mxu0 %v105
  %263 = vmatmul.mubr.f32.gmra.mrb[0].mxu0 %v24
  %v264 = vpop.f32.mrb[0].mxu0
  %v265 = vadd.f32 0.0, %v264
  %v266 = vpop.f32.mrb[0].mxu0
  %267 = vmatprep.mubr.f32.mxu0 %v108
  %268 = vmatmul.mubr.f32.gmra.mrb[0].mxu0 %v26
  %v269 = vpop.f32.mrb[0].mxu0
  %v270 = vadd.f32 0.0, %v269
  %v271 = vpop.f32.mrb[0].mxu0
  %272 = vmatprep.mubr.f32.mxu0 %v111
  %273 = vmatmul.mubr.f32.gmra.mrb[0].mxu0 %v28
  %v274 = vpop.f32.mrb[0].mxu0
  %v275 = vadd.f32 0.0, %v274
  %v276 = vpop.f32.mrb[0].mxu0
  %277 = vmatprep.mubr.f32.mxu0 %v114
  %278 = vmatmul.mubr.f32.gmra.mrb[0].mxu0 %v30
  %v279 = vpop.f32.mrb[0].mxu0
  %v280 = vadd.f32 0.0, %v279
  %v281 = vpop.f32.mrb[0].mxu0
  %282 = vmatprep.mubr.f32.mxu0 %v117
  %283 = vmatmul.mubr.f32.gmra.mrb[0].mxu0 %v32
  %v284 = vpop.f32.mrb[0].mxu0
  %v285 = vadd.f32 0.0, %v284
  %v286 = vpop.f32.mrb[0].mxu0
  %287 = vmatprep.mubr.f32.mxu0 %v120
  %288 = vmatmul.mubr.f32.gmra.mrb[0].mxu0 %v34
  %v289 = vpop.f32.mrb[0].mxu0
  %v290 = vadd.f32 0.0, %v289
  %v291 = vpop.f32.mrb[0].mxu0
  %292 = vmatprep.mubr.f32.mxu0 %v123
  %293 = vmatmul.mubr.f32.gmra.mrb[0].mxu0 %v36
  %v294 = vpop.f32.mrb[0].mxu0
  %v295 = vadd.f32 0.0, %v294
  %v296 = vpop.f32.mrb[0].mxu0
  %297 = vmatprep.mubr.f32.mxu0 %v126
  %298 = vmatmul.mubr.f32.gmra.mrb[0].mxu0 %v38
  %v299 = vpop.f32.mrb[0].mxu0
  %v300 = vadd.f32 0.0, %v299
  %v301 = vpop.f32.mrb[0].mxu0
  %302 = vmatprep.mubr.f32.mxu0 %v129
  %303 = vmatmul.mubr.f32.gmra.mrb[0].mxu0 %v40
  %v304 = vpop.f32.mrb[0].mxu0
  %v305 = vadd.f32 0.0, %v304
  %v306 = vpop.f32.mrb[0].mxu0
  %307 = vmatprep.mubr.f32.mxu0 %v132
  %308 = vmatmul.mubr.f32.gmra.mrb[0].mxu0 %v42
  %v309 = vpop.f32.mrb[0].mxu0
  %v310 = vadd.f32 0.0, %v309
  %v311 = vpop.f32.mrb[0].mxu0
  %312 = vmatprep.mubr.f32.mxu0 %v135
  %313 = vmatmul.mubr.f32.gmra.mrb[0].mxu0 %v44
  %v314 = vpop.f32.mrb[0].mxu0
  %v315 = vadd.f32 0.0, %v314
  %v316 = vpop.f32.mrb[0].mxu0
  %317 = vmatprep.mubr.f32.mxu0 %v138
  %318 = vmatmul.mubr.f32.gmra.mrb[0].mxu0 %v46
  %v319 = vpop.f32.mrb[0].mxu0
  %v320 = vadd.f32 0.0, %v319
  %v321 = vpop.f32.mrb[0].mxu0
  %322 = vmatprep.mubr.f32.mxu0 %v141
  %323 = vmatmul.mubr.f32.gmra.mrb[0].mxu0 %v48
  %v324 = vpop.f32.mrb[0].mxu0
  %v325 = vadd.f32 0.0, %v324
  %v326 = vpop.f32.mrb[0].mxu0
  %327 = vmatprep.mubr.f32.mxu0 %v144
  %328 = vmatmul.mubr.f32.gmra.mrb[0].mxu0 %v50
  %v329 = vpop.f32.mrb[0].mxu0
  %v330 = vadd.f32 0.0, %v329
  %v331 = vpop.f32.mrb[0].mxu0
  %332 = vmatprep.mubr.f32.mxu0 %v147
  %333 = vmatmul.mubr.f32.gmra.mrb[0].mxu0 %v52
  %v334 = vpop.f32.mrb[0].mxu0
  %v335 = vadd.f32 0.0, %v334
  %v336 = vpop.f32.mrb[0].mxu0
  %337 = vmatprep.mubr.f32.mxu0 %v150
  %338 = vmatmul.mubr.f32.gmra.mrb[0].mxu0 %v54
  %v339 = vpop.f32.mrb[0].mxu0
  %v340 = vadd.f32 0.0, %v339
  %v341 = vpop.f32.mrb[0].mxu0
  %342 = vmatprep.mubr.f32.mxu0 %v153
  %343 = vmatmul.mubr.f32.gmra.mrb[0].mxu0 %v56
  %v344 = vpop.f32.mrb[0].mxu0
  %v345 = vadd.f32 0.0, %v344
  %v346 = vpop.f32.mrb[0].mxu0
  %347 = vmatprep.mubr.f32.mxu0 %v156
  %348 = vmatmul.mubr.f32.gmra.mrb[0].mxu0 %v58
  %v349 = vpop.f32.mrb[0].mxu0
  %v350 = vadd.f32 0.0, %v349
  %v351 = vpop.f32.mrb[0].mxu0
  %352 = vmatprep.mubr.f32.mxu0 %v159
  %353 = vmatmul.mubr.f32.gmra.mrb[0].mxu0 %v60
  %v354 = vpop.f32.mrb[0].mxu0
  %v355 = vadd.f32 0.0, %v354
  %v356 = vpop.f32.mrb[0].mxu0
  %357 = vmatprep.mubr.f32.mxu0 %v162
  %358 = vmatmul.mubr.f32.gmra.mrb[0].mxu0 %v62
  %v359 = vpop.f32.mrb[0].mxu0
  %v360 = vadd.f32 0.0, %v359
  %v361 = vpop.f32.mrb[0].mxu0
  %362 = vmatprep.mubr.f32.mxu0 %v165
  %363 = vmatmul.mubr.f32.gmra.mrb[0].mxu0 %v64
  %v364 = vpop.f32.mrb[0].mxu0
  %v365 = vadd.f32 0.0, %v364
  %v366 = vpop.f32.mrb[0].mxu0
  %367 = vmatprep.mubr.f32.mxu0 %v168
  %368 = vmatmul.mubr.f32.gmra.mrb[0].mxu0 %v66
  %v369 = vpop.f32.mrb[0].mxu0
  %v370 = vadd.f32 0.0, %v369
  %v371 = vpop.f32.mrb[0].mxu0
  %372 = vmatprep.mubr.f32.mxu0 %v171
  %373 = vmatmul.mubr.f32.gmra.mrb[0].mxu0 %v68
  %v374 = vpop.f32.mrb[0].mxu0
  %v375 = vadd.f32 0.0, %v374
  %v376 = vpop.f32.mrb[0].mxu0
  %377 = vdwg.mxu0
  %v378 = vmax.f32 %v240, %v275
  %v379 = vmax.f32 %v245, %v280
  %v380 = vmax.f32 %v250, %v285
  %v381 = vmax.f32 %v255, %v290
  %v382 = vmax.f32 %v260, %v295
  %v383 = vmax.f32 %v265, %v300
  %v384 = vmax.f32 %v270, %v305
  %v385 = vmax.f32 %v310, %v345
  %v386 = vmax.f32 %v315, %v350
  %v387 = vmax.f32 %v320, %v355
  %v388 = vmax.f32 %v325, %v360
  %v389 = vmax.f32 %v330, %v365
  %v390 = vmax.f32 %v335, %v370
  %v391 = vmax.f32 %v340, %v375
  %v392 = vmax.f32 %v378, %v385
  %v393 = vmax.f32 %v379, %v386
  %v394 = vmax.f32 %v380, %v387
  %v395 = vmax.f32 %v381, %v388
  %v396 = vmax.f32 %v382, %v389
  %v397 = vmax.f32 %v383, %v390
  %v398 = vmax.f32 %v384, %v391
  %v399 = vld [vmem:[%s2] sm:$0x1]
  %v401 = vlaneseq
  %v402 = vshrl.u32 %v401, 7
  %v403 = vsub.s32 0, %v402
  %v404 = vrot.slane %v399, %v403
  %v406 = vadd.f32 %v392, %v404
  %v407 = vadd.f32 %v393, %v404
  %v408 = vadd.f32 %v394, %v404
  %v409 = vadd.f32 %v395, %v404
  %v410 = vadd.f32 %v396, %v404
  %v411 = vadd.f32 %v397, %v404
  %v412 = vadd.f32 %v398, %v404
  %v413 = vmax.f32 %v406, 0.0
  %v414 = vmax.f32 %v407, 0.0
  %v415 = vmax.f32 %v408, 0.0
  %v416 = vmax.f32 %v409, 0.0
  %v417 = vmax.f32 %v410, 0.0
  %v418 = vmax.f32 %v411, 0.0
  %v419 = vmax.f32 %v412, 0.0
  %vm420 = vcmask 261120
  %421 = vst.msk [vmem:[%s3] sm:$0xff] %vm420, %v413
  %422 = vst.msk [vmem:[%s3 + $0x8] sm:$0xff] %vm420, %v414
  %423 = vst.msk [vmem:[%s3 + $0x10] sm:$0xff] %vm420, %v415
  %424 = vst.msk [vmem:[%s3 + $0x18] sm:$0xff] %vm420, %v416
  %425 = vst.msk [vmem:[%s3 + $0x20] sm:$0xff] %vm420, %v417
  %426 = vst.msk [vmem:[%s3 + $0x28] sm:$0xff] %vm420, %v418
  %427 = vst.msk [vmem:[%s3 + $0x30] sm:$0xff] %vm420, %v419
  // Predicated region
  $region14: #{color_net_cnn.6} parent=0 // pred_check
    _
  $region15: #{color_net_cnn.6} parent=0 // pred_check_branch
    %429 = sbr.rel (0) target = $region17
  $region16: #{color_net_cnn.6} parent=0 // pred_region
    _
  $region17: #{color_net_cnn.6} parent=0 // pred_fallthru
    _
  // Predicated region
  $region18: #{color_net_cnn.6} parent=0 // pred_check
    _
  $region19: #{color_net_cnn.6} parent=0 // pred_check_branch
    %431 = sbr.rel (0) target = $region21
  $region20: #{color_net_cnn.6} parent=0 // pred_region
    _
  $region21: #{color_net_cnn.6} parent=0 // pred_fallthru
    _

// kernel: color_net_cnn.7
$region0: #{color_net_cnn.7}
  #allocation0 [shape = 'u32[]', space=smem, size = 0x4, offset = 0x4, fixed_abs, tag = 'smem constant byte address 0x4 - core index']
  #allocation1 [shape = 'u32[144,128]{1,0:T(1,128)}', space=vmem, size = 0x12000, scoped, tag = 'internal scratch']
  %s0 = inlined_call_operand.vmem [shape: f32[8,800], index: 0, kind: input, shape index: {}]
  %s1 = inlined_call_operand.vmem [shape: f32[800,1000], index: 1, kind: input, shape index: {}]
  %s2 = inlined_call_operand.vmem [shape: f32[1,1000], index: 2, kind: input, shape index: {}]
  %s3 = inlined_call_operand.vmem [shape: f32[1000,64], index: 3, kind: input, shape index: {}]
  %s4 = inlined_call_operand.vmem [shape: f32[1,64], index: 4, kind: input, shape index: {}]
  %s5 = inlined_call_operand.vmem [shape: f32[64,10], index: 5, kind: input, shape index: {}]
  %s6 = inlined_call_operand.vmem [shape: f32[1,10], index: 6, kind: input, shape index: {}]
  %s7 = inlined_call_operand.vmem [shape: f32[8,10], index: 7, kind: output, shape index: {}]
  %s8 = sld [smem:[#allocation0]]
  $region38: #{color_net_cnn.7} parent=0
    _
  %s10 = ssub.s32 1, %s8
  %s11 = scalar_select 0, %s10, %s8
  // Predicated region
  $region2: #{color_net_cnn.7} parent=0 // pred_check
    _
  $region3: #{color_net_cnn.7} parent=0 // pred_check_branch
    %13 = sbr.rel (0) target = $region5
  $region4: #{color_net_cnn.7} parent=0 // pred_region
    _
  $region5: #{color_net_cnn.7} parent=0 // pred_fallthru
    _
  // Predicated region
  $region6: #{color_net_cnn.7} parent=0 // pred_check
    _
  $region7: #{color_net_cnn.7} parent=0 // pred_check_branch
    %15 = sbr.rel (0) target = $region9
  $region8: #{color_net_cnn.7} parent=0 // pred_region
    _
  $region9: #{color_net_cnn.7} parent=0 // pred_fallthru
    _
  // Predicated region
  $region10: #{color_net_cnn.7} parent=0 // pred_check
    _
  $region11: #{color_net_cnn.7} parent=0 // pred_check_branch
    %17 = sbr.rel (0) target = $region13
  $region12: #{color_net_cnn.7} parent=0 // pred_region
    _
  $region13: #{color_net_cnn.7} parent=0 // pred_fallthru
    _
  // Predicated region
  $region14: #{color_net_cnn.7} parent=0 // pred_check
    _
  $region15: #{color_net_cnn.7} parent=0 // pred_check_branch
    %19 = sbr.rel (0) target = $region17
  $region16: #{color_net_cnn.7} parent=0 // pred_region
    _
  $region17: #{color_net_cnn.7} parent=0 // pred_fallthru
    _
  // Predicated region
  $region18: #{color_net_cnn.7} parent=0 // pred_check
    _
  $region19: #{color_net_cnn.7} parent=0 // pred_check_branch
    %21 = sbr.rel (0) target = $region21
  $region20: #{color_net_cnn.7} parent=0 // pred_region
    _
  $region21: #{color_net_cnn.7} parent=0 // pred_fallthru
    _
  // Predicated region
  $region22: #{color_net_cnn.7} parent=0 // pred_check
    _
  $region23: #{color_net_cnn.7} parent=0 // pred_check_branch
    %23 = sbr.rel (0) target = $region25
  $region24: #{color_net_cnn.7} parent=0 // pred_region
    _
  $region25: #{color_net_cnn.7} parent=0 // pred_fallthru
    _
  // Predicated region
  $region26: #{color_net_cnn.7} parent=0 // pred_check
    _
  $region27: #{color_net_cnn.7} parent=0 // pred_check_branch
    %25 = sbr.rel (0) target = $region29
  $region28: #{color_net_cnn.7} parent=0 // pred_region
    _
  $region29: #{color_net_cnn.7} parent=0 // pred_fallthru
    _
  %v26 = vld [vmem:[%s0] sm:$0xff]
  %v27 = vld [vmem:[%s0 + $0x8] sm:$0xff]
  %v28 = vld [vmem:[%s0 + $0x10] sm:$0xff]
  %v29 = vld [vmem:[%s0 + $0x18] sm:$0xff]
  %v30 = vld [vmem:[%s0 + $0x20] sm:$0xff]
  %v31 = vld [vmem:[%s0 + $0x28] sm:$0xff]
  %v32 = vld [vmem:[%s0 + $0x30] sm:$0xff]
  %v33 = vld [vmem:[%s1] sm:$0xff]
  %v34 = vld [vmem:[%s1 + $0x8] sm:$0xff]
  %v35 = vld [vmem:[%s1 + $0x10] sm:$0xff]
  %v36 = vld [vmem:[%s1 + $0x18] sm:$0xff]
  %v37 = vld [vmem:[%s1 + $0x20] sm:$0xff]
  %v38 = vld [vmem:[%s1 + $0x28] sm:$0xff]
  %v39 = vld [vmem:[%s1 + $0x30] sm:$0xff]
  %v40 = vld [vmem:[%s1 + $0x38] sm:$0xff]
  %v41 = vld [vmem:[%s1 + $0x40] sm:$0xff]
  %v42 = vld [vmem:[%s1 + $0x48] sm:$0xff]
  %v43 = vld [vmem:[%s1 + $0x50] sm:$0xff]
  %v44 = vld [vmem:[%s1 + $0x58] sm:$0xff]
  %v45 = vld [vmem:[%s1 + $0x60] sm:$0xff]
  %v46 = vld [vmem:[%s1 + $0x68] sm:$0xff]
  %v47 = vld [vmem:[%s1 + $0x70] sm:$0xff]
  %v48 = vld [vmem:[%s1 + $0x78] sm:$0xff]
  %v49 = vld [vmem:[%s1 + $0x80] sm:$0xff]
  %v50 = vld [vmem:[%s1 + $0x88] sm:$0xff]
  %v51 = vld [vmem:[%s1 + $0x90] sm:$0xff]
  %v52 = vld [vmem:[%s1 + $0x98] sm:$0xff]
  %v53 = vld [vmem:[%s1 + $0xa0] sm:$0xff]
  %v54 = vld [vmem:[%s1 + $0xa8] sm:$0xff]
  %v55 = vld [vmem:[%s1 + $0xb0] sm:$0xff]
  %v56 = vld [vmem:[%s1 + $0xb8] sm:$0xff]
  %v57 = vld [vmem:[%s1 + $0xc0] sm:$0xff]
  %v58 = vld [vmem:[%s1 + $0xc8] sm:$0xff]
  %v59 = vld [vmem:[%s1 + $0xd0] sm:$0xff]
  %v60 = vld [vmem:[%s1 + $0xd8] sm:$0xff]
  %v61 = vld [vmem:[%s1 + $0xe0] sm:$0xff]
  %v62 = vld [vmem:[%s1 + $0xe8] sm:$0xff]
  %v63 = vld [vmem:[%s1 + $0xf0] sm:$0xff]
  %v64 = vld [vmem:[%s1 + $0xf8] sm:$0xff]
  %v65 = vld [vmem:[%s1 + $0x100] sm:$0xff]
  %v66 = vld [vmem:[%s1 + $0x108] sm:$0xff]
  %v67 = vld [vmem:[%s1 + $0x110] sm:$0xff]
  %v68 = vld [vmem:[%s1 + $0x118] sm:$0xff]
  %v69 = vld [vmem:[%s1 + $0x120] sm:$0xff]
  %v70 = vld [vmem:[%s1 + $0x128] sm:$0xff]
  %v71 = vld [vmem:[%s1 + $0x130] sm:$0xff]
  %v72 = vld [vmem:[%s1 + $0x138] sm:$0xff]
  %v73 = vld [vmem:[%s1 + $0x140] sm:$0xff]
  %v74 = vld [vmem:[%s1 + $0x148] sm:$0xff]
  %v75 = vld [vmem:[%s1 + $0x150] sm:$0xff]
  %v76 = vld [vmem:[%s1 + $0x158] sm:$0xff]
  %v77 = vld [vmem:[%s1 + $0x160] sm:$0xff]
  %v78 = vld [vmem:[%s1 + $0x168] sm:$0xff]
  %v79 = vld [vmem:[%s1 + $0x170] sm:$0xff]
  %v80 = vld [vmem:[%s1 + $0x178] sm:$0xff]
  %v81 = vld [vmem:[%s1 + $0x180] sm:$0xff]
  %v82 = vld [vmem:[%s1 + $0x188] sm:$0xff]
  %v83 = vld [vmem:[%s1 + $0x190] sm:$0xff]
  %v84 = vld [vmem:[%s1 + $0x198] sm:$0xff]
  %v85 = vld [vmem:[%s1 + $0x1a0] sm:$0xff]
  %v86 = vld [vmem:[%s1 + $0x1a8] sm:$0xff]
  %v87 = vld [vmem:[%s1 + $0x1b0] sm:$0xff]
  %v88 = vld [vmem:[%s1 + $0x1b8] sm:$0xff]
  %v89 = vld [vmem:[%s1 + $0x1c0] sm:$0xff]
  %v90 = vld [vmem:[%s1 + $0x1c8] sm:$0xff]
  %v91 = vld [vmem:[%s1 + $0x1d0] sm:$0xff]
  %v92 = vld [vmem:[%s1 + $0x1d8] sm:$0xff]
  %v93 = vld [vmem:[%s1 + $0x1e0] sm:$0xff]
  %v94 = vld [vmem:[%s1 + $0x1e8] sm:$0xff]
  %v95 = vld [vmem:[%s1 + $0x1f0] sm:$0xff]
  %v96 = vld [vmem:[%s1 + $0x1f8] sm:$0xff]
  %v97 = vld [vmem:[%s1 + $0x200] sm:$0xff]
  %v98 = vld [vmem:[%s1 + $0x208] sm:$0xff]
  %v99 = vld [vmem:[%s1 + $0x210] sm:$0xff]
  %v100 = vld [vmem:[%s1 + $0x218] sm:$0xff]
  %v101 = vld [vmem:[%s1 + $0x220] sm:$0xff]
  %v102 = vld [vmem:[%s1 + $0x228] sm:$0xff]
  %v103 = vld [vmem:[%s1 + $0x230] sm:$0xff]
  %v104 = vld [vmem:[%s1 + $0x238] sm:$0xff]
  %v105 = vld [vmem:[%s1 + $0x240] sm:$0xff]
  %v106 = vld [vmem:[%s1 + $0x248] sm:$0xff]
  %v107 = vld [vmem:[%s1 + $0x250] sm:$0xff]
  %v108 = vld [vmem:[%s1 + $0x258] sm:$0xff]
  %v109 = vld [vmem:[%s1 + $0x260] sm:$0xff]
  %v110 = vld [vmem:[%s1 + $0x268] sm:$0xff]
  %v111 = vld [vmem:[%s1 + $0x270] sm:$0xff]
  %v112 = vld [vmem:[%s1 + $0x278] sm:$0xff]
  %v113 = vld [vmem:[%s1 + $0x280] sm:$0xff]
  %v114 = vld [vmem:[%s1 + $0x288] sm:$0xff]
  %v115 = vld [vmem:[%s1 + $0x290] sm:$0xff]
  %v116 = vld [vmem:[%s1 + $0x298] sm:$0xff]
  %v117 = vld [vmem:[%s1 + $0x2a0] sm:$0xff]
  %v118 = vld [vmem:[%s1 + $0x2a8] sm:$0xff]
  %v119 = vld [vmem:[%s1 + $0x2b0] sm:$0xff]
  %v120 = vld [vmem:[%s1 + $0x2b8] sm:$0xff]
  %v121 = vld [vmem:[%s1 + $0x2c0] sm:$0xff]
  %v122 = vld [vmem:[%s1 + $0x2c8] sm:$0xff]
  %v123 = vld [vmem:[%s1 + $0x2d0] sm:$0xff]
  %v124 = vld [vmem:[%s1 + $0x2d8] sm:$0xff]
  %v125 = vld [vmem:[%s1 + $0x2e0] sm:$0xff]
  %v126 = vld [vmem:[%s1 + $0x2e8] sm:$0xff]
  %v127 = vld [vmem:[%s1 + $0x2f0] sm:$0xff]
  %v128 = vld [vmem:[%s1 + $0x2f8] sm:$0xff]
  %v129 = vld [vmem:[%s1 + $0x300] sm:$0xff]
  %v130 = vld [vmem:[%s1 + $0x308] sm:$0xff]
  %v131 = vld [vmem:[%s1 + $0x310] sm:$0xff]
  %v132 = vld [vmem:[%s1 + $0x318] sm:$0xff]
  %v133 = vld [vmem:[%s1 + $0x320] sm:$0xff]
  %v134 = vld [vmem:[%s1 + $0x328] sm:$0xff]
  %v135 = vld [vmem:[%s1 + $0x330] sm:$0xff]
  %v136 = vld [vmem:[%s1 + $0x338] sm:$0xff]
  %v137 = vld [vmem:[%s1 + $0x340] sm:$0xff]
  %v138 = vld [vmem:[%s1 + $0x348] sm:$0xff]
  %v139 = vld [vmem:[%s1 + $0x350] sm:$0xff]
  %v140 = vld [vmem:[%s1 + $0x358] sm:$0xff]
  %v141 = vld [vmem:[%s1 + $0x360] sm:$0xff]
  %v142 = vld [vmem:[%s1 + $0x368] sm:$0xff]
  %v143 = vld [vmem:[%s1 + $0x370] sm:$0xff]
  %v144 = vld [vmem:[%s1 + $0x378] sm:$0xff]
  %v145 = vld [vmem:[%s1 + $0x380] sm:$0xff]
  %v146 = vld [vmem:[%s1 + $0x388] sm:$0xff]
  %v147 = vld [vmem:[%s1 + $0x390] sm:$0xff]
  %v148 = vld [vmem:[%s1 + $0x398] sm:$0xff]
  %v149 = vld [vmem:[%s1 + $0x3a0] sm:$0xff]
  %v150 = vld [vmem:[%s1 + $0x3a8] sm:$0xff]
  %v151 = vld [vmem:[%s1 + $0x3b0] sm:$0xff]
  %v152 = vld [vmem:[%s1 + $0x3b8] sm:$0xff]
  %v153 = vld [vmem:[%s1 + $0x3c0] sm:$0xff]
  %v154 = vld [vmem:[%s1 + $0x3c8] sm:$0xff]
  %v155 = vld [vmem:[%s1 + $0x3d0] sm:$0xff]
  %v156 = vld [vmem:[%s1 + $0x3d8] sm:$0xff]
  %v157 = vld [vmem:[%s1 + $0x3e0] sm:$0xff]
  %v158 = vld [vmem:[%s1 + $0x3e8] sm:$0xff]
  %v159 = vld [vmem:[%s1 + $0x3f0] sm:$0xff]
  %v160 = vld [vmem:[%s1 + $0x3f8] sm:$0xff]
  %v161 = vld [vmem:[%s1 + $0x400] sm:$0xff]
  %v162 = vld [vmem:[%s1 + $0x408] sm:$0xff]
  %v163 = vld [vmem:[%s1 + $0x410] sm:$0xff]
  %v164 = vld [vmem:[%s1 + $0x418] sm:$0xff]
  %v165 = vld [vmem:[%s1 + $0x420] sm:$0xff]
  %v166 = vld [vmem:[%s1 + $0x428] sm:$0xff]
  %v167 = vld [vmem:[%s1 + $0x430] sm:$0xff]
  %v168 = vld [vmem:[%s1 + $0x438] sm:$0xff]
  %v169 = vld [vmem:[%s1 + $0x440] sm:$0xff]
  %v170 = vld [vmem:[%s1 + $0x448] sm:$0xff]
  %v171 = vld [vmem:[%s1 + $0x450] sm:$0xff]
  %v172 = vld [vmem:[%s1 + $0x458] sm:$0xff]
  %v173 = vld [vmem:[%s1 + $0x460] sm:$0xff]
  %v174 = vld [vmem:[%s1 + $0x468] sm:$0xff]
  %v175 = vld [vmem:[%s1 + $0x470] sm:$0xff]
  %v176 = vld [vmem:[%s1 + $0x478] sm:$0xff]
  %v177 = vld [vmem:[%s1 + $0x480] sm:$0xff]
  %v178 = vld [vmem:[%s1 + $0x488] sm:$0xff]
  %v179 = vld [vmem:[%s1 + $0x490] sm:$0xff]
  %v180 = vld [vmem:[%s1 + $0x498] sm:$0xff]
  %v181 = vld [vmem:[%s1 + $0x4a0] sm:$0xff]
  %v182 = vld [vmem:[%s1 + $0x4a8] sm:$0xff]
  %v183 = vld [vmem:[%s1 + $0x4b0] sm:$0xff]
  %v184 = vld [vmem:[%s1 + $0x4b8] sm:$0xff]
  %v185 = vld [vmem:[%s1 + $0x4c0] sm:$0xff]
  %v186 = vld [vmem:[%s1 + $0x4c8] sm:$0xff]
  %v187 = vld [vmem:[%s1 + $0x4d0] sm:$0xff]
  %v188 = vld [vmem:[%s1 + $0x4d8] sm:$0xff]
  %v189 = vld [vmem:[%s1 + $0x4e0] sm:$0xff]
  %v190 = vld [vmem:[%s1 + $0x4e8] sm:$0xff]
  %v191 = vld [vmem:[%s1 + $0x4f0] sm:$0xff]
  %v192 = vld [vmem:[%s1 + $0x4f8] sm:$0xff]
  %v193 = vld [vmem:[%s1 + $0x500] sm:$0xff]
  %v194 = vld [vmem:[%s1 + $0x508] sm:$0xff]
  %v195 = vld [vmem:[%s1 + $0x510] sm:$0xff]
  %v196 = vld [vmem:[%s1 + $0x518] sm:$0xff]
  %v197 = vld [vmem:[%s1 + $0x520] sm:$0xff]
  %v198 = vld [vmem:[%s1 + $0x528] sm:$0xff]
  %v199 = vld [vmem:[%s1 + $0x530] sm:$0xff]
  %v200 = vld [vmem:[%s1 + $0x538] sm:$0xff]
  %v201 = vld [vmem:[%s1 + $0x540] sm:$0xff]
  %v202 = vld [vmem:[%s1 + $0x548] sm:$0xff]
  %v203 = vld [vmem:[%s1 + $0x550] sm:$0xff]
  %v204 = vld [vmem:[%s1 + $0x558] sm:$0xff]
  %v205 = vld [vmem:[%s1 + $0x560] sm:$0xff]
  %v206 = vld [vmem:[%s1 + $0x568] sm:$0xff]
  %v207 = vld [vmem:[%s1 + $0x570] sm:$0xff]
  %v208 = vld [vmem:[%s1 + $0x578] sm:$0xff]
  %v209 = vld [vmem:[%s1 + $0x580] sm:$0xff]
  %v210 = vld [vmem:[%s1 + $0x588] sm:$0xff]
  %v211 = vld [vmem:[%s1 + $0x590] sm:$0xff]
  %v212 = vld [vmem:[%s1 + $0x598] sm:$0xff]
  %v213 = vld [vmem:[%s1 + $0x5a0] sm:$0xff]
  %v214 = vld [vmem:[%s1 + $0x5a8] sm:$0xff]
  %v215 = vld [vmem:[%s1 + $0x5b0] sm:$0xff]
  %v216 = vld [vmem:[%s1 + $0x5b8] sm:$0xff]
  %v217 = vld [vmem:[%s1 + $0x5c0] sm:$0xff]
  %v218 = vld [vmem:[%s1 + $0x5c8] sm:$0xff]
  %v219 = vld [vmem:[%s1 + $0x5d0] sm:$0xff]
  %v220 = vld [vmem:[%s1 + $0x5d8] sm:$0xff]
  %v221 = vld [vmem:[%s1 + $0x5e0] sm:$0xff]
  %v222 = vld [vmem:[%s1 + $0x5e8] sm:$0xff]
  %v223 = vld [vmem:[%s1 + $0x5f0] sm:$0xff]
  %v224 = vld [vmem:[%s1 + $0x5f8] sm:$0xff]
  %v225 = vld [vmem:[%s1 + $0x600] sm:$0xff]
  %v226 = vld [vmem:[%s1 + $0x608] sm:$0xff]
  %v227 = vld [vmem:[%s1 + $0x610] sm:$0xff]
  %v228 = vld [vmem:[%s1 + $0x618] sm:$0xff]
  %v229 = vld [vmem:[%s1 + $0x620] sm:$0xff]
  %v230 = vld [vmem:[%s1 + $0x628] sm:$0xff]
  %v231 = vld [vmem:[%s1 + $0x630] sm:$0xff]
  %v232 = vld [vmem:[%s1 + $0x638] sm:$0xff]
  %v233 = vld [vmem:[%s1 + $0x640] sm:$0xff]
  %v234 = vld [vmem:[%s1 + $0x648] sm:$0xff]
  %v235 = vld [vmem:[%s1 + $0x650] sm:$0xff]
  %v236 = vld [vmem:[%s1 + $0x658] sm:$0xff]
  %v237 = vld [vmem:[%s1 + $0x660] sm:$0xff]
  %v238 = vld [vmem:[%s1 + $0x668] sm:$0xff]
  %v239 = vld [vmem:[%s1 + $0x670] sm:$0xff]
  %v240 = vld [vmem:[%s1 + $0x678] sm:$0xff]
  %v241 = vld [vmem:[%s1 + $0x680] sm:$0xff]
  %v242 = vld [vmem:[%s1 + $0x688] sm:$0xff]
  %v243 = vld [vmem:[%s1 + $0x690] sm:$0xff]
  %v244 = vld [vmem:[%s1 + $0x698] sm:$0xff]
  %v245 = vld [vmem:[%s1 + $0x6a0] sm:$0xff]
  %v246 = vld [vmem:[%s1 + $0x6a8] sm:$0xff]
  %v247 = vld [vmem:[%s1 + $0x6b0] sm:$0xff]
  %v248 = vld [vmem:[%s1 + $0x6b8] sm:$0xff]
  %v249 = vld [vmem:[%s1 + $0x6c0] sm:$0xff]
  %v250 = vld [vmem:[%s1 + $0x6c8] sm:$0xff]
  %v251 = vld [vmem:[%s1 + $0x6d0] sm:$0xff]
  %v252 = vld [vmem:[%s1 + $0x6d8] sm:$0xff]
  %v253 = vld [vmem:[%s1 + $0x6e0] sm:$0xff]
  %v254 = vld [vmem:[%s1 + $0x6e8] sm:$0xff]
  %v255 = vld [vmem:[%s1 + $0x6f0] sm:$0xff]
  %v256 = vld [vmem:[%s1 + $0x6f8] sm:$0xff]
  %v257 = vld [vmem:[%s1 + $0x700] sm:$0xff]
  %v258 = vld [vmem:[%s1 + $0x708] sm:$0xff]
  %v259 = vld [vmem:[%s1 + $0x710] sm:$0xff]
  %v260 = vld [vmem:[%s1 + $0x718] sm:$0xff]
  %v261 = vld [vmem:[%s1 + $0x720] sm:$0xff]
  %v262 = vld [vmem:[%s1 + $0x728] sm:$0xff]
  %v263 = vld [vmem:[%s1 + $0x730] sm:$0xff]
  %v264 = vld [vmem:[%s1 + $0x738] sm:$0xff]
  %v265 = vld [vmem:[%s1 + $0x740] sm:$0xff]
  %v266 = vld [vmem:[%s1 + $0x748] sm:$0xff]
  %v267 = vld [vmem:[%s1 + $0x750] sm:$0xff]
  %v268 = vld [vmem:[%s1 + $0x758] sm:$0xff]
  %v269 = vld [vmem:[%s1 + $0x760] sm:$0xff]
  %v270 = vld [vmem:[%s1 + $0x768] sm:$0xff]
  %v271 = vld [vmem:[%s1 + $0x770] sm:$0xff]
  %v272 = vld [vmem:[%s1 + $0x778] sm:$0xff]
  %v273 = vld [vmem:[%s1 + $0x780] sm:$0xff]
  %v274 = vld [vmem:[%s1 + $0x788] sm:$0xff]
  %v275 = vld [vmem:[%s1 + $0x790] sm:$0xff]
  %v276 = vld [vmem:[%s1 + $0x798] sm:$0xff]
  %v277 = vld [vmem:[%s1 + $0x7a0] sm:$0xff]
  %v278 = vld [vmem:[%s1 + $0x7a8] sm:$0xff]
  %v279 = vld [vmem:[%s1 + $0x7b0] sm:$0xff]
  %v280 = vld [vmem:[%s1 + $0x7b8] sm:$0xff]
  %v281 = vld [vmem:[%s1 + $0x7c0] sm:$0xff]
  %v282 = vld [vmem:[%s1 + $0x7c8] sm:$0xff]
  %v283 = vld [vmem:[%s1 + $0x7d0] sm:$0xff]
  %v284 = vld [vmem:[%s1 + $0x7d8] sm:$0xff]
  %v285 = vld [vmem:[%s1 + $0x7e0] sm:$0xff]
  %v286 = vld [vmem:[%s1 + $0x7e8] sm:$0xff]
  %v287 = vld [vmem:[%s1 + $0x7f0] sm:$0xff]
  %v288 = vld [vmem:[%s1 + $0x7f8] sm:$0xff]
  %v289 = vld [vmem:[%s1 + $0x800] sm:$0xff]
  %v290 = vld [vmem:[%s1 + $0x808] sm:$0xff]
  %v291 = vld [vmem:[%s1 + $0x810] sm:$0xff]
  %v292 = vld [vmem:[%s1 + $0x818] sm:$0xff]
  %v293 = vld [vmem:[%s1 + $0x820] sm:$0xff]
  %v294 = vld [vmem:[%s1 + $0x828] sm:$0xff]
  %v295 = vld [vmem:[%s1 + $0x830] sm:$0xff]
  %v296 = vld [vmem:[%s1 + $0x838] sm:$0xff]
  %v297 = vld [vmem:[%s1 + $0x840] sm:$0xff]
  %v298 = vld [vmem:[%s1 + $0x848] sm:$0xff]
  %v299 = vld [vmem:[%s1 + $0x850] sm:$0xff]
  %v300 = vld [vmem:[%s1 + $0x858] sm:$0xff]
  %v301 = vld [vmem:[%s1 + $0x860] sm:$0xff]
  %v302 = vld [vmem:[%s1 + $0x868] sm:$0xff]
  %v303 = vld [vmem:[%s1 + $0x870] sm:$0xff]
  %v304 = vld [vmem:[%s1 + $0x878] sm:$0xff]
  %v305 = vld [vmem:[%s1 + $0x880] sm:$0xff]
  %v306 = vld [vmem:[%s1 + $0x888] sm:$0xff]
  %v307 = vld [vmem:[%s1 + $0x890] sm:$0xff]
  %v308 = vld [vmem:[%s1 + $0x898] sm:$0xff]
  %v309 = vld [vmem:[%s1 + $0x8a0] sm:$0xff]
  %v310 = vld [vmem:[%s1 + $0x8a8] sm:$0xff]
  %v311 = vld [vmem:[%s1 + $0x8b0] sm:$0xff]
  %v312 = vld [vmem:[%s1 + $0x8b8] sm:$0xff]
  %v313 = vld [vmem:[%s1 + $0x8c0] sm:$0xff]
  %v314 = vld [vmem:[%s1 + $0x8c8] sm:$0xff]
  %v315 = vld [vmem:[%s1 + $0x8d0] sm:$0xff]
  %v316 = vld [vmem:[%s1 + $0x8d8] sm:$0xff]
  %v317 = vld [vmem:[%s1 + $0x8e0] sm:$0xff]
  %v318 = vld [vmem:[%s1 + $0x8e8] sm:$0xff]
  %v319 = vld [vmem:[%s1 + $0x8f0] sm:$0xff]
  %v320 = vld [vmem:[%s1 + $0x8f8] sm:$0xff]
  %v321 = vld [vmem:[%s1 + $0x900] sm:$0xff]
  %v322 = vld [vmem:[%s1 + $0x908] sm:$0xff]
  %v323 = vld [vmem:[%s1 + $0x910] sm:$0xff]
  %v324 = vld [vmem:[%s1 + $0x918] sm:$0xff]
  %v325 = vld [vmem:[%s1 + $0x920] sm:$0xff]
  %v326 = vld [vmem:[%s1 + $0x928] sm:$0xff]
  %v327 = vld [vmem:[%s1 + $0x930] sm:$0xff]
  %v328 = vld [vmem:[%s1 + $0x938] sm:$0xff]
  %v329 = vld [vmem:[%s1 + $0x940] sm:$0xff]
  %v330 = vld [vmem:[%s1 + $0x948] sm:$0xff]
  %v331 = vld [vmem:[%s1 + $0x950] sm:$0xff]
  %v332 = vld [vmem:[%s1 + $0x958] sm:$0xff]
  %v333 = vld [vmem:[%s1 + $0x960] sm:$0xff]
  %v334 = vld [vmem:[%s1 + $0x968] sm:$0xff]
  %v335 = vld [vmem:[%s1 + $0x970] sm:$0xff]
  %v336 = vld [vmem:[%s1 + $0x978] sm:$0xff]
  %v337 = vld [vmem:[%s1 + $0x980] sm:$0xff]
  %v338 = vld [vmem:[%s1 + $0x988] sm:$0xff]
  %v339 = vld [vmem:[%s1 + $0x990] sm:$0xff]
  %v340 = vld [vmem:[%s1 + $0x998] sm:$0xff]
  %v341 = vld [vmem:[%s1 + $0x9a0] sm:$0xff]
  %v342 = vld [vmem:[%s1 + $0x9a8] sm:$0xff]
  %v343 = vld [vmem:[%s1 + $0x9b0] sm:$0xff]
  %v344 = vld [vmem:[%s1 + $0x9b8] sm:$0xff]
  %v345 = vld [vmem:[%s1 + $0x9c0] sm:$0xff]
  %v346 = vld [vmem:[%s1 + $0x9c8] sm:$0xff]
  %v347 = vld [vmem:[%s1 + $0x9d0] sm:$0xff]
  %v348 = vld [vmem:[%s1 + $0x9d8] sm:$0xff]
  %v349 = vld [vmem:[%s1 + $0x9e0] sm:$0xff]
  %v350 = vld [vmem:[%s1 + $0x9e8] sm:$0xff]
  %v351 = vld [vmem:[%s1 + $0x9f0] sm:$0xff]
  %v352 = vld [vmem:[%s1 + $0x9f8] sm:$0xff]
  %v353 = vld [vmem:[%s1 + $0xa00] sm:$0xff]
  %v354 = vld [vmem:[%s1 + $0xa08] sm:$0xff]
  %v355 = vld [vmem:[%s1 + $0xa10] sm:$0xff]
  %v356 = vld [vmem:[%s1 + $0xa18] sm:$0xff]
  %v357 = vld [vmem:[%s1 + $0xa20] sm:$0xff]
  %v358 = vld [vmem:[%s1 + $0xa28] sm:$0xff]
  %v359 = vld [vmem:[%s1 + $0xa30] sm:$0xff]
  %v360 = vld [vmem:[%s1 + $0xa38] sm:$0xff]
  %v361 = vld [vmem:[%s1 + $0xa40] sm:$0xff]
  %v362 = vld [vmem:[%s1 + $0xa48] sm:$0xff]
  %v363 = vld [vmem:[%s1 + $0xa50] sm:$0xff]
  %v364 = vld [vmem:[%s1 + $0xa58] sm:$0xff]
  %v365 = vld [vmem:[%s1 + $0xa60] sm:$0xff]
  %v366 = vld [vmem:[%s1 + $0xa68] sm:$0xff]
  %v367 = vld [vmem:[%s1 + $0xa70] sm:$0xff]
  %v368 = vld [vmem:[%s1 + $0xa78] sm:$0xff]
  %v369 = vld [vmem:[%s1 + $0xa80] sm:$0xff]
  %v370 = vld [vmem:[%s1 + $0xa88] sm:$0xff]
  %v371 = vld [vmem:[%s1 + $0xa90] sm:$0xff]
  %v372 = vld [vmem:[%s1 + $0xa98] sm:$0xff]
  %v373 = vld [vmem:[%s1 + $0xaa0] sm:$0xff]
  %v374 = vld [vmem:[%s1 + $0xaa8] sm:$0xff]
  %v375 = vld [vmem:[%s1 + $0xab0] sm:$0xff]
  %v376 = vld [vmem:[%s1 + $0xab8] sm:$0xff]
  %v377 = vld [vmem:[%s1 + $0xac0] sm:$0xff]
  %v378 = vld [vmem:[%s1 + $0xac8] sm:$0xff]
  %v379 = vld [vmem:[%s1 + $0xad0] sm:$0xff]
  %v380 = vld [vmem:[%s1 + $0xad8] sm:$0xff]
  %v381 = vld [vmem:[%s1 + $0xae0] sm:$0xff]
  %v382 = vld [vmem:[%s1 + $0xae8] sm:$0xff]
  %v383 = vld [vmem:[%s1 + $0xaf0] sm:$0xff]
  %v384 = vld [vmem:[%s1 + $0xaf8] sm:$0xff]
  %v385 = vld [vmem:[%s1 + $0xb00] sm:$0xff]
  %v386 = vld [vmem:[%s1 + $0xb08] sm:$0xff]
  %v387 = vld [vmem:[%s1 + $0xb10] sm:$0xff]
  %v388 = vld [vmem:[%s1 + $0xb18] sm:$0xff]
  %v389 = vld [vmem:[%s1 + $0xb20] sm:$0xff]
  %v390 = vld [vmem:[%s1 + $0xb28] sm:$0xff]
  %v391 = vld [vmem:[%s1 + $0xb30] sm:$0xff]
  %v392 = vld [vmem:[%s1 + $0xb38] sm:$0xff]
  %v393 = vld [vmem:[%s1 + $0xb40] sm:$0xff]
  %v394 = vld [vmem:[%s1 + $0xb48] sm:$0xff]
  %v395 = vld [vmem:[%s1 + $0xb50] sm:$0xff]
  %v396 = vld [vmem:[%s1 + $0xb58] sm:$0xff]
  %v397 = vld [vmem:[%s1 + $0xb60] sm:$0xff]
  %v398 = vld [vmem:[%s1 + $0xb68] sm:$0xff]
  %v399 = vld [vmem:[%s1 + $0xb70] sm:$0xff]
  %v400 = vld [vmem:[%s1 + $0xb78] sm:$0xff]
  %v401 = vld [vmem:[%s1 + $0xb80] sm:$0xff]
  %v402 = vld [vmem:[%s1 + $0xb88] sm:$0xff]
  %v403 = vld [vmem:[%s1 + $0xb90] sm:$0xff]
  %v404 = vld [vmem:[%s1 + $0xb98] sm:$0xff]
  %v405 = vld [vmem:[%s1 + $0xba0] sm:$0xff]
  %v406 = vld [vmem:[%s1 + $0xba8] sm:$0xff]
  %v407 = vld [vmem:[%s1 + $0xbb0] sm:$0xff]
  %v408 = vld [vmem:[%s1 + $0xbb8] sm:$0xff]
  %v409 = vld [vmem:[%s1 + $0xbc0] sm:$0xff]
  %v410 = vld [vmem:[%s1 + $0xbc8] sm:$0xff]
  %v411 = vld [vmem:[%s1 + $0xbd0] sm:$0xff]
  %v412 = vld [vmem:[%s1 + $0xbd8] sm:$0xff]
  %v413 = vld [vmem:[%s1 + $0xbe0] sm:$0xff]
  %v414 = vld [vmem:[%s1 + $0xbe8] sm:$0xff]
  %v415 = vld [vmem:[%s1 + $0xbf0] sm:$0xff]
  %v416 = vld [vmem:[%s1 + $0xbf8] sm:$0xff]
  %v417 = vld [vmem:[%s1 + $0xc00] sm:$0xff]
  %v418 = vld [vmem:[%s1 + $0xc08] sm:$0xff]
  %v419 = vld [vmem:[%s1 + $0xc10] sm:$0xff]
  %v420 = vld [vmem:[%s1 + $0xc18] sm:$0xff]
  %v421 = vld [vmem:[%s1 + $0xc20] sm:$0xff]
  %v422 = vld [vmem:[%s1 + $0xc28] sm:$0xff]
  %v423 = vld [vmem:[%s1 + $0xc30] sm:$0xff]
  %v424 = vld [vmem:[%s1 + $0xc38] sm:$0xff]
  %v425 = vld [vmem:[%s1 + $0xc40] sm:$0xff]
  %v426 = vld [vmem:[%s1 + $0xc48] sm:$0xff]
  %v427 = vld [vmem:[%s1 + $0xc50] sm:$0xff]
  %v428 = vld [vmem:[%s1 + $0xc58] sm:$0xff]
  %v429 = vld [vmem:[%s1 + $0xc60] sm:$0xff]
  %v430 = vld [vmem:[%s1 + $0xc68] sm:$0xff]
  %v431 = vld [vmem:[%s1 + $0xc70] sm:$0xff]
  %v432 = vld [vmem:[%s1 + $0xc78] sm:$0xff]
  %v433 = vld [vmem:[%s1 + $0xc80] sm:$0xff]
  %v434 = vld [vmem:[%s1 + $0xc88] sm:$0xff]
  %v435 = vld [vmem:[%s1 + $0xc90] sm:$0xff]
  %v436 = vld [vmem:[%s1 + $0xc98] sm:$0xff]
  %v437 = vld [vmem:[%s1 + $0xca0] sm:$0xff]
  %v438 = vld [vmem:[%s1 + $0xca8] sm:$0xff]
  %v439 = vld [vmem:[%s1 + $0xcb0] sm:$0xff]
  %v440 = vld [vmem:[%s1 + $0xcb8] sm:$0xff]
  %v441 = vld [vmem:[%s1 + $0xcc0] sm:$0xff]
  %v442 = vld [vmem:[%s1 + $0xcc8] sm:$0xff]
  %v443 = vld [vmem:[%s1 + $0xcd0] sm:$0xff]
  %v444 = vld [vmem:[%s1 + $0xcd8] sm:$0xff]
  %v445 = vld [vmem:[%s1 + $0xce0] sm:$0xff]
  %v446 = vld [vmem:[%s1 + $0xce8] sm:$0xff]
  %v447 = vld [vmem:[%s1 + $0xcf0] sm:$0xff]
  %v448 = vld [vmem:[%s1 + $0xcf8] sm:$0xff]
  %v449 = vld [vmem:[%s1 + $0xd00] sm:$0xff]
  %v450 = vld [vmem:[%s1 + $0xd08] sm:$0xff]
  %v451 = vld [vmem:[%s1 + $0xd10] sm:$0xff]
  %v452 = vld [vmem:[%s1 + $0xd18] sm:$0xff]
  %v453 = vld [vmem:[%s1 + $0xd20] sm:$0xff]
  %v454 = vld [vmem:[%s1 + $0xd28] sm:$0xff]
  %v455 = vld [vmem:[%s1 + $0xd30] sm:$0xff]
  %v456 = vld [vmem:[%s1 + $0xd38] sm:$0xff]
  %v457 = vld [vmem:[%s1 + $0xd40] sm:$0xff]
  %v458 = vld [vmem:[%s1 + $0xd48] sm:$0xff]
  %v459 = vld [vmem:[%s1 + $0xd50] sm:$0xff]
  %v460 = vld [vmem:[%s1 + $0xd58] sm:$0xff]
  %v461 = vld [vmem:[%s1 + $0xd60] sm:$0xff]
  %v462 = vld [vmem:[%s1 + $0xd68] sm:$0xff]
  %v463 = vld [vmem:[%s1 + $0xd70] sm:$0xff]
  %v464 = vld [vmem:[%s1 + $0xd78] sm:$0xff]
  %v465 = vld [vmem:[%s1 + $0xd80] sm:$0xff]
  %v466 = vld [vmem:[%s1 + $0xd88] sm:$0xff]
  %v467 = vld [vmem:[%s1 + $0xd90] sm:$0xff]
  %v468 = vld [vmem:[%s1 + $0xd98] sm:$0xff]
  %v469 = vld [vmem:[%s1 + $0xda0] sm:$0xff]
  %v470 = vld [vmem:[%s1 + $0xda8] sm:$0xff]
  %v471 = vld [vmem:[%s1 + $0xdb0] sm:$0xff]
  %v472 = vld [vmem:[%s1 + $0xdb8] sm:$0xff]
  %v473 = vld [vmem:[%s1 + $0xdc0] sm:$0xff]
  %v474 = vld [vmem:[%s1 + $0xdc8] sm:$0xff]
  %v475 = vld [vmem:[%s1 + $0xdd0] sm:$0xff]
  %v476 = vld [vmem:[%s1 + $0xdd8] sm:$0xff]
  %v477 = vld [vmem:[%s1 + $0xde0] sm:$0xff]
  %v478 = vld [vmem:[%s1 + $0xde8] sm:$0xff]
  %v479 = vld [vmem:[%s1 + $0xdf0] sm:$0xff]
  %v480 = vld [vmem:[%s1 + $0xdf8] sm:$0xff]
  %v481 = vld [vmem:[%s1 + $0xe00] sm:$0xff]
  %v482 = vld [vmem:[%s1 + $0xe08] sm:$0xff]
  %v483 = vld [vmem:[%s1 + $0xe10] sm:$0xff]
  %v484 = vld [vmem:[%s1 + $0xe18] sm:$0xff]
  %v485 = vld [vmem:[%s1 + $0xe20] sm:$0xff]
  %v486 = vld [vmem:[%s1 + $0xe28] sm:$0xff]
  %v487 = vld [vmem:[%s1 + $0xe30] sm:$0xff]
  %v488 = vld [vmem:[%s1 + $0xe38] sm:$0xff]
  %v489 = vld [vmem:[%s1 + $0xe40] sm:$0xff]
  %v490 = vld [vmem:[%s1 + $0xe48] sm:$0xff]
  %v491 = vld [vmem:[%s1 + $0xe50] sm:$0xff]
  %v492 = vld [vmem:[%s1 + $0xe58] sm:$0xff]
  %v493 = vld [vmem:[%s1 + $0xe60] sm:$0xff]
  %v494 = vld [vmem:[%s1 + $0xe68] sm:$0xff]
  %v495 = vld [vmem:[%s1 + $0xe70] sm:$0xff]
  %v496 = vld [vmem:[%s1 + $0xe78] sm:$0xff]
  %v497 = vld [vmem:[%s1 + $0xe80] sm:$0xff]
  %v498 = vld [vmem:[%s1 + $0xe88] sm:$0xff]
  %v499 = vld [vmem:[%s1 + $0xe90] sm:$0xff]
  %v500 = vld [vmem:[%s1 + $0xe98] sm:$0xff]
  %v501 = vld [vmem:[%s1 + $0xea0] sm:$0xff]
  %v502 = vld [vmem:[%s1 + $0xea8] sm:$0xff]
  %v503 = vld [vmem:[%s1 + $0xeb0] sm:$0xff]
  %v504 = vld [vmem:[%s1 + $0xeb8] sm:$0xff]
  %v505 = vld [vmem:[%s1 + $0xec0] sm:$0xff]
  %v506 = vld [vmem:[%s1 + $0xec8] sm:$0xff]
  %v507 = vld [vmem:[%s1 + $0xed0] sm:$0xff]
  %v508 = vld [vmem:[%s1 + $0xed8] sm:$0xff]
  %v509 = vld [vmem:[%s1 + $0xee0] sm:$0xff]
  %v510 = vld [vmem:[%s1 + $0xee8] sm:$0xff]
  %v511 = vld [vmem:[%s1 + $0xef0] sm:$0xff]
  %v512 = vld [vmem:[%s1 + $0xef8] sm:$0xff]
  %v513 = vld [vmem:[%s1 + $0xf00] sm:$0xff]
  %v514 = vld [vmem:[%s1 + $0xf08] sm:$0xff]
  %v515 = vld [vmem:[%s1 + $0xf10] sm:$0xff]
  %v516 = vld [vmem:[%s1 + $0xf18] sm:$0xff]
  %v517 = vld [vmem:[%s1 + $0xf20] sm:$0xff]
  %v518 = vld [vmem:[%s1 + $0xf28] sm:$0xff]
  %v519 = vld [vmem:[%s1 + $0xf30] sm:$0xff]
  %v520 = vld [vmem:[%s1 + $0xf38] sm:$0xff]
  %v521 = vld [vmem:[%s1 + $0xf40] sm:$0xff]
  %v522 = vld [vmem:[%s1 + $0xf48] sm:$0xff]
  %v523 = vld [vmem:[%s1 + $0xf50] sm:$0xff]
  %v524 = vld [vmem:[%s1 + $0xf58] sm:$0xff]
  %v525 = vld [vmem:[%s1 + $0xf60] sm:$0xff]
  %v526 = vld [vmem:[%s1 + $0xf68] sm:$0xff]
  %v527 = vld [vmem:[%s1 + $0xf70] sm:$0xff]
  %v528 = vld [vmem:[%s1 + $0xf78] sm:$0xff]
  %v529 = vld [vmem:[%s1 + $0xf80] sm:$0xff]
  %v530 = vld [vmem:[%s1 + $0xf88] sm:$0xff]
  %v531 = vld [vmem:[%s1 + $0xf90] sm:$0xff]
  %v532 = vld [vmem:[%s1 + $0xf98] sm:$0xff]
  %v533 = vld [vmem:[%s1 + $0xfa0] sm:$0xff]
  %v534 = vld [vmem:[%s1 + $0xfa8] sm:$0xff]
  %v535 = vld [vmem:[%s1 + $0xfb0] sm:$0xff]
  %v536 = vld [vmem:[%s1 + $0xfb8] sm:$0xff]
  %v537 = vld [vmem:[%s1 + $0xfc0] sm:$0xff]
  %v538 = vld [vmem:[%s1 + $0xfc8] sm:$0xff]
  %v539 = vld [vmem:[%s1 + $0xfd0] sm:$0xff]
  %v540 = vld [vmem:[%s1 + $0xfd8] sm:$0xff]
  %v541 = vld [vmem:[%s1 + $0xfe0] sm:$0xff]
  %v542 = vld [vmem:[%s1 + $0xfe8] sm:$0xff]
  %v543 = vld [vmem:[%s1 + $0xff0] sm:$0xff]
  %v544 = vld [vmem:[%s1 + $0xff8] sm:$0xff]
  %v545 = vld [vmem:[%s1 + $0x1000] sm:$0xff]
  %v546 = vld [vmem:[%s1 + $0x1008] sm:$0xff]
  %v547 = vld [vmem:[%s1 + $0x1010] sm:$0xff]
  %v548 = vld [vmem:[%s1 + $0x1018] sm:$0xff]
  %v549 = vld [vmem:[%s1 + $0x1020] sm:$0xff]
  %v550 = vld [vmem:[%s1 + $0x1028] sm:$0xff]
  %v551 = vld [vmem:[%s1 + $0x1030] sm:$0xff]
  %v552 = vld [vmem:[%s1 + $0x1038] sm:$0xff]
  %v553 = vld [vmem:[%s1 + $0x1040] sm:$0xff]
  %v554 = vld [vmem:[%s1 + $0x1048] sm:$0xff]
  %v555 = vld [vmem:[%s1 + $0x1050] sm:$0xff]
  %v556 = vld [vmem:[%s1 + $0x1058] sm:$0xff]
  %v557 = vld [vmem:[%s1 + $0x1060] sm:$0xff]
  %v558 = vld [vmem:[%s1 + $0x1068] sm:$0xff]
  %v559 = vld [vmem:[%s1 + $0x1070] sm:$0xff]
  %v560 = vld [vmem:[%s1 + $0x1078] sm:$0xff]
  %v561 = vld [vmem:[%s1 + $0x1080] sm:$0xff]
  %v562 = vld [vmem:[%s1 + $0x1088] sm:$0xff]
  %v563 = vld [vmem:[%s1 + $0x1090] sm:$0xff]
  %v564 = vld [vmem:[%s1 + $0x1098] sm:$0xff]
  %v565 = vld [vmem:[%s1 + $0x10a0] sm:$0xff]
  %v566 = vld [vmem:[%s1 + $0x10a8] sm:$0xff]
  %v567 = vld [vmem:[%s1 + $0x10b0] sm:$0xff]
  %v568 = vld [vmem:[%s1 + $0x10b8] sm:$0xff]
  %v569 = vld [vmem:[%s1 + $0x10c0] sm:$0xff]
  %v570 = vld [vmem:[%s1 + $0x10c8] sm:$0xff]
  %v571 = vld [vmem:[%s1 + $0x10d0] sm:$0xff]
  %v572 = vld [vmem:[%s1 + $0x10d8] sm:$0xff]
  %v573 = vld [vmem:[%s1 + $0x10e0] sm:$0xff]
  %v574 = vld [vmem:[%s1 + $0x10e8] sm:$0xff]
  %v575 = vld [vmem:[%s1 + $0x10f0] sm:$0xff]
  %v576 = vld [vmem:[%s1 + $0x10f8] sm:$0xff]
  %v577 = vld [vmem:[%s1 + $0x1100] sm:$0xff]
  %v578 = vld [vmem:[%s1 + $0x1108] sm:$0xff]
  %v579 = vld [vmem:[%s1 + $0x1110] sm:$0xff]
  %v580 = vld [vmem:[%s1 + $0x1118] sm:$0xff]
  %v581 = vld [vmem:[%s1 + $0x1120] sm:$0xff]
  %v582 = vld [vmem:[%s1 + $0x1128] sm:$0xff]
  %v583 = vld [vmem:[%s1 + $0x1130] sm:$0xff]
  %v584 = vld [vmem:[%s1 + $0x1138] sm:$0xff]
  %v585 = vld [vmem:[%s1 + $0x1140] sm:$0xff]
  %v586 = vld [vmem:[%s1 + $0x1148] sm:$0xff]
  %v587 = vld [vmem:[%s1 + $0x1150] sm:$0xff]
  %v588 = vld [vmem:[%s1 + $0x1158] sm:$0xff]
  %v589 = vld [vmem:[%s1 + $0x1160] sm:$0xff]
  %v590 = vld [vmem:[%s1 + $0x1168] sm:$0xff]
  %v591 = vld [vmem:[%s1 + $0x1170] sm:$0xff]
  %v592 = vld [vmem:[%s1 + $0x1178] sm:$0xff]
  %v593 = vld [vmem:[%s1 + $0x1180] sm:$0xff]
  %v594 = vld [vmem:[%s1 + $0x1188] sm:$0xff]
  %v595 = vld [vmem:[%s1 + $0x1190] sm:$0xff]
  %v596 = vld [vmem:[%s1 + $0x1198] sm:$0xff]
  %v597 = vld [vmem:[%s1 + $0x11a0] sm:$0xff]
  %v598 = vld [vmem:[%s1 + $0x11a8] sm:$0xff]
  %v599 = vld [vmem:[%s1 + $0x11b0] sm:$0xff]
  %v600 = vld [vmem:[%s1 + $0x11b8] sm:$0xff]
  %v601 = vld [vmem:[%s1 + $0x11c0] sm:$0xff]
  %v602 = vld [vmem:[%s1 + $0x11c8] sm:$0xff]
  %v603 = vld [vmem:[%s1 + $0x11d0] sm:$0xff]
  %v604 = vld [vmem:[%s1 + $0x11d8] sm:$0xff]
  %v605 = vld [vmem:[%s1 + $0x11e0] sm:$0xff]
  %v606 = vld [vmem:[%s1 + $0x11e8] sm:$0xff]
  %v607 = vld [vmem:[%s1 + $0x11f0] sm:$0xff]
  %v608 = vld [vmem:[%s1 + $0x11f8] sm:$0xff]
  %v609 = vld [vmem:[%s1 + $0x1200] sm:$0xff]
  %v610 = vld [vmem:[%s1 + $0x1208] sm:$0xff]
  %v611 = vld [vmem:[%s1 + $0x1210] sm:$0xff]
  %v612 = vld [vmem:[%s1 + $0x1218] sm:$0xff]
  %v613 = vld [vmem:[%s1 + $0x1220] sm:$0xff]
  %v614 = vld [vmem:[%s1 + $0x1228] sm:$0xff]
  %v615 = vld [vmem:[%s1 + $0x1230] sm:$0xff]
  %v616 = vld [vmem:[%s1 + $0x1238] sm:$0xff]
  %v617 = vld [vmem:[%s1 + $0x1240] sm:$0xff]
  %v618 = vld [vmem:[%s1 + $0x1248] sm:$0xff]
  %v619 = vld [vmem:[%s1 + $0x1250] sm:$0xff]
  %v620 = vld [vmem:[%s1 + $0x1258] sm:$0xff]
  %v621 = vld [vmem:[%s1 + $0x1260] sm:$0xff]
  %v622 = vld [vmem:[%s1 + $0x1268] sm:$0xff]
  %v623 = vld [vmem:[%s1 + $0x1270] sm:$0xff]
  %v624 = vld [vmem:[%s1 + $0x1278] sm:$0xff]
  %v625 = vld [vmem:[%s1 + $0x1280] sm:$0xff]
  %v626 = vld [vmem:[%s1 + $0x1288] sm:$0xff]
  %v627 = vld [vmem:[%s1 + $0x1290] sm:$0xff]
  %v628 = vld [vmem:[%s1 + $0x1298] sm:$0xff]
  %v629 = vld [vmem:[%s1 + $0x12a0] sm:$0xff]
  %v630 = vld [vmem:[%s1 + $0x12a8] sm:$0xff]
  %v631 = vld [vmem:[%s1 + $0x12b0] sm:$0xff]
  %v632 = vld [vmem:[%s1 + $0x12b8] sm:$0xff]
  %v633 = vld [vmem:[%s1 + $0x12c0] sm:$0xff]
  %v634 = vld [vmem:[%s1 + $0x12c8] sm:$0xff]
  %v635 = vld [vmem:[%s1 + $0x12d0] sm:$0xff]
  %v636 = vld [vmem:[%s1 + $0x12d8] sm:$0xff]
  %v637 = vld [vmem:[%s1 + $0x12e0] sm:$0xff]
  %v638 = vld [vmem:[%s1 + $0x12e8] sm:$0xff]
  %v639 = vld [vmem:[%s1 + $0x12f0] sm:$0xff]
  %v640 = vld [vmem:[%s1 + $0x12f8] sm:$0xff]
  %v641 = vld [vmem:[%s1 + $0x1300] sm:$0xff]
  %v642 = vld [vmem:[%s1 + $0x1308] sm:$0xff]
  %v643 = vld [vmem:[%s1 + $0x1310] sm:$0xff]
  %v644 = vld [vmem:[%s1 + $0x1318] sm:$0xff]
  %v645 = vld [vmem:[%s1 + $0x1320] sm:$0xff]
  %v646 = vld [vmem:[%s1 + $0x1328] sm:$0xff]
  %v647 = vld [vmem:[%s1 + $0x1330] sm:$0xff]
  %v648 = vld [vmem:[%s1 + $0x1338] sm:$0xff]
  %v649 = vld [vmem:[%s1 + $0x1340] sm:$0xff]
  %v650 = vld [vmem:[%s1 + $0x1348] sm:$0xff]
  %v651 = vld [vmem:[%s1 + $0x1350] sm:$0xff]
  %v652 = vld [vmem:[%s1 + $0x1358] sm:$0xff]
  %v653 = vld [vmem:[%s1 + $0x1360] sm:$0xff]
  %v654 = vld [vmem:[%s1 + $0x1368] sm:$0xff]
  %v655 = vld [vmem:[%s1 + $0x1370] sm:$0xff]
  %v656 = vld [vmem:[%s1 + $0x1378] sm:$0xff]
  %v657 = vld [vmem:[%s1 + $0x1380] sm:$0xff]
  %v658 = vld [vmem:[%s1 + $0x1388] sm:$0xff]
  %v659 = vld [vmem:[%s1 + $0x1390] sm:$0xff]
  %v660 = vld [vmem:[%s1 + $0x1398] sm:$0xff]
  %v661 = vld [vmem:[%s1 + $0x13a0] sm:$0xff]
  %v662 = vld [vmem:[%s1 + $0x13a8] sm:$0xff]
  %v663 = vld [vmem:[%s1 + $0x13b0] sm:$0xff]
  %v664 = vld [vmem:[%s1 + $0x13b8] sm:$0xff]
  %v665 = vld [vmem:[%s1 + $0x13c0] sm:$0xff]
  %v666 = vld [vmem:[%s1 + $0x13c8] sm:$0xff]
  %v667 = vld [vmem:[%s1 + $0x13d0] sm:$0xff]
  %v668 = vld [vmem:[%s1 + $0x13d8] sm:$0xff]
  %v669 = vld [vmem:[%s1 + $0x13e0] sm:$0xff]
  %v670 = vld [vmem:[%s1 + $0x13e8] sm:$0xff]
  %v671 = vld [vmem:[%s1 + $0x13f0] sm:$0xff]
  %v672 = vld [vmem:[%s1 + $0x13f8] sm:$0xff]
  %v673 = vld [vmem:[%s1 + $0x1400] sm:$0xff]
  %v674 = vld [vmem:[%s1 + $0x1408] sm:$0xff]
  %v675 = vld [vmem:[%s1 + $0x1410] sm:$0xff]
  %v676 = vld [vmem:[%s1 + $0x1418] sm:$0xff]
  %v677 = vld [vmem:[%s1 + $0x1420] sm:$0xff]
  %v678 = vld [vmem:[%s1 + $0x1428] sm:$0xff]
  %v679 = vld [vmem:[%s1 + $0x1430] sm:$0xff]
  %v680 = vld [vmem:[%s1 + $0x1438] sm:$0xff]
  %v681 = vld [vmem:[%s1 + $0x1440] sm:$0xff]
  %v682 = vld [vmem:[%s1 + $0x1448] sm:$0xff]
  %v683 = vld [vmem:[%s1 + $0x1450] sm:$0xff]
  %v684 = vld [vmem:[%s1 + $0x1458] sm:$0xff]
  %v685 = vld [vmem:[%s1 + $0x1460] sm:$0xff]
  %v686 = vld [vmem:[%s1 + $0x1468] sm:$0xff]
  %v687 = vld [vmem:[%s1 + $0x1470] sm:$0xff]
  %v688 = vld [vmem:[%s1 + $0x1478] sm:$0xff]
  %v689 = vld [vmem:[%s1 + $0x1480] sm:$0xff]
  %v690 = vld [vmem:[%s1 + $0x1488] sm:$0xff]
  %v691 = vld [vmem:[%s1 + $0x1490] sm:$0xff]
  %v692 = vld [vmem:[%s1 + $0x1498] sm:$0xff]
  %v693 = vld [vmem:[%s1 + $0x14a0] sm:$0xff]
  %v694 = vld [vmem:[%s1 + $0x14a8] sm:$0xff]
  %v695 = vld [vmem:[%s1 + $0x14b0] sm:$0xff]
  %v696 = vld [vmem:[%s1 + $0x14b8] sm:$0xff]
  %v697 = vld [vmem:[%s1 + $0x14c0] sm:$0xff]
  %v698 = vld [vmem:[%s1 + $0x14c8] sm:$0xff]
  %v699 = vld [vmem:[%s1 + $0x14d0] sm:$0xff]
  %v700 = vld [vmem:[%s1 + $0x14d8] sm:$0xff]
  %v701 = vld [vmem:[%s1 + $0x14e0] sm:$0xff]
  %v702 = vld [vmem:[%s1 + $0x14e8] sm:$0xff]
  %v703 = vld [vmem:[%s1 + $0x14f0] sm:$0xff]
  %v704 = vld [vmem:[%s1 + $0x14f8] sm:$0xff]
  %v705 = vld [vmem:[%s1 + $0x1500] sm:$0xff]
  %v706 = vld [vmem:[%s1 + $0x1508] sm:$0xff]
  %v707 = vld [vmem:[%s1 + $0x1510] sm:$0xff]
  %v708 = vld [vmem:[%s1 + $0x1518] sm:$0xff]
  %v709 = vld [vmem:[%s1 + $0x1520] sm:$0xff]
  %v710 = vld [vmem:[%s1 + $0x1528] sm:$0xff]
  %v711 = vld [vmem:[%s1 + $0x1530] sm:$0xff]
  %v712 = vld [vmem:[%s1 + $0x1538] sm:$0xff]
  %v713 = vld [vmem:[%s1 + $0x1540] sm:$0xff]
  %v714 = vld [vmem:[%s1 + $0x1548] sm:$0xff]
  %v715 = vld [vmem:[%s1 + $0x1550] sm:$0xff]
  %v716 = vld [vmem:[%s1 + $0x1558] sm:$0xff]
  %v717 = vld [vmem:[%s1 + $0x1560] sm:$0xff]
  %v718 = vld [vmem:[%s1 + $0x1568] sm:$0xff]
  %v719 = vld [vmem:[%s1 + $0x1570] sm:$0xff]
  %v720 = vld [vmem:[%s1 + $0x1578] sm:$0xff]
  %v721 = vld [vmem:[%s1 + $0x1580] sm:$0xff]
  %v722 = vld [vmem:[%s1 + $0x1588] sm:$0xff]
  %v723 = vld [vmem:[%s1 + $0x1590] sm:$0xff]
  %v724 = vld [vmem:[%s1 + $0x1598] sm:$0xff]
  %v725 = vld [vmem:[%s1 + $0x15a0] sm:$0xff]
  %v726 = vld [vmem:[%s1 + $0x15a8] sm:$0xff]
  %v727 = vld [vmem:[%s1 + $0x15b0] sm:$0xff]
  %v728 = vld [vmem:[%s1 + $0x15b8] sm:$0xff]
  %v729 = vld [vmem:[%s1 + $0x15c0] sm:$0xff]
  %v730 = vld [vmem:[%s1 + $0x15c8] sm:$0xff]
  %v731 = vld [vmem:[%s1 + $0x15d0] sm:$0xff]
  %v732 = vld [vmem:[%s1 + $0x15d8] sm:$0xff]
  %v733 = vld [vmem:[%s1 + $0x15e0] sm:$0xff]
  %v734 = vld [vmem:[%s1 + $0x15e8] sm:$0xff]
  %v735 = vld [vmem:[%s1 + $0x15f0] sm:$0xff]
  %v736 = vld [vmem:[%s1 + $0x15f8] sm:$0xff]
  %v737 = vld [vmem:[%s1 + $0x1600] sm:$0xff]
  %v738 = vld [vmem:[%s1 + $0x1608] sm:$0xff]
  %v739 = vld [vmem:[%s1 + $0x1610] sm:$0xff]
  %v740 = vld [vmem:[%s1 + $0x1618] sm:$0xff]
  %v741 = vld [vmem:[%s1 + $0x1620] sm:$0xff]
  %v742 = vld [vmem:[%s1 + $0x1628] sm:$0xff]
  %v743 = vld [vmem:[%s1 + $0x1630] sm:$0xff]
  %v744 = vld [vmem:[%s1 + $0x1638] sm:$0xff]
  %v745 = vld [vmem:[%s1 + $0x1640] sm:$0xff]
  %v746 = vld [vmem:[%s1 + $0x1648] sm:$0xff]
  %v747 = vld [vmem:[%s1 + $0x1650] sm:$0xff]
  %v748 = vld [vmem:[%s1 + $0x1658] sm:$0xff]
  %v749 = vld [vmem:[%s1 + $0x1660] sm:$0xff]
  %v750 = vld [vmem:[%s1 + $0x1668] sm:$0xff]
  %v751 = vld [vmem:[%s1 + $0x1670] sm:$0xff]
  %v752 = vld [vmem:[%s1 + $0x1678] sm:$0xff]
  %v753 = vld [vmem:[%s1 + $0x1680] sm:$0xff]
  %v754 = vld [vmem:[%s1 + $0x1688] sm:$0xff]
  %v755 = vld [vmem:[%s1 + $0x1690] sm:$0xff]
  %v756 = vld [vmem:[%s1 + $0x1698] sm:$0xff]
  %v757 = vld [vmem:[%s1 + $0x16a0] sm:$0xff]
  %v758 = vld [vmem:[%s1 + $0x16a8] sm:$0xff]
  %v759 = vld [vmem:[%s1 + $0x16b0] sm:$0xff]
  %v760 = vld [vmem:[%s1 + $0x16b8] sm:$0xff]
  %v761 = vld [vmem:[%s1 + $0x16c0] sm:$0xff]
  %v762 = vld [vmem:[%s1 + $0x16c8] sm:$0xff]
  %v763 = vld [vmem:[%s1 + $0x16d0] sm:$0xff]
  %v764 = vld [vmem:[%s1 + $0x16d8] sm:$0xff]
  %v765 = vld [vmem:[%s1 + $0x16e0] sm:$0xff]
  %v766 = vld [vmem:[%s1 + $0x16e8] sm:$0xff]
  %v767 = vld [vmem:[%s1 + $0x16f0] sm:$0xff]
  %v768 = vld [vmem:[%s1 + $0x16f8] sm:$0xff]
  %v769 = vld [vmem:[%s1 + $0x1700] sm:$0xff]
  %v770 = vld [vmem:[%s1 + $0x1708] sm:$0xff]
  %v771 = vld [vmem:[%s1 + $0x1710] sm:$0xff]
  %v772 = vld [vmem:[%s1 + $0x1718] sm:$0xff]
  %v773 = vld [vmem:[%s1 + $0x1720] sm:$0xff]
  %v774 = vld [vmem:[%s1 + $0x1728] sm:$0xff]
  %v775 = vld [vmem:[%s1 + $0x1730] sm:$0xff]
  %v776 = vld [vmem:[%s1 + $0x1738] sm:$0xff]
  %v777 = vld [vmem:[%s1 + $0x1740] sm:$0xff]
  %v778 = vld [vmem:[%s1 + $0x1748] sm:$0xff]
  %v779 = vld [vmem:[%s1 + $0x1750] sm:$0xff]
  %v780 = vld [vmem:[%s1 + $0x1758] sm:$0xff]
  %v781 = vld [vmem:[%s1 + $0x1760] sm:$0xff]
  %v782 = vld [vmem:[%s1 + $0x1768] sm:$0xff]
  %v783 = vld [vmem:[%s1 + $0x1770] sm:$0xff]
  %v784 = vld [vmem:[%s1 + $0x1778] sm:$0xff]
  %v785 = vld [vmem:[%s1 + $0x1780] sm:$0xff]
  %v786 = vld [vmem:[%s1 + $0x1788] sm:$0xff]
  %v787 = vld [vmem:[%s1 + $0x1790] sm:$0xff]
  %v788 = vld [vmem:[%s1 + $0x1798] sm:$0xff]
  %v789 = vld [vmem:[%s1 + $0x17a0] sm:$0xff]
  %v790 = vld [vmem:[%s1 + $0x17a8] sm:$0xff]
  %v791 = vld [vmem:[%s1 + $0x17b0] sm:$0xff]
  %v792 = vld [vmem:[%s1 + $0x17b8] sm:$0xff]
  %v793 = vld [vmem:[%s1 + $0x17c0] sm:$0xff]
  %v794 = vld [vmem:[%s1 + $0x17c8] sm:$0xff]
  %v795 = vld [vmem:[%s1 + $0x17d0] sm:$0xff]
  %v796 = vld [vmem:[%s1 + $0x17d8] sm:$0xff]
  %v797 = vld [vmem:[%s1 + $0x17e0] sm:$0xff]
  %v798 = vld [vmem:[%s1 + $0x17e8] sm:$0xff]
  %v799 = vld [vmem:[%s1 + $0x17f0] sm:$0xff]
  %v800 = vld [vmem:[%s1 + $0x17f8] sm:$0xff]
  %v801 = vld [vmem:[%s1 + $0x1800] sm:$0xff]
  %v802 = vld [vmem:[%s1 + $0x1808] sm:$0xff]
  %v803 = vld [vmem:[%s1 + $0x1810] sm:$0xff]
  %v804 = vld [vmem:[%s1 + $0x1818] sm:$0xff]
  %v805 = vld [vmem:[%s1 + $0x1820] sm:$0xff]
  %v806 = vld [vmem:[%s1 + $0x1828] sm:$0xff]
  %v807 = vld [vmem:[%s1 + $0x1830] sm:$0xff]
  %v808 = vld [vmem:[%s1 + $0x1838] sm:$0xff]
  %v809 = vld [vmem:[%s1 + $0x1840] sm:$0xff]
  %v810 = vld [vmem:[%s1 + $0x1848] sm:$0xff]
  %v811 = vld [vmem:[%s1 + $0x1850] sm:$0xff]
  %v812 = vld [vmem:[%s1 + $0x1858] sm:$0xff]
  %v813 = vld [vmem:[%s1 + $0x1860] sm:$0xff]
  %v814 = vld [vmem:[%s1 + $0x1868] sm:$0xff]
  %v815 = vld [vmem:[%s1 + $0x1870] sm:$0xff]
  %v816 = vld [vmem:[%s1 + $0x1878] sm:$0xff]
  %v817 = vld [vmem:[%s1 + $0x1880] sm:$0xff]
  %v818 = vld [vmem:[%s1 + $0x1888] sm:$0xff]
  %v819 = vld [vmem:[%s1 + $0x1890] sm:$0xff]
  %v820 = vld [vmem:[%s1 + $0x1898] sm:$0xff]
  %v821 = vld [vmem:[%s1 + $0x18a0] sm:$0xff]
  %v822 = vld [vmem:[%s1 + $0x18a8] sm:$0xff]
  %v823 = vld [vmem:[%s1 + $0x18b0] sm:$0xff]
  %v824 = vld [vmem:[%s1 + $0x18b8] sm:$0xff]
  %v825 = vld [vmem:[%s1 + $0x18c0] sm:$0xff]
  %v826 = vld [vmem:[%s1 + $0x18c8] sm:$0xff]
  %v827 = vld [vmem:[%s1 + $0x18d0] sm:$0xff]
  %v828 = vld [vmem:[%s1 + $0x18d8] sm:$0xff]
  %v829 = vld [vmem:[%s1 + $0x18e0] sm:$0xff]
  %v830 = vld [vmem:[%s1 + $0x18e8] sm:$0xff]
  %v831 = vld [vmem:[%s1 + $0x18f0] sm:$0xff]
  %v832 = vld [vmem:[%s1 + $0x18f8] sm:$0xff]
  %v833 = vld [vmem:[%s2] sm:$0xff]
  %v835 = vlaneseq
  %v836 = vshrl.u32 %v835, 7
  %v837 = vsub.s32 0, %v836
  %v838 = vrot.slane %v833, %v837
  %v839 = vlaneseq
  %v840 = vshrl.u32 %v839, 7
  %v841 = vsub.s32 1, %v840
  %v842 = vrot.slane %v833, %v841
  %v843 = vlaneseq
  %v844 = vshrl.u32 %v843, 7
  %v845 = vsub.s32 2, %v844
  %v846 = vrot.slane %v833, %v845
  %v847 = vlaneseq
  %v848 = vshrl.u32 %v847, 7
  %v849 = vsub.s32 3, %v848
  %v850 = vrot.slane %v833, %v849
  %v851 = vlaneseq
  %v852 = vshrl.u32 %v851, 7
  %v853 = vsub.s32 4, %v852
  %v854 = vrot.slane %v833, %v853
  %v855 = vlaneseq
  %v856 = vshrl.u32 %v855, 7
  %v857 = vsub.s32 5, %v856
  %v858 = vrot.slane %v833, %v857
  %v859 = vlaneseq
  %v860 = vshrl.u32 %v859, 7
  %v861 = vsub.s32 6, %v860
  %v862 = vrot.slane %v833, %v861
  %v863 = vlaneseq
  %v864 = vshrl.u32 %v863, 7
  %v865 = vsub.s32 7, %v864
  %v866 = vrot.slane %v833, %v865
  %vm875 = vcmask 261120
  %v877 = vsel %vm875, %v32, 0
  %879 = vmatprep.subr.mxu0 %v34
  %880 = vmatpush1.msra.mxu0 %v33
  %881 = vmatprep.subr.mxu0 %v42
  %882 = vmatpush1.msra.mxu0 %v41
  %883 = vmatprep.subr.mxu0 %v50
  %884 = vmatpush1.msra.mxu0 %v49
  %885 = vmatprep.subr.mxu0 %v58
  %886 = vmatpush1.msra.mxu0 %v57
  %887 = vmatprep.subr.mxu0 %v66
  %888 = vmatpush1.msra.mxu0 %v65
  %889 = vmatprep.subr.mxu0 %v74
  %890 = vmatpush1.msra.mxu0 %v73
  %891 = vmatprep.subr.mxu0 %v82
  %892 = vmatpush1.msra.mxu0 %v81
  %893 = vmatprep.subr.mxu0 %v90
  %894 = vmatpush1.msra.mxu0 %v89
  %895 = vmatprep.subr.mxu0 %v98
  %896 = vmatpush1.msra.mxu0 %v97
  %897 = vmatprep.subr.mxu0 %v106
  %898 = vmatpush1.msra.mxu0 %v105
  %899 = vmatprep.subr.mxu0 %v114
  %900 = vmatpush1.msra.mxu0 %v113
  %901 = vmatprep.subr.mxu0 %v122
  %902 = vmatpush1.msra.mxu0 %v121
  %903 = vmatprep.subr.mxu0 %v130
  %904 = vmatpush1.msra.mxu0 %v129
  %905 = vmatprep.subr.mxu0 %v138
  %906 = vmatpush1.msra.mxu0 %v137
  %907 = vmatprep.subr.mxu0 %v146
  %908 = vmatpush1.msra.mxu0 %v145
  %909 = vmatprep.subr.mxu0 %v154
  %910 = vmatpush1.msra.mxu0 %v153
  %911 = vmatprep.subr.mxu0 %v162
  %912 = vmatpush1.msra.mxu0 %v161
  %913 = vmatprep.subr.mxu0 %v170
  %914 = vmatpush1.msra.mxu0 %v169
  %915 = vmatprep.subr.mxu0 %v178
  %916 = vmatpush1.msra.mxu0 %v177
  %917 = vmatprep.subr.mxu0 %v186
  %918 = vmatpush1.msra.mxu0 %v185
  %919 = vmatprep.subr.mxu0 %v194
  %920 = vmatpush1.msra.mxu0 %v193
  %921 = vmatprep.subr.mxu0 %v202
  %922 = vmatpush1.msra.mxu0 %v201
  %923 = vmatprep.subr.mxu0 %v210
  %924 = vmatpush1.msra.mxu0 %v209
  %925 = vmatprep.subr.mxu0 %v218
  %926 = vmatpush1.msra.mxu0 %v217
  %927 = vmatprep.subr.mxu0 %v226
  %928 = vmatpush1.msra.mxu0 %v225
  %929 = vmatprep.subr.mxu0 %v234
  %930 = vmatpush1.msra.mxu0 %v233
  %931 = vmatprep.subr.mxu0 %v242
  %932 = vmatpush1.msra.mxu0 %v241
  %933 = vmatprep.subr.mxu0 %v250
  %934 = vmatpush1.msra.mxu0 %v249
  %935 = vmatprep.subr.mxu0 %v258
  %936 = vmatpush1.msra.mxu0 %v257
  %937 = vmatprep.subr.mxu0 %v266
  %938 = vmatpush1.msra.mxu0 %v265
  %939 = vmatprep.subr.mxu0 %v274
  %940 = vmatpush1.msra.mxu0 %v273
  %941 = vmatprep.subr.mxu0 %v282
  %942 = vmatpush1.msra.mxu0 %v281
  %943 = vmatprep.mubr.f32.mxu0 %v27
  %944 = vmatmul.mubr.f32.gmra.mrb[0].mxu0 %v26
  %v945 = vpop.f32.mrb[0].mxu0
  %v946 = vadd.f32 %v838, %v945
  %v947 = vpop.f32.mrb[0].mxu0
  %v948 = vadd.f32 %v842, %v947
  %949 = vdwg.mxu0
  %950 = vmatprep.subr.mxu0 %v290
  %951 = vmatpush1.msra.mxu0 %v289
  %952 = vmatprep.subr.mxu0 %v298
  %953 = vmatpush1.msra.mxu0 %v297
  %954 = vmatprep.subr.mxu0 %v306
  %955 = vmatpush1.msra.mxu0 %v305
  %956 = vmatprep.subr.mxu0 %v314
  %957 = vmatpush1.msra.mxu0 %v313
  %958 = vmatprep.subr.mxu0 %v322
  %959 = vmatpush1.msra.mxu0 %v321
  %960 = vmatprep.subr.mxu0 %v330
  %961 = vmatpush1.msra.mxu0 %v329
  %962 = vmatprep.subr.mxu0 %v338
  %963 = vmatpush1.msra.mxu0 %v337
  %964 = vmatprep.subr.mxu0 %v346
  %965 = vmatpush1.msra.mxu0 %v345
  %966 = vmatprep.subr.mxu0 %v354
  %967 = vmatpush1.msra.mxu0 %v353
  %968 = vmatprep.subr.mxu0 %v362
  %969 = vmatpush1.msra.mxu0 %v361
  %970 = vmatprep.subr.mxu0 %v370
  %971 = vmatpush1.msra.mxu0 %v369
  %972 = vmatprep.subr.mxu0 %v378
  %973 = vmatpush1.msra.mxu0 %v377
  %974 = vmatprep.subr.mxu0 %v386
  %975 = vmatpush1.msra.mxu0 %v385
  %976 = vmatprep.subr.mxu0 %v394
  %977 = vmatpush1.msra.mxu0 %v393
  %978 = vmatprep.subr.mxu0 %v402
  %979 = vmatpush1.msra.mxu0 %v401
  %980 = vmatprep.subr.mxu0 %v410
  %981 = vmatpush1.msra.mxu0 %v409
  %982 = vmatprep.subr.mxu0 %v418
  %983 = vmatpush1.msra.mxu0 %v417
  %984 = vmatprep.subr.mxu0 %v426
  %985 = vmatpush1.msra.mxu0 %v425
  %986 = vmatprep.subr.mxu0 %v434
  %987 = vmatpush1.msra.mxu0 %v433
  %988 = vmatprep.subr.mxu0 %v442
  %989 = vmatpush1.msra.mxu0 %v441
  %990 = vmatprep.subr.mxu0 %v450
  %991 = vmatpush1.msra.mxu0 %v449
  %992 = vmatprep.subr.mxu0 %v458
  %993 = vmatpush1.msra.mxu0 %v457
  %994 = vmatprep.subr.mxu0 %v466
  %995 = vmatpush1.msra.mxu0 %v465
  %996 = vmatprep.subr.mxu0 %v474
  %997 = vmatpush1.msra.mxu0 %v473
  %998 = vmatprep.subr.mxu0 %v482
  %999 = vmatpush1.msra.mxu0 %v481
  %1000 = vmatprep.subr.mxu0 %v490
  %1001 = vmatpush1.msra.mxu0 %v489
  %1002 = vmatprep.subr.mxu0 %v498
  %1003 = vmatpush1.msra.mxu0 %v497
  %1004 = vmatprep.subr.mxu0 %v506
  %1005 = vmatpush1.msra.mxu0 %v505
  %1006 = vmatprep.subr.mxu0 %v514
  %1007 = vmatpush1.msra.mxu0 %v513
  %1008 = vmatprep.subr.mxu0 %v522
  %1009 = vmatpush1.msra.mxu0 %v521
  %1010 = vmatprep.subr.mxu0 %v530
  %1011 = vmatpush1.msra.mxu0 %v529
  %1012 = vmatprep.subr.mxu0 %v538
  %1013 = vmatpush1.msra.mxu0 %v537
  %1014 = vmatprep.mubr.f32.mxu0 %v29
  %1015 = vmatmul.mubr.f32.gmra.mrb[0].mxu0 %v28
  %v1016 = vpop.f32.mrb[0].mxu0
  %v1017 = vadd.f32 %v946, %v1016
  %v1018 = vpop.f32.mrb[0].mxu0
  %v1019 = vadd.f32 %v948, %v1018
  %1020 = vdwg.mxu0
  %1021 = vmatprep.subr.mxu0 %v546
  %1022 = vmatpush1.msra.mxu0 %v545
  %1023 = vmatprep.subr.mxu0 %v554
  %1024 = vmatpush1.msra.mxu0 %v553
  %1025 = vmatprep.subr.mxu0 %v562
  %1026 = vmatpush1.msra.mxu0 %v561
  %1027 = vmatprep.subr.mxu0 %v570
  %1028 = vmatpush1.msra.mxu0 %v569
  %1029 = vmatprep.subr.mxu0 %v578
  %1030 = vmatpush1.msra.mxu0 %v577
  %1031 = vmatprep.subr.mxu0 %v586
  %1032 = vmatpush1.msra.mxu0 %v585
  %1033 = vmatprep.subr.mxu0 %v594
  %1034 = vmatpush1.msra.mxu0 %v593
  %1035 = vmatprep.subr.mxu0 %v602
  %1036 = vmatpush1.msra.mxu0 %v601
  %1037 = vmatprep.subr.mxu0 %v610
  %1038 = vmatpush1.msra.mxu0 %v609
  %1039 = vmatprep.subr.mxu0 %v618
  %1040 = vmatpush1.msra.mxu0 %v617
  %1041 = vmatprep.subr.mxu0 %v626
  %1042 = vmatpush1.msra.mxu0 %v625
  %1043 = vmatprep.subr.mxu0 %v634
  %1044 = vmatpush1.msra.mxu0 %v633
  %1045 = vmatprep.subr.mxu0 %v642
  %1046 = vmatpush1.msra.mxu0 %v641
  %1047 = vmatprep.subr.mxu0 %v650
  %1048 = vmatpush1.msra.mxu0 %v649
  %1049 = vmatprep.subr.mxu0 %v658
  %1050 = vmatpush1.msra.mxu0 %v657
  %1051 = vmatprep.subr.mxu0 %v666
  %1052 = vmatpush1.msra.mxu0 %v665
  %1053 = vmatprep.subr.mxu0 %v674
  %1054 = vmatpush1.msra.mxu0 %v673
  %1055 = vmatprep.subr.mxu0 %v682
  %1056 = vmatpush1.msra.mxu0 %v681
  %1057 = vmatprep.subr.mxu0 %v690
  %1058 = vmatpush1.msra.mxu0 %v689
  %1059 = vmatprep.subr.mxu0 %v698
  %1060 = vmatpush1.msra.mxu0 %v697
  %1061 = vmatprep.subr.mxu0 %v706
  %1062 = vmatpush1.msra.mxu0 %v705
  %1063 = vmatprep.subr.mxu0 %v714
  %1064 = vmatpush1.msra.mxu0 %v713
  %1065 = vmatprep.subr.mxu0 %v722
  %1066 = vmatpush1.msra.mxu0 %v721
  %1067 = vmatprep.subr.mxu0 %v730
  %1068 = vmatpush1.msra.mxu0 %v729
  %1069 = vmatprep.subr.mxu0 %v738
  %1070 = vmatpush1.msra.mxu0 %v737
  %1071 = vmatprep.subr.mxu0 %v746
  %1072 = vmatpush1.msra.mxu0 %v745
  %1073 = vmatprep.subr.mxu0 %v754
  %1074 = vmatpush1.msra.mxu0 %v753
  %1075 = vmatprep.subr.mxu0 %v762
  %1076 = vmatpush1.msra.mxu0 %v761
  %1077 = vmatprep.subr.mxu0 %v770
  %1078 = vmatpush1.msra.mxu0 %v769
  %1079 = vmatprep.subr.mxu0 %v778
  %1080 = vmatpush1.msra.mxu0 %v777
  %1081 = vmatprep.subr.mxu0 %v786
  %1082 = vmatpush1.msra.mxu0 %v785
  %1083 = vmatprep.subr.mxu0 %v794
  %1084 = vmatpush1.msra.mxu0 %v793
  %1085 = vmatprep.mubr.f32.mxu0 %v31
  %1086 = vmatmul.mubr.f32.gmra.mrb[0].mxu0 %v30
  %v1087 = vpop.f32.mrb[0].mxu0
  %v1088 = vadd.f32 %v1017, %v1087
  %v1089 = vpop.f32.mrb[0].mxu0
  %v1090 = vadd.f32 %v1019, %v1089
  %1091 = vdwg.mxu0
  %1092 = vmatprep.subr.mxu0 %v802
  %1093 = vmatpush1.msra.mxu0 %v801
  %1094 = vmatprep.subr.mxu0 %v810
  %1095 = vmatpush1.msra.mxu0 %v809
  %1096 = vmatprep.subr.mxu0 %v818
  %1097 = vmatpush1.msra.mxu0 %v817
  %1098 = vmatprep.subr.mxu0 %v826
  %1099 = vmatpush1.msra.mxu0 %v825
  %1100 = vmatprep.subr.mxu0 0.0
  %1101 = vmatpush1.msra.mxu0 0.0
  %1102 = vmatprep.subr.mxu0 0.0
  %1103 = vmatpush1.msra.mxu0 0.0
  %1104 = vmatprep.subr.mxu0 0.0
  %1105 = vmatpush1.msra.mxu0 0.0
  %1106 = vmatprep.subr.mxu0 0.0
  %1107 = vmatpush1.msra.mxu0 0.0
  %1108 = vmatprep.subr.mxu0 0.0
  %1109 = vmatpush1.msra.mxu0 0.0
  %1110 = vmatprep.subr.mxu0 0.0
  %1111 = vmatpush1.msra.mxu0 0.0
  %1112 = vmatprep.subr.mxu0 0.0
  %1113 = vmatpush1.msra.mxu0 0.0
  %1114 = vmatprep.subr.mxu0 0.0
  %1115 = vmatpush1.msra.mxu0 0.0
  %1116 = vmatprep.subr.mxu0 0.0
  %1117 = vmatpush1.msra.mxu0 0.0
  %1118 = vmatprep.subr.mxu0 0.0
  %1119 = vmatpush1.msra.mxu0 0.0
  %1120 = vmatprep.subr.mxu0 0.0
  %1121 = vmatpush1.msra.mxu0 0.0
  %1122 = vmatprep.subr.mxu0 0.0
  %1123 = vmatpush1.msra.mxu0 0.0
  %1124 = vmatprep.subr.mxu0 0.0
  %1125 = vmatpush1.msra.mxu0 0.0
  %1126 = vmatprep.subr.mxu0 0.0
  %1127 = vmatpush1.msra.mxu0 0.0
  %1128 = vmatprep.subr.mxu0 0.0
  %1129 = vmatpush1.msra.mxu0 0.0
  %1130 = vmatprep.subr.mxu0 0.0
  %1131 = vmatpush1.msra.mxu0 0.0
  %1132 = vmatprep.subr.mxu0 0.0
  %1133 = vmatpush1.msra.mxu0 0.0
  %1134 = vmatprep.subr.mxu0 0.0
  %1135 = vmatpush1.msra.mxu0 0.0
  %1136 = vmatprep.subr.mxu0 0.0
  %1137 = vmatpush1.msra.mxu0 0.0
  %1138 = vmatprep.subr.mxu0 0.0
  %1139 = vmatpush1.msra.mxu0 0.0
  %1140 = vmatprep.subr.mxu0 0.0
  %1141 = vmatpush1.msra.mxu0 0.0
  %1142 = vmatprep.subr.mxu0 0.0
  %1143 = vmatpush1.msra.mxu0 0.0
  %1144 = vmatprep.subr.mxu0 0.0
  %1145 = vmatpush1.msra.mxu0 0.0
  %1146 = vmatprep.subr.mxu0 0.0
  %1147 = vmatpush1.msra.mxu0 0.0
  %1148 = vmatprep.subr.mxu0 0.0
  %1149 = vmatpush1.msra.mxu0 0.0
  %1150 = vmatprep.subr.mxu0 0.0
  %1151 = vmatpush1.msra.mxu0 0.0
  %1152 = vmatprep.subr.mxu0 0.0
  %1153 = vmatpush1.msra.mxu0 0.0
  %1154 = vmatprep.subr.mxu0 0.0
  %1155 = vmatpush1.msra.mxu0 0.0
  %1156 = vmatprep.mubr.f32.mxu0 0.0
  %1157 = vmatmul.mubr.f32.gmra.mrb[0].mxu0 %v877
  %v1158 = vpop.f32.mrb[0].mxu0
  %v1159 = vadd.f32 %v1088, %v1158
  %v1160 = vpop.f32.mrb[0].mxu0
  %v1161 = vadd.f32 %v1090, %v1160
  %1162 = vdwg.mxu0
  %1163 = vmatprep.subr.mxu0 %v36
  %1164 = vmatpush1.msra.mxu0 %v35
  %1165 = vmatprep.subr.mxu0 %v44
  %1166 = vmatpush1.msra.mxu0 %v43
  %1167 = vmatprep.subr.mxu0 %v52
  %1168 = vmatpush1.msra.mxu0 %v51
  %1169 = vmatprep.subr.mxu0 %v60
  %1170 = vmatpush1.msra.mxu0 %v59
  %1171 = vmatprep.subr.mxu0 %v68
  %1172 = vmatpush1.msra.mxu0 %v67
  %1173 = vmatprep.subr.mxu0 %v76
  %1174 = vmatpush1.msra.mxu0 %v75
  %1175 = vmatprep.subr.mxu0 %v84
  %1176 = vmatpush1.msra.mxu0 %v83
  %1177 = vmatprep.subr.mxu0 %v92
  %1178 = vmatpush1.msra.mxu0 %v91
  %1179 = vmatprep.subr.mxu0 %v100
  %1180 = vmatpush1.msra.mxu0 %v99
  %1181 = vmatprep.subr.mxu0 %v108
  %1182 = vmatpush1.msra.mxu0 %v107
  %1183 = vmatprep.subr.mxu0 %v116
  %1184 = vmatpush1.msra.mxu0 %v115
  %1185 = vmatprep.subr.mxu0 %v124
  %1186 = vmatpush1.msra.mxu0 %v123
  %1187 = vmatprep.subr.mxu0 %v132
  %1188 = vmatpush1.msra.mxu0 %v131
  %1189 = vmatprep.subr.mxu0 %v140
  %1190 = vmatpush1.msra.mxu0 %v139
  %1191 = vmatprep.subr.mxu0 %v148
  %1192 = vmatpush1.msra.mxu0 %v147
  %1193 = vmatprep.subr.mxu0 %v156
  %1194 = vmatpush1.msra.mxu0 %v155
  %1195 = vmatprep.subr.mxu0 %v164
  %1196 = vmatpush1.msra.mxu0 %v163
  %1197 = vmatprep.subr.mxu0 %v172
  %1198 = vmatpush1.msra.mxu0 %v171
  %1199 = vmatprep.subr.mxu0 %v180
  %1200 = vmatpush1.msra.mxu0 %v179
  %1201 = vmatprep.subr.mxu0 %v188
  %1202 = vmatpush1.msra.mxu0 %v187
  %1203 = vmatprep.subr.mxu0 %v196
  %1204 = vmatpush1.msra.mxu0 %v195
  %1205 = vmatprep.subr.mxu0 %v204
  %1206 = vmatpush1.msra.mxu0 %v203
  %1207 = vmatprep.subr.mxu0 %v212
  %1208 = vmatpush1.msra.mxu0 %v211
  %1209 = vmatprep.subr.mxu0 %v220
  %1210 = vmatpush1.msra.mxu0 %v219
  %1211 = vmatprep.subr.mxu0 %v228
  %1212 = vmatpush1.msra.mxu0 %v227
  %1213 = vmatprep.subr.mxu0 %v236
  %1214 = vmatpush1.msra.mxu0 %v235
  %1215 = vmatprep.subr.mxu0 %v244
  %1216 = vmatpush1.msra.mxu0 %v243
  %1217 = vmatprep.subr.mxu0 %v252
  %1218 = vmatpush1.msra.mxu0 %v251
  %1219 = vmatprep.subr.mxu0 %v260
  %1220 = vmatpush1.msra.mxu0 %v259
  %1221 = vmatprep.subr.mxu0 %v268
  %1222 = vmatpush1.msra.mxu0 %v267
  %1223 = vmatprep.subr.mxu0 %v276
  %1224 = vmatpush1.msra.mxu0 %v275
  %1225 = vmatprep.subr.mxu0 %v284
  %1226 = vmatpush1.msra.mxu0 %v283
  %1227 = vmatprep.mubr.f32.mxu0 %v27
  %1228 = vmatmul.mubr.f32.gmra.mrb[0].mxu0 %v26
  %v1229 = vpop.f32.mrb[0].mxu0
  %v1230 = vadd.f32 %v846, %v1229
  %v1231 = vpop.f32.mrb[0].mxu0
  %v1232 = vadd.f32 %v850, %v1231
  %1233 = vdwg.mxu0
  %1234 = vmatprep.subr.mxu0 %v292
  %1235 = vmatpush1.msra.mxu0 %v291
  %1236 = vmatprep.subr.mxu0 %v300
  %1237 = vmatpush1.msra.mxu0 %v299
  %1238 = vmatprep.subr.mxu0 %v308
  %1239 = vmatpush1.msra.mxu0 %v307
  %1240 = vmatprep.subr.mxu0 %v316
  %1241 = vmatpush1.msra.mxu0 %v315
  %1242 = vmatprep.subr.mxu0 %v324
  %1243 = vmatpush1.msra.mxu0 %v323
  %1244 = vmatprep.subr.mxu0 %v332
  %1245 = vmatpush1.msra.mxu0 %v331
  %1246 = vmatprep.subr.mxu0 %v340
  %1247 = vmatpush1.msra.mxu0 %v339
  %1248 = vmatprep.subr.mxu0 %v348
  %1249 = vmatpush1.msra.mxu0 %v347
  %1250 = vmatprep.subr.mxu0 %v356
  %1251 = vmatpush1.msra.mxu0 %v355
  %1252 = vmatprep.subr.mxu0 %v364
  %1253 = vmatpush1.msra.mxu0 %v363
  %1254 = vmatprep.subr.mxu0 %v372
  %1255 = vmatpush1.msra.mxu0 %v371
  %1256 = vmatprep.subr.mxu0 %v380
  %1257 = vmatpush1.msra.mxu0 %v379
  %1258 = vmatprep.subr.mxu0 %v388
  %1259 = vmatpush1.msra.mxu0 %v387
  %1260 = vmatprep.subr.mxu0 %v396
  %1261 = vmatpush1.msra.mxu0 %v395
  %1262 = vmatprep.subr.mxu0 %v404
  %1263 = vmatpush1.msra.mxu0 %v403
  %1264 = vmatprep.subr.mxu0 %v412
  %1265 = vmatpush1.msra.mxu0 %v411
  %1266 = vmatprep.subr.mxu0 %v420
  %1267 = vmatpush1.msra.mxu0 %v419
  %1268 = vmatprep.subr.mxu0 %v428
  %1269 = vmatpush1.msra.mxu0 %v427
  %1270 = vmatprep.subr.mxu0 %v436
  %1271 = vmatpush1.msra.mxu0 %v435
  %1272 = vmatprep.subr.mxu0 %v444
  %1273 = vmatpush1.msra.mxu0 %v443
  %1274 = vmatprep.subr.mxu0 %v452
  %1275 = vmatpush1.msra.mxu0 %v451
  %1276 = vmatprep.subr.mxu0 %v460
  %1277 = vmatpush1.msra.mxu0 %v459
  %1278 = vmatprep.subr.mxu0 %v468
  %1279 = vmatpush1.msra.mxu0 %v467
  %1280 = vmatprep.subr.mxu0 %v476
  %1281 = vmatpush1.msra.mxu0 %v475
  %1282 = vmatprep.subr.mxu0 %v484
  %1283 = vmatpush1.msra.mxu0 %v483
  %1284 = vmatprep.subr.mxu0 %v492
  %1285 = vmatpush1.msra.mxu0 %v491
  %1286 = vmatprep.subr.mxu0 %v500
  %1287 = vmatpush1.msra.mxu0 %v499
  %1288 = vmatprep.subr.mxu0 %v508
  %1289 = vmatpush1.msra.mxu0 %v507
  %1290 = vmatprep.subr.mxu0 %v516
  %1291 = vmatpush1.msra.mxu0 %v515
  %1292 = vmatprep.subr.mxu0 %v524
  %1293 = vmatpush1.msra.mxu0 %v523
  %1294 = vmatprep.subr.mxu0 %v532
  %1295 = vmatpush1.msra.mxu0 %v531
  %1296 = vmatprep.subr.mxu0 %v540
  %1297 = vmatpush1.msra.mxu0 %v539
  %1298 = vmatprep.mubr.f32.mxu0 %v29
  %1299 = vmatmul.mubr.f32.gmra.mrb[0].mxu0 %v28
  %v1300 = vpop.f32.mrb[0].mxu0
  %v1301 = vadd.f32 %v1230, %v1300
  %v1302 = vpop.f32.mrb[0].mxu0
  %v1303 = vadd.f32 %v1232, %v1302
  %1304 = vdwg.mxu0
  %1305 = vmatprep.subr.mxu0 %v548
  %1306 = vmatpush1.msra.mxu0 %v547
  %1307 = vmatprep.subr.mxu0 %v556
  %1308 = vmatpush1.msra.mxu0 %v555
  %1309 = vmatprep.subr.mxu0 %v564
  %1310 = vmatpush1.msra.mxu0 %v563
  %1311 = vmatprep.subr.mxu0 %v572
  %1312 = vmatpush1.msra.mxu0 %v571
  %1313 = vmatprep.subr.mxu0 %v580
  %1314 = vmatpush1.msra.mxu0 %v579
  %1315 = vmatprep.subr.mxu0 %v588
  %1316 = vmatpush1.msra.mxu0 %v587
  %1317 = vmatprep.subr.mxu0 %v596
  %1318 = vmatpush1.msra.mxu0 %v595
  %1319 = vmatprep.subr.mxu0 %v604
  %1320 = vmatpush1.msra.mxu0 %v603
  %1321 = vmatprep.subr.mxu0 %v612
  %1322 = vmatpush1.msra.mxu0 %v611
  %1323 = vmatprep.subr.mxu0 %v620
  %1324 = vmatpush1.msra.mxu0 %v619
  %1325 = vmatprep.subr.mxu0 %v628
  %1326 = vmatpush1.msra.mxu0 %v627
  %1327 = vmatprep.subr.mxu0 %v636
  %1328 = vmatpush1.msra.mxu0 %v635
  %1329 = vmatprep.subr.mxu0 %v644
  %1330 = vmatpush1.msra.mxu0 %v643
  %1331 = vmatprep.subr.mxu0 %v652
  %1332 = vmatpush1.msra.mxu0 %v651
  %1333 = vmatprep.subr.mxu0 %v660
  %1334 = vmatpush1.msra.mxu0 %v659
  %1335 = vmatprep.subr.mxu0 %v668
  %1336 = vmatpush1.msra.mxu0 %v667
  %1337 = vmatprep.subr.mxu0 %v676
  %1338 = vmatpush1.msra.mxu0 %v675
  %1339 = vmatprep.subr.mxu0 %v684
  %1340 = vmatpush1.msra.mxu0 %v683
  %1341 = vmatprep.subr.mxu0 %v692
  %1342 = vmatpush1.msra.mxu0 %v691
  %1343 = vmatprep.subr.mxu0 %v700
  %1344 = vmatpush1.msra.mxu0 %v699
  %1345 = vmatprep.subr.mxu0 %v708
  %1346 = vmatpush1.msra.mxu0 %v707
  %1347 = vmatprep.subr.mxu0 %v716
  %1348 = vmatpush1.msra.mxu0 %v715
  %1349 = vmatprep.subr.mxu0 %v724
  %1350 = vmatpush1.msra.mxu0 %v723
  %1351 = vmatprep.subr.mxu0 %v732
  %1352 = vmatpush1.msra.mxu0 %v731
  %1353 = vmatprep.subr.mxu0 %v740
  %1354 = vmatpush1.msra.mxu0 %v739
  %1355 = vmatprep.subr.mxu0 %v748
  %1356 = vmatpush1.msra.mxu0 %v747
  %1357 = vmatprep.subr.mxu0 %v756
  %1358 = vmatpush1.msra.mxu0 %v755
  %1359 = vmatprep.subr.mxu0 %v764
  %1360 = vmatpush1.msra.mxu0 %v763
  %1361 = vmatprep.subr.mxu0 %v772
  %1362 = vmatpush1.msra.mxu0 %v771
  %1363 = vmatprep.subr.mxu0 %v780
  %1364 = vmatpush1.msra.mxu0 %v779
  %1365 = vmatprep.subr.mxu0 %v788
  %1366 = vmatpush1.msra.mxu0 %v787
  %1367 = vmatprep.subr.mxu0 %v796
  %1368 = vmatpush1.msra.mxu0 %v795
  %1369 = vmatprep.mubr.f32.mxu0 %v31
  %1370 = vmatmul.mubr.f32.gmra.mrb[0].mxu0 %v30
  %v1371 = vpop.f32.mrb[0].mxu0
  %v1372 = vadd.f32 %v1301, %v1371
  %v1373 = vpop.f32.mrb[0].mxu0
  %v1374 = vadd.f32 %v1303, %v1373
  %1375 = vdwg.mxu0
  %1376 = vmatprep.subr.mxu0 %v804
  %1377 = vmatpush1.msra.mxu0 %v803
  %1378 = vmatprep.subr.mxu0 %v812
  %1379 = vmatpush1.msra.mxu0 %v811
  %1380 = vmatprep.subr.mxu0 %v820
  %1381 = vmatpush1.msra.mxu0 %v819
  %1382 = vmatprep.subr.mxu0 %v828
  %1383 = vmatpush1.msra.mxu0 %v827
  %1384 = vmatprep.subr.mxu0 0.0
  %1385 = vmatpush1.msra.mxu0 0.0
  %1386 = vmatprep.subr.mxu0 0.0
  %1387 = vmatpush1.msra.mxu0 0.0
  %1388 = vmatprep.subr.mxu0 0.0
  %1389 = vmatpush1.msra.mxu0 0.0
  %1390 = vmatprep.subr.mxu0 0.0
  %1391 = vmatpush1.msra.mxu0 0.0
  %1392 = vmatprep.subr.mxu0 0.0
  %1393 = vmatpush1.msra.mxu0 0.0
  %1394 = vmatprep.subr.mxu0 0.0
  %1395 = vmatpush1.msra.mxu0 0.0
  %1396 = vmatprep.subr.mxu0 0.0
  %1397 = vmatpush1.msra.mxu0 0.0
  %1398 = vmatprep.subr.mxu0 0.0
  %1399 = vmatpush1.msra.mxu0 0.0
  %1400 = vmatprep.subr.mxu0 0.0
  %1401 = vmatpush1.msra.mxu0 0.0
  %1402 = vmatprep.subr.mxu0 0.0
  %1403 = vmatpush1.msra.mxu0 0.0
  %1404 = vmatprep.subr.mxu0 0.0
  %1405 = vmatpush1.msra.mxu0 0.0
  %1406 = vmatprep.subr.mxu0 0.0
  %1407 = vmatpush1.msra.mxu0 0.0
  %1408 = vmatprep.subr.mxu0 0.0
  %1409 = vmatpush1.msra.mxu0 0.0
  %1410 = vmatprep.subr.mxu0 0.0
  %1411 = vmatpush1.msra.mxu0 0.0
  %1412 = vmatprep.subr.mxu0 0.0
  %1413 = vmatpush1.msra.mxu0 0.0
  %1414 = vmatprep.subr.mxu0 0.0
  %1415 = vmatpush1.msra.mxu0 0.0
  %1416 = vmatprep.subr.mxu0 0.0
  %1417 = vmatpush1.msra.mxu0 0.0
  %1418 = vmatprep.subr.mxu0 0.0
  %1419 = vmatpush1.msra.mxu0 0.0
  %1420 = vmatprep.subr.mxu0 0.0
  %1421 = vmatpush1.msra.mxu0 0.0
  %1422 = vmatprep.subr.mxu0 0.0
  %1423 = vmatpush1.msra.mxu0 0.0
  %1424 = vmatprep.subr.mxu0 0.0
  %1425 = vmatpush1.msra.mxu0 0.0
  %1426 = vmatprep.subr.mxu0 0.0
  %1427 = vmatpush1.msra.mxu0 0.0
  %1428 = vmatprep.subr.mxu0 0.0
  %1429 = vmatpush1.msra.mxu0 0.0
  %1430 = vmatprep.subr.mxu0 0.0
  %1431 = vmatpush1.msra.mxu0 0.0
  %1432 = vmatprep.subr.mxu0 0.0
  %1433 = vmatpush1.msra.mxu0 0.0
  %1434 = vmatprep.subr.mxu0 0.0
  %1435 = vmatpush1.msra.mxu0 0.0
  %1436 = vmatprep.subr.mxu0 0.0
  %1437 = vmatpush1.msra.mxu0 0.0
  %1438 = vmatprep.subr.mxu0 0.0
  %1439 = vmatpush1.msra.mxu0 0.0
  %1440 = vmatprep.mubr.f32.mxu0 0.0
  %1441 = vmatmul.mubr.f32.gmra.mrb[0].mxu0 %v877
  %v1442 = vpop.f32.mrb[0].mxu0
  %v1443 = vadd.f32 %v1372, %v1442
  %v1444 = vpop.f32.mrb[0].mxu0
  %v1445 = vadd.f32 %v1374, %v1444
  %1446 = vdwg.mxu0
  %1447 = vmatprep.subr.mxu0 %v38
  %1448 = vmatpush1.msra.mxu0 %v37
  %1449 = vmatprep.subr.mxu0 %v46
  %1450 = vmatpush1.msra.mxu0 %v45
  %1451 = vmatprep.subr.mxu0 %v54
  %1452 = vmatpush1.msra.mxu0 %v53
  %1453 = vmatprep.subr.mxu0 %v62
  %1454 = vmatpush1.msra.mxu0 %v61
  %1455 = vmatprep.subr.mxu0 %v70
  %1456 = vmatpush1.msra.mxu0 %v69
  %1457 = vmatprep.subr.mxu0 %v78
  %1458 = vmatpush1.msra.mxu0 %v77
  %1459 = vmatprep.subr.mxu0 %v86
  %1460 = vmatpush1.msra.mxu0 %v85
  %1461 = vmatprep.subr.mxu0 %v94
  %1462 = vmatpush1.msra.mxu0 %v93
  %1463 = vmatprep.subr.mxu0 %v102
  %1464 = vmatpush1.msra.mxu0 %v101
  %1465 = vmatprep.subr.mxu0 %v110
  %1466 = vmatpush1.msra.mxu0 %v109
  %1467 = vmatprep.subr.mxu0 %v118
  %1468 = vmatpush1.msra.mxu0 %v117
  %1469 = vmatprep.subr.mxu0 %v126
  %1470 = vmatpush1.msra.mxu0 %v125
  %1471 = vmatprep.subr.mxu0 %v134
  %1472 = vmatpush1.msra.mxu0 %v133
  %1473 = vmatprep.subr.mxu0 %v142
  %1474 = vmatpush1.msra.mxu0 %v141
  %1475 = vmatprep.subr.mxu0 %v150
  %1476 = vmatpush1.msra.mxu0 %v149
  %1477 = vmatprep.subr.mxu0 %v158
  %1478 = vmatpush1.msra.mxu0 %v157
  %1479 = vmatprep.subr.mxu0 %v166
  %1480 = vmatpush1.msra.mxu0 %v165
  %1481 = vmatprep.subr.mxu0 %v174
  %1482 = vmatpush1.msra.mxu0 %v173
  %1483 = vmatprep.subr.mxu0 %v182
  %1484 = vmatpush1.msra.mxu0 %v181
  %1485 = vmatprep.subr.mxu0 %v190
  %1486 = vmatpush1.msra.mxu0 %v189
  %1487 = vmatprep.subr.mxu0 %v198
  %1488 = vmatpush1.msra.mxu0 %v197
  %1489 = vmatprep.subr.mxu0 %v206
  %1490 = vmatpush1.msra.mxu0 %v205
  %1491 = vmatprep.subr.mxu0 %v214
  %1492 = vmatpush1.msra.mxu0 %v213
  %1493 = vmatprep.subr.mxu0 %v222
  %1494 = vmatpush1.msra.mxu0 %v221
  %1495 = vmatprep.subr.mxu0 %v230
  %1496 = vmatpush1.msra.mxu0 %v229
  %1497 = vmatprep.subr.mxu0 %v238
  %1498 = vmatpush1.msra.mxu0 %v237
  %1499 = vmatprep.subr.mxu0 %v246
  %1500 = vmatpush1.msra.mxu0 %v245
  %1501 = vmatprep.subr.mxu0 %v254
  %1502 = vmatpush1.msra.mxu0 %v253
  %1503 = vmatprep.subr.mxu0 %v262
  %1504 = vmatpush1.msra.mxu0 %v261
  %1505 = vmatprep.subr.mxu0 %v270
  %1506 = vmatpush1.msra.mxu0 %v269
  %1507 = vmatprep.subr.mxu0 %v278
  %1508 = vmatpush1.msra.mxu0 %v277
  %1509 = vmatprep.subr.mxu0 %v286
  %1510 = vmatpush1.msra.mxu0 %v285
  %1511 = vmatprep.mubr.f32.mxu0 %v27
  %1512 = vmatmul.mubr.f32.gmra.mrb[0].mxu0 %v26
  %v1513 = vpop.f32.mrb[0].mxu0
  %v1514 = vadd.f32 %v854, %v1513
  %v1515 = vpop.f32.mrb[0].mxu0
  %v1516 = vadd.f32 %v858, %v1515
  %1517 = vdwg.mxu0
  %1518 = vmatprep.subr.mxu0 %v294
  %1519 = vmatpush1.msra.mxu0 %v293
  %1520 = vmatprep.subr.mxu0 %v302
  %1521 = vmatpush1.msra.mxu0 %v301
  %1522 = vmatprep.subr.mxu0 %v310
  %1523 = vmatpush1.msra.mxu0 %v309
  %1524 = vmatprep.subr.mxu0 %v318
  %1525 = vmatpush1.msra.mxu0 %v317
  %1526 = vmatprep.subr.mxu0 %v326
  %1527 = vmatpush1.msra.mxu0 %v325
  %1528 = vmatprep.subr.mxu0 %v334
  %1529 = vmatpush1.msra.mxu0 %v333
  %1530 = vmatprep.subr.mxu0 %v342
  %1531 = vmatpush1.msra.mxu0 %v341
  %1532 = vmatprep.subr.mxu0 %v350
  %1533 = vmatpush1.msra.mxu0 %v349
  %1534 = vmatprep.subr.mxu0 %v358
  %1535 = vmatpush1.msra.mxu0 %v357
  %1536 = vmatprep.subr.mxu0 %v366
  %1537 = vmatpush1.msra.mxu0 %v365
  %1538 = vmatprep.subr.mxu0 %v374
  %1539 = vmatpush1.msra.mxu0 %v373
  %1540 = vmatprep.subr.mxu0 %v382
  %1541 = vmatpush1.msra.mxu0 %v381
  %1542 = vmatprep.subr.mxu0 %v390
  %1543 = vmatpush1.msra.mxu0 %v389
  %1544 = vmatprep.subr.mxu0 %v398
  %1545 = vmatpush1.msra.mxu0 %v397
  %1546 = vmatprep.subr.mxu0 %v406
  %1547 = vmatpush1.msra.mxu0 %v405
  %1548 = vmatprep.subr.mxu0 %v414
  %1549 = vmatpush1.msra.mxu0 %v413
  %1550 = vmatprep.subr.mxu0 %v422
  %1551 = vmatpush1.msra.mxu0 %v421
  %1552 = vmatprep.subr.mxu0 %v430
  %1553 = vmatpush1.msra.mxu0 %v429
  %1554 = vmatprep.subr.mxu0 %v438
  %1555 = vmatpush1.msra.mxu0 %v437
  %1556 = vmatprep.subr.mxu0 %v446
  %1557 = vmatpush1.msra.mxu0 %v445
  %1558 = vmatprep.subr.mxu0 %v454
  %1559 = vmatpush1.msra.mxu0 %v453
  %1560 = vmatprep.subr.mxu0 %v462
  %1561 = vmatpush1.msra.mxu0 %v461
  %1562 = vmatprep.subr.mxu0 %v470
  %1563 = vmatpush1.msra.mxu0 %v469
  %1564 = vmatprep.subr.mxu0 %v478
  %1565 = vmatpush1.msra.mxu0 %v477
  %1566 = vmatprep.subr.mxu0 %v486
  %1567 = vmatpush1.msra.mxu0 %v485
  %1568 = vmatprep.subr.mxu0 %v494
  %1569 = vmatpush1.msra.mxu0 %v493
  %1570 = vmatprep.subr.mxu0 %v502
  %1571 = vmatpush1.msra.mxu0 %v501
  %1572 = vmatprep.subr.mxu0 %v510
  %1573 = vmatpush1.msra.mxu0 %v509
  %1574 = vmatprep.subr.mxu0 %v518
  %1575 = vmatpush1.msra.mxu0 %v517
  %1576 = vmatprep.subr.mxu0 %v526
  %1577 = vmatpush1.msra.mxu0 %v525
  %1578 = vmatprep.subr.mxu0 %v534
  %1579 = vmatpush1.msra.mxu0 %v533
  %1580 = vmatprep.subr.mxu0 %v542
  %1581 = vmatpush1.msra.mxu0 %v541
  %1582 = vmatprep.mubr.f32.mxu0 %v29
  %1583 = vmatmul.mubr.f32.gmra.mrb[0].mxu0 %v28
  %v1584 = vpop.f32.mrb[0].mxu0
  %v1585 = vadd.f32 %v1514, %v1584
  %v1586 = vpop.f32.mrb[0].mxu0
  %v1587 = vadd.f32 %v1516, %v1586
  %1588 = vdwg.mxu0
  %1589 = vmatprep.subr.mxu0 %v550
  %1590 = vmatpush1.msra.mxu0 %v549
  %1591 = vmatprep.subr.mxu0 %v558
  %1592 = vmatpush1.msra.mxu0 %v557
  %1593 = vmatprep.subr.mxu0 %v566
  %1594 = vmatpush1.msra.mxu0 %v565
  %1595 = vmatprep.subr.mxu0 %v574
  %1596 = vmatpush1.msra.mxu0 %v573
  %1597 = vmatprep.subr.mxu0 %v582
  %1598 = vmatpush1.msra.mxu0 %v581
  %1599 = vmatprep.subr.mxu0 %v590
  %1600 = vmatpush1.msra.mxu0 %v589
  %1601 = vmatprep.subr.mxu0 %v598
  %1602 = vmatpush1.msra.mxu0 %v597
  %1603 = vmatprep.subr.mxu0 %v606
  %1604 = vmatpush1.msra.mxu0 %v605
  %1605 = vmatprep.subr.mxu0 %v614
  %1606 = vmatpush1.msra.mxu0 %v613
  %1607 = vmatprep.subr.mxu0 %v622
  %1608 = vmatpush1.msra.mxu0 %v621
  %1609 = vmatprep.subr.mxu0 %v630
  %1610 = vmatpush1.msra.mxu0 %v629
  %1611 = vmatprep.subr.mxu0 %v638
  %1612 = vmatpush1.msra.mxu0 %v637
  %1613 = vmatprep.subr.mxu0 %v646
  %1614 = vmatpush1.msra.mxu0 %v645
  %1615 = vmatprep.subr.mxu0 %v654
  %1616 = vmatpush1.msra.mxu0 %v653
  %1617 = vmatprep.subr.mxu0 %v662
  %1618 = vmatpush1.msra.mxu0 %v661
  %1619 = vmatprep.subr.mxu0 %v670
  %1620 = vmatpush1.msra.mxu0 %v669
  %1621 = vmatprep.subr.mxu0 %v678
  %1622 = vmatpush1.msra.mxu0 %v677
  %1623 = vmatprep.subr.mxu0 %v686
  %1624 = vmatpush1.msra.mxu0 %v685
  %1625 = vmatprep.subr.mxu0 %v694
  %1626 = vmatpush1.msra.mxu0 %v693
  %1627 = vmatprep.subr.mxu0 %v702
  %1628 = vmatpush1.msra.mxu0 %v701
  %1629 = vmatprep.subr.mxu0 %v710
  %1630 = vmatpush1.msra.mxu0 %v709
  %1631 = vmatprep.subr.mxu0 %v718
  %1632 = vmatpush1.msra.mxu0 %v717
  %1633 = vmatprep.subr.mxu0 %v726
  %1634 = vmatpush1.msra.mxu0 %v725
  %1635 = vmatprep.subr.mxu0 %v734
  %1636 = vmatpush1.msra.mxu0 %v733
  %1637 = vmatprep.subr.mxu0 %v742
  %1638 = vmatpush1.msra.mxu0 %v741
  %1639 = vmatprep.subr.mxu0 %v750
  %1640 = vmatpush1.msra.mxu0 %v749
  %1641 = vmatprep.subr.mxu0 %v758
  %1642 = vmatpush1.msra.mxu0 %v757
  %1643 = vmatprep.subr.mxu0 %v766
  %1644 = vmatpush1.msra.mxu0 %v765
  %1645 = vmatprep.subr.mxu0 %v774
  %1646 = vmatpush1.msra.mxu0 %v773
  %1647 = vmatprep.subr.mxu0 %v782
  %1648 = vmatpush1.msra.mxu0 %v781
  %1649 = vmatprep.subr.mxu0 %v790
  %1650 = vmatpush1.msra.mxu0 %v789
  %1651 = vmatprep.subr.mxu0 %v798
  %1652 = vmatpush1.msra.mxu0 %v797
  %1653 = vmatprep.mubr.f32.mxu0 %v31
  %1654 = vmatmul.mubr.f32.gmra.mrb[0].mxu0 %v30
  %v1655 = vpop.f32.mrb[0].mxu0
  %v1656 = vadd.f32 %v1585, %v1655
  %v1657 = vpop.f32.mrb[0].mxu0
  %v1658 = vadd.f32 %v1587, %v1657
  %1659 = vdwg.mxu0
  %1660 = vmatprep.subr.mxu0 %v806
  %1661 = vmatpush1.msra.mxu0 %v805
  %1662 = vmatprep.subr.mxu0 %v814
  %1663 = vmatpush1.msra.mxu0 %v813
  %1664 = vmatprep.subr.mxu0 %v822
  %1665 = vmatpush1.msra.mxu0 %v821
  %1666 = vmatprep.subr.mxu0 %v830
  %1667 = vmatpush1.msra.mxu0 %v829
  %1668 = vmatprep.subr.mxu0 0.0
  %1669 = vmatpush1.msra.mxu0 0.0
  %1670 = vmatprep.subr.mxu0 0.0
  %1671 = vmatpush1.msra.mxu0 0.0
  %1672 = vmatprep.subr.mxu0 0.0
  %1673 = vmatpush1.msra.mxu0 0.0
  %1674 = vmatprep.subr.mxu0 0.0
  %1675 = vmatpush1.msra.mxu0 0.0
  %1676 = vmatprep.subr.mxu0 0.0
  %1677 = vmatpush1.msra.mxu0 0.0
  %1678 = vmatprep.subr.mxu0 0.0
  %1679 = vmatpush1.msra.mxu0 0.0
  %1680 = vmatprep.subr.mxu0 0.0
  %1681 = vmatpush1.msra.mxu0 0.0
  %1682 = vmatprep.subr.mxu0 0.0
  %1683 = vmatpush1.msra.mxu0 0.0
  %1684 = vmatprep.subr.mxu0 0.0
  %1685 = vmatpush1.msra.mxu0 0.0
  %1686 = vmatprep.subr.mxu0 0.0
  %1687 = vmatpush1.msra.mxu0 0.0
  %1688 = vmatprep.subr.mxu0 0.0
  %1689 = vmatpush1.msra.mxu0 0.0
  %1690 = vmatprep.subr.mxu0 0.0
  %1691 = vmatpush1.msra.mxu0 0.0
  %1692 = vmatprep.subr.mxu0 0.0
  %1693 = vmatpush1.msra.mxu0 0.0
  %1694 = vmatprep.subr.mxu0 0.0
  %1695 = vmatpush1.msra.mxu0 0.0
  %1696 = vmatprep.subr.mxu0 0.0
  %1697 = vmatpush1.msra.mxu0 0.0
  %1698 = vmatprep.subr.mxu0 0.0
  %1699 = vmatpush1.msra.mxu0 0.0
  %1700 = vmatprep.subr.mxu0 0.0
  %1701 = vmatpush1.msra.mxu0 0.0
  %1702 = vmatprep.subr.mxu0 0.0
  %1703 = vmatpush1.msra.mxu0 0.0
  %1704 = vmatprep.subr.mxu0 0.0
  %1705 = vmatpush1.msra.mxu0 0.0
  %1706 = vmatprep.subr.mxu0 0.0
  %1707 = vmatpush1.msra.mxu0 0.0
  %1708 = vmatprep.subr.mxu0 0.0
  %1709 = vmatpush1.msra.mxu0 0.0
  %1710 = vmatprep.subr.mxu0 0.0
  %1711 = vmatpush1.msra.mxu0 0.0
  %1712 = vmatprep.subr.mxu0 0.0
  %1713 = vmatpush1.msra.mxu0 0.0
  %1714 = vmatprep.subr.mxu0 0.0
  %1715 = vmatpush1.msra.mxu0 0.0
  %1716 = vmatprep.subr.mxu0 0.0
  %1717 = vmatpush1.msra.mxu0 0.0
  %1718 = vmatprep.subr.mxu0 0.0
  %1719 = vmatpush1.msra.mxu0 0.0
  %1720 = vmatprep.subr.mxu0 0.0
  %1721 = vmatpush1.msra.mxu0 0.0
  %1722 = vmatprep.subr.mxu0 0.0
  %1723 = vmatpush1.msra.mxu0 0.0
  %1724 = vmatprep.mubr.f32.mxu0 0.0
  %1725 = vmatmul.mubr.f32.gmra.mrb[0].mxu0 %v877
  %v1726 = vpop.f32.mrb[0].mxu0
  %v1727 = vadd.f32 %v1656, %v1726
  %v1728 = vpop.f32.mrb[0].mxu0
  %v1729 = vadd.f32 %v1658, %v1728
  %1730 = vdwg.mxu0
  %1731 = vmatprep.subr.mxu0 %v40
  %1732 = vmatpush1.msra.mxu0 %v39
  %1733 = vmatprep.subr.mxu0 %v48
  %1734 = vmatpush1.msra.mxu0 %v47
  %1735 = vmatprep.subr.mxu0 %v56
  %1736 = vmatpush1.msra.mxu0 %v55
  %1737 = vmatprep.subr.mxu0 %v64
  %1738 = vmatpush1.msra.mxu0 %v63
  %1739 = vmatprep.subr.mxu0 %v72
  %1740 = vmatpush1.msra.mxu0 %v71
  %1741 = vmatprep.subr.mxu0 %v80
  %1742 = vmatpush1.msra.mxu0 %v79
  %1743 = vmatprep.subr.mxu0 %v88
  %1744 = vmatpush1.msra.mxu0 %v87
  %1745 = vmatprep.subr.mxu0 %v96
  %1746 = vmatpush1.msra.mxu0 %v95
  %1747 = vmatprep.subr.mxu0 %v104
  %1748 = vmatpush1.msra.mxu0 %v103
  %1749 = vmatprep.subr.mxu0 %v112
  %1750 = vmatpush1.msra.mxu0 %v111
  %1751 = vmatprep.subr.mxu0 %v120
  %1752 = vmatpush1.msra.mxu0 %v119
  %1753 = vmatprep.subr.mxu0 %v128
  %1754 = vmatpush1.msra.mxu0 %v127
  %1755 = vmatprep.subr.mxu0 %v136
  %1756 = vmatpush1.msra.mxu0 %v135
  %1757 = vmatprep.subr.mxu0 %v144
  %1758 = vmatpush1.msra.mxu0 %v143
  %1759 = vmatprep.subr.mxu0 %v152
  %1760 = vmatpush1.msra.mxu0 %v151
  %1761 = vmatprep.subr.mxu0 %v160
  %1762 = vmatpush1.msra.mxu0 %v159
  %1763 = vmatprep.subr.mxu0 %v168
  %1764 = vmatpush1.msra.mxu0 %v167
  %1765 = vmatprep.subr.mxu0 %v176
  %1766 = vmatpush1.msra.mxu0 %v175
  %1767 = vmatprep.subr.mxu0 %v184
  %1768 = vmatpush1.msra.mxu0 %v183
  %1769 = vmatprep.subr.mxu0 %v192
  %1770 = vmatpush1.msra.mxu0 %v191
  %1771 = vmatprep.subr.mxu0 %v200
  %1772 = vmatpush1.msra.mxu0 %v199
  %1773 = vmatprep.subr.mxu0 %v208
  %1774 = vmatpush1.msra.mxu0 %v207
  %1775 = vmatprep.subr.mxu0 %v216
  %1776 = vmatpush1.msra.mxu0 %v215
  %1777 = vmatprep.subr.mxu0 %v224
  %1778 = vmatpush1.msra.mxu0 %v223
  %1779 = vmatprep.subr.mxu0 %v232
  %1780 = vmatpush1.msra.mxu0 %v231
  %1781 = vmatprep.subr.mxu0 %v240
  %1782 = vmatpush1.msra.mxu0 %v239
  %1783 = vmatprep.subr.mxu0 %v248
  %1784 = vmatpush1.msra.mxu0 %v247
  %1785 = vmatprep.subr.mxu0 %v256
  %1786 = vmatpush1.msra.mxu0 %v255
  %1787 = vmatprep.subr.mxu0 %v264
  %1788 = vmatpush1.msra.mxu0 %v263
  %1789 = vmatprep.subr.mxu0 %v272
  %1790 = vmatpush1.msra.mxu0 %v271
  %1791 = vmatprep.subr.mxu0 %v280
  %1792 = vmatpush1.msra.mxu0 %v279
  %1793 = vmatprep.subr.mxu0 %v288
  %1794 = vmatpush1.msra.mxu0 %v287
  %1795 = vmatprep.mubr.f32.mxu0 %v27
  %1796 = vmatmul.mubr.f32.gmra.mrb[0].mxu0 %v26
  %v1797 = vpop.f32.mrb[0].mxu0
  %v1798 = vadd.f32 %v862, %v1797
  %v1799 = vpop.f32.mrb[0].mxu0
  %v1800 = vadd.f32 %v866, %v1799
  %1801 = vdwg.mxu0
  %1802 = vmatprep.subr.mxu0 %v296
  %1803 = vmatpush1.msra.mxu0 %v295
  %1804 = vmatprep.subr.mxu0 %v304
  %1805 = vmatpush1.msra.mxu0 %v303
  %1806 = vmatprep.subr.mxu0 %v312
  %1807 = vmatpush1.msra.mxu0 %v311
  %1808 = vmatprep.subr.mxu0 %v320
  %1809 = vmatpush1.msra.mxu0 %v319
  %1810 = vmatprep.subr.mxu0 %v328
  %1811 = vmatpush1.msra.mxu0 %v327
  %1812 = vmatprep.subr.mxu0 %v336
  %1813 = vmatpush1.msra.mxu0 %v335
  %1814 = vmatprep.subr.mxu0 %v344
  %1815 = vmatpush1.msra.mxu0 %v343
  %1816 = vmatprep.subr.mxu0 %v352
  %1817 = vmatpush1.msra.mxu0 %v351
  %1818 = vmatprep.subr.mxu0 %v360
  %1819 = vmatpush1.msra.mxu0 %v359
  %1820 = vmatprep.subr.mxu0 %v368
  %1821 = vmatpush1.msra.mxu0 %v367
  %1822 = vmatprep.subr.mxu0 %v376
  %1823 = vmatpush1.msra.mxu0 %v375
  %1824 = vmatprep.subr.mxu0 %v384
  %1825 = vmatpush1.msra.mxu0 %v383
  %1826 = vmatprep.subr.mxu0 %v392
  %1827 = vmatpush1.msra.mxu0 %v391
  %1828 = vmatprep.subr.mxu0 %v400
  %1829 = vmatpush1.msra.mxu0 %v399
  %1830 = vmatprep.subr.mxu0 %v408
  %1831 = vmatpush1.msra.mxu0 %v407
  %1832 = vmatprep.subr.mxu0 %v416
  %1833 = vmatpush1.msra.mxu0 %v415
  %1834 = vmatprep.subr.mxu0 %v424
  %1835 = vmatpush1.msra.mxu0 %v423
  %1836 = vmatprep.subr.mxu0 %v432
  %1837 = vmatpush1.msra.mxu0 %v431
  %1838 = vmatprep.subr.mxu0 %v440
  %1839 = vmatpush1.msra.mxu0 %v439
  %1840 = vmatprep.subr.mxu0 %v448
  %1841 = vmatpush1.msra.mxu0 %v447
  %1842 = vmatprep.subr.mxu0 %v456
  %1843 = vmatpush1.msra.mxu0 %v455
  %1844 = vmatprep.subr.mxu0 %v464
  %1845 = vmatpush1.msra.mxu0 %v463
  %1846 = vmatprep.subr.mxu0 %v472
  %1847 = vmatpush1.msra.mxu0 %v471
  %1848 = vmatprep.subr.mxu0 %v480
  %1849 = vmatpush1.msra.mxu0 %v479
  %1850 = vmatprep.subr.mxu0 %v488
  %1851 = vmatpush1.msra.mxu0 %v487
  %1852 = vmatprep.subr.mxu0 %v496
  %1853 = vmatpush1.msra.mxu0 %v495
  %1854 = vmatprep.subr.mxu0 %v504
  %1855 = vmatpush1.msra.mxu0 %v503
  %1856 = vmatprep.subr.mxu0 %v512
  %1857 = vmatpush1.msra.mxu0 %v511
  %1858 = vmatprep.subr.mxu0 %v520
  %1859 = vmatpush1.msra.mxu0 %v519
  %1860 = vmatprep.subr.mxu0 %v528
  %1861 = vmatpush1.msra.mxu0 %v527
  %1862 = vmatprep.subr.mxu0 %v536
  %1863 = vmatpush1.msra.mxu0 %v535
  %1864 = vmatprep.subr.mxu0 %v544
  %1865 = vmatpush1.msra.mxu0 %v543
  %1866 = vmatprep.mubr.f32.mxu0 %v29
  %1867 = vmatmul.mubr.f32.gmra.mrb[0].mxu0 %v28
  %v1868 = vpop.f32.mrb[0].mxu0
  %v1869 = vadd.f32 %v1798, %v1868
  %v1870 = vpop.f32.mrb[0].mxu0
  %v1871 = vadd.f32 %v1800, %v1870
  %1872 = vdwg.mxu0
  %1873 = vmatprep.subr.mxu0 %v552
  %1874 = vmatpush1.msra.mxu0 %v551
  %1875 = vmatprep.subr.mxu0 %v560
  %1876 = vmatpush1.msra.mxu0 %v559
  %1877 = vmatprep.subr.mxu0 %v568
  %1878 = vmatpush1.msra.mxu0 %v567
  %1879 = vmatprep.subr.mxu0 %v576
  %1880 = vmatpush1.msra.mxu0 %v575
  %1881 = vmatprep.subr.mxu0 %v584
  %1882 = vmatpush1.msra.mxu0 %v583
  %1883 = vmatprep.subr.mxu0 %v592
  %1884 = vmatpush1.msra.mxu0 %v591
  %1885 = vmatprep.subr.mxu0 %v600
  %1886 = vmatpush1.msra.mxu0 %v599
  %1887 = vmatprep.subr.mxu0 %v608
  %1888 = vmatpush1.msra.mxu0 %v607
  %1889 = vmatprep.subr.mxu0 %v616
  %1890 = vmatpush1.msra.mxu0 %v615
  %1891 = vmatprep.subr.mxu0 %v624
  %1892 = vmatpush1.msra.mxu0 %v623
  %1893 = vmatprep.subr.mxu0 %v632
  %1894 = vmatpush1.msra.mxu0 %v631
  %1895 = vmatprep.subr.mxu0 %v640
  %1896 = vmatpush1.msra.mxu0 %v639
  %1897 = vmatprep.subr.mxu0 %v648
  %1898 = vmatpush1.msra.mxu0 %v647
  %1899 = vmatprep.subr.mxu0 %v656
  %1900 = vmatpush1.msra.mxu0 %v655
  %1901 = vmatprep.subr.mxu0 %v664
  %1902 = vmatpush1.msra.mxu0 %v663
  %1903 = vmatprep.subr.mxu0 %v672
  %1904 = vmatpush1.msra.mxu0 %v671
  %1905 = vmatprep.subr.mxu0 %v680
  %1906 = vmatpush1.msra.mxu0 %v679
  %1907 = vmatprep.subr.mxu0 %v688
  %1908 = vmatpush1.msra.mxu0 %v687
  %1909 = vmatprep.subr.mxu0 %v696
  %1910 = vmatpush1.msra.mxu0 %v695
  %1911 = vmatprep.subr.mxu0 %v704
  %1912 = vmatpush1.msra.mxu0 %v703
  %1913 = vmatprep.subr.mxu0 %v712
  %1914 = vmatpush1.msra.mxu0 %v711
  %1915 = vmatprep.subr.mxu0 %v720
  %1916 = vmatpush1.msra.mxu0 %v719
  %1917 = vmatprep.subr.mxu0 %v728
  %1918 = vmatpush1.msra.mxu0 %v727
  %1919 = vmatprep.subr.mxu0 %v736
  %1920 = vmatpush1.msra.mxu0 %v735
  %1921 = vmatprep.subr.mxu0 %v744
  %1922 = vmatpush1.msra.mxu0 %v743
  %1923 = vmatprep.subr.mxu0 %v752
  %1924 = vmatpush1.msra.mxu0 %v751
  %1925 = vmatprep.subr.mxu0 %v760
  %1926 = vmatpush1.msra.mxu0 %v759
  %1927 = vmatprep.subr.mxu0 %v768
  %1928 = vmatpush1.msra.mxu0 %v767
  %1929 = vmatprep.subr.mxu0 %v776
  %1930 = vmatpush1.msra.mxu0 %v775
  %1931 = vmatprep.subr.mxu0 %v784
  %1932 = vmatpush1.msra.mxu0 %v783
  %1933 = vmatprep.subr.mxu0 %v792
  %1934 = vmatpush1.msra.mxu0 %v791
  %1935 = vmatprep.subr.mxu0 %v800
  %1936 = vmatpush1.msra.mxu0 %v799
  %1937 = vmatprep.mubr.f32.mxu0 %v31
  %1938 = vmatmul.mubr.f32.gmra.mrb[0].mxu0 %v30
  %v1939 = vpop.f32.mrb[0].mxu0
  %v1940 = vadd.f32 %v1869, %v1939
  %v1941 = vpop.f32.mrb[0].mxu0
  %v1942 = vadd.f32 %v1871, %v1941
  %1943 = vdwg.mxu0
  %1944 = vmatprep.subr.mxu0 %v808
  %1945 = vmatpush1.msra.mxu0 %v807
  %1946 = vmatprep.subr.mxu0 %v816
  %1947 = vmatpush1.msra.mxu0 %v815
  %1948 = vmatprep.subr.mxu0 %v824
  %1949 = vmatpush1.msra.mxu0 %v823
  %1950 = vmatprep.subr.mxu0 %v832
  %1951 = vmatpush1.msra.mxu0 %v831
  %1952 = vmatprep.subr.mxu0 0.0
  %1953 = vmatpush1.msra.mxu0 0.0
  %1954 = vmatprep.subr.mxu0 0.0
  %1955 = vmatpush1.msra.mxu0 0.0
  %1956 = vmatprep.subr.mxu0 0.0
  %1957 = vmatpush1.msra.mxu0 0.0
  %1958 = vmatprep.subr.mxu0 0.0
  %1959 = vmatpush1.msra.mxu0 0.0
  %1960 = vmatprep.subr.mxu0 0.0
  %1961 = vmatpush1.msra.mxu0 0.0
  %1962 = vmatprep.subr.mxu0 0.0
  %1963 = vmatpush1.msra.mxu0 0.0
  %1964 = vmatprep.subr.mxu0 0.0
  %1965 = vmatpush1.msra.mxu0 0.0
  %1966 = vmatprep.subr.mxu0 0.0
  %1967 = vmatpush1.msra.mxu0 0.0
  %1968 = vmatprep.subr.mxu0 0.0
  %1969 = vmatpush1.msra.mxu0 0.0
  %1970 = vmatprep.subr.mxu0 0.0
  %1971 = vmatpush1.msra.mxu0 0.0
  %1972 = vmatprep.subr.mxu0 0.0
  %1973 = vmatpush1.msra.mxu0 0.0
  %1974 = vmatprep.subr.mxu0 0.0
  %1975 = vmatpush1.msra.mxu0 0.0
  %1976 = vmatprep.subr.mxu0 0.0
  %1977 = vmatpush1.msra.mxu0 0.0
  %1978 = vmatprep.subr.mxu0 0.0
  %1979 = vmatpush1.msra.mxu0 0.0
  %1980 = vmatprep.subr.mxu0 0.0
  %1981 = vmatpush1.msra.mxu0 0.0
  %1982 = vmatprep.subr.mxu0 0.0
  %1983 = vmatpush1.msra.mxu0 0.0
  %1984 = vmatprep.subr.mxu0 0.0
  %1985 = vmatpush1.msra.mxu0 0.0
  %1986 = vmatprep.subr.mxu0 0.0
  %1987 = vmatpush1.msra.mxu0 0.0
  %1988 = vmatprep.subr.mxu0 0.0
  %1989 = vmatpush1.msra.mxu0 0.0
  %1990 = vmatprep.subr.mxu0 0.0
  %1991 = vmatpush1.msra.mxu0 0.0
  %1992 = vmatprep.subr.mxu0 0.0
  %1993 = vmatpush1.msra.mxu0 0.0
  %1994 = vmatprep.subr.mxu0 0.0
  %1995 = vmatpush1.msra.mxu0 0.0
  %1996 = vmatprep.subr.mxu0 0.0
  %1997 = vmatpush1.msra.mxu0 0.0
  %1998 = vmatprep.subr.mxu0 0.0
  %1999 = vmatpush1.msra.mxu0 0.0
  %2000 = vmatprep.subr.mxu0 0.0
  %2001 = vmatpush1.msra.mxu0 0.0
  %2002 = vmatprep.subr.mxu0 0.0
  %2003 = vmatpush1.msra.mxu0 0.0
  %2004 = vmatprep.subr.mxu0 0.0
  %2005 = vmatpush1.msra.mxu0 0.0
  %2006 = vmatprep.subr.mxu0 0.0
  %2007 = vmatpush1.msra.mxu0 0.0
  %2008 = vmatprep.mubr.f32.mxu0 0.0
  %2009 = vmatmul.mubr.f32.gmra.mrb[0].mxu0 %v877
  %v2010 = vpop.f32.mrb[0].mxu0
  %v2011 = vadd.f32 %v1940, %v2010
  %v2012 = vpop.f32.mrb[0].mxu0
  %v2013 = vadd.f32 %v1942, %v2012
  %2014 = vdwg.mxu0
  %v2015 = vmax.f32 %v1159, 0.0
  %v2016 = vmax.f32 %v1161, 0.0
  %v2017 = vmax.f32 %v1443, 0.0
  %v2018 = vmax.f32 %v1445, 0.0
  %v2019 = vmax.f32 %v1727, 0.0
  %v2020 = vmax.f32 %v1729, 0.0
  %v2021 = vmax.f32 %v2011, 0.0
  %v2022 = vmax.f32 %v2013, 0.0
  %v2023 = vld [vmem:[%s3] sm:$0xff]
  %v2024 = vld [vmem:[%s3 + $0x8] sm:$0xff]
  %v2025 = vld [vmem:[%s3 + $0x10] sm:$0xff]
  %v2026 = vld [vmem:[%s3 + $0x18] sm:$0xff]
  %v2027 = vld [vmem:[%s3 + $0x20] sm:$0xff]
  %v2028 = vld [vmem:[%s3 + $0x28] sm:$0xff]
  %v2029 = vld [vmem:[%s3 + $0x30] sm:$0xff]
  %v2030 = vld [vmem:[%s3 + $0x38] sm:$0xff]
  %v2031 = vld [vmem:[%s3 + $0x40] sm:$0xff]
  %v2032 = vld [vmem:[%s3 + $0x48] sm:$0xff]
  %v2033 = vld [vmem:[%s3 + $0x50] sm:$0xff]
  %v2034 = vld [vmem:[%s3 + $0x58] sm:$0xff]
  %v2035 = vld [vmem:[%s3 + $0x60] sm:$0xff]
  %v2036 = vld [vmem:[%s3 + $0x68] sm:$0xff]
  %v2037 = vld [vmem:[%s3 + $0x70] sm:$0xff]
  %v2038 = vld [vmem:[%s3 + $0x78] sm:$0xff]
  %v2039 = vld [vmem:[%s3 + $0x80] sm:$0xff]
  %v2040 = vld [vmem:[%s3 + $0x88] sm:$0xff]
  %v2041 = vld [vmem:[%s3 + $0x90] sm:$0xff]
  %v2042 = vld [vmem:[%s3 + $0x98] sm:$0xff]
  %v2043 = vld [vmem:[%s3 + $0xa0] sm:$0xff]
  %v2044 = vld [vmem:[%s3 + $0xa8] sm:$0xff]
  %v2045 = vld [vmem:[%s3 + $0xb0] sm:$0xff]
  %v2046 = vld [vmem:[%s3 + $0xb8] sm:$0xff]
  %v2047 = vld [vmem:[%s3 + $0xc0] sm:$0xff]
  %v2048 = vld [vmem:[%s3 + $0xc8] sm:$0xff]
  %v2049 = vld [vmem:[%s3 + $0xd0] sm:$0xff]
  %v2050 = vld [vmem:[%s3 + $0xd8] sm:$0xff]
  %v2051 = vld [vmem:[%s3 + $0xe0] sm:$0xff]
  %v2052 = vld [vmem:[%s3 + $0xe8] sm:$0xff]
  %v2053 = vld [vmem:[%s3 + $0xf0] sm:$0xff]
  %v2054 = vld [vmem:[%s3 + $0xf8] sm:$0xff]
  %v2055 = vld [vmem:[%s3 + $0x100] sm:$0xff]
  %v2056 = vld [vmem:[%s3 + $0x108] sm:$0xff]
  %v2057 = vld [vmem:[%s3 + $0x110] sm:$0xff]
  %v2058 = vld [vmem:[%s3 + $0x118] sm:$0xff]
  %v2059 = vld [vmem:[%s3 + $0x120] sm:$0xff]
  %v2060 = vld [vmem:[%s3 + $0x128] sm:$0xff]
  %v2061 = vld [vmem:[%s3 + $0x130] sm:$0xff]
  %v2062 = vld [vmem:[%s3 + $0x138] sm:$0xff]
  %v2063 = vld [vmem:[%s3 + $0x140] sm:$0xff]
  %v2064 = vld [vmem:[%s3 + $0x148] sm:$0xff]
  %v2065 = vld [vmem:[%s3 + $0x150] sm:$0xff]
  %v2066 = vld [vmem:[%s3 + $0x158] sm:$0xff]
  %v2067 = vld [vmem:[%s3 + $0x160] sm:$0xff]
  %v2068 = vld [vmem:[%s3 + $0x168] sm:$0xff]
  %v2069 = vld [vmem:[%s3 + $0x170] sm:$0xff]
  %v2070 = vld [vmem:[%s3 + $0x178] sm:$0xff]
  %v2071 = vld [vmem:[%s3 + $0x180] sm:$0xff]
  %v2072 = vld [vmem:[%s3 + $0x188] sm:$0xff]
  %v2073 = vld [vmem:[%s3 + $0x190] sm:$0xff]
  %v2074 = vld [vmem:[%s3 + $0x198] sm:$0xff]
  %v2075 = vld [vmem:[%s3 + $0x1a0] sm:$0xff]
  %v2076 = vld [vmem:[%s3 + $0x1a8] sm:$0xff]
  %v2077 = vld [vmem:[%s3 + $0x1b0] sm:$0xff]
  %v2078 = vld [vmem:[%s3 + $0x1b8] sm:$0xff]
  %v2079 = vld [vmem:[%s3 + $0x1c0] sm:$0xff]
  %v2080 = vld [vmem:[%s3 + $0x1c8] sm:$0xff]
  %v2081 = vld [vmem:[%s3 + $0x1d0] sm:$0xff]
  %v2082 = vld [vmem:[%s3 + $0x1d8] sm:$0xff]
  %v2083 = vld [vmem:[%s3 + $0x1e0] sm:$0xff]
  %v2084 = vld [vmem:[%s3 + $0x1e8] sm:$0xff]
  %v2085 = vld [vmem:[%s3 + $0x1f0] sm:$0xff]
  %v2086 = vld [vmem:[%s3 + $0x1f8] sm:$0xff]
  %v2087 = vld [vmem:[%s3 + $0x200] sm:$0xff]
  %v2088 = vld [vmem:[%s3 + $0x208] sm:$0xff]
  %v2089 = vld [vmem:[%s3 + $0x210] sm:$0xff]
  %v2090 = vld [vmem:[%s3 + $0x218] sm:$0xff]
  %v2091 = vld [vmem:[%s3 + $0x220] sm:$0xff]
  %v2092 = vld [vmem:[%s3 + $0x228] sm:$0xff]
  %v2093 = vld [vmem:[%s3 + $0x230] sm:$0xff]
  %v2094 = vld [vmem:[%s3 + $0x238] sm:$0xff]
  %v2095 = vld [vmem:[%s3 + $0x240] sm:$0xff]
  %v2096 = vld [vmem:[%s3 + $0x248] sm:$0xff]
  %v2097 = vld [vmem:[%s3 + $0x250] sm:$0xff]
  %v2098 = vld [vmem:[%s3 + $0x258] sm:$0xff]
  %v2099 = vld [vmem:[%s3 + $0x260] sm:$0xff]
  %v2100 = vld [vmem:[%s3 + $0x268] sm:$0xff]
  %v2101 = vld [vmem:[%s3 + $0x270] sm:$0xff]
  %v2102 = vld [vmem:[%s3 + $0x278] sm:$0xff]
  %v2103 = vld [vmem:[%s3 + $0x280] sm:$0xff]
  %v2104 = vld [vmem:[%s3 + $0x288] sm:$0xff]
  %v2105 = vld [vmem:[%s3 + $0x290] sm:$0xff]
  %v2106 = vld [vmem:[%s3 + $0x298] sm:$0xff]
  %v2107 = vld [vmem:[%s3 + $0x2a0] sm:$0xff]
  %v2108 = vld [vmem:[%s3 + $0x2a8] sm:$0xff]
  %v2109 = vld [vmem:[%s3 + $0x2b0] sm:$0xff]
  %v2110 = vld [vmem:[%s3 + $0x2b8] sm:$0xff]
  %v2111 = vld [vmem:[%s3 + $0x2c0] sm:$0xff]
  %v2112 = vld [vmem:[%s3 + $0x2c8] sm:$0xff]
  %v2113 = vld [vmem:[%s3 + $0x2d0] sm:$0xff]
  %v2114 = vld [vmem:[%s3 + $0x2d8] sm:$0xff]
  %v2115 = vld [vmem:[%s3 + $0x2e0] sm:$0xff]
  %v2116 = vld [vmem:[%s3 + $0x2e8] sm:$0xff]
  %v2117 = vld [vmem:[%s3 + $0x2f0] sm:$0xff]
  %v2118 = vld [vmem:[%s3 + $0x2f8] sm:$0xff]
  %v2119 = vld [vmem:[%s3 + $0x300] sm:$0xff]
  %v2120 = vld [vmem:[%s3 + $0x308] sm:$0xff]
  %v2121 = vld [vmem:[%s3 + $0x310] sm:$0xff]
  %v2122 = vld [vmem:[%s3 + $0x318] sm:$0xff]
  %v2123 = vld [vmem:[%s3 + $0x320] sm:$0xff]
  %v2124 = vld [vmem:[%s3 + $0x328] sm:$0xff]
  %v2125 = vld [vmem:[%s3 + $0x330] sm:$0xff]
  %v2126 = vld [vmem:[%s3 + $0x338] sm:$0xff]
  %v2127 = vld [vmem:[%s3 + $0x340] sm:$0xff]
  %v2128 = vld [vmem:[%s3 + $0x348] sm:$0xff]
  %v2129 = vld [vmem:[%s3 + $0x350] sm:$0xff]
  %v2130 = vld [vmem:[%s3 + $0x358] sm:$0xff]
  %v2131 = vld [vmem:[%s3 + $0x360] sm:$0xff]
  %v2132 = vld [vmem:[%s3 + $0x368] sm:$0xff]
  %v2133 = vld [vmem:[%s3 + $0x370] sm:$0xff]
  %v2134 = vld [vmem:[%s3 + $0x378] sm:$0xff]
  %v2135 = vld [vmem:[%s3 + $0x380] sm:$0xff]
  %v2136 = vld [vmem:[%s3 + $0x388] sm:$0xff]
  %v2137 = vld [vmem:[%s3 + $0x390] sm:$0xff]
  %v2138 = vld [vmem:[%s3 + $0x398] sm:$0xff]
  %v2139 = vld [vmem:[%s3 + $0x3a0] sm:$0xff]
  %v2140 = vld [vmem:[%s3 + $0x3a8] sm:$0xff]
  %v2141 = vld [vmem:[%s3 + $0x3b0] sm:$0xff]
  %v2142 = vld [vmem:[%s3 + $0x3b8] sm:$0xff]
  %v2143 = vld [vmem:[%s3 + $0x3c0] sm:$0xff]
  %v2144 = vld [vmem:[%s3 + $0x3c8] sm:$0xff]
  %v2145 = vld [vmem:[%s3 + $0x3d0] sm:$0xff]
  %v2146 = vld [vmem:[%s3 + $0x3d8] sm:$0xff]
  %v2147 = vld [vmem:[%s3 + $0x3e0] sm:$0xff]
  %v2148 = vld [vmem:[%s4] sm:$0x1]
  %v2150 = vlaneseq
  %v2151 = vshrl.u32 %v2150, 7
  %v2152 = vsub.s32 0, %v2151
  %v2153 = vrot.slane %v2148, %v2152
  %vm2155 = vcmask 850944
  %v2157 = vsel %vm2155, %v2022, 0
  %2159 = vmatprep.subr.mxu0 0.0
  %2160 = vmatpush1.msra.mxu0 %v2023
  %2161 = vmatprep.subr.mxu0 0.0
  %2162 = vmatpush1.msra.mxu0 %v2024
  %2163 = vmatprep.subr.mxu0 0.0
  %2164 = vmatpush1.msra.mxu0 %v2025
  %2165 = vmatprep.subr.mxu0 0.0
  %2166 = vmatpush1.msra.mxu0 %v2026
  %2167 = vmatprep.subr.mxu0 0.0
  %2168 = vmatpush1.msra.mxu0 %v2027
  %2169 = vmatprep.subr.mxu0 0.0
  %2170 = vmatpush1.msra.mxu0 %v2028
  %2171 = vmatprep.subr.mxu0 0.0
  %2172 = vmatpush1.msra.mxu0 %v2029
  %2173 = vmatprep.subr.mxu0 0.0
  %2174 = vmatpush1.msra.mxu0 %v2030
  %2175 = vmatprep.subr.mxu0 0.0
  %2176 = vmatpush1.msra.mxu0 %v2031
  %2177 = vmatprep.subr.mxu0 0.0
  %2178 = vmatpush1.msra.mxu0 %v2032
  %2179 = vmatprep.subr.mxu0 0.0
  %2180 = vmatpush1.msra.mxu0 %v2033
  %2181 = vmatprep.subr.mxu0 0.0
  %2182 = vmatpush1.msra.mxu0 %v2034
  %2183 = vmatprep.subr.mxu0 0.0
  %2184 = vmatpush1.msra.mxu0 %v2035
  %2185 = vmatprep.subr.mxu0 0.0
  %2186 = vmatpush1.msra.mxu0 %v2036
  %2187 = vmatprep.subr.mxu0 0.0
  %2188 = vmatpush1.msra.mxu0 %v2037
  %2189 = vmatprep.subr.mxu0 0.0
  %2190 = vmatpush1.msra.mxu0 %v2038
  %2191 = vmatprep.subr.mxu0 0.0
  %2192 = vmatpush1.msra.mxu0 %v2039
  %2193 = vmatprep.subr.mxu0 0.0
  %2194 = vmatpush1.msra.mxu0 %v2040
  %2195 = vmatprep.subr.mxu0 0.0
  %2196 = vmatpush1.msra.mxu0 %v2041
  %2197 = vmatprep.subr.mxu0 0.0
  %2198 = vmatpush1.msra.mxu0 %v2042
  %2199 = vmatprep.subr.mxu0 0.0
  %2200 = vmatpush1.msra.mxu0 %v2043
  %2201 = vmatprep.subr.mxu0 0.0
  %2202 = vmatpush1.msra.mxu0 %v2044
  %2203 = vmatprep.subr.mxu0 0.0
  %2204 = vmatpush1.msra.mxu0 %v2045
  %2205 = vmatprep.subr.mxu0 0.0
  %2206 = vmatpush1.msra.mxu0 %v2046
  %2207 = vmatprep.subr.mxu0 0.0
  %2208 = vmatpush1.msra.mxu0 %v2047
  %2209 = vmatprep.subr.mxu0 0.0
  %2210 = vmatpush1.msra.mxu0 %v2048
  %2211 = vmatprep.subr.mxu0 0.0
  %2212 = vmatpush1.msra.mxu0 %v2049
  %2213 = vmatprep.subr.mxu0 0.0
  %2214 = vmatpush1.msra.mxu0 %v2050
  %2215 = vmatprep.subr.mxu0 0.0
  %2216 = vmatpush1.msra.mxu0 %v2051
  %2217 = vmatprep.subr.mxu0 0.0
  %2218 = vmatpush1.msra.mxu0 %v2052
  %2219 = vmatprep.subr.mxu0 0.0
  %2220 = vmatpush1.msra.mxu0 %v2053
  %2221 = vmatprep.subr.mxu0 0.0
  %2222 = vmatpush1.msra.mxu0 %v2054
  %2223 = vmatprep.mubr.f32.mxu0 %v2016
  %2224 = vmatmul.mubr.f32.gmra.mrb[0].mxu0 %v2015
  %v2225 = vpop.f32.mrb[0].mxu0
  %v2226 = vadd.f32 %v2153, %v2225
  %v2227 = vpop.f32.mrb[0].mxu0
  %2228 = vdwg.mxu0
  %2229 = vmatprep.subr.mxu0 0.0
  %2230 = vmatpush1.msra.mxu0 %v2055
  %2231 = vmatprep.subr.mxu0 0.0
  %2232 = vmatpush1.msra.mxu0 %v2056
  %2233 = vmatprep.subr.mxu0 0.0
  %2234 = vmatpush1.msra.mxu0 %v2057
  %2235 = vmatprep.subr.mxu0 0.0
  %2236 = vmatpush1.msra.mxu0 %v2058
  %2237 = vmatprep.subr.mxu0 0.0
  %2238 = vmatpush1.msra.mxu0 %v2059
  %2239 = vmatprep.subr.mxu0 0.0
  %2240 = vmatpush1.msra.mxu0 %v2060
  %2241 = vmatprep.subr.mxu0 0.0
  %2242 = vmatpush1.msra.mxu0 %v2061
  %2243 = vmatprep.subr.mxu0 0.0
  %2244 = vmatpush1.msra.mxu0 %v2062
  %2245 = vmatprep.subr.mxu0 0.0
  %2246 = vmatpush1.msra.mxu0 %v2063
  %2247 = vmatprep.subr.mxu0 0.0
  %2248 = vmatpush1.msra.mxu0 %v2064
  %2249 = vmatprep.subr.mxu0 0.0
  %2250 = vmatpush1.msra.mxu0 %v2065
  %2251 = vmatprep.subr.mxu0 0.0
  %2252 = vmatpush1.msra.mxu0 %v2066
  %2253 = vmatprep.subr.mxu0 0.0
  %2254 = vmatpush1.msra.mxu0 %v2067
  %2255 = vmatprep.subr.mxu0 0.0
  %2256 = vmatpush1.msra.mxu0 %v2068
  %2257 = vmatprep.subr.mxu0 0.0
  %2258 = vmatpush1.msra.mxu0 %v2069
  %2259 = vmatprep.subr.mxu0 0.0
  %2260 = vmatpush1.msra.mxu0 %v2070
  %2261 = vmatprep.subr.mxu0 0.0
  %2262 = vmatpush1.msra.mxu0 %v2071
  %2263 = vmatprep.subr.mxu0 0.0
  %2264 = vmatpush1.msra.mxu0 %v2072
  %2265 = vmatprep.subr.mxu0 0.0
  %2266 = vmatpush1.msra.mxu0 %v2073
  %2267 = vmatprep.subr.mxu0 0.0
  %2268 = vmatpush1.msra.mxu0 %v2074
  %2269 = vmatprep.subr.mxu0 0.0
  %2270 = vmatpush1.msra.mxu0 %v2075
  %2271 = vmatprep.subr.mxu0 0.0
  %2272 = vmatpush1.msra.mxu0 %v2076
  %2273 = vmatprep.subr.mxu0 0.0
  %2274 = vmatpush1.msra.mxu0 %v2077
  %2275 = vmatprep.subr.mxu0 0.0
  %2276 = vmatpush1.msra.mxu0 %v2078
  %2277 = vmatprep.subr.mxu0 0.0
  %2278 = vmatpush1.msra.mxu0 %v2079
  %2279 = vmatprep.subr.mxu0 0.0
  %2280 = vmatpush1.msra.mxu0 %v2080
  %2281 = vmatprep.subr.mxu0 0.0
  %2282 = vmatpush1.msra.mxu0 %v2081
  %2283 = vmatprep.subr.mxu0 0.0
  %2284 = vmatpush1.msra.mxu0 %v2082
  %2285 = vmatprep.subr.mxu0 0.0
  %2286 = vmatpush1.msra.mxu0 %v2083
  %2287 = vmatprep.subr.mxu0 0.0
  %2288 = vmatpush1.msra.mxu0 %v2084
  %2289 = vmatprep.subr.mxu0 0.0
  %2290 = vmatpush1.msra.mxu0 %v2085
  %2291 = vmatprep.subr.mxu0 0.0
  %2292 = vmatpush1.msra.mxu0 %v2086
  %2293 = vmatprep.mubr.f32.mxu0 %v2018
  %2294 = vmatmul.mubr.f32.gmra.mrb[0].mxu0 %v2017
  %v2295 = vpop.f32.mrb[0].mxu0
  %v2296 = vadd.f32 %v2226, %v2295
  %v2297 = vpop.f32.mrb[0].mxu0
  %2298 = vdwg.mxu0
  %2299 = vmatprep.subr.mxu0 0.0
  %2300 = vmatpush1.msra.mxu0 %v2087
  %2301 = vmatprep.subr.mxu0 0.0
  %2302 = vmatpush1.msra.mxu0 %v2088
  %2303 = vmatprep.subr.mxu0 0.0
  %2304 = vmatpush1.msra.mxu0 %v2089
  %2305 = vmatprep.subr.mxu0 0.0
  %2306 = vmatpush1.msra.mxu0 %v2090
  %2307 = vmatprep.subr.mxu0 0.0
  %2308 = vmatpush1.msra.mxu0 %v2091
  %2309 = vmatprep.subr.mxu0 0.0
  %2310 = vmatpush1.msra.mxu0 %v2092
  %2311 = vmatprep.subr.mxu0 0.0
  %2312 = vmatpush1.msra.mxu0 %v2093
  %2313 = vmatprep.subr.mxu0 0.0
  %2314 = vmatpush1.msra.mxu0 %v2094
  %2315 = vmatprep.subr.mxu0 0.0
  %2316 = vmatpush1.msra.mxu0 %v2095
  %2317 = vmatprep.subr.mxu0 0.0
  %2318 = vmatpush1.msra.mxu0 %v2096
  %2319 = vmatprep.subr.mxu0 0.0
  %2320 = vmatpush1.msra.mxu0 %v2097
  %2321 = vmatprep.subr.mxu0 0.0
  %2322 = vmatpush1.msra.mxu0 %v2098
  %2323 = vmatprep.subr.mxu0 0.0
  %2324 = vmatpush1.msra.mxu0 %v2099
  %2325 = vmatprep.subr.mxu0 0.0
  %2326 = vmatpush1.msra.mxu0 %v2100
  %2327 = vmatprep.subr.mxu0 0.0
  %2328 = vmatpush1.msra.mxu0 %v2101
  %2329 = vmatprep.subr.mxu0 0.0
  %2330 = vmatpush1.msra.mxu0 %v2102
  %2331 = vmatprep.subr.mxu0 0.0
  %2332 = vmatpush1.msra.mxu0 %v2103
  %2333 = vmatprep.subr.mxu0 0.0
  %2334 = vmatpush1.msra.mxu0 %v2104
  %2335 = vmatprep.subr.mxu0 0.0
  %2336 = vmatpush1.msra.mxu0 %v2105
  %2337 = vmatprep.subr.mxu0 0.0
  %2338 = vmatpush1.msra.mxu0 %v2106
  %2339 = vmatprep.subr.mxu0 0.0
  %2340 = vmatpush1.msra.mxu0 %v2107
  %2341 = vmatprep.subr.mxu0 0.0
  %2342 = vmatpush1.msra.mxu0 %v2108
  %2343 = vmatprep.subr.mxu0 0.0
  %2344 = vmatpush1.msra.mxu0 %v2109
  %2345 = vmatprep.subr.mxu0 0.0
  %2346 = vmatpush1.msra.mxu0 %v2110
  %2347 = vmatprep.subr.mxu0 0.0
  %2348 = vmatpush1.msra.mxu0 %v2111
  %2349 = vmatprep.subr.mxu0 0.0
  %2350 = vmatpush1.msra.mxu0 %v2112
  %2351 = vmatprep.subr.mxu0 0.0
  %2352 = vmatpush1.msra.mxu0 %v2113
  %2353 = vmatprep.subr.mxu0 0.0
  %2354 = vmatpush1.msra.mxu0 %v2114
  %2355 = vmatprep.subr.mxu0 0.0
  %2356 = vmatpush1.msra.mxu0 %v2115
  %2357 = vmatprep.subr.mxu0 0.0
  %2358 = vmatpush1.msra.mxu0 %v2116
  %2359 = vmatprep.subr.mxu0 0.0
  %2360 = vmatpush1.msra.mxu0 %v2117
  %2361 = vmatprep.subr.mxu0 0.0
  %2362 = vmatpush1.msra.mxu0 %v2118
  %2363 = vmatprep.mubr.f32.mxu0 %v2020
  %2364 = vmatmul.mubr.f32.gmra.mrb[0].mxu0 %v2019
  %v2365 = vpop.f32.mrb[0].mxu0
  %v2366 = vadd.f32 %v2296, %v2365
  %v2367 = vpop.f32.mrb[0].mxu0
  %2368 = vdwg.mxu0
  %2369 = vmatprep.subr.mxu0 0.0
  %2370 = vmatpush1.msra.mxu0 %v2119
  %2371 = vmatprep.subr.mxu0 0.0
  %2372 = vmatpush1.msra.mxu0 %v2120
  %2373 = vmatprep.subr.mxu0 0.0
  %2374 = vmatpush1.msra.mxu0 %v2121
  %2375 = vmatprep.subr.mxu0 0.0
  %2376 = vmatpush1.msra.mxu0 %v2122
  %2377 = vmatprep.subr.mxu0 0.0
  %2378 = vmatpush1.msra.mxu0 %v2123
  %2379 = vmatprep.subr.mxu0 0.0
  %2380 = vmatpush1.msra.mxu0 %v2124
  %2381 = vmatprep.subr.mxu0 0.0
  %2382 = vmatpush1.msra.mxu0 %v2125
  %2383 = vmatprep.subr.mxu0 0.0
  %2384 = vmatpush1.msra.mxu0 %v2126
  %2385 = vmatprep.subr.mxu0 0.0
  %2386 = vmatpush1.msra.mxu0 %v2127
  %2387 = vmatprep.subr.mxu0 0.0
  %2388 = vmatpush1.msra.mxu0 %v2128
  %2389 = vmatprep.subr.mxu0 0.0
  %2390 = vmatpush1.msra.mxu0 %v2129
  %2391 = vmatprep.subr.mxu0 0.0
  %2392 = vmatpush1.msra.mxu0 %v2130
  %2393 = vmatprep.subr.mxu0 0.0
  %2394 = vmatpush1.msra.mxu0 %v2131
  %2395 = vmatprep.subr.mxu0 0.0
  %2396 = vmatpush1.msra.mxu0 %v2132
  %2397 = vmatprep.subr.mxu0 0.0
  %2398 = vmatpush1.msra.mxu0 %v2133
  %2399 = vmatprep.subr.mxu0 0.0
  %2400 = vmatpush1.msra.mxu0 %v2134
  %2401 = vmatprep.subr.mxu0 0.0
  %2402 = vmatpush1.msra.mxu0 %v2135
  %2403 = vmatprep.subr.mxu0 0.0
  %2404 = vmatpush1.msra.mxu0 %v2136
  %2405 = vmatprep.subr.mxu0 0.0
  %2406 = vmatpush1.msra.mxu0 %v2137
  %2407 = vmatprep.subr.mxu0 0.0
  %2408 = vmatpush1.msra.mxu0 %v2138
  %2409 = vmatprep.subr.mxu0 0.0
  %2410 = vmatpush1.msra.mxu0 %v2139
  %2411 = vmatprep.subr.mxu0 0.0
  %2412 = vmatpush1.msra.mxu0 %v2140
  %2413 = vmatprep.subr.mxu0 0.0
  %2414 = vmatpush1.msra.mxu0 %v2141
  %2415 = vmatprep.subr.mxu0 0.0
  %2416 = vmatpush1.msra.mxu0 %v2142
  %2417 = vmatprep.subr.mxu0 0.0
  %2418 = vmatpush1.msra.mxu0 %v2143
  %2419 = vmatprep.subr.mxu0 0.0
  %2420 = vmatpush1.msra.mxu0 %v2144
  %2421 = vmatprep.subr.mxu0 0.0
  %2422 = vmatpush1.msra.mxu0 %v2145
  %2423 = vmatprep.subr.mxu0 0.0
  %2424 = vmatpush1.msra.mxu0 %v2146
  %2425 = vmatprep.subr.mxu0 0.0
  %2426 = vmatpush1.msra.mxu0 %v2147
  %2427 = vmatprep.subr.mxu0 0.0
  %2428 = vmatpush1.msra.mxu0 0.0
  %2429 = vmatprep.subr.mxu0 0.0
  %2430 = vmatpush1.msra.mxu0 0.0
  %2431 = vmatprep.subr.mxu0 0.0
  %2432 = vmatpush1.msra.mxu0 0.0
  %2433 = vmatprep.mubr.f32.mxu0 %v2157
  %2434 = vmatmul.mubr.f32.gmra.mrb[0].mxu0 %v2021
  %v2435 = vpop.f32.mrb[0].mxu0
  %v2436 = vadd.f32 %v2366, %v2435
  %v2437 = vpop.f32.mrb[0].mxu0
  %2438 = vdwg.mxu0
  %v2439 = vmax.f32 %v2436, 0.0
  %v2440 = vld [vmem:[%s5] sm:$0xff]
  %v2441 = vld [vmem:[%s5 + $0x8] sm:$0xff]
  %v2442 = vld [vmem:[%s5 + $0x10] sm:$0xff]
  %v2443 = vld [vmem:[%s5 + $0x18] sm:$0xff]
  %v2444 = vld [vmem:[%s5 + $0x20] sm:$0xff]
  %v2445 = vld [vmem:[%s5 + $0x28] sm:$0xff]
  %v2446 = vld [vmem:[%s5 + $0x30] sm:$0xff]
  %v2447 = vld [vmem:[%s5 + $0x38] sm:$0xff]
  %v2448 = vld [vmem:[%s6] sm:$0x1]
  %v2450 = vlaneseq
  %v2451 = vshrl.u32 %v2450, 7
  %v2452 = vsub.s32 0, %v2451
  %v2453 = vrot.slane %v2448, %v2452
  %vm2455 = vcmask 523264
  %v2457 = vsel %vm2455, %v2439, 0
  %2459 = vmatprep.subr.mxu0 0.0
  %2460 = vmatpush1.msra.mxu0 %v2440
  %2461 = vmatprep.subr.mxu0 0.0
  %2462 = vmatpush1.msra.mxu0 %v2441
  %2463 = vmatprep.subr.mxu0 0.0
  %2464 = vmatpush1.msra.mxu0 %v2442
  %2465 = vmatprep.subr.mxu0 0.0
  %2466 = vmatpush1.msra.mxu0 %v2443
  %2467 = vmatprep.subr.mxu0 0.0
  %2468 = vmatpush1.msra.mxu0 %v2444
  %2469 = vmatprep.subr.mxu0 0.0
  %2470 = vmatpush1.msra.mxu0 %v2445
  %2471 = vmatprep.subr.mxu0 0.0
  %2472 = vmatpush1.msra.mxu0 %v2446
  %2473 = vmatprep.subr.mxu0 0.0
  %2474 = vmatpush1.msra.mxu0 %v2447
  %2475 = vmatprep.subr.mxu0 0.0
  %2476 = vmatpush1.msra.mxu0 0.0
  %2477 = vmatprep.subr.mxu0 0.0
  %2478 = vmatpush1.msra.mxu0 0.0
  %2479 = vmatprep.subr.mxu0 0.0
  %2480 = vmatpush1.msra.mxu0 0.0
  %2481 = vmatprep.subr.mxu0 0.0
  %2482 = vmatpush1.msra.mxu0 0.0
  %2483 = vmatprep.subr.mxu0 0.0
  %2484 = vmatpush1.msra.mxu0 0.0
  %2485 = vmatprep.subr.mxu0 0.0
  %2486 = vmatpush1.msra.mxu0 0.0
  %2487 = vmatprep.subr.mxu0 0.0
  %2488 = vmatpush1.msra.mxu0 0.0
  %2489 = vmatprep.subr.mxu0 0.0
  %2490 = vmatpush1.msra.mxu0 0.0
  %2491 = vmatprep.subr.mxu0 0.0
  %2492 = vmatpush1.msra.mxu0 0.0
  %2493 = vmatprep.subr.mxu0 0.0
  %2494 = vmatpush1.msra.mxu0 0.0
  %2495 = vmatprep.subr.mxu0 0.0
  %2496 = vmatpush1.msra.mxu0 0.0
  %2497 = vmatprep.subr.mxu0 0.0
  %2498 = vmatpush1.msra.mxu0 0.0
  %2499 = vmatprep.subr.mxu0 0.0
  %2500 = vmatpush1.msra.mxu0 0.0
  %2501 = vmatprep.subr.mxu0 0.0
  %2502 = vmatpush1.msra.mxu0 0.0
  %2503 = vmatprep.subr.mxu0 0.0
  %2504 = vmatpush1.msra.mxu0 0.0
  %2505 = vmatprep.subr.mxu0 0.0
  %2506 = vmatpush1.msra.mxu0 0.0
  %2507 = vmatprep.subr.mxu0 0.0
  %2508 = vmatpush1.msra.mxu0 0.0
  %2509 = vmatprep.subr.mxu0 0.0
  %2510 = vmatpush1.msra.mxu0 0.0
  %2511 = vmatprep.subr.mxu0 0.0
  %2512 = vmatpush1.msra.mxu0 0.0
  %2513 = vmatprep.subr.mxu0 0.0
  %2514 = vmatpush1.msra.mxu0 0.0
  %2515 = vmatprep.subr.mxu0 0.0
  %2516 = vmatpush1.msra.mxu0 0.0
  %2517 = vmatprep.subr.mxu0 0.0
  %2518 = vmatpush1.msra.mxu0 0.0
  %2519 = vmatprep.subr.mxu0 0.0
  %2520 = vmatpush1.msra.mxu0 0.0
  %2521 = vmatprep.subr.mxu0 0.0
  %2522 = vmatpush1.msra.mxu0 0.0
  %2523 = vmatprep.mubr.f32.mxu0 0.0
  %2524 = vmatmul.mubr.f32.gmra.mrb[0].mxu0 %v2457
  %v2525 = vpop.f32.mrb[0].mxu0
  %v2526 = vadd.f32 %v2453, %v2525
  %v2527 = vpop.f32.mrb[0].mxu0
  %2528 = vdwg.mxu0
  %vm2529 = vcmask 80896
  %v2530 = vsel %vm2529, %v2526, -inf
  %2531 = vmax.xlane.f32.xlu0 %v2530
  %v2532 = vpop.xlane.xlu0 %2531
  %v2533 = vsub.f32 %v2526, %v2532
  %v2534 = vmul.f32 %v2533, 1.442695
  %v2535 = vpow.pop %v2534
  %v2536 = vsel %vm2529, %v2535, 0.0
  %2537 = vadd.xlane.f32.xlu0 %v2536
  %v2538 = vpop.xlane.xlu0 %2537
  %v2539 = vlog2.pop %v2538
  %v2540 = vmul.f32 %v2539, 0.6931472
  %v2541 = vadd.f32 %v2532, %v2540
  %v2542 = vsub.f32 %v2526, %v2541
  %2543 = vst.msk [vmem:[%s7] sm:$0xff] %vm2529, %v2542
  // Predicated region
  $region30: #{color_net_cnn.7} parent=0 // pred_check
    _
  $region31: #{color_net_cnn.7} parent=0 // pred_check_branch
    %2545 = sbr.rel (0) target = $region33
  $region32: #{color_net_cnn.7} parent=0 // pred_region
    _
  $region33: #{color_net_cnn.7} parent=0 // pred_fallthru
    _
  // Predicated region
  $region34: #{color_net_cnn.7} parent=0 // pred_check
    _
  $region35: #{color_net_cnn.7} parent=0 // pred_check_branch
    %2547 = sbr.rel (0) target = $region37
  $region36: #{color_net_cnn.7} parent=0 // pred_region
    _
  $region37: #{color_net_cnn.7} parent=0 // pred_fallthru
    _

</llo_original>
